<compile_context>
chip_gen: v7x
topology: tpu7x:2x2x1
jax: 0.10.0
libtpu: 0.0.40
codegen_flags: <defaults>
</compile_context>

<pallas_src>
import functools
import math

import jax
import jax.numpy as jnp
from jax import lax
from jax.experimental import pallas as pl
from jax.experimental.pallas import tpu as pltpu


# ----------------------------------------------------------------------------
# Fused kernel: cond pass (mode='w') + main pass (mode='r'), one batch / step
# ----------------------------------------------------------------------------

def _fused_ref_unet_kernel(acp_ref, macp_ref,            # SMEM scalar prefetch (bs,)
                           cond_ref, noise_ref,          # (1, vn, C, S) f32
                           x_ref, ehs_ref,               # (1, C, S), (1, S_txt, D_txt)
                           w_in_t, b_in_c,               # (D, C) bf16, (D, 1) f32
                           wqkv1_t, bqkv1_c,             # (3D, D) bf16, (3D, 1) f32
                           wo1_t, bo1_c,                 # (D, D) bf16, (D, 1) f32
                           wq2_t, bq2_c,                 # (D, D) bf16, (D, 1) f32
                           wkv2, bkv2_r,                 # (D_txt, 2D) bf16, (1, 2D) f32
                           wo2_t, bo2_c,                 # (D, D) bf16, (D, 1) f32
                           w_out_t, b_out_c,             # (C, D) bf16, (C, 1) f32
                           o_ref,                        # (1, C, S) f32
                           *, scale):
    i = pl.program_id(0)
    bf = jnp.bfloat16
    f32 = jnp.float32
    D = w_in_t.shape[0]
    S = x_ref.shape[2]

    def mm(x, y):        # standard (M,K)@(K,N): bf16 MXU, f32 accumulate
        return jnp.dot(x.astype(bf), y.astype(bf), preferred_element_type=f32)

    def nt(x, y):        # x @ y.T (contract last dims of both)
        return lax.dot_general(x.astype(bf), y.astype(bf),
                               (((1,), (1,)), ((), ())),
                               preferred_element_type=f32)

    def softmax_rows(s):  # row softmax over the last (lane) axis, f32 stats
        p = jnp.exp(s - jnp.max(s, axis=-1, keepdims=True))
        return p * pl.reciprocal(jnp.sum(p, axis=-1, keepdims=True), approx=False)

    # ---- cond pass (mode='w'): DDPM add_noise on channel-major latents -----
    a = acp_ref[i]                                   # sqrt(alphas_cumprod[t_i])
    b = macp_ref[i]                                  # sqrt(1 - alphas_cumprod[t_i])
    noisy = a * cond_ref[0] + b * noise_ref[0]       # (vn, C, S) f32
    vn = noisy.shape[0]

    # Lay the main sample and every reference view side by side along lanes:
    # all_cs: (C, (1+vn)*S).  The attn1 [self ; reference] KV concat then
    # happens "for free" as a row-slice of the fused projection below.
    all_cs = jnp.concatenate([x_ref[0]] + [noisy[v] for v in range(vn)], axis=1)

    # 1x1 conv_in + fused attn1 q/k/v projection, feature-major (D on sublanes)
    h_all_t = mm(w_in_t[...], all_cs) + b_in_c[...]          # (D, (1+vn)*S)
    qkv_all_t = mm(wqkv1_t[...], h_all_t) + bqkv1_c[...]     # (3D, (1+vn)*S)

    h_t = h_all_t[:, :S]                                     # main tokens (D, S)
    q1 = qkv_all_t[:D, :S].T                                 # (S, D)   aligned f32 transpose
    k_all_t = qkv_all_t[D:2 * D, :]                          # (D, S + vn*S)
    v_all_t = qkv_all_t[2 * D:, :]                           # (D, S + vn*S)

    # attn1: ReferenceOnlyAttnProc mode='r' -> one joint softmax over
    # [self tokens ; cached reference tokens].
    p1 = softmax_rows(mm(q1, k_all_t) * scale)               # (S, S + vn*S)
    o1_t = nt(v_all_t, p1)                                    # (D, S)
    h_t = h_t + mm(wo1_t[...], o1_t) + bo1_c[...]

    # attn2: cross-attention with encoder_hidden_states (processor not enabled).
    q2 = (mm(wq2_t[...], h_t) + bq2_c[...]).T                 # (S, D)
    kv2 = mm(ehs_ref[0], wkv2[...]) + bkv2_r[...]             # (S_txt, 2D)
    p2 = softmax_rows(nt(q2, kv2[:, :D]) * scale)             # (S, S_txt)
    o2 = mm(p2, kv2[:, D:])                                   # (S, D)
    h_t = h_t + nt(wo2_t[...], o2) + bo2_c[...]

    # 1x1 conv_out, already channel-major -> (C, S); wrapper only reshapes.
    o_ref[0] = (mm(w_out_t[...], h_t) + b_out_c[...]).astype(o_ref.dtype)


def _fused_forward(params, sqrt_acp, sqrt_1macp, cond_cs, noise_cs, x_cs, ehs):
    bs, vn, C, S = cond_cs.shape
    D = params["w_in"].shape[1]
    S_txt, D_txt = ehs.shape[1], ehs.shape[2]
    a1, a2 = params["attn1"], params["attn2"]
    bf = jnp.bfloat16
    f32 = jnp.float32
    # TODO(synk): single-head attention; a multi-head UNet block would use
    #             1/sqrt(head_dim) and per-head softmax.
    scale = 1.0 / math.sqrt(D)

    def col(v):
        return v.reshape(-1, 1).astype(f32)

    def row(v):
        return v.reshape(1, -1).astype(f32)

    # bf16 weights, pre-transposed for the feature-major kernel; QKV/KV fused.
    weights = [
        params["w_in"].T.astype(bf), col(params["b_in"]),
        jnp.concatenate([a1["wq"], a1["wk"], a1["wv"]], axis=1).T.astype(bf),
        col(jnp.concatenate([a1["bq"], a1["bk"], a1["bv"]])),
        a1["wo"].T.astype(bf), col(a1["bo"]),
        a2["wq"].T.astype(bf), col(a2["bq"]),
        jnp.concatenate([a2["wk"], a2["wv"]], axis=1).astype(bf),
        row(jnp.concatenate([a2["bk"], a2["bv"]])),
        a2["wo"].T.astype(bf), col(a2["bo"]),
        params["w_out"].T.astype(bf), col(params["b_out"]),
    ]
    acts = [cond_cs, noise_cs, x_cs, ehs]

    def batch_spec(shape):
        nd = len(shape)
        return pl.BlockSpec((1,) + tuple(shape[1:]),
                            lambda i, *_: (i,) + (0,) * (nd - 1))

    def const_spec(shape):
        nd = len(shape)
        return pl.BlockSpec(tuple(shape), lambda i, *_: (0,) * nd)

    in_specs = ([batch_spec(v.shape) for v in acts]
                + [const_spec(w.shape) for w in weights])

    # Advisory cost estimate so XLA schedules nicely around the custom call.
    s_all = (1 + vn) * S
    mac = (D * C * s_all + 3 * D * D * s_all        # conv_in + fused qkv
           + 2 * S * D * s_all                      # attn1 scores + PV
           + 3 * S * D * D                          # wo1, q2, wo2
           + S_txt * D_txt * 2 * D                  # fused kv2
           + 2 * S * D * S_txt                      # attn2 scores + PV
           + S * D * C)                             # conv_out
    flops = int(2 * mac * bs)
    transcendentals = int(bs * (S * s_all + S * S_txt))
    bytes_accessed = int(sum(int(v.size) * v.dtype.itemsize for v in acts + weights)
                         + bs * C * S * 4)

    grid_spec = pltpu.PrefetchScalarGridSpec(
        num_scalar_prefetch=2,
        grid=(bs,),
        in_specs=in_specs,
        out_specs=pl.BlockSpec((1, C, S), lambda i, *_: (i, 0, 0)),
    )

    return pl.pallas_call(
        functools.partial(_fused_ref_unet_kernel, scale=scale),
        grid_spec=grid_spec,
        out_shape=jax.ShapeDtypeStruct((bs, C, S), x_cs.dtype),
        compiler_params=pltpu.CompilerParams(
            dimension_semantics=("parallel",),
            vmem_limit_bytes=32 * 1024 * 1024),
        cost_estimate=pl.CostEstimate(flops=flops,
                                      transcendentals=transcendentals,
                                      bytes_accessed=bytes_accessed),
    )(sqrt_acp, sqrt_1macp, *acts, *weights)


# ----------------------------------------------------------------------------
# RefOnlyNoisedUNet.forward
# ----------------------------------------------------------------------------

def ref_only_noised_unet_forward(params, sched, sample, timestep,
                                 encoder_hidden_states, cross_attention_kwargs,
                                 noise_rng, training=True):
    cond_lat = cross_attention_kwargs["cond_lat"]            # (bs, vn, c, h, w)
    # TODO(synk): is_cfg_guidance CFG split (separate res0 for batch[0]) not
    #             modeled; the example runs with is_cfg_guidance=False.
    _ = cross_attention_kwargs.get("is_cfg_guidance", False)

    assert cond_lat.shape[0] == 2, (
        "batch size must be 2 include negative condition")

    noise = jax.random.normal(noise_rng, cond_lat.shape, dtype=cond_lat.dtype)

    # Training branch: DDPMScheduler.add_noise then scale_model_input (identity).
    # TODO(synk): eval path (EulerAncestralDiscreteScheduler val_sched) not modeled.
    acp = sched["alphas_cumprod"]
    t = timestep.astype(jnp.int32)
    sqrt_acp = jnp.sqrt(acp[t]).astype(jnp.float32)          # (bs,)
    sqrt_1macp = jnp.sqrt(1.0 - acp[t]).astype(jnp.float32)  # (bs,)

    bs, vn, c, hh, ww = cond_lat.shape
    B, C, H, W = sample.shape

    # Channel-major token slabs: pure reshapes, no wrapper transposes.
    cond_cs = cond_lat.reshape(bs, vn, c, hh * ww)
    noise_cs = noise.reshape(bs, vn, c, hh * ww)
    x_cs = sample.reshape(B, C, H * W)

    out_cs = _fused_forward(params, sqrt_acp, sqrt_1macp,
                            cond_cs, noise_cs, x_cs, encoder_hidden_states)
    return out_cs.reshape(B, C, H, W)


# ----------------------------------------------------------------------------
# Deterministic parameter / scheduler construction
# ----------------------------------------------------------------------------

def make_params(key, c, d, d_txt):
    ks = jax.random.split(key, 16)

    def w(k, shape, scale=0.05):
        return (scale * jax.random.normal(k, shape)).astype(jnp.float32)

    def attn_params(kq, kk, kv, ko, kv_dim):
        return {
            "wq": w(kq, (d, d)), "bq": jnp.zeros((d,), jnp.float32),
            "wk": w(kk, (kv_dim, d)), "bk": jnp.zeros((d,), jnp.float32),
            "wv": w(kv, (kv_dim, d)), "bv": jnp.zeros((d,), jnp.float32),
            "wo": w(ko, (d, d)), "bo": jnp.zeros((d,), jnp.float32),
        }

    return {
        "w_in": w(ks[0], (c, d)), "b_in": jnp.zeros((d,), jnp.float32),
        "attn1": attn_params(ks[1], ks[2], ks[3], ks[4], d),
        "attn2": attn_params(ks[5], ks[6], ks[7], ks[8], d_txt),
        "w_out": w(ks[9], (d, c)), "b_out": jnp.zeros((c,), jnp.float32),
    }


def make_ddpm_schedule(num_train_timesteps=1000, beta_start=1e-4, beta_end=2e-2):
    betas = jnp.linspace(beta_start, beta_end, num_train_timesteps,
                         dtype=jnp.float32)
    alphas_cumprod = jnp.cumprod(1.0 - betas)
    return {"alphas_cumprod": alphas_cumprod}


# ----------------------------------------------------------------------------
# Example run
# ----------------------------------------------------------------------------

if __name__ == "__main__":
    bs, vn, C, H, W = 2, 3, 4, 16, 16     # batch must be 2 (module assertion)
    D, D_txt, S_txt = 128, 128, 8         # D=128 -> lane/sublane aligned activations

    root = jax.random.PRNGKey(0)
    k_par, k_samp, k_cond, k_ehs, k_noise = jax.random.split(root, 5)

    params = make_params(k_par, C, D, D_txt)
    sched = make_ddpm_schedule()

    sample = jax.random.normal(k_samp, (bs, C, H, W), dtype=jnp.float32)
    cond_lat = jax.random.normal(k_cond, (bs, vn, C, H, W), dtype=jnp.float32)
    encoder_hidden_states = jax.random.normal(
        k_ehs, (bs, S_txt, D_txt), dtype=jnp.float32)
    timestep = jnp.array([10, 500], dtype=jnp.int32)

    cross_attention_kwargs = {"cond_lat": cond_lat, "is_cfg_guidance": False}

    out = ref_only_noised_unet_forward(
        params, sched, sample, timestep, encoder_hidden_states,
        cross_attention_kwargs, k_noise, training=True)
    out = jax.block_until_ready(out)

    assert out.shape == (bs, C, H, W), out.shape
    assert bool(jnp.all(jnp.isfinite(out)))
    print("KERNEL_OK")
</pallas_src>

<mosaic_0001>
module attributes {stable_mosaic.version = 11 : i64} {
  func.func @_fused_ref_unet_kernel(%arg0: i32, %arg1: memref<2xf32, #tpu.memory_space<smem>>, %arg2: memref<2xf32, #tpu.memory_space<smem>>, %arg3: memref<1x3x4x256xf32, #tpu.memory_space<vmem>>, %arg4: memref<1x3x4x256xf32, #tpu.memory_space<vmem>>, %arg5: memref<1x4x256xf32, #tpu.memory_space<vmem>>, %arg6: memref<1x8x128xf32, #tpu.memory_space<vmem>>, %arg7: memref<128x4xbf16, #tpu.memory_space<vmem>>, %arg8: memref<128x1xf32, #tpu.memory_space<vmem>>, %arg9: memref<384x128xbf16, #tpu.memory_space<vmem>>, %arg10: memref<384x1xf32, #tpu.memory_space<vmem>>, %arg11: memref<128x128xbf16, #tpu.memory_space<vmem>>, %arg12: memref<128x1xf32, #tpu.memory_space<vmem>>, %arg13: memref<128x128xbf16, #tpu.memory_space<vmem>>, %arg14: memref<128x1xf32, #tpu.memory_space<vmem>>, %arg15: memref<128x256xbf16, #tpu.memory_space<vmem>>, %arg16: memref<1x256xf32, #tpu.memory_space<vmem>>, %arg17: memref<128x128xbf16, #tpu.memory_space<vmem>>, %arg18: memref<128x1xf32, #tpu.memory_space<vmem>>, %arg19: memref<4x128xbf16, #tpu.memory_space<vmem>>, %arg20: memref<4x1xf32, #tpu.memory_space<vmem>>, %arg21: memref<1x4x256xf32, #tpu.memory_space<vmem>>) attributes {dimension_semantics = [#tpu.dimension_semantics<parallel>], iteration_bounds = array<i64: 2>, scalar_prefetch = 2 : i64, scratch_operands = 0 : i64, tpu.core_type = #tpu.core_type<tc>, window_params = [{transform_indices = @transform_0, window_bounds = array<i64: 1, 3, 4, 256>}, {transform_indices = @transform_1, window_bounds = array<i64: 1, 3, 4, 256>}, {transform_indices = @transform_2, window_bounds = array<i64: 1, 4, 256>}, {transform_indices = @transform_3, window_bounds = array<i64: 1, 8, 128>}, {pipeline_mode = #tpu.pipeline_mode<synchronous>, transform_indices = @transform_4, window_bounds = array<i64: 128, 4>}, {pipeline_mode = #tpu.pipeline_mode<synchronous>, transform_indices = @transform_5, window_bounds = array<i64: 128, 1>}, {pipeline_mode = #tpu.pipeline_mode<synchronous>, transform_indices = @transform_6, window_bounds = array<i64: 384, 128>}, {pipeline_mode = #tpu.pipeline_mode<synchronous>, transform_indices = @transform_7, window_bounds = array<i64: 384, 1>}, {pipeline_mode = #tpu.pipeline_mode<synchronous>, transform_indices = @transform_8, window_bounds = array<i64: 128, 128>}, {pipeline_mode = #tpu.pipeline_mode<synchronous>, transform_indices = @transform_9, window_bounds = array<i64: 128, 1>}, {pipeline_mode = #tpu.pipeline_mode<synchronous>, transform_indices = @transform_10, window_bounds = array<i64: 128, 128>}, {pipeline_mode = #tpu.pipeline_mode<synchronous>, transform_indices = @transform_11, window_bounds = array<i64: 128, 1>}, {pipeline_mode = #tpu.pipeline_mode<synchronous>, transform_indices = @transform_12, window_bounds = array<i64: 128, 256>}, {pipeline_mode = #tpu.pipeline_mode<synchronous>, transform_indices = @transform_13, window_bounds = array<i64: 1, 256>}, {pipeline_mode = #tpu.pipeline_mode<synchronous>, transform_indices = @transform_14, window_bounds = array<i64: 128, 128>}, {pipeline_mode = #tpu.pipeline_mode<synchronous>, transform_indices = @transform_15, window_bounds = array<i64: 128, 1>}, {pipeline_mode = #tpu.pipeline_mode<synchronous>, transform_indices = @transform_16, window_bounds = array<i64: 4, 128>}, {pipeline_mode = #tpu.pipeline_mode<synchronous>, transform_indices = @transform_17, window_bounds = array<i64: 4, 1>}, {transform_indices = @transform_18, window_bounds = array<i64: 1, 4, 256>}]} {
    %0 = arith.index_cast %arg0 : i32 to index
    %1 = memref.load %arg1[%0] : memref<2xf32, #tpu.memory_space<smem>>
    %2 = arith.index_cast %arg0 : i32 to index
    %3 = memref.load %arg2[%2] : memref<2xf32, #tpu.memory_space<smem>>
    %c0 = arith.constant 0 : index
    %c0_0 = arith.constant 0 : index
    %c0_1 = arith.constant 0 : index
    %c0_2 = arith.constant 0 : index
    %4 = vector.load %arg3[%c0, %c0_0, %c0_1, %c0_2] : memref<1x3x4x256xf32, #tpu.memory_space<vmem>>, vector<1x3x4x256xf32>
    %5 = vector.shape_cast %4 : vector<1x3x4x256xf32> to vector<3x4x256xf32>
    %6 = vector.broadcast %1 : f32 to vector<3x4x256xf32>
    %7 = arith.mulf %6, %5 : vector<3x4x256xf32>
    %c0_3 = arith.constant 0 : index
    %c0_4 = arith.constant 0 : index
    %c0_5 = arith.constant 0 : index
    %c0_6 = arith.constant 0 : index
    %8 = vector.load %arg4[%c0_3, %c0_4, %c0_5, %c0_6] : memref<1x3x4x256xf32, #tpu.memory_space<vmem>>, vector<1x3x4x256xf32>
    %9 = vector.shape_cast %8 : vector<1x3x4x256xf32> to vector<3x4x256xf32>
    %10 = vector.broadcast %3 : f32 to vector<3x4x256xf32>
    %11 = arith.mulf %10, %9 : vector<3x4x256xf32>
    %12 = arith.addf %7, %11 : vector<3x4x256xf32>
    %c0_7 = arith.constant 0 : index
    %c0_8 = arith.constant 0 : index
    %c0_9 = arith.constant 0 : index
    %13 = vector.load %arg5[%c0_7, %c0_8, %c0_9] : memref<1x4x256xf32, #tpu.memory_space<vmem>>, vector<1x4x256xf32>
    %14 = vector.shape_cast %13 : vector<1x4x256xf32> to vector<4x256xf32>
    %15 = vector.extract_strided_slice %12 {offsets = [0, 0, 0], sizes = [1, 4, 256], strides = [1, 1, 1]} : vector<3x4x256xf32> to vector<1x4x256xf32>
    %16 = vector.shape_cast %15 : vector<1x4x256xf32> to vector<4x256xf32>
    %17 = vector.extract_strided_slice %12 {offsets = [1, 0, 0], sizes = [1, 4, 256], strides = [1, 1, 1]} : vector<3x4x256xf32> to vector<1x4x256xf32>
    %18 = vector.shape_cast %17 : vector<1x4x256xf32> to vector<4x256xf32>
    %19 = vector.extract_strided_slice %12 {offsets = [2, 0, 0], sizes = [1, 4, 256], strides = [1, 1, 1]} : vector<3x4x256xf32> to vector<1x4x256xf32>
    %20 = vector.shape_cast %19 : vector<1x4x256xf32> to vector<4x256xf32>
    %21 = tpu.concatenate %14, %16, %18, %20 in 1 : vector<4x256xf32>, vector<4x256xf32>, vector<4x256xf32>, vector<4x256xf32> -> vector<4x1024xf32>
    %c0_10 = arith.constant 0 : index
    %c0_11 = arith.constant 0 : index
    %22 = vector.load %arg7[%c0_10, %c0_11] : memref<128x4xbf16, #tpu.memory_space<vmem>>, vector<128x4xbf16>
    %23 = arith.truncf %21 : vector<4x1024xf32> to vector<4x1024xbf16>
    %cst = arith.constant dense<0.000000e+00> : vector<128x1024xf32>
    %24 = tpu.matmul %22, %23, %cst {dimension_numbers = #tpu.dot_dimension_numbers<[1], [0], [0], [1], [0, 0, 1, 1], [], []>} : vector<128x4xbf16>, vector<4x1024xbf16>, vector<128x1024xf32> -> vector<128x1024xf32>
    %c0_12 = arith.constant 0 : index
    %c0_13 = arith.constant 0 : index
    %25 = vector.load %arg8[%c0_12, %c0_13] : memref<128x1xf32, #tpu.memory_space<vmem>>, vector<128x1xf32>
    %26 = vector.broadcast %25 : vector<128x1xf32> to vector<128x1024xf32>
    %27 = arith.addf %24, %26 : vector<128x1024xf32>
    %c0_14 = arith.constant 0 : index
    %c0_15 = arith.constant 0 : index
    %28 = vector.load %arg9[%c0_14, %c0_15] : memref<384x128xbf16, #tpu.memory_space<vmem>>, vector<384x128xbf16>
    %29 = arith.truncf %27 : vector<128x1024xf32> to vector<128x1024xbf16>
    %cst_16 = arith.constant dense<0.000000e+00> : vector<384x1024xf32>
    %30 = tpu.matmul %28, %29, %cst_16 {dimension_numbers = #tpu.dot_dimension_numbers<[1], [0], [0], [1], [0, 0, 1, 1], [], []>} : vector<384x128xbf16>, vector<128x1024xbf16>, vector<384x1024xf32> -> vector<384x1024xf32>
    %c0_17 = arith.constant 0 : index
    %c0_18 = arith.constant 0 : index
    %31 = vector.load %arg10[%c0_17, %c0_18] : memref<384x1xf32, #tpu.memory_space<vmem>>, vector<384x1xf32>
    %32 = vector.broadcast %31 : vector<384x1xf32> to vector<384x1024xf32>
    %33 = arith.addf %30, %32 : vector<384x1024xf32>
    %34 = vector.extract_strided_slice %27 {offsets = [0, 0], sizes = [128, 256], strides = [1, 1]} : vector<128x1024xf32> to vector<128x256xf32>
    %35 = vector.extract_strided_slice %33 {offsets = [0, 0], sizes = [128, 256], strides = [1, 1]} : vector<384x1024xf32> to vector<128x256xf32>
    %36 = tpu.transpose %35, [1, 0] : vector<128x256xf32> -> vector<256x128xf32>
    %37 = vector.extract_strided_slice %33 {offsets = [128, 0], sizes = [128, 1024], strides = [1, 1]} : vector<384x1024xf32> to vector<128x1024xf32>
    %38 = vector.extract_strided_slice %33 {offsets = [256, 0], sizes = [128, 1024], strides = [1, 1]} : vector<384x1024xf32> to vector<128x1024xf32>
    %39 = arith.truncf %36 : vector<256x128xf32> to vector<256x128xbf16>
    %40 = arith.truncf %37 : vector<128x1024xf32> to vector<128x1024xbf16>
    %cst_19 = arith.constant dense<0.000000e+00> : vector<256x1024xf32>
    %41 = tpu.matmul %39, %40, %cst_19 {dimension_numbers = #tpu.dot_dimension_numbers<[1], [0], [0], [1], [0, 0, 1, 1], [], []>} : vector<256x128xbf16>, vector<128x1024xbf16>, vector<256x1024xf32> -> vector<256x1024xf32>
    %cst_20 = arith.constant 0.0883883461 : f32
    %42 = vector.broadcast %cst_20 : f32 to vector<256x1024xf32>
    %43 = arith.mulf %41, %42 : vector<256x1024xf32>
    %cst_21 = arith.constant dense<0xFF800000> : vector<256xf32>
    %44 = vector.multi_reduction <maximumf>, %43, %cst_21 [1] : vector<256x1024xf32> to vector<256xf32>
    %45 = vector.shape_cast %44 : vector<256xf32> to vector<256x1xf32>
    %46 = vector.broadcast %45 : vector<256x1xf32> to vector<256x1024xf32>
    %47 = arith.subf %43, %46 : vector<256x1024xf32>
    %48 = math.exp %47 : vector<256x1024xf32>
    %cst_22 = arith.constant dense<0.000000e+00> : vector<256xf32>
    %49 = vector.multi_reduction <add>, %48, %cst_22 [1] : vector<256x1024xf32> to vector<256xf32>
    %50 = vector.shape_cast %49 : vector<256xf32> to vector<256x1xf32>
    %51 = tpu.reciprocal %50 : vector<256x1xf32> -> vector<256x1xf32>
    %52 = vector.broadcast %51 : vector<256x1xf32> to vector<256x1024xf32>
    %53 = arith.mulf %48, %52 : vector<256x1024xf32>
    %54 = arith.truncf %38 : vector<128x1024xf32> to vector<128x1024xbf16>
    %55 = arith.truncf %53 : vector<256x1024xf32> to vector<256x1024xbf16>
    %cst_23 = arith.constant dense<0.000000e+00> : vector<128x256xf32>
    %56 = tpu.matmul %54, %55, %cst_23 {dimension_numbers = #tpu.dot_dimension_numbers<[1], [1], [0], [0], [0, 0, 1, 0], [], []>} : vector<128x1024xbf16>, vector<256x1024xbf16>, vector<128x256xf32> -> vector<128x256xf32>
    %c0_24 = arith.constant 0 : index
    %c0_25 = arith.constant 0 : index
    %57 = vector.load %arg11[%c0_24, %c0_25] : memref<128x128xbf16, #tpu.memory_space<vmem>>, vector<128x128xbf16>
    %58 = arith.truncf %56 : vector<128x256xf32> to vector<128x256xbf16>
    %cst_26 = arith.constant dense<0.000000e+00> : vector<128x256xf32>
    %59 = tpu.matmul %57, %58, %cst_26 {dimension_numbers = #tpu.dot_dimension_numbers<[1], [0], [0], [1], [0, 0, 1, 1], [], []>} : vector<128x128xbf16>, vector<128x256xbf16>, vector<128x256xf32> -> vector<128x256xf32>
    %60 = arith.addf %34, %59 : vector<128x256xf32>
    %c0_27 = arith.constant 0 : index
    %c0_28 = arith.constant 0 : index
    %61 = vector.load %arg12[%c0_27, %c0_28] : memref<128x1xf32, #tpu.memory_space<vmem>>, vector<128x1xf32>
    %62 = vector.broadcast %61 : vector<128x1xf32> to vector<128x256xf32>
    %63 = arith.addf %60, %62 : vector<128x256xf32>
    %c0_29 = arith.constant 0 : index
    %c0_30 = arith.constant 0 : index
    %64 = vector.load %arg13[%c0_29, %c0_30] : memref<128x128xbf16, #tpu.memory_space<vmem>>, vector<128x128xbf16>
    %65 = arith.truncf %63 : vector<128x256xf32> to vector<128x256xbf16>
    %cst_31 = arith.constant dense<0.000000e+00> : vector<128x256xf32>
    %66 = tpu.matmul %64, %65, %cst_31 {dimension_numbers = #tpu.dot_dimension_numbers<[1], [0], [0], [1], [0, 0, 1, 1], [], []>} : vector<128x128xbf16>, vector<128x256xbf16>, vector<128x256xf32> -> vector<128x256xf32>
    %c0_32 = arith.constant 0 : index
    %c0_33 = arith.constant 0 : index
    %67 = vector.load %arg14[%c0_32, %c0_33] : memref<128x1xf32, #tpu.memory_space<vmem>>, vector<128x1xf32>
    %68 = vector.broadcast %67 : vector<128x1xf32> to vector<128x256xf32>
    %69 = arith.addf %66, %68 : vector<128x256xf32>
    %70 = tpu.transpose %69, [1, 0] : vector<128x256xf32> -> vector<256x128xf32>
    %c0_34 = arith.constant 0 : index
    %c0_35 = arith.constant 0 : index
    %c0_36 = arith.constant 0 : index
    %71 = vector.load %arg6[%c0_34, %c0_35, %c0_36] : memref<1x8x128xf32, #tpu.memory_space<vmem>>, vector<1x8x128xf32>
    %72 = vector.shape_cast %71 : vector<1x8x128xf32> to vector<8x128xf32>
    %c0_37 = arith.constant 0 : index
    %c0_38 = arith.constant 0 : index
    %73 = vector.load %arg15[%c0_37, %c0_38] : memref<128x256xbf16, #tpu.memory_space<vmem>>, vector<128x256xbf16>
    %74 = arith.truncf %72 : vector<8x128xf32> to vector<8x128xbf16>
    %cst_39 = arith.constant dense<0.000000e+00> : vector<8x256xf32>
    %75 = tpu.matmul %74, %73, %cst_39 {dimension_numbers = #tpu.dot_dimension_numbers<[1], [0], [0], [1], [0, 0, 1, 1], [], []>} : vector<8x128xbf16>, vector<128x256xbf16>, vector<8x256xf32> -> vector<8x256xf32>
    %c0_40 = arith.constant 0 : index
    %c0_41 = arith.constant 0 : index
    %76 = vector.load %arg16[%c0_40, %c0_41] : memref<1x256xf32, #tpu.memory_space<vmem>>, vector<1x256xf32>
    %77 = vector.broadcast %76 : vector<1x256xf32> to vector<8x256xf32>
    %78 = arith.addf %75, %77 : vector<8x256xf32>
    %79 = vector.extract_strided_slice %78 {offsets = [0, 0], sizes = [8, 128], strides = [1, 1]} : vector<8x256xf32> to vector<8x128xf32>
    %80 = arith.truncf %70 : vector<256x128xf32> to vector<256x128xbf16>
    %81 = arith.truncf %79 : vector<8x128xf32> to vector<8x128xbf16>
    %cst_42 = arith.constant dense<0.000000e+00> : vector<256x8xf32>
    %82 = tpu.matmul %80, %81, %cst_42 {dimension_numbers = #tpu.dot_dimension_numbers<[1], [1], [0], [0], [0, 0, 1, 0], [], []>} : vector<256x128xbf16>, vector<8x128xbf16>, vector<256x8xf32> -> vector<256x8xf32>
    %cst_43 = arith.constant 0.0883883461 : f32
    %83 = vector.broadcast %cst_43 : f32 to vector<256x8xf32>
    %84 = arith.mulf %82, %83 : vector<256x8xf32>
    %cst_44 = arith.constant dense<0xFF800000> : vector<256xf32>
    %85 = vector.multi_reduction <maximumf>, %84, %cst_44 [1] : vector<256x8xf32> to vector<256xf32>
    %86 = vector.shape_cast %85 : vector<256xf32> to vector<256x1xf32>
    %87 = vector.broadcast %86 : vector<256x1xf32> to vector<256x8xf32>
    %88 = arith.subf %84, %87 : vector<256x8xf32>
    %89 = math.exp %88 : vector<256x8xf32>
    %cst_45 = arith.constant dense<0.000000e+00> : vector<256xf32>
    %90 = vector.multi_reduction <add>, %89, %cst_45 [1] : vector<256x8xf32> to vector<256xf32>
    %91 = vector.shape_cast %90 : vector<256xf32> to vector<256x1xf32>
    %92 = tpu.reciprocal %91 : vector<256x1xf32> -> vector<256x1xf32>
    %93 = vector.broadcast %92 : vector<256x1xf32> to vector<256x8xf32>
    %94 = arith.mulf %89, %93 : vector<256x8xf32>
    %95 = vector.extract_strided_slice %78 {offsets = [0, 128], sizes = [8, 128], strides = [1, 1]} : vector<8x256xf32> to vector<8x128xf32>
    %96 = arith.truncf %94 : vector<256x8xf32> to vector<256x8xbf16>
    %97 = arith.truncf %95 : vector<8x128xf32> to vector<8x128xbf16>
    %cst_46 = arith.constant dense<0.000000e+00> : vector<256x128xf32>
    %98 = tpu.matmul %96, %97, %cst_46 {dimension_numbers = #tpu.dot_dimension_numbers<[1], [0], [0], [1], [0, 0, 1, 1], [], []>} : vector<256x8xbf16>, vector<8x128xbf16>, vector<256x128xf32> -> vector<256x128xf32>
    %c0_47 = arith.constant 0 : index
    %c0_48 = arith.constant 0 : index
    %99 = vector.load %arg17[%c0_47, %c0_48] : memref<128x128xbf16, #tpu.memory_space<vmem>>, vector<128x128xbf16>
    %100 = arith.truncf %98 : vector<256x128xf32> to vector<256x128xbf16>
    %cst_49 = arith.constant dense<0.000000e+00> : vector<128x256xf32>
    %101 = tpu.matmul %99, %100, %cst_49 {dimension_numbers = #tpu.dot_dimension_numbers<[1], [1], [0], [0], [0, 0, 1, 0], [], []>} : vector<128x128xbf16>, vector<256x128xbf16>, vector<128x256xf32> -> vector<128x256xf32>
    %102 = arith.addf %63, %101 : vector<128x256xf32>
    %c0_50 = arith.constant 0 : index
    %c0_51 = arith.constant 0 : index
    %103 = vector.load %arg18[%c0_50, %c0_51] : memref<128x1xf32, #tpu.memory_space<vmem>>, vector<128x1xf32>
    %104 = vector.broadcast %103 : vector<128x1xf32> to vector<128x256xf32>
    %105 = arith.addf %102, %104 : vector<128x256xf32>
    %c0_52 = arith.constant 0 : index
    %c0_53 = arith.constant 0 : index
    %106 = vector.load %arg19[%c0_52, %c0_53] : memref<4x128xbf16, #tpu.memory_space<vmem>>, vector<4x128xbf16>
    %107 = arith.truncf %105 : vector<128x256xf32> to vector<128x256xbf16>
    %cst_54 = arith.constant dense<0.000000e+00> : vector<4x256xf32>
    %108 = tpu.matmul %106, %107, %cst_54 {dimension_numbers = #tpu.dot_dimension_numbers<[1], [0], [0], [1], [0, 0, 1, 1], [], []>} : vector<4x128xbf16>, vector<128x256xbf16>, vector<4x256xf32> -> vector<4x256xf32>
    %c0_55 = arith.constant 0 : index
    %c0_56 = arith.constant 0 : index
    %109 = vector.load %arg20[%c0_55, %c0_56] : memref<4x1xf32, #tpu.memory_space<vmem>>, vector<4x1xf32>
    %110 = vector.broadcast %109 : vector<4x1xf32> to vector<4x256xf32>
    %111 = arith.addf %108, %110 : vector<4x256xf32>
    %c0_57 = arith.constant 0 : index
    %c0_58 = arith.constant 0 : index
    %c0_59 = arith.constant 0 : index
    %112 = vector.load %arg21[%c0_57, %c0_58, %c0_59] : memref<1x4x256xf32, #tpu.memory_space<vmem>>, vector<1x4x256xf32>
    %113 = vector.shape_cast %112 : vector<1x4x256xf32> to vector<4x256xf32>
    %114 = vector.shape_cast %111 : vector<4x256xf32> to vector<1x4x256xf32>
    tpu.vector_store %arg21[%c0_57, %c0_58, %c0_59], %114 {strides = array<i32>} : memref<1x4x256xf32, #tpu.memory_space<vmem>>, vector<1x4x256xf32>,
    return
  }
  func.func @transform_0(%arg0: i32, %arg1: memref<2xf32, #tpu.memory_space<smem>>, %arg2: memref<2xf32, #tpu.memory_space<smem>>) -> (i32, i32, i32, i32) {
    %c0_i32 = arith.constant 0 : i32
    %c0_i32_0 = arith.constant 0 : i32
    %c0_i32_1 = arith.constant 0 : i32
    %c0_i32_2 = arith.constant 0 : i32
    return %arg0, %c0_i32, %c0_i32_0, %c0_i32_1 : i32, i32, i32, i32
  }
  func.func @transform_1(%arg0: i32, %arg1: memref<2xf32, #tpu.memory_space<smem>>, %arg2: memref<2xf32, #tpu.memory_space<smem>>) -> (i32, i32, i32, i32) {
    %c0_i32 = arith.constant 0 : i32
    %c0_i32_0 = arith.constant 0 : i32
    %c0_i32_1 = arith.constant 0 : i32
    %c0_i32_2 = arith.constant 0 : i32
    return %arg0, %c0_i32, %c0_i32_0, %c0_i32_1 : i32, i32, i32, i32
  }
  func.func @transform_2(%arg0: i32, %arg1: memref<2xf32, #tpu.memory_space<smem>>, %arg2: memref<2xf32, #tpu.memory_space<smem>>) -> (i32, i32, i32) {
    %c0_i32 = arith.constant 0 : i32
    %c0_i32_0 = arith.constant 0 : i32
    %c0_i32_1 = arith.constant 0 : i32
    return %arg0, %c0_i32, %c0_i32_0 : i32, i32, i32
  }
  func.func @transform_3(%arg0: i32, %arg1: memref<2xf32, #tpu.memory_space<smem>>, %arg2: memref<2xf32, #tpu.memory_space<smem>>) -> (i32, i32, i32) {
    %c0_i32 = arith.constant 0 : i32
    %c0_i32_0 = arith.constant 0 : i32
    %c0_i32_1 = arith.constant 0 : i32
    return %arg0, %c0_i32, %c0_i32_0 : i32, i32, i32
  }
  func.func @transform_4(%arg0: i32, %arg1: memref<2xf32, #tpu.memory_space<smem>>, %arg2: memref<2xf32, #tpu.memory_space<smem>>) -> (i32, i32) {
    %c0_i32 = arith.constant 0 : i32
    %c0_i32_0 = arith.constant 0 : i32
    %c0_i32_1 = arith.constant 0 : i32
    return %c0_i32, %c0_i32_0 : i32, i32
  }
  func.func @transform_5(%arg0: i32, %arg1: memref<2xf32, #tpu.memory_space<smem>>, %arg2: memref<2xf32, #tpu.memory_space<smem>>) -> (i32, i32) {
    %c0_i32 = arith.constant 0 : i32
    %c0_i32_0 = arith.constant 0 : i32
    %c0_i32_1 = arith.constant 0 : i32
    return %c0_i32, %c0_i32_0 : i32, i32
  }
  func.func @transform_6(%arg0: i32, %arg1: memref<2xf32, #tpu.memory_space<smem>>, %arg2: memref<2xf32, #tpu.memory_space<smem>>) -> (i32, i32) {
    %c0_i32 = arith.constant 0 : i32
    %c0_i32_0 = arith.constant 0 : i32
    %c0_i32_1 = arith.constant 0 : i32
    return %c0_i32, %c0_i32_0 : i32, i32
  }
  func.func @transform_7(%arg0: i32, %arg1: memref<2xf32, #tpu.memory_space<smem>>, %arg2: memref<2xf32, #tpu.memory_space<smem>>) -> (i32, i32) {
    %c0_i32 = arith.constant 0 : i32
    %c0_i32_0 = arith.constant 0 : i32
    %c0_i32_1 = arith.constant 0 : i32
    return %c0_i32, %c0_i32_0 : i32, i32
  }
  func.func @transform_8(%arg0: i32, %arg1: memref<2xf32, #tpu.memory_space<smem>>, %arg2: memref<2xf32, #tpu.memory_space<smem>>) -> (i32, i32) {
    %c0_i32 = arith.constant 0 : i32
    %c0_i32_0 = arith.constant 0 : i32
    %c0_i32_1 = arith.constant 0 : i32
    return %c0_i32, %c0_i32_0 : i32, i32
  }
  func.func @transform_9(%arg0: i32, %arg1: memref<2xf32, #tpu.memory_space<smem>>, %arg2: memref<2xf32, #tpu.memory_space<smem>>) -> (i32, i32) {
    %c0_i32 = arith.constant 0 : i32
    %c0_i32_0 = arith.constant 0 : i32
    %c0_i32_1 = arith.constant 0 : i32
    return %c0_i32, %c0_i32_0 : i32, i32
  }
  func.func @transform_10(%arg0: i32, %arg1: memref<2xf32, #tpu.memory_space<smem>>, %arg2: memref<2xf32, #tpu.memory_space<smem>>) -> (i32, i32) {
    %c0_i32 = arith.constant 0 : i32
    %c0_i32_0 = arith.constant 0 : i32
    %c0_i32_1 = arith.constant 0 : i32
    return %c0_i32, %c0_i32_0 : i32, i32
  }
  func.func @transform_11(%arg0: i32, %arg1: memref<2xf32, #tpu.memory_space<smem>>, %arg2: memref<2xf32, #tpu.memory_space<smem>>) -> (i32, i32) {
    %c0_i32 = arith.constant 0 : i32
    %c0_i32_0 = arith.constant 0 : i32
    %c0_i32_1 = arith.constant 0 : i32
    return %c0_i32, %c0_i32_0 : i32, i32
  }
  func.func @transform_12(%arg0: i32, %arg1: memref<2xf32, #tpu.memory_space<smem>>, %arg2: memref<2xf32, #tpu.memory_space<smem>>) -> (i32, i32) {
    %c0_i32 = arith.constant 0 : i32
    %c0_i32_0 = arith.constant 0 : i32
    %c0_i32_1 = arith.constant 0 : i32
    return %c0_i32, %c0_i32_0 : i32, i32
  }
  func.func @transform_13(%arg0: i32, %arg1: memref<2xf32, #tpu.memory_space<smem>>, %arg2: memref<2xf32, #tpu.memory_space<smem>>) -> (i32, i32) {
    %c0_i32 = arith.constant 0 : i32
    %c0_i32_0 = arith.constant 0 : i32
    %c0_i32_1 = arith.constant 0 : i32
    return %c0_i32, %c0_i32_0 : i32, i32
  }
  func.func @transform_14(%arg0: i32, %arg1: memref<2xf32, #tpu.memory_space<smem>>, %arg2: memref<2xf32, #tpu.memory_space<smem>>) -> (i32, i32) {
    %c0_i32 = arith.constant 0 : i32
    %c0_i32_0 = arith.constant 0 : i32
    %c0_i32_1 = arith.constant 0 : i32
    return %c0_i32, %c0_i32_0 : i32, i32
  }
  func.func @transform_15(%arg0: i32, %arg1: memref<2xf32, #tpu.memory_space<smem>>, %arg2: memref<2xf32, #tpu.memory_space<smem>>) -> (i32, i32) {
    %c0_i32 = arith.constant 0 : i32
    %c0_i32_0 = arith.constant 0 : i32
    %c0_i32_1 = arith.constant 0 : i32
    return %c0_i32, %c0_i32_0 : i32, i32
  }
  func.func @transform_16(%arg0: i32, %arg1: memref<2xf32, #tpu.memory_space<smem>>, %arg2: memref<2xf32, #tpu.memory_space<smem>>) -> (i32, i32) {
    %c0_i32 = arith.constant 0 : i32
    %c0_i32_0 = arith.constant 0 : i32
    %c0_i32_1 = arith.constant 0 : i32
    return %c0_i32, %c0_i32_0 : i32, i32
  }
  func.func @transform_17(%arg0: i32, %arg1: memref<2xf32, #tpu.memory_space<smem>>, %arg2: memref<2xf32, #tpu.memory_space<smem>>) -> (i32, i32) {
    %c0_i32 = arith.constant 0 : i32
    %c0_i32_0 = arith.constant 0 : i32
    %c0_i32_1 = arith.constant 0 : i32
    return %c0_i32, %c0_i32_0 : i32, i32
  }
  func.func @transform_18(%arg0: i32, %arg1: memref<2xf32, #tpu.memory_space<smem>>, %arg2: memref<2xf32, #tpu.memory_space<smem>>) -> (i32, i32, i32) {
    %c0_i32 = arith.constant 0 : i32
    %c0_i32_0 = arith.constant 0 : i32
    %c0_i32_1 = arith.constant 0 : i32
    return %arg0, %c0_i32, %c0_i32_0 : i32, i32, i32
  }
}

</mosaic_0001>

<llo_original>
// kernel: tpu_custom_call.1
$region0: #{tpu_custom_call.1}
  #allocation0 [shape = 'u32[]', space=smem, size = 0x4, offset = 0x4, fixed_abs, tag = 'smem constant byte address 0x4 - core index']
  #allocation1 [shape = 'u32[144,128]{1,0:T(1,128)}', space=vmem, size = 0x12000, scoped, tag = 'internal scratch']
  #allocation2 [shape = 's32[1]{0}', space=sflag, size = 0x4, scoped, tag = 'scoped memory for tpu_custom_call.1']
  #allocation3 [shape = 'u8[512]{0}', space=smem, size = 0x200, scoped, tag = 'prefetched SMEM operand 0']
  #allocation4 [shape = 'u8[512]{0}', space=smem, size = 0x200, scoped, tag = 'prefetched SMEM operand 1']
  %s0 = inlined_call_operand.vmem [shape: f32[2], index: 0, kind: input, shape index: {}]
  %s1 = inlined_call_operand.vmem [shape: f32[2], index: 1, kind: input, shape index: {}]
  %s2 = inlined_call_operand.vmem [shape: f32[2,3,4,256], index: 2, kind: input, shape index: {}]
  %s3 = inlined_call_operand.vmem [shape: f32[2,3,4,256], index: 3, kind: input, shape index: {}]
  %s4 = inlined_call_operand.vmem [shape: f32[2,4,256], index: 4, kind: input, shape index: {}]
  %s5 = inlined_call_operand.vmem [shape: f32[2,8,128], index: 5, kind: input, shape index: {}]
  %s6 = inlined_call_operand.vmem [shape: bf16[128,4], index: 6, kind: input, shape index: {}]
  %s7 = inlined_call_operand.vmem [shape: f32[128,1], index: 7, kind: input, shape index: {}]
  %s8 = inlined_call_operand.vmem [shape: bf16[384,128], index: 8, kind: input, shape index: {}]
  %s9 = inlined_call_operand.vmem [shape: f32[384,1], index: 9, kind: input, shape index: {}]
  %s10 = inlined_call_operand.vmem [shape: bf16[128,128], index: 10, kind: input, shape index: {}]
  %s11 = inlined_call_operand.vmem [shape: f32[128,1], index: 11, kind: input, shape index: {}]
  %s12 = inlined_call_operand.vmem [shape: bf16[128,128], index: 12, kind: input, shape index: {}]
  %s13 = inlined_call_operand.vmem [shape: f32[128,1], index: 13, kind: input, shape index: {}]
  %s14 = inlined_call_operand.vmem [shape: bf16[128,256], index: 14, kind: input, shape index: {}]
  %s15 = inlined_call_operand.vmem [shape: f32[1,256], index: 15, kind: input, shape index: {}]
  %s16 = inlined_call_operand.vmem [shape: bf16[128,128], index: 16, kind: input, shape index: {}]
  %s17 = inlined_call_operand.vmem [shape: f32[128,1], index: 17, kind: input, shape index: {}]
  %s18 = inlined_call_operand.vmem [shape: bf16[4,128], index: 18, kind: input, shape index: {}]
  %s19 = inlined_call_operand.vmem [shape: f32[4,1], index: 19, kind: input, shape index: {}]
  %s20 = inlined_call_operand.hbm [shape: f32[2,4,256], index: 20, kind: output, shape index: {}]
  %s21 = sld [smem:[#allocation0]]
  $region105: #{tpu_custom_call.1} parent=0
    _
  %s23 = ssub.s32 1, %s21
  %s24 = scalar_select 0, %s23, %s21
  %s25 = sshll.u32 %s0, 4
  %s26 = int_to_ptr.vmem [resolvable:$true] %s25
  %28 = dma.vmem_to_smem %s26, 16, [#allocation3], [#allocation2]
  %s29 = sshll.u32 %s1, 4
  %s30 = int_to_ptr.vmem [resolvable:$true] %s29
  %32 = dma.vmem_to_smem %s30, 16, [#allocation4], [#allocation2]
  %33 = dma.done [#allocation2], 32
  %34 = sfence
  $region1: #{tpu_custom_call.1} parent=0
    #allocation5 [shape = 'u8[8192]{0}', space=vmem, size = 0x2000, scoped, tag = 'output window, operand 0']
    #allocation6 [shape = 's32[2]{0}', space=sflag, size = 0x8, scoped, tag = 'scoped memory for tpu_custom_call.1']
    %35 = vsyncpa [#allocation6], 0
    %s36 = scalar_lea.sflag [#allocation6], 1
    %37 = vsyncpa %s36, 0
    loop: start=0, step=1, limit=4
    $region2: #{tpu_custom_call.1} parent=1 // loop_pre_header
      _
    $region3: #{tpu_custom_call.1} parent=1 // loop_header
      %s39 = sphi 0, %s43
      %p40 = scmp.ge.s32.totalorder %s39, 4
      %s49 = sphi 0, %s51
      %s52 = sphi 0, %s49
      %s53 = sphi 0, %s52
      %s69 = sphi 0, %s53
      %s75 = sphi 0, %s77
      %s78 = sphi 0, %s75
      %s79 = sphi 0, %s78
      %s95 = sphi 0, %s79
      %s101 = sphi 0, %s103
      %s104 = sphi 0, %s101
      %s105 = sphi 0, %s104
      %s121 = sphi 0, %s105
      %s127 = sphi 0, %s129
      %s130 = sphi 0, %s127
      %s131 = sphi 0, %s130
      %s147 = sphi 0, %s131
      %s151 = sphi 0, %s151
      %s153 = sphi 0, %s151
      %s154 = sphi 0, %s153
      %s168 = sphi 0, %s154
      %s172 = sphi 0, %s172
      %s174 = sphi 0, %s172
      %s175 = sphi 0, %s174
      %s189 = sphi 0, %s175
      %s193 = sphi 0, %s193
      %s195 = sphi 0, %s193
      %s196 = sphi 0, %s195
      %s210 = sphi 0, %s196
      %s214 = sphi 0, %s214
      %s216 = sphi 0, %s214
      %s217 = sphi 0, %s216
      %s231 = sphi 0, %s217
      %s235 = sphi 0, %s235
      %s237 = sphi 0, %s235
      %s238 = sphi 0, %s237
      %s252 = sphi 0, %s238
      %s256 = sphi 0, %s256
      %s258 = sphi 0, %s256
      %s259 = sphi 0, %s258
      %s273 = sphi 0, %s259
      %s277 = sphi 0, %s277
      %s279 = sphi 0, %s277
      %s280 = sphi 0, %s279
      %s294 = sphi 0, %s280
      %s298 = sphi 0, %s298
      %s300 = sphi 0, %s298
      %s301 = sphi 0, %s300
      %s315 = sphi 0, %s301
      %s319 = sphi 0, %s319
      %s321 = sphi 0, %s319
      %s322 = sphi 0, %s321
      %s336 = sphi 0, %s322
      %s340 = sphi 0, %s340
      %s342 = sphi 0, %s340
      %s343 = sphi 0, %s342
      %s357 = sphi 0, %s343
      %s361 = sphi 0, %s361
      %s363 = sphi 0, %s361
      %s364 = sphi 0, %s363
      %s378 = sphi 0, %s364
      %s382 = sphi 0, %s382
      %s384 = sphi 0, %s382
      %s385 = sphi 0, %s384
      %s399 = sphi 0, %s385
      %s403 = sphi 0, %s403
      %s405 = sphi 0, %s403
      %s406 = sphi 0, %s405
      %s420 = sphi 0, %s406
      %s424 = sphi 0, %s424
      %s426 = sphi 0, %s424
      %s427 = sphi 0, %s426
      %s441 = sphi 0, %s427
      %s447 = sphi 0, %s449
      %s450 = sphi 0, %s447
      %s451 = sphi 0, %s450
      %s467 = sphi 0, %s451
    $region4: #{tpu_custom_call.1} parent=1 // loop_header_branch
      %42 = sbr.rel (%p40) target = $region8
    $region5: #{tpu_custom_call.1} parent=1 // loop_body
      %s44 = ssub.s32 %s39, 1
      %s45 = ssub.s32 %s39, 2
      %s46 = sadd.s32 %s39, 1
      %s47 = ssub.s32 %s39, %s46
      %p48 = scmp.eq.s32.totalorder %s47, 0
      %s50 = sadd.s32 %s49, 1
      %s51 = scalar_select %p48, %s49, %s50
      %p54 = pneg %p48
      %p55 = scmp.eq.s32.totalorder %s39, 1
      %p56 = por %p54, %p55
      %p57 = scmp.ne.s32.totalorder %s49, %s52
      %p58 = scmp.eq.s32.totalorder %s39, 0
      %p59 = por %p57, %p58
      %p60 = scmp.ne.s32.totalorder %s49, %s52
      %p61 = scmp.eq.s32.totalorder %s44, 1
      %p62 = por %p60, %p61
      %p63 = scmp.ne.s32.totalorder %s52, %s53
      %p64 = scmp.eq.s32.totalorder %s44, 0
      %p65 = por %p63, %p64
      %p66 = scmp.ne.s32.totalorder %s52, %s53
      %p67 = scmp.eq.s32.totalorder %s45, 1
      %p68 = por %p66, %p67
      %p70 = scmp.ne.s32.totalorder %s53, %s69
      %p71 = scmp.eq.s32.totalorder %s45, 0
      %p72 = por %p70, %p71
      %s73 = ssub.s32 %s39, %s46
      %p74 = scmp.eq.s32.totalorder %s73, 0
      %s76 = sadd.s32 %s75, 1
      %s77 = scalar_select %p74, %s75, %s76
      %p80 = pneg %p74
      %p81 = scmp.eq.s32.totalorder %s39, 1
      %p82 = por %p80, %p81
      %p83 = scmp.ne.s32.totalorder %s75, %s78
      %p84 = scmp.eq.s32.totalorder %s39, 0
      %p85 = por %p83, %p84
      %p86 = scmp.ne.s32.totalorder %s75, %s78
      %p87 = scmp.eq.s32.totalorder %s44, 1
      %p88 = por %p86, %p87
      %p89 = scmp.ne.s32.totalorder %s78, %s79
      %p90 = scmp.eq.s32.totalorder %s44, 0
      %p91 = por %p89, %p90
      %p92 = scmp.ne.s32.totalorder %s78, %s79
      %p93 = scmp.eq.s32.totalorder %s45, 1
      %p94 = por %p92, %p93
      %p96 = scmp.ne.s32.totalorder %s79, %s95
      %p97 = scmp.eq.s32.totalorder %s45, 0
      %p98 = por %p96, %p97
      %s99 = ssub.s32 %s39, %s46
      %p100 = scmp.eq.s32.totalorder %s99, 0
      %s102 = sadd.s32 %s101, 1
      %s103 = scalar_select %p100, %s101, %s102
      %p106 = pneg %p100
      %p107 = scmp.eq.s32.totalorder %s39, 1
      %p108 = por %p106, %p107
      %p109 = scmp.ne.s32.totalorder %s101, %s104
      %p110 = scmp.eq.s32.totalorder %s39, 0
      %p111 = por %p109, %p110
      %p112 = scmp.ne.s32.totalorder %s101, %s104
      %p113 = scmp.eq.s32.totalorder %s44, 1
      %p114 = por %p112, %p113
      %p115 = scmp.ne.s32.totalorder %s104, %s105
      %p116 = scmp.eq.s32.totalorder %s44, 0
      %p117 = por %p115, %p116
      %p118 = scmp.ne.s32.totalorder %s104, %s105
      %p119 = scmp.eq.s32.totalorder %s45, 1
      %p120 = por %p118, %p119
      %p122 = scmp.ne.s32.totalorder %s105, %s121
      %p123 = scmp.eq.s32.totalorder %s45, 0
      %p124 = por %p122, %p123
      %s125 = ssub.s32 %s39, %s46
      %p126 = scmp.eq.s32.totalorder %s125, 0
      %s128 = sadd.s32 %s127, 1
      %s129 = scalar_select %p126, %s127, %s128
      %p132 = pneg %p126
      %p133 = scmp.eq.s32.totalorder %s39, 1
      %p134 = por %p132, %p133
      %p135 = scmp.ne.s32.totalorder %s127, %s130
      %p136 = scmp.eq.s32.totalorder %s39, 0
      %p137 = por %p135, %p136
      %p138 = scmp.ne.s32.totalorder %s127, %s130
      %p139 = scmp.eq.s32.totalorder %s44, 1
      %p140 = por %p138, %p139
      %p141 = scmp.ne.s32.totalorder %s130, %s131
      %p142 = scmp.eq.s32.totalorder %s44, 0
      %p143 = por %p141, %p142
      %p144 = scmp.ne.s32.totalorder %s130, %s131
      %p145 = scmp.eq.s32.totalorder %s45, 1
      %p146 = por %p144, %p145
      %p148 = scmp.ne.s32.totalorder %s131, %s147
      %p149 = scmp.eq.s32.totalorder %s45, 0
      %p150 = por %p148, %p149
      %s152 = sadd.s32 %s151, 1
      %p155 = scmp.eq.s32.totalorder %s39, 1
      %p156 = scmp.ne.s32.totalorder %s151, %s153
      %p157 = scmp.eq.s32.totalorder %s39, 0
      %p158 = por %p156, %p157
      %p159 = scmp.ne.s32.totalorder %s151, %s153
      %p160 = scmp.eq.s32.totalorder %s44, 1
      %p161 = por %p159, %p160
      %p162 = scmp.ne.s32.totalorder %s153, %s154
      %p163 = scmp.eq.s32.totalorder %s44, 0
      %p164 = por %p162, %p163
      %p165 = scmp.ne.s32.totalorder %s153, %s154
      %p166 = scmp.eq.s32.totalorder %s45, 1
      %p167 = por %p165, %p166
      %p169 = scmp.ne.s32.totalorder %s154, %s168
      %p170 = scmp.eq.s32.totalorder %s45, 0
      %p171 = por %p169, %p170
      %s173 = sadd.s32 %s172, 1
      %p176 = scmp.eq.s32.totalorder %s39, 1
      %p177 = scmp.ne.s32.totalorder %s172, %s174
      %p178 = scmp.eq.s32.totalorder %s39, 0
      %p179 = por %p177, %p178
      %p180 = scmp.ne.s32.totalorder %s172, %s174
      %p181 = scmp.eq.s32.totalorder %s44, 1
      %p182 = por %p180, %p181
      %p183 = scmp.ne.s32.totalorder %s174, %s175
      %p184 = scmp.eq.s32.totalorder %s44, 0
      %p185 = por %p183, %p184
      %p186 = scmp.ne.s32.totalorder %s174, %s175
      %p187 = scmp.eq.s32.totalorder %s45, 1
      %p188 = por %p186, %p187
      %p190 = scmp.ne.s32.totalorder %s175, %s189
      %p191 = scmp.eq.s32.totalorder %s45, 0
      %p192 = por %p190, %p191
      %s194 = sadd.s32 %s193, 1
      %p197 = scmp.eq.s32.totalorder %s39, 1
      %p198 = scmp.ne.s32.totalorder %s193, %s195
      %p199 = scmp.eq.s32.totalorder %s39, 0
      %p200 = por %p198, %p199
      %p201 = scmp.ne.s32.totalorder %s193, %s195
      %p202 = scmp.eq.s32.totalorder %s44, 1
      %p203 = por %p201, %p202
      %p204 = scmp.ne.s32.totalorder %s195, %s196
      %p205 = scmp.eq.s32.totalorder %s44, 0
      %p206 = por %p204, %p205
      %p207 = scmp.ne.s32.totalorder %s195, %s196
      %p208 = scmp.eq.s32.totalorder %s45, 1
      %p209 = por %p207, %p208
      %p211 = scmp.ne.s32.totalorder %s196, %s210
      %p212 = scmp.eq.s32.totalorder %s45, 0
      %p213 = por %p211, %p212
      %s215 = sadd.s32 %s214, 1
      %p218 = scmp.eq.s32.totalorder %s39, 1
      %p219 = scmp.ne.s32.totalorder %s214, %s216
      %p220 = scmp.eq.s32.totalorder %s39, 0
      %p221 = por %p219, %p220
      %p222 = scmp.ne.s32.totalorder %s214, %s216
      %p223 = scmp.eq.s32.totalorder %s44, 1
      %p224 = por %p222, %p223
      %p225 = scmp.ne.s32.totalorder %s216, %s217
      %p226 = scmp.eq.s32.totalorder %s44, 0
      %p227 = por %p225, %p226
      %p228 = scmp.ne.s32.totalorder %s216, %s217
      %p229 = scmp.eq.s32.totalorder %s45, 1
      %p230 = por %p228, %p229
      %p232 = scmp.ne.s32.totalorder %s217, %s231
      %p233 = scmp.eq.s32.totalorder %s45, 0
      %p234 = por %p232, %p233
      %s236 = sadd.s32 %s235, 1
      %p239 = scmp.eq.s32.totalorder %s39, 1
      %p240 = scmp.ne.s32.totalorder %s235, %s237
      %p241 = scmp.eq.s32.totalorder %s39, 0
      %p242 = por %p240, %p241
      %p243 = scmp.ne.s32.totalorder %s235, %s237
      %p244 = scmp.eq.s32.totalorder %s44, 1
      %p245 = por %p243, %p244
      %p246 = scmp.ne.s32.totalorder %s237, %s238
      %p247 = scmp.eq.s32.totalorder %s44, 0
      %p248 = por %p246, %p247
      %p249 = scmp.ne.s32.totalorder %s237, %s238
      %p250 = scmp.eq.s32.totalorder %s45, 1
      %p251 = por %p249, %p250
      %p253 = scmp.ne.s32.totalorder %s238, %s252
      %p254 = scmp.eq.s32.totalorder %s45, 0
      %p255 = por %p253, %p254
      %s257 = sadd.s32 %s256, 1
      %p260 = scmp.eq.s32.totalorder %s39, 1
      %p261 = scmp.ne.s32.totalorder %s256, %s258
      %p262 = scmp.eq.s32.totalorder %s39, 0
      %p263 = por %p261, %p262
      %p264 = scmp.ne.s32.totalorder %s256, %s258
      %p265 = scmp.eq.s32.totalorder %s44, 1
      %p266 = por %p264, %p265
      %p267 = scmp.ne.s32.totalorder %s258, %s259
      %p268 = scmp.eq.s32.totalorder %s44, 0
      %p269 = por %p267, %p268
      %p270 = scmp.ne.s32.totalorder %s258, %s259
      %p271 = scmp.eq.s32.totalorder %s45, 1
      %p272 = por %p270, %p271
      %p274 = scmp.ne.s32.totalorder %s259, %s273
      %p275 = scmp.eq.s32.totalorder %s45, 0
      %p276 = por %p274, %p275
      %s278 = sadd.s32 %s277, 1
      %p281 = scmp.eq.s32.totalorder %s39, 1
      %p282 = scmp.ne.s32.totalorder %s277, %s279
      %p283 = scmp.eq.s32.totalorder %s39, 0
      %p284 = por %p282, %p283
      %p285 = scmp.ne.s32.totalorder %s277, %s279
      %p286 = scmp.eq.s32.totalorder %s44, 1
      %p287 = por %p285, %p286
      %p288 = scmp.ne.s32.totalorder %s279, %s280
      %p289 = scmp.eq.s32.totalorder %s44, 0
      %p290 = por %p288, %p289
      %p291 = scmp.ne.s32.totalorder %s279, %s280
      %p292 = scmp.eq.s32.totalorder %s45, 1
      %p293 = por %p291, %p292
      %p295 = scmp.ne.s32.totalorder %s280, %s294
      %p296 = scmp.eq.s32.totalorder %s45, 0
      %p297 = por %p295, %p296
      %s299 = sadd.s32 %s298, 1
      %p302 = scmp.eq.s32.totalorder %s39, 1
      %p303 = scmp.ne.s32.totalorder %s298, %s300
      %p304 = scmp.eq.s32.totalorder %s39, 0
      %p305 = por %p303, %p304
      %p306 = scmp.ne.s32.totalorder %s298, %s300
      %p307 = scmp.eq.s32.totalorder %s44, 1
      %p308 = por %p306, %p307
      %p309 = scmp.ne.s32.totalorder %s300, %s301
      %p310 = scmp.eq.s32.totalorder %s44, 0
      %p311 = por %p309, %p310
      %p312 = scmp.ne.s32.totalorder %s300, %s301
      %p313 = scmp.eq.s32.totalorder %s45, 1
      %p314 = por %p312, %p313
      %p316 = scmp.ne.s32.totalorder %s301, %s315
      %p317 = scmp.eq.s32.totalorder %s45, 0
      %p318 = por %p316, %p317
      %s320 = sadd.s32 %s319, 1
      %p323 = scmp.eq.s32.totalorder %s39, 1
      %p324 = scmp.ne.s32.totalorder %s319, %s321
      %p325 = scmp.eq.s32.totalorder %s39, 0
      %p326 = por %p324, %p325
      %p327 = scmp.ne.s32.totalorder %s319, %s321
      %p328 = scmp.eq.s32.totalorder %s44, 1
      %p329 = por %p327, %p328
      %p330 = scmp.ne.s32.totalorder %s321, %s322
      %p331 = scmp.eq.s32.totalorder %s44, 0
      %p332 = por %p330, %p331
      %p333 = scmp.ne.s32.totalorder %s321, %s322
      %p334 = scmp.eq.s32.totalorder %s45, 1
      %p335 = por %p333, %p334
      %p337 = scmp.ne.s32.totalorder %s322, %s336
      %p338 = scmp.eq.s32.totalorder %s45, 0
      %p339 = por %p337, %p338
      %s341 = sadd.s32 %s340, 1
      %p344 = scmp.eq.s32.totalorder %s39, 1
      %p345 = scmp.ne.s32.totalorder %s340, %s342
      %p346 = scmp.eq.s32.totalorder %s39, 0
      %p347 = por %p345, %p346
      %p348 = scmp.ne.s32.totalorder %s340, %s342
      %p349 = scmp.eq.s32.totalorder %s44, 1
      %p350 = por %p348, %p349
      %p351 = scmp.ne.s32.totalorder %s342, %s343
      %p352 = scmp.eq.s32.totalorder %s44, 0
      %p353 = por %p351, %p352
      %p354 = scmp.ne.s32.totalorder %s342, %s343
      %p355 = scmp.eq.s32.totalorder %s45, 1
      %p356 = por %p354, %p355
      %p358 = scmp.ne.s32.totalorder %s343, %s357
      %p359 = scmp.eq.s32.totalorder %s45, 0
      %p360 = por %p358, %p359
      %s362 = sadd.s32 %s361, 1
      %p365 = scmp.eq.s32.totalorder %s39, 1
      %p366 = scmp.ne.s32.totalorder %s361, %s363
      %p367 = scmp.eq.s32.totalorder %s39, 0
      %p368 = por %p366, %p367
      %p369 = scmp.ne.s32.totalorder %s361, %s363
      %p370 = scmp.eq.s32.totalorder %s44, 1
      %p371 = por %p369, %p370
      %p372 = scmp.ne.s32.totalorder %s363, %s364
      %p373 = scmp.eq.s32.totalorder %s44, 0
      %p374 = por %p372, %p373
      %p375 = scmp.ne.s32.totalorder %s363, %s364
      %p376 = scmp.eq.s32.totalorder %s45, 1
      %p377 = por %p375, %p376
      %p379 = scmp.ne.s32.totalorder %s364, %s378
      %p380 = scmp.eq.s32.totalorder %s45, 0
      %p381 = por %p379, %p380
      %s383 = sadd.s32 %s382, 1
      %p386 = scmp.eq.s32.totalorder %s39, 1
      %p387 = scmp.ne.s32.totalorder %s382, %s384
      %p388 = scmp.eq.s32.totalorder %s39, 0
      %p389 = por %p387, %p388
      %p390 = scmp.ne.s32.totalorder %s382, %s384
      %p391 = scmp.eq.s32.totalorder %s44, 1
      %p392 = por %p390, %p391
      %p393 = scmp.ne.s32.totalorder %s384, %s385
      %p394 = scmp.eq.s32.totalorder %s44, 0
      %p395 = por %p393, %p394
      %p396 = scmp.ne.s32.totalorder %s384, %s385
      %p397 = scmp.eq.s32.totalorder %s45, 1
      %p398 = por %p396, %p397
      %p400 = scmp.ne.s32.totalorder %s385, %s399
      %p401 = scmp.eq.s32.totalorder %s45, 0
      %p402 = por %p400, %p401
      %s404 = sadd.s32 %s403, 1
      %p407 = scmp.eq.s32.totalorder %s39, 1
      %p408 = scmp.ne.s32.totalorder %s403, %s405
      %p409 = scmp.eq.s32.totalorder %s39, 0
      %p410 = por %p408, %p409
      %p411 = scmp.ne.s32.totalorder %s403, %s405
      %p412 = scmp.eq.s32.totalorder %s44, 1
      %p413 = por %p411, %p412
      %p414 = scmp.ne.s32.totalorder %s405, %s406
      %p415 = scmp.eq.s32.totalorder %s44, 0
      %p416 = por %p414, %p415
      %p417 = scmp.ne.s32.totalorder %s405, %s406
      %p418 = scmp.eq.s32.totalorder %s45, 1
      %p419 = por %p417, %p418
      %p421 = scmp.ne.s32.totalorder %s406, %s420
      %p422 = scmp.eq.s32.totalorder %s45, 0
      %p423 = por %p421, %p422
      %s425 = sadd.s32 %s424, 1
      %p428 = scmp.eq.s32.totalorder %s39, 1
      %p429 = scmp.ne.s32.totalorder %s424, %s426
      %p430 = scmp.eq.s32.totalorder %s39, 0
      %p431 = por %p429, %p430
      %p432 = scmp.ne.s32.totalorder %s424, %s426
      %p433 = scmp.eq.s32.totalorder %s44, 1
      %p434 = por %p432, %p433
      %p435 = scmp.ne.s32.totalorder %s426, %s427
      %p436 = scmp.eq.s32.totalorder %s44, 0
      %p437 = por %p435, %p436
      %p438 = scmp.ne.s32.totalorder %s426, %s427
      %p439 = scmp.eq.s32.totalorder %s45, 1
      %p440 = por %p438, %p439
      %p442 = scmp.ne.s32.totalorder %s427, %s441
      %p443 = scmp.eq.s32.totalorder %s45, 0
      %p444 = por %p442, %p443
      %s445 = ssub.s32 %s39, %s46
      %p446 = scmp.eq.s32.totalorder %s445, 0
      %s448 = sadd.s32 %s447, 1
      %s449 = scalar_select %p446, %s447, %s448
      %p452 = pneg %p446
      %p453 = scmp.eq.s32.totalorder %s39, 1
      %p454 = por %p452, %p453
      %p455 = scmp.ne.s32.totalorder %s447, %s450
      %p456 = scmp.eq.s32.totalorder %s39, 0
      %p457 = por %p455, %p456
      %p458 = scmp.ne.s32.totalorder %s447, %s450
      %p459 = scmp.eq.s32.totalorder %s44, 1
      %p460 = por %p458, %p459
      %p461 = scmp.ne.s32.totalorder %s450, %s451
      %p462 = scmp.eq.s32.totalorder %s44, 0
      %p463 = por %p461, %p462
      %p464 = scmp.ne.s32.totalorder %s450, %s451
      %p465 = scmp.eq.s32.totalorder %s45, 1
      %p466 = por %p464, %p465
      %p468 = scmp.ne.s32.totalorder %s451, %s467
      %p469 = scmp.eq.s32.totalorder %s45, 0
      %p470 = por %p468, %p469
      %p471 = scmp.le.s32.totalorder 1, %s39
      %p472 = scmp.lt.s32.totalorder %s39, 3
      %p473 = pnand %p471, %p472
      %p474 = pneg %p473
      // Predicated region
      $region9: #{tpu_custom_call.1} parent=5 // pred_check
        _
      $region10: #{tpu_custom_call.1} parent=5 // pred_check_branch
        %476 = sbr.rel (%p473) target = $region12
      $region11: #{tpu_custom_call.1} parent=5 // pred_region
        %s477 = ssub.s32 %s39, 1
        // Predicated region
        $region13: #{tpu_custom_call.1} parent=11 // pred_check
          %p478 = pneg %p164
        $region14: #{tpu_custom_call.1} parent=11 // pred_check_branch
          %480 = sbr.rel (%p478) target = $region16
        $region15: #{tpu_custom_call.1} parent=11 // pred_region
          _
        $region16: #{tpu_custom_call.1} parent=11 // pred_fallthru
          _
        // Predicated region
        $region17: #{tpu_custom_call.1} parent=11 // pred_check
          %p481 = pneg %p185
        $region18: #{tpu_custom_call.1} parent=11 // pred_check_branch
          %483 = sbr.rel (%p481) target = $region20
        $region19: #{tpu_custom_call.1} parent=11 // pred_region
          _
        $region20: #{tpu_custom_call.1} parent=11 // pred_fallthru
          _
        // Predicated region
        $region21: #{tpu_custom_call.1} parent=11 // pred_check
          %p484 = pneg %p206
        $region22: #{tpu_custom_call.1} parent=11 // pred_check_branch
          %486 = sbr.rel (%p484) target = $region24
        $region23: #{tpu_custom_call.1} parent=11 // pred_region
          _
        $region24: #{tpu_custom_call.1} parent=11 // pred_fallthru
          _
        // Predicated region
        $region25: #{tpu_custom_call.1} parent=11 // pred_check
          %p487 = pneg %p227
        $region26: #{tpu_custom_call.1} parent=11 // pred_check_branch
          %489 = sbr.rel (%p487) target = $region28
        $region27: #{tpu_custom_call.1} parent=11 // pred_region
          _
        $region28: #{tpu_custom_call.1} parent=11 // pred_fallthru
          _
        // Predicated region
        $region29: #{tpu_custom_call.1} parent=11 // pred_check
          %p490 = pneg %p248
        $region30: #{tpu_custom_call.1} parent=11 // pred_check_branch
          %492 = sbr.rel (%p490) target = $region32
        $region31: #{tpu_custom_call.1} parent=11 // pred_region
          _
        $region32: #{tpu_custom_call.1} parent=11 // pred_fallthru
          _
        // Predicated region
        $region33: #{tpu_custom_call.1} parent=11 // pred_check
          %p493 = pneg %p269
        $region34: #{tpu_custom_call.1} parent=11 // pred_check_branch
          %495 = sbr.rel (%p493) target = $region36
        $region35: #{tpu_custom_call.1} parent=11 // pred_region
          _
        $region36: #{tpu_custom_call.1} parent=11 // pred_fallthru
          _
        // Predicated region
        $region37: #{tpu_custom_call.1} parent=11 // pred_check
          %p496 = pneg %p290
        $region38: #{tpu_custom_call.1} parent=11 // pred_check_branch
          %498 = sbr.rel (%p496) target = $region40
        $region39: #{tpu_custom_call.1} parent=11 // pred_region
          _
        $region40: #{tpu_custom_call.1} parent=11 // pred_fallthru
          _
        // Predicated region
        $region41: #{tpu_custom_call.1} parent=11 // pred_check
          %p499 = pneg %p311
        $region42: #{tpu_custom_call.1} parent=11 // pred_check_branch
          %501 = sbr.rel (%p499) target = $region44
        $region43: #{tpu_custom_call.1} parent=11 // pred_region
          _
        $region44: #{tpu_custom_call.1} parent=11 // pred_fallthru
          _
        // Predicated region
        $region45: #{tpu_custom_call.1} parent=11 // pred_check
          %p502 = pneg %p332
        $region46: #{tpu_custom_call.1} parent=11 // pred_check_branch
          %504 = sbr.rel (%p502) target = $region48
        $region47: #{tpu_custom_call.1} parent=11 // pred_region
          _
        $region48: #{tpu_custom_call.1} parent=11 // pred_fallthru
          _
        // Predicated region
        $region49: #{tpu_custom_call.1} parent=11 // pred_check
          %p505 = pneg %p353
        $region50: #{tpu_custom_call.1} parent=11 // pred_check_branch
          %507 = sbr.rel (%p505) target = $region52
        $region51: #{tpu_custom_call.1} parent=11 // pred_region
          _
        $region52: #{tpu_custom_call.1} parent=11 // pred_fallthru
          _
        // Predicated region
        $region53: #{tpu_custom_call.1} parent=11 // pred_check
          %p508 = pneg %p374
        $region54: #{tpu_custom_call.1} parent=11 // pred_check_branch
          %510 = sbr.rel (%p508) target = $region56
        $region55: #{tpu_custom_call.1} parent=11 // pred_region
          _
        $region56: #{tpu_custom_call.1} parent=11 // pred_fallthru
          _
        // Predicated region
        $region57: #{tpu_custom_call.1} parent=11 // pred_check
          %p511 = pneg %p395
        $region58: #{tpu_custom_call.1} parent=11 // pred_check_branch
          %513 = sbr.rel (%p511) target = $region60
        $region59: #{tpu_custom_call.1} parent=11 // pred_region
          _
        $region60: #{tpu_custom_call.1} parent=11 // pred_fallthru
          _
        // Predicated region
        $region61: #{tpu_custom_call.1} parent=11 // pred_check
          %p514 = pneg %p416
        $region62: #{tpu_custom_call.1} parent=11 // pred_check_branch
          %516 = sbr.rel (%p514) target = $region64
        $region63: #{tpu_custom_call.1} parent=11 // pred_region
          _
        $region64: #{tpu_custom_call.1} parent=11 // pred_fallthru
          _
        // Predicated region
        $region65: #{tpu_custom_call.1} parent=11 // pred_check
          %p517 = pneg %p437
        $region66: #{tpu_custom_call.1} parent=11 // pred_check_branch
          %519 = sbr.rel (%p517) target = $region68
        $region67: #{tpu_custom_call.1} parent=11 // pred_region
          _
        $region68: #{tpu_custom_call.1} parent=11 // pred_fallthru
          _
      $region12: #{tpu_custom_call.1} parent=5 // pred_fallthru
        _
      %p520 = scmp.lt.s32.totalorder %s39, 2
      // Predicated region
      $region69: #{tpu_custom_call.1} parent=5 // pred_check
        %p521 = pneg %p520
      $region70: #{tpu_custom_call.1} parent=5 // pred_check_branch
        %523 = sbr.rel (%p521) target = $region72
      $region71: #{tpu_custom_call.1} parent=5 // pred_region
        // Predicated region
        $region73: #{tpu_custom_call.1} parent=71 // pred_check
          %p524 = pneg %p59
        $region74: #{tpu_custom_call.1} parent=71 // pred_check_branch
          %526 = sbr.rel (%p524) target = $region76
        $region75: #{tpu_custom_call.1} parent=71 // pred_region
          %p527 = scmp.lt.s32.totalorder %s39, 1
          %s528 = scalar_select %p527, %s39, 1
          %s529 = smul.addr %s528, 6
          %s530 = smul.addr %s529, 4
          %s531 = scalar_lea.vmem %s2, %s530
        $region76: #{tpu_custom_call.1} parent=71 // pred_fallthru
          _
        // Predicated region
        $region77: #{tpu_custom_call.1} parent=71 // pred_check
          %p532 = pneg %p85
        $region78: #{tpu_custom_call.1} parent=71 // pred_check_branch
          %534 = sbr.rel (%p532) target = $region80
        $region79: #{tpu_custom_call.1} parent=71 // pred_region
          %p535 = scmp.lt.s32.totalorder %s39, 1
          %s536 = scalar_select %p535, %s39, 1
          %s537 = smul.addr %s536, 6
          %s538 = smul.addr %s537, 4
          %s539 = scalar_lea.vmem %s3, %s538
        $region80: #{tpu_custom_call.1} parent=71 // pred_fallthru
          _
        // Predicated region
        $region81: #{tpu_custom_call.1} parent=71 // pred_check
          %p540 = pneg %p111
        $region82: #{tpu_custom_call.1} parent=71 // pred_check_branch
          %542 = sbr.rel (%p540) target = $region84
        $region83: #{tpu_custom_call.1} parent=71 // pred_region
          %p543 = scmp.lt.s32.totalorder %s39, 1
          %s544 = scalar_select %p543, %s39, 1
          %s545 = smul.addr %s544, 2
          %s546 = smul.addr %s545, 4
          %s547 = scalar_lea.vmem %s4, %s546
        $region84: #{tpu_custom_call.1} parent=71 // pred_fallthru
          _
        // Predicated region
        $region85: #{tpu_custom_call.1} parent=71 // pred_check
          %p548 = pneg %p137
        $region86: #{tpu_custom_call.1} parent=71 // pred_check_branch
          %550 = sbr.rel (%p548) target = $region88
        $region87: #{tpu_custom_call.1} parent=71 // pred_region
          %p551 = scmp.lt.s32.totalorder %s39, 1
          %s552 = scalar_select %p551, %s39, 1
          %s553 = smul.addr %s552, 8
          %s554 = scalar_lea.vmem %s5, %s553
        $region88: #{tpu_custom_call.1} parent=71 // pred_fallthru
          _
      $region72: #{tpu_custom_call.1} parent=5 // pred_fallthru
        _
      %p555 = scmp.le.s32.totalorder 1, %s39
      %p556 = scmp.lt.s32.totalorder %s39, 3
      %p557 = pnand %p555, %p556
      %p558 = pneg %p557
      // Predicated region
      $region89: #{tpu_custom_call.1} parent=5 // pred_check
        _
      $region90: #{tpu_custom_call.1} parent=5 // pred_check_branch
        %560 = sbr.rel (%p557) target = $region92
      $region91: #{tpu_custom_call.1} parent=5 // pred_region
        %s561 = ssub.s32 %s39, 1
        %p562 = scmp.lt.s32.totalorder %s44, 1
        %s563 = scalar_select %p562, %s44, 1
        %s564 = smul.addr %s563, 6
        %s565 = smul.addr %s564, 4
        %s566 = scalar_lea.vmem %s2, %s565
        %p567 = pneg %p65
        %p568 = pneg %p62
        %p569 = scmp.lt.s32.totalorder %s44, 1
        %s570 = scalar_select %p569, %s44, 1
        %s571 = smul.addr %s570, 6
        %s572 = smul.addr %s571, 4
        %s573 = scalar_lea.vmem %s3, %s572
        %p574 = pneg %p91
        %p575 = pneg %p88
        %p576 = scmp.lt.s32.totalorder %s44, 1
        %s577 = scalar_select %p576, %s44, 1
        %s578 = smul.addr %s577, 2
        %s579 = smul.addr %s578, 4
        %s580 = scalar_lea.vmem %s4, %s579
        %p581 = pneg %p117
        %p582 = pneg %p114
        %p583 = scmp.lt.s32.totalorder %s44, 1
        %s584 = scalar_select %p583, %s44, 1
        %s585 = smul.addr %s584, 8
        %s586 = scalar_lea.vmem %s5, %s585
        %p587 = pneg %p143
        %p588 = pneg %p140
        %p589 = pneg %p164
        %p590 = pneg %p161
        %p591 = pneg %p185
        %p592 = pneg %p182
        %p593 = pneg %p206
        %p594 = pneg %p203
        %p595 = pneg %p227
        %p596 = pneg %p224
        %p597 = pneg %p248
        %p598 = pneg %p245
        %p599 = pneg %p269
        %p600 = pneg %p266
        %p601 = pneg %p290
        %p602 = pneg %p287
        %p603 = pneg %p311
        %p604 = pneg %p308
        %p605 = pneg %p332
        %p606 = pneg %p329
        %p607 = pneg %p353
        %p608 = pneg %p350
        %p609 = pneg %p374
        %p610 = pneg %p371
        %p611 = pneg %p395
        %p612 = pneg %p392
        %p613 = pneg %p416
        %p614 = pneg %p413
        %p615 = pneg %p437
        %p616 = pneg %p434
        %p617 = pneg %p463
        %p618 = pneg %p460
        %s619 = sand.u32 %s450, 1
        %s620 = scalar_lea.sflag [#allocation6], %s619
        %s621 = sand.u32 %s450, 1
        %s622 = smul.addr %s621, 8
        %s623 = scalar_lea.vmem [#allocation5], %s622
        %p624 = scmp.lt.s32.totalorder %s44, 1
        %s625 = scalar_select %p624, %s44, 1
        %s626 = smul.addr %s625, 6
        %s627 = smul.addr %s626, 4
        %s628 = scalar_lea.vmem %s2, %s627
        %p629 = scmp.lt.s32.totalorder %s44, 1
        %s630 = scalar_select %p629, %s44, 1
        %s631 = smul.addr %s630, 6
        %s632 = smul.addr %s631, 4
        %s633 = scalar_lea.vmem %s3, %s632
        %p634 = scmp.lt.s32.totalorder %s44, 1
        %s635 = scalar_select %p634, %s44, 1
        %s636 = smul.addr %s635, 2
        %s637 = smul.addr %s636, 4
        %s638 = scalar_lea.vmem %s4, %s637
        %p639 = scmp.lt.s32.totalorder %s44, 1
        %s640 = scalar_select %p639, %s44, 1
        %s641 = smul.addr %s640, 8
        %s642 = scalar_lea.vmem %s5, %s641
        %s644 = sld [smem:[#allocation3 + %s44]]
        %s645 = sld [smem:[#allocation4 + %s44]]
        %v646 = vld [vmem:[%s628] sm:$0xff]
        %v647 = vld [vmem:[%s628 + $0x8] sm:$0xff]
        %v648 = vld [vmem:[%s628 + $0x10] sm:$0xff]
        %v649 = vstv %s644
        %v650 = vmul.f32 %v649, %v646
        %v651 = vmul.f32 %v649, %v647
        %v652 = vmul.f32 %v649, %v648
        %v653 = vld [vmem:[%s633] sm:$0xff]
        %v654 = vld [vmem:[%s633 + $0x8] sm:$0xff]
        %v655 = vld [vmem:[%s633 + $0x10] sm:$0xff]
        %v656 = vstv %s645
        %v657 = vmul.f32 %v656, %v653
        %v658 = vmul.f32 %v656, %v654
        %v659 = vmul.f32 %v656, %v655
        %v660 = vadd.f32 %v650, %v657
        %v661 = vadd.f32 %v651, %v658
        %v662 = vadd.f32 %v652, %v659
        %v663 = vld [vmem:[%s638] sm:$0xff]
        %v665 = vcombine.high %v663, %v663
        %v668 = vcombine.high %v660, %v660
        %v671 = vcombine.high %v661, %v661
        %v674 = vcombine.high %v662, %v662
        %v676 = vld [vmem:[%s6] sm:$0xf]
        %v677 = vld [vmem:[%s6 + $0x4] sm:$0xf]
        %v678 = vld [vmem:[%s6 + $0x8] sm:$0xf]
        %v679 = vld [vmem:[%s6 + $0xc] sm:$0xf]
        %v680 = vld [vmem:[%s6 + $0x10] sm:$0xf]
        %v681 = vld [vmem:[%s6 + $0x14] sm:$0xf]
        %v682 = vld [vmem:[%s6 + $0x18] sm:$0xf]
        %v683 = vld [vmem:[%s6 + $0x1c] sm:$0xf]
        %v684 = vld [vmem:[%s6 + $0x20] sm:$0xf]
        %v685 = vld [vmem:[%s6 + $0x24] sm:$0xf]
        %v686 = vld [vmem:[%s6 + $0x28] sm:$0xf]
        %v687 = vld [vmem:[%s6 + $0x2c] sm:$0xf]
        %v688 = vld [vmem:[%s6 + $0x30] sm:$0xf]
        %v689 = vld [vmem:[%s6 + $0x34] sm:$0xf]
        %v690 = vld [vmem:[%s6 + $0x38] sm:$0xf]
        %v691 = vld [vmem:[%s6 + $0x3c] sm:$0xf]
        %v692 = vpack.c.bf16 %v663, %v663
        %v693 = vpack.c.bf16 %v665, %v665
        %v694 = vpack.c.bf16 %v660, %v660
        %v695 = vpack.c.bf16 %v668, %v668
        %v696 = vpack.c.bf16 %v661, %v661
        %v697 = vpack.c.bf16 %v671, %v671
        %v698 = vpack.c.bf16 %v662, %v662
        %v699 = vpack.c.bf16 %v674, %v674
        %v700 = vld [vmem:[%s7] sm:$0xff]
        %v701 = vld [vmem:[%s7 + $0x8] sm:$0xff]
        %v702 = vld [vmem:[%s7 + $0x10] sm:$0xff]
        %v703 = vld [vmem:[%s7 + $0x18] sm:$0xff]
        %v704 = vld [vmem:[%s7 + $0x20] sm:$0xff]
        %v705 = vld [vmem:[%s7 + $0x28] sm:$0xff]
        %v706 = vld [vmem:[%s7 + $0x30] sm:$0xff]
        %v707 = vld [vmem:[%s7 + $0x38] sm:$0xff]
        %v708 = vld [vmem:[%s7 + $0x40] sm:$0xff]
        %v709 = vld [vmem:[%s7 + $0x48] sm:$0xff]
        %v710 = vld [vmem:[%s7 + $0x50] sm:$0xff]
        %v711 = vld [vmem:[%s7 + $0x58] sm:$0xff]
        %v712 = vld [vmem:[%s7 + $0x60] sm:$0xff]
        %v713 = vld [vmem:[%s7 + $0x68] sm:$0xff]
        %v714 = vld [vmem:[%s7 + $0x70] sm:$0xff]
        %v715 = vld [vmem:[%s7 + $0x78] sm:$0xff]
        %717 = vset.pattern.permute.xlu0 0
        %718 = vperm.xlu0 %717, %v700
        %v719 = vpop.permute.xlu0 %718
        %722 = vset.pattern.permute.xlu0 0
        %723 = vperm.xlu0 %722, %v701
        %v724 = vpop.permute.xlu0 %723
        %727 = vset.pattern.permute.xlu0 0
        %728 = vperm.xlu0 %727, %v702
        %v729 = vpop.permute.xlu0 %728
        %732 = vset.pattern.permute.xlu0 0
        %733 = vperm.xlu0 %732, %v703
        %v734 = vpop.permute.xlu0 %733
        %737 = vset.pattern.permute.xlu0 0
        %738 = vperm.xlu0 %737, %v704
        %v739 = vpop.permute.xlu0 %738
        %742 = vset.pattern.permute.xlu0 0
        %743 = vperm.xlu0 %742, %v705
        %v744 = vpop.permute.xlu0 %743
        %747 = vset.pattern.permute.xlu0 0
        %748 = vperm.xlu0 %747, %v706
        %v749 = vpop.permute.xlu0 %748
        %752 = vset.pattern.permute.xlu0 0
        %753 = vperm.xlu0 %752, %v707
        %v754 = vpop.permute.xlu0 %753
        %757 = vset.pattern.permute.xlu0 0
        %758 = vperm.xlu0 %757, %v708
        %v759 = vpop.permute.xlu0 %758
        %762 = vset.pattern.permute.xlu0 0
        %763 = vperm.xlu0 %762, %v709
        %v764 = vpop.permute.xlu0 %763
        %767 = vset.pattern.permute.xlu0 0
        %768 = vperm.xlu0 %767, %v710
        %v769 = vpop.permute.xlu0 %768
        %772 = vset.pattern.permute.xlu0 0
        %773 = vperm.xlu0 %772, %v711
        %v774 = vpop.permute.xlu0 %773
        %777 = vset.pattern.permute.xlu0 0
        %778 = vperm.xlu0 %777, %v712
        %v779 = vpop.permute.xlu0 %778
        %782 = vset.pattern.permute.xlu0 0
        %783 = vperm.xlu0 %782, %v713
        %v784 = vpop.permute.xlu0 %783
        %787 = vset.pattern.permute.xlu0 0
        %788 = vperm.xlu0 %787, %v714
        %v789 = vpop.permute.xlu0 %788
        %792 = vset.pattern.permute.xlu0 0
        %793 = vperm.xlu0 %792, %v715
        %v794 = vpop.permute.xlu0 %793
        %v812 = vunpack.c.l.b16 %v676
        %v813 = vunpack.c.l.b16 %v677
        %v814 = vunpack.c.l.b16 %v678
        %v815 = vunpack.c.l.b16 %v679
        %v816 = vunpack.c.l.b16 %v680
        %v817 = vunpack.c.l.b16 %v681
        %v818 = vunpack.c.l.b16 %v682
        %v819 = vunpack.c.l.b16 %v683
        %v820 = vunpack.c.l.b16 %v684
        %v821 = vunpack.c.l.b16 %v685
        %v822 = vunpack.c.l.b16 %v686
        %v823 = vunpack.c.l.b16 %v687
        %v824 = vunpack.c.l.b16 %v688
        %v825 = vunpack.c.l.b16 %v689
        %v826 = vunpack.c.l.b16 %v690
        %v827 = vunpack.c.l.b16 %v691
        %v828 = vpack.c.b16 %v813, %v812
        %v829 = vpack.c.b16 %v815, %v814
        %v830 = vpack.c.b16 %v817, %v816
        %v831 = vpack.c.b16 %v819, %v818
        %v832 = vpack.c.b16 %v821, %v820
        %v833 = vpack.c.b16 %v823, %v822
        %v834 = vpack.c.b16 %v825, %v824
        %v835 = vpack.c.b16 %v827, %v826
        %vm836 = vcmask 31744
        %v838 = vsel %vm836, %v828, 0
        %v841 = vsel %vm836, %v829, 0
        %v844 = vsel %vm836, %v830, 0
        %v847 = vsel %vm836, %v831, 0
        %v850 = vsel %vm836, %v832, 0
        %v853 = vsel %vm836, %v833, 0
        %v856 = vsel %vm836, %v834, 0
        %v859 = vsel %vm836, %v835, 0
        %vm861 = vcmask 1041408
        %v863 = vsel %vm861, %v692, 0
        %v866 = vsel %vm861, %v693, 0
        %v869 = vsel %vm861, %v694, 0
        %v872 = vsel %vm861, %v695, 0
        %v875 = vsel %vm861, %v696, 0
        %v878 = vsel %vm861, %v697, 0
        %v881 = vsel %vm861, %v698, 0
        %v884 = vsel %vm861, %v699, 0
        %886 = vmatprep.subr.bf16.mxu0 %v866
        %887 = vmatpush1.bf16.msra.mxu0 %v863
        %888 = vmatprep.subr.bf16.mxu0 0
        %889 = vmatpush1.bf16.msra.mxu0 0
        %890 = vmatprep.subr.bf16.mxu0 0
        %891 = vmatpush1.bf16.msra.mxu0 0
        %892 = vmatprep.subr.bf16.mxu0 0
        %893 = vmatpush1.bf16.msra.mxu0 0
        %894 = vmatprep.subr.bf16.mxu0 0
        %895 = vmatpush1.bf16.msra.mxu0 0
        %896 = vmatprep.subr.bf16.mxu0 0
        %897 = vmatpush1.bf16.msra.mxu0 0
        %898 = vmatprep.subr.bf16.mxu0 0
        %899 = vmatpush1.bf16.msra.mxu0 0
        %900 = vmatprep.subr.bf16.mxu0 0
        %901 = vmatpush1.bf16.msra.mxu0 0
        %902 = vmatprep.subr.bf16.mxu0 0
        %903 = vmatpush1.bf16.msra.mxu0 0
        %904 = vmatprep.subr.bf16.mxu0 0
        %905 = vmatpush1.bf16.msra.mxu0 0
        %906 = vmatprep.subr.bf16.mxu0 0
        %907 = vmatpush1.bf16.msra.mxu0 0
        %908 = vmatprep.subr.bf16.mxu0 0
        %909 = vmatpush1.bf16.msra.mxu0 0
        %910 = vmatprep.subr.bf16.mxu0 0
        %911 = vmatpush1.bf16.msra.mxu0 0
        %912 = vmatprep.subr.bf16.mxu0 0
        %913 = vmatpush1.bf16.msra.mxu0 0
        %914 = vmatprep.subr.bf16.mxu0 0
        %915 = vmatpush1.bf16.msra.mxu0 0
        %916 = vmatprep.subr.bf16.mxu0 0
        %917 = vmatpush1.bf16.msra.mxu0 0
        %918 = vmatprep.mubr.bf16.mxu0 0
        %919 = vmatmul.mubr.bf16.gmra.mrb[0].mxu0 %v838
        %v920 = vpop.f32.mrb[0].mxu0
        %v921 = vadd.f32 %v719, %v920
        %v922 = vpop.f32.mrb[0].mxu0
        %v923 = vadd.f32 %v719, %v922
        %v924 = vpop.f32.mrb[0].mxu0
        %v925 = vadd.f32 %v724, %v924
        %v926 = vpop.f32.mrb[0].mxu0
        %v927 = vadd.f32 %v724, %v926
        %928 = vmatprep.mubr.bf16.mxu0 0
        %929 = vmatmul.mubr.bf16.gmra.mrb[0].mxu0 %v841
        %v930 = vpop.f32.mrb[0].mxu0
        %v931 = vadd.f32 %v729, %v930
        %v932 = vpop.f32.mrb[0].mxu0
        %v933 = vadd.f32 %v729, %v932
        %v934 = vpop.f32.mrb[0].mxu0
        %v935 = vadd.f32 %v734, %v934
        %v936 = vpop.f32.mrb[0].mxu0
        %v937 = vadd.f32 %v734, %v936
        %938 = vmatprep.mubr.bf16.mxu0 0
        %939 = vmatmul.mubr.bf16.gmra.mrb[0].mxu0 %v844
        %v940 = vpop.f32.mrb[0].mxu0
        %v941 = vadd.f32 %v739, %v940
        %v942 = vpop.f32.mrb[0].mxu0
        %v943 = vadd.f32 %v739, %v942
        %v944 = vpop.f32.mrb[0].mxu0
        %v945 = vadd.f32 %v744, %v944
        %v946 = vpop.f32.mrb[0].mxu0
        %v947 = vadd.f32 %v744, %v946
        %948 = vmatprep.mubr.bf16.mxu0 0
        %949 = vmatmul.mubr.bf16.gmra.mrb[0].mxu0 %v847
        %v950 = vpop.f32.mrb[0].mxu0
        %v951 = vadd.f32 %v749, %v950
        %v952 = vpop.f32.mrb[0].mxu0
        %v953 = vadd.f32 %v749, %v952
        %v954 = vpop.f32.mrb[0].mxu0
        %v955 = vadd.f32 %v754, %v954
        %v956 = vpop.f32.mrb[0].mxu0
        %v957 = vadd.f32 %v754, %v956
        %958 = vmatprep.mubr.bf16.mxu0 0
        %959 = vmatmul.mubr.bf16.gmra.mrb[0].mxu0 %v850
        %v960 = vpop.f32.mrb[0].mxu0
        %v961 = vadd.f32 %v759, %v960
        %v962 = vpop.f32.mrb[0].mxu0
        %v963 = vadd.f32 %v759, %v962
        %v964 = vpop.f32.mrb[0].mxu0
        %v965 = vadd.f32 %v764, %v964
        %v966 = vpop.f32.mrb[0].mxu0
        %v967 = vadd.f32 %v764, %v966
        %968 = vmatprep.mubr.bf16.mxu0 0
        %969 = vmatmul.mubr.bf16.gmra.mrb[0].mxu0 %v853
        %v970 = vpop.f32.mrb[0].mxu0
        %v971 = vadd.f32 %v769, %v970
        %v972 = vpop.f32.mrb[0].mxu0
        %v973 = vadd.f32 %v769, %v972
        %v974 = vpop.f32.mrb[0].mxu0
        %v975 = vadd.f32 %v774, %v974
        %v976 = vpop.f32.mrb[0].mxu0
        %v977 = vadd.f32 %v774, %v976
        %978 = vmatprep.mubr.bf16.mxu0 0
        %979 = vmatmul.mubr.bf16.gmra.mrb[0].mxu0 %v856
        %v980 = vpop.f32.mrb[0].mxu0
        %v981 = vadd.f32 %v779, %v980
        %v982 = vpop.f32.mrb[0].mxu0
        %v983 = vadd.f32 %v779, %v982
        %v984 = vpop.f32.mrb[0].mxu0
        %v985 = vadd.f32 %v784, %v984
        %v986 = vpop.f32.mrb[0].mxu0
        %v987 = vadd.f32 %v784, %v986
        %988 = vmatprep.mubr.bf16.mxu0 0
        %989 = vmatmul.mubr.bf16.gmra.mrb[0].mxu0 %v859
        %v990 = vpop.f32.mrb[0].mxu0
        %v991 = vadd.f32 %v789, %v990
        %v992 = vpop.f32.mrb[0].mxu0
        %v993 = vadd.f32 %v789, %v992
        %v994 = vpop.f32.mrb[0].mxu0
        %v995 = vadd.f32 %v794, %v994
        %v996 = vpop.f32.mrb[0].mxu0
        %v997 = vadd.f32 %v794, %v996
        %998 = vdwg.mxu0
        %999 = vmatprep.subr.bf16.mxu0 %v872
        %1000 = vmatpush1.bf16.msra.mxu0 %v869
        %1001 = vmatprep.subr.bf16.mxu0 0
        %1002 = vmatpush1.bf16.msra.mxu0 0
        %1003 = vmatprep.subr.bf16.mxu0 0
        %1004 = vmatpush1.bf16.msra.mxu0 0
        %1005 = vmatprep.subr.bf16.mxu0 0
        %1006 = vmatpush1.bf16.msra.mxu0 0
        %1007 = vmatprep.subr.bf16.mxu0 0
        %1008 = vmatpush1.bf16.msra.mxu0 0
        %1009 = vmatprep.subr.bf16.mxu0 0
        %1010 = vmatpush1.bf16.msra.mxu0 0
        %1011 = vmatprep.subr.bf16.mxu0 0
        %1012 = vmatpush1.bf16.msra.mxu0 0
        %1013 = vmatprep.subr.bf16.mxu0 0
        %1014 = vmatpush1.bf16.msra.mxu0 0
        %1015 = vmatprep.subr.bf16.mxu0 0
        %1016 = vmatpush1.bf16.msra.mxu0 0
        %1017 = vmatprep.subr.bf16.mxu0 0
        %1018 = vmatpush1.bf16.msra.mxu0 0
        %1019 = vmatprep.subr.bf16.mxu0 0
        %1020 = vmatpush1.bf16.msra.mxu0 0
        %1021 = vmatprep.subr.bf16.mxu0 0
        %1022 = vmatpush1.bf16.msra.mxu0 0
        %1023 = vmatprep.subr.bf16.mxu0 0
        %1024 = vmatpush1.bf16.msra.mxu0 0
        %1025 = vmatprep.subr.bf16.mxu0 0
        %1026 = vmatpush1.bf16.msra.mxu0 0
        %1027 = vmatprep.subr.bf16.mxu0 0
        %1028 = vmatpush1.bf16.msra.mxu0 0
        %1029 = vmatprep.subr.bf16.mxu0 0
        %1030 = vmatpush1.bf16.msra.mxu0 0
        %1031 = vmatprep.mubr.bf16.mxu0 0
        %1032 = vmatmul.mubr.bf16.gmra.mrb[0].mxu0 %v838
        %v1033 = vpop.f32.mrb[0].mxu0
        %v1034 = vadd.f32 %v719, %v1033
        %v1035 = vpop.f32.mrb[0].mxu0
        %v1036 = vadd.f32 %v719, %v1035
        %v1037 = vpop.f32.mrb[0].mxu0
        %v1038 = vadd.f32 %v724, %v1037
        %v1039 = vpop.f32.mrb[0].mxu0
        %v1040 = vadd.f32 %v724, %v1039
        %1041 = vmatprep.mubr.bf16.mxu0 0
        %1042 = vmatmul.mubr.bf16.gmra.mrb[0].mxu0 %v841
        %v1043 = vpop.f32.mrb[0].mxu0
        %v1044 = vadd.f32 %v729, %v1043
        %v1045 = vpop.f32.mrb[0].mxu0
        %v1046 = vadd.f32 %v729, %v1045
        %v1047 = vpop.f32.mrb[0].mxu0
        %v1048 = vadd.f32 %v734, %v1047
        %v1049 = vpop.f32.mrb[0].mxu0
        %v1050 = vadd.f32 %v734, %v1049
        %1051 = vmatprep.mubr.bf16.mxu0 0
        %1052 = vmatmul.mubr.bf16.gmra.mrb[0].mxu0 %v844
        %v1053 = vpop.f32.mrb[0].mxu0
        %v1054 = vadd.f32 %v739, %v1053
        %v1055 = vpop.f32.mrb[0].mxu0
        %v1056 = vadd.f32 %v739, %v1055
        %v1057 = vpop.f32.mrb[0].mxu0
        %v1058 = vadd.f32 %v744, %v1057
        %v1059 = vpop.f32.mrb[0].mxu0
        %v1060 = vadd.f32 %v744, %v1059
        %1061 = vmatprep.mubr.bf16.mxu0 0
        %1062 = vmatmul.mubr.bf16.gmra.mrb[0].mxu0 %v847
        %v1063 = vpop.f32.mrb[0].mxu0
        %v1064 = vadd.f32 %v749, %v1063
        %v1065 = vpop.f32.mrb[0].mxu0
        %v1066 = vadd.f32 %v749, %v1065
        %v1067 = vpop.f32.mrb[0].mxu0
        %v1068 = vadd.f32 %v754, %v1067
        %v1069 = vpop.f32.mrb[0].mxu0
        %v1070 = vadd.f32 %v754, %v1069
        %1071 = vmatprep.mubr.bf16.mxu0 0
        %1072 = vmatmul.mubr.bf16.gmra.mrb[0].mxu0 %v850
        %v1073 = vpop.f32.mrb[0].mxu0
        %v1074 = vadd.f32 %v759, %v1073
        %v1075 = vpop.f32.mrb[0].mxu0
        %v1076 = vadd.f32 %v759, %v1075
        %v1077 = vpop.f32.mrb[0].mxu0
        %v1078 = vadd.f32 %v764, %v1077
        %v1079 = vpop.f32.mrb[0].mxu0
        %v1080 = vadd.f32 %v764, %v1079
        %1081 = vmatprep.mubr.bf16.mxu0 0
        %1082 = vmatmul.mubr.bf16.gmra.mrb[0].mxu0 %v853
        %v1083 = vpop.f32.mrb[0].mxu0
        %v1084 = vadd.f32 %v769, %v1083
        %v1085 = vpop.f32.mrb[0].mxu0
        %v1086 = vadd.f32 %v769, %v1085
        %v1087 = vpop.f32.mrb[0].mxu0
        %v1088 = vadd.f32 %v774, %v1087
        %v1089 = vpop.f32.mrb[0].mxu0
        %v1090 = vadd.f32 %v774, %v1089
        %1091 = vmatprep.mubr.bf16.mxu0 0
        %1092 = vmatmul.mubr.bf16.gmra.mrb[0].mxu0 %v856
        %v1093 = vpop.f32.mrb[0].mxu0
        %v1094 = vadd.f32 %v779, %v1093
        %v1095 = vpop.f32.mrb[0].mxu0
        %v1096 = vadd.f32 %v779, %v1095
        %v1097 = vpop.f32.mrb[0].mxu0
        %v1098 = vadd.f32 %v784, %v1097
        %v1099 = vpop.f32.mrb[0].mxu0
        %v1100 = vadd.f32 %v784, %v1099
        %1101 = vmatprep.mubr.bf16.mxu0 0
        %1102 = vmatmul.mubr.bf16.gmra.mrb[0].mxu0 %v859
        %v1103 = vpop.f32.mrb[0].mxu0
        %v1104 = vadd.f32 %v789, %v1103
        %v1105 = vpop.f32.mrb[0].mxu0
        %v1106 = vadd.f32 %v789, %v1105
        %v1107 = vpop.f32.mrb[0].mxu0
        %v1108 = vadd.f32 %v794, %v1107
        %v1109 = vpop.f32.mrb[0].mxu0
        %v1110 = vadd.f32 %v794, %v1109
        %1111 = vdwg.mxu0
        %1112 = vmatprep.subr.bf16.mxu0 %v878
        %1113 = vmatpush1.bf16.msra.mxu0 %v875
        %1114 = vmatprep.subr.bf16.mxu0 0
        %1115 = vmatpush1.bf16.msra.mxu0 0
        %1116 = vmatprep.subr.bf16.mxu0 0
        %1117 = vmatpush1.bf16.msra.mxu0 0
        %1118 = vmatprep.subr.bf16.mxu0 0
        %1119 = vmatpush1.bf16.msra.mxu0 0
        %1120 = vmatprep.subr.bf16.mxu0 0
        %1121 = vmatpush1.bf16.msra.mxu0 0
        %1122 = vmatprep.subr.bf16.mxu0 0
        %1123 = vmatpush1.bf16.msra.mxu0 0
        %1124 = vmatprep.subr.bf16.mxu0 0
        %1125 = vmatpush1.bf16.msra.mxu0 0
        %1126 = vmatprep.subr.bf16.mxu0 0
        %1127 = vmatpush1.bf16.msra.mxu0 0
        %1128 = vmatprep.subr.bf16.mxu0 0
        %1129 = vmatpush1.bf16.msra.mxu0 0
        %1130 = vmatprep.subr.bf16.mxu0 0
        %1131 = vmatpush1.bf16.msra.mxu0 0
        %1132 = vmatprep.subr.bf16.mxu0 0
        %1133 = vmatpush1.bf16.msra.mxu0 0
        %1134 = vmatprep.subr.bf16.mxu0 0
        %1135 = vmatpush1.bf16.msra.mxu0 0
        %1136 = vmatprep.subr.bf16.mxu0 0
        %1137 = vmatpush1.bf16.msra.mxu0 0
        %1138 = vmatprep.subr.bf16.mxu0 0
        %1139 = vmatpush1.bf16.msra.mxu0 0
        %1140 = vmatprep.subr.bf16.mxu0 0
        %1141 = vmatpush1.bf16.msra.mxu0 0
        %1142 = vmatprep.subr.bf16.mxu0 0
        %1143 = vmatpush1.bf16.msra.mxu0 0
        %1144 = vmatprep.mubr.bf16.mxu0 0
        %1145 = vmatmul.mubr.bf16.gmra.mrb[0].mxu0 %v838
        %v1146 = vpop.f32.mrb[0].mxu0
        %v1147 = vadd.f32 %v719, %v1146
        %v1148 = vpop.f32.mrb[0].mxu0
        %v1149 = vadd.f32 %v719, %v1148
        %v1150 = vpop.f32.mrb[0].mxu0
        %v1151 = vadd.f32 %v724, %v1150
        %v1152 = vpop.f32.mrb[0].mxu0
        %v1153 = vadd.f32 %v724, %v1152
        %1154 = vmatprep.mubr.bf16.mxu0 0
        %1155 = vmatmul.mubr.bf16.gmra.mrb[0].mxu0 %v841
        %v1156 = vpop.f32.mrb[0].mxu0
        %v1157 = vadd.f32 %v729, %v1156
        %v1158 = vpop.f32.mrb[0].mxu0
        %v1159 = vadd.f32 %v729, %v1158
        %v1160 = vpop.f32.mrb[0].mxu0
        %v1161 = vadd.f32 %v734, %v1160
        %v1162 = vpop.f32.mrb[0].mxu0
        %v1163 = vadd.f32 %v734, %v1162
        %1164 = vmatprep.mubr.bf16.mxu0 0
        %1165 = vmatmul.mubr.bf16.gmra.mrb[0].mxu0 %v844
        %v1166 = vpop.f32.mrb[0].mxu0
        %v1167 = vadd.f32 %v739, %v1166
        %v1168 = vpop.f32.mrb[0].mxu0
        %v1169 = vadd.f32 %v739, %v1168
        %v1170 = vpop.f32.mrb[0].mxu0
        %v1171 = vadd.f32 %v744, %v1170
        %v1172 = vpop.f32.mrb[0].mxu0
        %v1173 = vadd.f32 %v744, %v1172
        %1174 = vmatprep.mubr.bf16.mxu0 0
        %1175 = vmatmul.mubr.bf16.gmra.mrb[0].mxu0 %v847
        %v1176 = vpop.f32.mrb[0].mxu0
        %v1177 = vadd.f32 %v749, %v1176
        %v1178 = vpop.f32.mrb[0].mxu0
        %v1179 = vadd.f32 %v749, %v1178
        %v1180 = vpop.f32.mrb[0].mxu0
        %v1181 = vadd.f32 %v754, %v1180
        %v1182 = vpop.f32.mrb[0].mxu0
        %v1183 = vadd.f32 %v754, %v1182
        %1184 = vmatprep.mubr.bf16.mxu0 0
        %1185 = vmatmul.mubr.bf16.gmra.mrb[0].mxu0 %v850
        %v1186 = vpop.f32.mrb[0].mxu0
        %v1187 = vadd.f32 %v759, %v1186
        %v1188 = vpop.f32.mrb[0].mxu0
        %v1189 = vadd.f32 %v759, %v1188
        %v1190 = vpop.f32.mrb[0].mxu0
        %v1191 = vadd.f32 %v764, %v1190
        %v1192 = vpop.f32.mrb[0].mxu0
        %v1193 = vadd.f32 %v764, %v1192
        %1194 = vmatprep.mubr.bf16.mxu0 0
        %1195 = vmatmul.mubr.bf16.gmra.mrb[0].mxu0 %v853
        %v1196 = vpop.f32.mrb[0].mxu0
        %v1197 = vadd.f32 %v769, %v1196
        %v1198 = vpop.f32.mrb[0].mxu0
        %v1199 = vadd.f32 %v769, %v1198
        %v1200 = vpop.f32.mrb[0].mxu0
        %v1201 = vadd.f32 %v774, %v1200
        %v1202 = vpop.f32.mrb[0].mxu0
        %v1203 = vadd.f32 %v774, %v1202
        %1204 = vmatprep.mubr.bf16.mxu0 0
        %1205 = vmatmul.mubr.bf16.gmra.mrb[0].mxu0 %v856
        %v1206 = vpop.f32.mrb[0].mxu0
        %v1207 = vadd.f32 %v779, %v1206
        %v1208 = vpop.f32.mrb[0].mxu0
        %v1209 = vadd.f32 %v779, %v1208
        %v1210 = vpop.f32.mrb[0].mxu0
        %v1211 = vadd.f32 %v784, %v1210
        %v1212 = vpop.f32.mrb[0].mxu0
        %v1213 = vadd.f32 %v784, %v1212
        %1214 = vmatprep.mubr.bf16.mxu0 0
        %1215 = vmatmul.mubr.bf16.gmra.mrb[0].mxu0 %v859
        %v1216 = vpop.f32.mrb[0].mxu0
        %v1217 = vadd.f32 %v789, %v1216
        %v1218 = vpop.f32.mrb[0].mxu0
        %v1219 = vadd.f32 %v789, %v1218
        %v1220 = vpop.f32.mrb[0].mxu0
        %v1221 = vadd.f32 %v794, %v1220
        %v1222 = vpop.f32.mrb[0].mxu0
        %v1223 = vadd.f32 %v794, %v1222
        %1224 = vdwg.mxu0
        %1225 = vmatprep.subr.bf16.mxu0 %v884
        %1226 = vmatpush1.bf16.msra.mxu0 %v881
        %1227 = vmatprep.subr.bf16.mxu0 0
        %1228 = vmatpush1.bf16.msra.mxu0 0
        %1229 = vmatprep.subr.bf16.mxu0 0
        %1230 = vmatpush1.bf16.msra.mxu0 0
        %1231 = vmatprep.subr.bf16.mxu0 0
        %1232 = vmatpush1.bf16.msra.mxu0 0
        %1233 = vmatprep.subr.bf16.mxu0 0
        %1234 = vmatpush1.bf16.msra.mxu0 0
        %1235 = vmatprep.subr.bf16.mxu0 0
        %1236 = vmatpush1.bf16.msra.mxu0 0
        %1237 = vmatprep.subr.bf16.mxu0 0
        %1238 = vmatpush1.bf16.msra.mxu0 0
        %1239 = vmatprep.subr.bf16.mxu0 0
        %1240 = vmatpush1.bf16.msra.mxu0 0
        %1241 = vmatprep.subr.bf16.mxu0 0
        %1242 = vmatpush1.bf16.msra.mxu0 0
        %1243 = vmatprep.subr.bf16.mxu0 0
        %1244 = vmatpush1.bf16.msra.mxu0 0
        %1245 = vmatprep.subr.bf16.mxu0 0
        %1246 = vmatpush1.bf16.msra.mxu0 0
        %1247 = vmatprep.subr.bf16.mxu0 0
        %1248 = vmatpush1.bf16.msra.mxu0 0
        %1249 = vmatprep.subr.bf16.mxu0 0
        %1250 = vmatpush1.bf16.msra.mxu0 0
        %1251 = vmatprep.subr.bf16.mxu0 0
        %1252 = vmatpush1.bf16.msra.mxu0 0
        %1253 = vmatprep.subr.bf16.mxu0 0
        %1254 = vmatpush1.bf16.msra.mxu0 0
        %1255 = vmatprep.subr.bf16.mxu0 0
        %1256 = vmatpush1.bf16.msra.mxu0 0
        %1257 = vmatprep.mubr.bf16.mxu0 0
        %1258 = vmatmul.mubr.bf16.gmra.mrb[0].mxu0 %v838
        %v1259 = vpop.f32.mrb[0].mxu0
        %v1260 = vadd.f32 %v719, %v1259
        %v1261 = vpop.f32.mrb[0].mxu0
        %v1262 = vadd.f32 %v719, %v1261
        %v1263 = vpop.f32.mrb[0].mxu0
        %v1264 = vadd.f32 %v724, %v1263
        %v1265 = vpop.f32.mrb[0].mxu0
        %v1266 = vadd.f32 %v724, %v1265
        %1267 = vmatprep.mubr.bf16.mxu0 0
        %1268 = vmatmul.mubr.bf16.gmra.mrb[0].mxu0 %v841
        %v1269 = vpop.f32.mrb[0].mxu0
        %v1270 = vadd.f32 %v729, %v1269
        %v1271 = vpop.f32.mrb[0].mxu0
        %v1272 = vadd.f32 %v729, %v1271
        %v1273 = vpop.f32.mrb[0].mxu0
        %v1274 = vadd.f32 %v734, %v1273
        %v1275 = vpop.f32.mrb[0].mxu0
        %v1276 = vadd.f32 %v734, %v1275
        %1277 = vmatprep.mubr.bf16.mxu0 0
        %1278 = vmatmul.mubr.bf16.gmra.mrb[0].mxu0 %v844
        %v1279 = vpop.f32.mrb[0].mxu0
        %v1280 = vadd.f32 %v739, %v1279
        %v1281 = vpop.f32.mrb[0].mxu0
        %v1282 = vadd.f32 %v739, %v1281
        %v1283 = vpop.f32.mrb[0].mxu0
        %v1284 = vadd.f32 %v744, %v1283
        %v1285 = vpop.f32.mrb[0].mxu0
        %v1286 = vadd.f32 %v744, %v1285
        %1287 = vmatprep.mubr.bf16.mxu0 0
        %1288 = vmatmul.mubr.bf16.gmra.mrb[0].mxu0 %v847
        %v1289 = vpop.f32.mrb[0].mxu0
        %v1290 = vadd.f32 %v749, %v1289
        %v1291 = vpop.f32.mrb[0].mxu0
        %v1292 = vadd.f32 %v749, %v1291
        %v1293 = vpop.f32.mrb[0].mxu0
        %v1294 = vadd.f32 %v754, %v1293
        %v1295 = vpop.f32.mrb[0].mxu0
        %v1296 = vadd.f32 %v754, %v1295
        %1297 = vmatprep.mubr.bf16.mxu0 0
        %1298 = vmatmul.mubr.bf16.gmra.mrb[0].mxu0 %v850
        %v1299 = vpop.f32.mrb[0].mxu0
        %v1300 = vadd.f32 %v759, %v1299
        %v1301 = vpop.f32.mrb[0].mxu0
        %v1302 = vadd.f32 %v759, %v1301
        %v1303 = vpop.f32.mrb[0].mxu0
        %v1304 = vadd.f32 %v764, %v1303
        %v1305 = vpop.f32.mrb[0].mxu0
        %v1306 = vadd.f32 %v764, %v1305
        %1307 = vmatprep.mubr.bf16.mxu0 0
        %1308 = vmatmul.mubr.bf16.gmra.mrb[0].mxu0 %v853
        %v1309 = vpop.f32.mrb[0].mxu0
        %v1310 = vadd.f32 %v769, %v1309
        %v1311 = vpop.f32.mrb[0].mxu0
        %v1312 = vadd.f32 %v769, %v1311
        %v1313 = vpop.f32.mrb[0].mxu0
        %v1314 = vadd.f32 %v774, %v1313
        %v1315 = vpop.f32.mrb[0].mxu0
        %v1316 = vadd.f32 %v774, %v1315
        %1317 = vmatprep.mubr.bf16.mxu0 0
        %1318 = vmatmul.mubr.bf16.gmra.mrb[0].mxu0 %v856
        %v1319 = vpop.f32.mrb[0].mxu0
        %v1320 = vadd.f32 %v779, %v1319
        %v1321 = vpop.f32.mrb[0].mxu0
        %v1322 = vadd.f32 %v779, %v1321
        %v1323 = vpop.f32.mrb[0].mxu0
        %v1324 = vadd.f32 %v784, %v1323
        %v1325 = vpop.f32.mrb[0].mxu0
        %v1326 = vadd.f32 %v784, %v1325
        %1327 = vmatprep.mubr.bf16.mxu0 0
        %1328 = vmatmul.mubr.bf16.gmra.mrb[0].mxu0 %v859
        %v1329 = vpop.f32.mrb[0].mxu0
        %v1330 = vadd.f32 %v789, %v1329
        %v1331 = vpop.f32.mrb[0].mxu0
        %v1332 = vadd.f32 %v789, %v1331
        %v1333 = vpop.f32.mrb[0].mxu0
        %v1334 = vadd.f32 %v794, %v1333
        %v1335 = vpop.f32.mrb[0].mxu0
        %v1336 = vadd.f32 %v794, %v1335
        %1337 = vdwg.mxu0
        %v1338 = vld [vmem:[%s8] sm:$0xf]
        %v1339 = vld [vmem:[%s8 + $0x4] sm:$0xf]
        %v1340 = vld [vmem:[%s8 + $0x8] sm:$0xf]
        %v1341 = vld [vmem:[%s8 + $0xc] sm:$0xf]
        %v1342 = vld [vmem:[%s8 + $0x10] sm:$0xf]
        %v1343 = vld [vmem:[%s8 + $0x14] sm:$0xf]
        %v1344 = vld [vmem:[%s8 + $0x18] sm:$0xf]
        %v1345 = vld [vmem:[%s8 + $0x1c] sm:$0xf]
        %v1346 = vld [vmem:[%s8 + $0x20] sm:$0xf]
        %v1347 = vld [vmem:[%s8 + $0x24] sm:$0xf]
        %v1348 = vld [vmem:[%s8 + $0x28] sm:$0xf]
        %v1349 = vld [vmem:[%s8 + $0x2c] sm:$0xf]
        %v1350 = vld [vmem:[%s8 + $0x30] sm:$0xf]
        %v1351 = vld [vmem:[%s8 + $0x34] sm:$0xf]
        %v1352 = vld [vmem:[%s8 + $0x38] sm:$0xf]
        %v1353 = vld [vmem:[%s8 + $0x3c] sm:$0xf]
        %v1354 = vld [vmem:[%s8 + $0x40] sm:$0xf]
        %v1355 = vld [vmem:[%s8 + $0x44] sm:$0xf]
        %v1356 = vld [vmem:[%s8 + $0x48] sm:$0xf]
        %v1357 = vld [vmem:[%s8 + $0x4c] sm:$0xf]
        %v1358 = vld [vmem:[%s8 + $0x50] sm:$0xf]
        %v1359 = vld [vmem:[%s8 + $0x54] sm:$0xf]
        %v1360 = vld [vmem:[%s8 + $0x58] sm:$0xf]
        %v1361 = vld [vmem:[%s8 + $0x5c] sm:$0xf]
        %v1362 = vld [vmem:[%s8 + $0x60] sm:$0xf]
        %v1363 = vld [vmem:[%s8 + $0x64] sm:$0xf]
        %v1364 = vld [vmem:[%s8 + $0x68] sm:$0xf]
        %v1365 = vld [vmem:[%s8 + $0x6c] sm:$0xf]
        %v1366 = vld [vmem:[%s8 + $0x70] sm:$0xf]
        %v1367 = vld [vmem:[%s8 + $0x74] sm:$0xf]
        %v1368 = vld [vmem:[%s8 + $0x78] sm:$0xf]
        %v1369 = vld [vmem:[%s8 + $0x7c] sm:$0xf]
        %v1370 = vld [vmem:[%s8 + $0x80] sm:$0xf]
        %v1371 = vld [vmem:[%s8 + $0x84] sm:$0xf]
        %v1372 = vld [vmem:[%s8 + $0x88] sm:$0xf]
        %v1373 = vld [vmem:[%s8 + $0x8c] sm:$0xf]
        %v1374 = vld [vmem:[%s8 + $0x90] sm:$0xf]
        %v1375 = vld [vmem:[%s8 + $0x94] sm:$0xf]
        %v1376 = vld [vmem:[%s8 + $0x98] sm:$0xf]
        %v1377 = vld [vmem:[%s8 + $0x9c] sm:$0xf]
        %v1378 = vld [vmem:[%s8 + $0xa0] sm:$0xf]
        %v1379 = vld [vmem:[%s8 + $0xa4] sm:$0xf]
        %v1380 = vld [vmem:[%s8 + $0xa8] sm:$0xf]
        %v1381 = vld [vmem:[%s8 + $0xac] sm:$0xf]
        %v1382 = vld [vmem:[%s8 + $0xb0] sm:$0xf]
        %v1383 = vld [vmem:[%s8 + $0xb4] sm:$0xf]
        %v1384 = vld [vmem:[%s8 + $0xb8] sm:$0xf]
        %v1385 = vld [vmem:[%s8 + $0xbc] sm:$0xf]
        %v1386 = vpack.c.bf16 %v925, %v921
        %v1387 = vpack.c.bf16 %v927, %v923
        %v1388 = vpack.c.bf16 %v1038, %v1034
        %v1389 = vpack.c.bf16 %v1040, %v1036
        %v1390 = vpack.c.bf16 %v1151, %v1147
        %v1391 = vpack.c.bf16 %v1153, %v1149
        %v1392 = vpack.c.bf16 %v1264, %v1260
        %v1393 = vpack.c.bf16 %v1266, %v1262
        %v1394 = vpack.c.bf16 %v935, %v931
        %v1395 = vpack.c.bf16 %v937, %v933
        %v1396 = vpack.c.bf16 %v1048, %v1044
        %v1397 = vpack.c.bf16 %v1050, %v1046
        %v1398 = vpack.c.bf16 %v1161, %v1157
        %v1399 = vpack.c.bf16 %v1163, %v1159
        %v1400 = vpack.c.bf16 %v1274, %v1270
        %v1401 = vpack.c.bf16 %v1276, %v1272
        %v1402 = vpack.c.bf16 %v945, %v941
        %v1403 = vpack.c.bf16 %v947, %v943
        %v1404 = vpack.c.bf16 %v1058, %v1054
        %v1405 = vpack.c.bf16 %v1060, %v1056
        %v1406 = vpack.c.bf16 %v1171, %v1167
        %v1407 = vpack.c.bf16 %v1173, %v1169
        %v1408 = vpack.c.bf16 %v1284, %v1280
        %v1409 = vpack.c.bf16 %v1286, %v1282
        %v1410 = vpack.c.bf16 %v955, %v951
        %v1411 = vpack.c.bf16 %v957, %v953
        %v1412 = vpack.c.bf16 %v1068, %v1064
        %v1413 = vpack.c.bf16 %v1070, %v1066
        %v1414 = vpack.c.bf16 %v1181, %v1177
        %v1415 = vpack.c.bf16 %v1183, %v1179
        %v1416 = vpack.c.bf16 %v1294, %v1290
        %v1417 = vpack.c.bf16 %v1296, %v1292
        %v1418 = vpack.c.bf16 %v965, %v961
        %v1419 = vpack.c.bf16 %v967, %v963
        %v1420 = vpack.c.bf16 %v1078, %v1074
        %v1421 = vpack.c.bf16 %v1080, %v1076
        %v1422 = vpack.c.bf16 %v1191, %v1187
        %v1423 = vpack.c.bf16 %v1193, %v1189
        %v1424 = vpack.c.bf16 %v1304, %v1300
        %v1425 = vpack.c.bf16 %v1306, %v1302
        %v1426 = vpack.c.bf16 %v975, %v971
        %v1427 = vpack.c.bf16 %v977, %v973
        %v1428 = vpack.c.bf16 %v1088, %v1084
        %v1429 = vpack.c.bf16 %v1090, %v1086
        %v1430 = vpack.c.bf16 %v1201, %v1197
        %v1431 = vpack.c.bf16 %v1203, %v1199
        %v1432 = vpack.c.bf16 %v1314, %v1310
        %v1433 = vpack.c.bf16 %v1316, %v1312
        %v1434 = vpack.c.bf16 %v985, %v981
        %v1435 = vpack.c.bf16 %v987, %v983
        %v1436 = vpack.c.bf16 %v1098, %v1094
        %v1437 = vpack.c.bf16 %v1100, %v1096
        %v1438 = vpack.c.bf16 %v1211, %v1207
        %v1439 = vpack.c.bf16 %v1213, %v1209
        %v1440 = vpack.c.bf16 %v1324, %v1320
        %v1441 = vpack.c.bf16 %v1326, %v1322
        %v1442 = vpack.c.bf16 %v995, %v991
        %v1443 = vpack.c.bf16 %v997, %v993
        %v1444 = vpack.c.bf16 %v1108, %v1104
        %v1445 = vpack.c.bf16 %v1110, %v1106
        %v1446 = vpack.c.bf16 %v1221, %v1217
        %v1447 = vpack.c.bf16 %v1223, %v1219
        %v1448 = vpack.c.bf16 %v1334, %v1330
        %v1449 = vpack.c.bf16 %v1336, %v1332
        %v1450 = vld [vmem:[%s9] sm:$0xff]
        %v1451 = vld [vmem:[%s9 + $0x8] sm:$0xff]
        %v1452 = vld [vmem:[%s9 + $0x10] sm:$0xff]
        %v1453 = vld [vmem:[%s9 + $0x18] sm:$0xff]
        %v1454 = vld [vmem:[%s9 + $0x20] sm:$0xff]
        %v1455 = vld [vmem:[%s9 + $0x28] sm:$0xff]
        %v1456 = vld [vmem:[%s9 + $0x30] sm:$0xff]
        %v1457 = vld [vmem:[%s9 + $0x38] sm:$0xff]
        %v1458 = vld [vmem:[%s9 + $0x40] sm:$0xff]
        %v1459 = vld [vmem:[%s9 + $0x48] sm:$0xff]
        %v1460 = vld [vmem:[%s9 + $0x50] sm:$0xff]
        %v1461 = vld [vmem:[%s9 + $0x58] sm:$0xff]
        %v1462 = vld [vmem:[%s9 + $0x60] sm:$0xff]
        %v1463 = vld [vmem:[%s9 + $0x68] sm:$0xff]
        %v1464 = vld [vmem:[%s9 + $0x70] sm:$0xff]
        %v1465 = vld [vmem:[%s9 + $0x78] sm:$0xff]
        %v1466 = vld [vmem:[%s9 + $0x80] sm:$0xff]
        %v1467 = vld [vmem:[%s9 + $0x88] sm:$0xff]
        %v1468 = vld [vmem:[%s9 + $0x90] sm:$0xff]
        %v1469 = vld [vmem:[%s9 + $0x98] sm:$0xff]
        %v1470 = vld [vmem:[%s9 + $0xa0] sm:$0xff]
        %v1471 = vld [vmem:[%s9 + $0xa8] sm:$0xff]
        %v1472 = vld [vmem:[%s9 + $0xb0] sm:$0xff]
        %v1473 = vld [vmem:[%s9 + $0xb8] sm:$0xff]
        %v1474 = vld [vmem:[%s9 + $0xc0] sm:$0xff]
        %v1475 = vld [vmem:[%s9 + $0xc8] sm:$0xff]
        %v1476 = vld [vmem:[%s9 + $0xd0] sm:$0xff]
        %v1477 = vld [vmem:[%s9 + $0xd8] sm:$0xff]
        %v1478 = vld [vmem:[%s9 + $0xe0] sm:$0xff]
        %v1479 = vld [vmem:[%s9 + $0xe8] sm:$0xff]
        %v1480 = vld [vmem:[%s9 + $0xf0] sm:$0xff]
        %v1481 = vld [vmem:[%s9 + $0xf8] sm:$0xff]
        %v1482 = vld [vmem:[%s9 + $0x100] sm:$0xff]
        %v1483 = vld [vmem:[%s9 + $0x108] sm:$0xff]
        %v1484 = vld [vmem:[%s9 + $0x110] sm:$0xff]
        %v1485 = vld [vmem:[%s9 + $0x118] sm:$0xff]
        %v1486 = vld [vmem:[%s9 + $0x120] sm:$0xff]
        %v1487 = vld [vmem:[%s9 + $0x128] sm:$0xff]
        %v1488 = vld [vmem:[%s9 + $0x130] sm:$0xff]
        %v1489 = vld [vmem:[%s9 + $0x138] sm:$0xff]
        %v1490 = vld [vmem:[%s9 + $0x140] sm:$0xff]
        %v1491 = vld [vmem:[%s9 + $0x148] sm:$0xff]
        %v1492 = vld [vmem:[%s9 + $0x150] sm:$0xff]
        %v1493 = vld [vmem:[%s9 + $0x158] sm:$0xff]
        %v1494 = vld [vmem:[%s9 + $0x160] sm:$0xff]
        %v1495 = vld [vmem:[%s9 + $0x168] sm:$0xff]
        %v1496 = vld [vmem:[%s9 + $0x170] sm:$0xff]
        %v1497 = vld [vmem:[%s9 + $0x178] sm:$0xff]
        %1499 = vset.pattern.permute.xlu0 0
        %1500 = vperm.xlu0 %1499, %v1450
        %v1501 = vpop.permute.xlu0 %1500
        %1504 = vset.pattern.permute.xlu0 0
        %1505 = vperm.xlu0 %1504, %v1451
        %v1506 = vpop.permute.xlu0 %1505
        %1509 = vset.pattern.permute.xlu0 0
        %1510 = vperm.xlu0 %1509, %v1452
        %v1511 = vpop.permute.xlu0 %1510
        %1514 = vset.pattern.permute.xlu0 0
        %1515 = vperm.xlu0 %1514, %v1453
        %v1516 = vpop.permute.xlu0 %1515
        %1519 = vset.pattern.permute.xlu0 0
        %1520 = vperm.xlu0 %1519, %v1454
        %v1521 = vpop.permute.xlu0 %1520
        %1524 = vset.pattern.permute.xlu0 0
        %1525 = vperm.xlu0 %1524, %v1455
        %v1526 = vpop.permute.xlu0 %1525
        %1529 = vset.pattern.permute.xlu0 0
        %1530 = vperm.xlu0 %1529, %v1456
        %v1531 = vpop.permute.xlu0 %1530
        %1534 = vset.pattern.permute.xlu0 0
        %1535 = vperm.xlu0 %1534, %v1457
        %v1536 = vpop.permute.xlu0 %1535
        %1539 = vset.pattern.permute.xlu0 0
        %1540 = vperm.xlu0 %1539, %v1458
        %v1541 = vpop.permute.xlu0 %1540
        %1544 = vset.pattern.permute.xlu0 0
        %1545 = vperm.xlu0 %1544, %v1459
        %v1546 = vpop.permute.xlu0 %1545
        %1549 = vset.pattern.permute.xlu0 0
        %1550 = vperm.xlu0 %1549, %v1460
        %v1551 = vpop.permute.xlu0 %1550
        %1554 = vset.pattern.permute.xlu0 0
        %1555 = vperm.xlu0 %1554, %v1461
        %v1556 = vpop.permute.xlu0 %1555
        %1559 = vset.pattern.permute.xlu0 0
        %1560 = vperm.xlu0 %1559, %v1462
        %v1561 = vpop.permute.xlu0 %1560
        %1564 = vset.pattern.permute.xlu0 0
        %1565 = vperm.xlu0 %1564, %v1463
        %v1566 = vpop.permute.xlu0 %1565
        %1569 = vset.pattern.permute.xlu0 0
        %1570 = vperm.xlu0 %1569, %v1464
        %v1571 = vpop.permute.xlu0 %1570
        %1574 = vset.pattern.permute.xlu0 0
        %1575 = vperm.xlu0 %1574, %v1465
        %v1576 = vpop.permute.xlu0 %1575
        %1579 = vset.pattern.permute.xlu0 0
        %1580 = vperm.xlu0 %1579, %v1466
        %v1581 = vpop.permute.xlu0 %1580
        %1584 = vset.pattern.permute.xlu0 0
        %1585 = vperm.xlu0 %1584, %v1467
        %v1586 = vpop.permute.xlu0 %1585
        %1589 = vset.pattern.permute.xlu0 0
        %1590 = vperm.xlu0 %1589, %v1468
        %v1591 = vpop.permute.xlu0 %1590
        %1594 = vset.pattern.permute.xlu0 0
        %1595 = vperm.xlu0 %1594, %v1469
        %v1596 = vpop.permute.xlu0 %1595
        %1599 = vset.pattern.permute.xlu0 0
        %1600 = vperm.xlu0 %1599, %v1470
        %v1601 = vpop.permute.xlu0 %1600
        %1604 = vset.pattern.permute.xlu0 0
        %1605 = vperm.xlu0 %1604, %v1471
        %v1606 = vpop.permute.xlu0 %1605
        %1609 = vset.pattern.permute.xlu0 0
        %1610 = vperm.xlu0 %1609, %v1472
        %v1611 = vpop.permute.xlu0 %1610
        %1614 = vset.pattern.permute.xlu0 0
        %1615 = vperm.xlu0 %1614, %v1473
        %v1616 = vpop.permute.xlu0 %1615
        %1619 = vset.pattern.permute.xlu0 0
        %1620 = vperm.xlu0 %1619, %v1474
        %v1621 = vpop.permute.xlu0 %1620
        %1624 = vset.pattern.permute.xlu0 0
        %1625 = vperm.xlu0 %1624, %v1475
        %v1626 = vpop.permute.xlu0 %1625
        %1629 = vset.pattern.permute.xlu0 0
        %1630 = vperm.xlu0 %1629, %v1476
        %v1631 = vpop.permute.xlu0 %1630
        %1634 = vset.pattern.permute.xlu0 0
        %1635 = vperm.xlu0 %1634, %v1477
        %v1636 = vpop.permute.xlu0 %1635
        %1639 = vset.pattern.permute.xlu0 0
        %1640 = vperm.xlu0 %1639, %v1478
        %v1641 = vpop.permute.xlu0 %1640
        %1644 = vset.pattern.permute.xlu0 0
        %1645 = vperm.xlu0 %1644, %v1479
        %v1646 = vpop.permute.xlu0 %1645
        %1649 = vset.pattern.permute.xlu0 0
        %1650 = vperm.xlu0 %1649, %v1480
        %v1651 = vpop.permute.xlu0 %1650
        %1654 = vset.pattern.permute.xlu0 0
        %1655 = vperm.xlu0 %1654, %v1481
        %v1656 = vpop.permute.xlu0 %1655
        %1659 = vset.pattern.permute.xlu0 0
        %1660 = vperm.xlu0 %1659, %v1482
        %v1661 = vpop.permute.xlu0 %1660
        %1664 = vset.pattern.permute.xlu0 0
        %1665 = vperm.xlu0 %1664, %v1483
        %v1666 = vpop.permute.xlu0 %1665
        %1669 = vset.pattern.permute.xlu0 0
        %1670 = vperm.xlu0 %1669, %v1484
        %v1671 = vpop.permute.xlu0 %1670
        %1674 = vset.pattern.permute.xlu0 0
        %1675 = vperm.xlu0 %1674, %v1485
        %v1676 = vpop.permute.xlu0 %1675
        %1679 = vset.pattern.permute.xlu0 0
        %1680 = vperm.xlu0 %1679, %v1486
        %v1681 = vpop.permute.xlu0 %1680
        %1684 = vset.pattern.permute.xlu0 0
        %1685 = vperm.xlu0 %1684, %v1487
        %v1686 = vpop.permute.xlu0 %1685
        %1689 = vset.pattern.permute.xlu0 0
        %1690 = vperm.xlu0 %1689, %v1488
        %v1691 = vpop.permute.xlu0 %1690
        %1694 = vset.pattern.permute.xlu0 0
        %1695 = vperm.xlu0 %1694, %v1489
        %v1696 = vpop.permute.xlu0 %1695
        %1699 = vset.pattern.permute.xlu0 0
        %1700 = vperm.xlu0 %1699, %v1490
        %v1701 = vpop.permute.xlu0 %1700
        %1704 = vset.pattern.permute.xlu0 0
        %1705 = vperm.xlu0 %1704, %v1491
        %v1706 = vpop.permute.xlu0 %1705
        %1709 = vset.pattern.permute.xlu0 0
        %1710 = vperm.xlu0 %1709, %v1492
        %v1711 = vpop.permute.xlu0 %1710
        %1714 = vset.pattern.permute.xlu0 0
        %1715 = vperm.xlu0 %1714, %v1493
        %v1716 = vpop.permute.xlu0 %1715
        %1719 = vset.pattern.permute.xlu0 0
        %1720 = vperm.xlu0 %1719, %v1494
        %v1721 = vpop.permute.xlu0 %1720
        %1724 = vset.pattern.permute.xlu0 0
        %1725 = vperm.xlu0 %1724, %v1495
        %v1726 = vpop.permute.xlu0 %1725
        %1729 = vset.pattern.permute.xlu0 0
        %1730 = vperm.xlu0 %1729, %v1496
        %v1731 = vpop.permute.xlu0 %1730
        %1734 = vset.pattern.permute.xlu0 0
        %1735 = vperm.xlu0 %1734, %v1497
        %v1736 = vpop.permute.xlu0 %1735
        %v1786 = vunpack.c.l.b16 %v1338
        %v1787 = vunpack.c.l.b16 %v1339
        %v1788 = vunpack.c.l.b16 %v1340
        %v1789 = vunpack.c.l.b16 %v1341
        %v1790 = vunpack.c.l.b16 %v1342
        %v1791 = vunpack.c.l.b16 %v1343
        %v1792 = vunpack.c.l.b16 %v1344
        %v1793 = vunpack.c.l.b16 %v1345
        %v1794 = vunpack.c.l.b16 %v1346
        %v1795 = vunpack.c.l.b16 %v1347
        %v1796 = vunpack.c.l.b16 %v1348
        %v1797 = vunpack.c.l.b16 %v1349
        %v1798 = vunpack.c.l.b16 %v1350
        %v1799 = vunpack.c.l.b16 %v1351
        %v1800 = vunpack.c.l.b16 %v1352
        %v1801 = vunpack.c.l.b16 %v1353
        %v1802 = vunpack.c.l.b16 %v1354
        %v1803 = vunpack.c.l.b16 %v1355
        %v1804 = vunpack.c.l.b16 %v1356
        %v1805 = vunpack.c.l.b16 %v1357
        %v1806 = vunpack.c.l.b16 %v1358
        %v1807 = vunpack.c.l.b16 %v1359
        %v1808 = vunpack.c.l.b16 %v1360
        %v1809 = vunpack.c.l.b16 %v1361
        %v1810 = vunpack.c.l.b16 %v1362
        %v1811 = vunpack.c.l.b16 %v1363
        %v1812 = vunpack.c.l.b16 %v1364
        %v1813 = vunpack.c.l.b16 %v1365
        %v1814 = vunpack.c.l.b16 %v1366
        %v1815 = vunpack.c.l.b16 %v1367
        %v1816 = vunpack.c.l.b16 %v1368
        %v1817 = vunpack.c.l.b16 %v1369
        %v1818 = vunpack.c.l.b16 %v1370
        %v1819 = vunpack.c.l.b16 %v1371
        %v1820 = vunpack.c.l.b16 %v1372
        %v1821 = vunpack.c.l.b16 %v1373
        %v1822 = vunpack.c.l.b16 %v1374
        %v1823 = vunpack.c.l.b16 %v1375
        %v1824 = vunpack.c.l.b16 %v1376
        %v1825 = vunpack.c.l.b16 %v1377
        %v1826 = vunpack.c.l.b16 %v1378
        %v1827 = vunpack.c.l.b16 %v1379
        %v1828 = vunpack.c.l.b16 %v1380
        %v1829 = vunpack.c.l.b16 %v1381
        %v1830 = vunpack.c.l.b16 %v1382
        %v1831 = vunpack.c.l.b16 %v1383
        %v1832 = vunpack.c.l.b16 %v1384
        %v1833 = vunpack.c.l.b16 %v1385
        %v1834 = vpack.c.b16 %v1787, %v1786
        %v1835 = vpack.c.b16 %v1789, %v1788
        %v1836 = vpack.c.b16 %v1791, %v1790
        %v1837 = vpack.c.b16 %v1793, %v1792
        %v1838 = vpack.c.b16 %v1795, %v1794
        %v1839 = vpack.c.b16 %v1797, %v1796
        %v1840 = vpack.c.b16 %v1799, %v1798
        %v1841 = vpack.c.b16 %v1801, %v1800
        %v1842 = vpack.c.b16 %v1803, %v1802
        %v1843 = vpack.c.b16 %v1805, %v1804
        %v1844 = vpack.c.b16 %v1807, %v1806
        %v1845 = vpack.c.b16 %v1809, %v1808
        %v1846 = vpack.c.b16 %v1811, %v1810
        %v1847 = vpack.c.b16 %v1813, %v1812
        %v1848 = vpack.c.b16 %v1815, %v1814
        %v1849 = vpack.c.b16 %v1817, %v1816
        %v1850 = vpack.c.b16 %v1819, %v1818
        %v1851 = vpack.c.b16 %v1821, %v1820
        %v1852 = vpack.c.b16 %v1823, %v1822
        %v1853 = vpack.c.b16 %v1825, %v1824
        %v1854 = vpack.c.b16 %v1827, %v1826
        %v1855 = vpack.c.b16 %v1829, %v1828
        %v1856 = vpack.c.b16 %v1831, %v1830
        %v1857 = vpack.c.b16 %v1833, %v1832
        %1882 = vmatprep.subr.bf16.mxu0 %v1387
        %1883 = vmatpush1.bf16.msra.mxu0 %v1386
        %1884 = vmatprep.subr.bf16.mxu0 %v1395
        %1885 = vmatpush1.bf16.msra.mxu0 %v1394
        %1886 = vmatprep.subr.bf16.mxu0 %v1403
        %1887 = vmatpush1.bf16.msra.mxu0 %v1402
        %1888 = vmatprep.subr.bf16.mxu0 %v1411
        %1889 = vmatpush1.bf16.msra.mxu0 %v1410
        %1890 = vmatprep.subr.bf16.mxu0 %v1419
        %1891 = vmatpush1.bf16.msra.mxu0 %v1418
        %1892 = vmatprep.subr.bf16.mxu0 %v1427
        %1893 = vmatpush1.bf16.msra.mxu0 %v1426
        %1894 = vmatprep.subr.bf16.mxu0 %v1435
        %1895 = vmatpush1.bf16.msra.mxu0 %v1434
        %1896 = vmatprep.subr.bf16.mxu0 %v1443
        %1897 = vmatpush1.bf16.msra.mxu0 %v1442
        %1898 = vmatprep.subr.bf16.mxu0 0
        %1899 = vmatpush1.bf16.msra.mxu0 0
        %1900 = vmatprep.subr.bf16.mxu0 0
        %1901 = vmatpush1.bf16.msra.mxu0 0
        %1902 = vmatprep.subr.bf16.mxu0 0
        %1903 = vmatpush1.bf16.msra.mxu0 0
        %1904 = vmatprep.subr.bf16.mxu0 0
        %1905 = vmatpush1.bf16.msra.mxu0 0
        %1906 = vmatprep.subr.bf16.mxu0 0
        %1907 = vmatpush1.bf16.msra.mxu0 0
        %1908 = vmatprep.subr.bf16.mxu0 0
        %1909 = vmatpush1.bf16.msra.mxu0 0
        %1910 = vmatprep.subr.bf16.mxu0 0
        %1911 = vmatpush1.bf16.msra.mxu0 0
        %1912 = vmatprep.subr.bf16.mxu0 0
        %1913 = vmatpush1.bf16.msra.mxu0 0
        %1914 = vmatprep.mubr.bf16.mxu0 0
        %1915 = vmatmul.mubr.bf16.gmra.mrb[0].mxu0 %v1834
        %v1916 = vpop.f32.mrb[0].mxu0
        %v1917 = vadd.f32 %v1501, %v1916
        %v1918 = vpop.f32.mrb[0].mxu0
        %v1919 = vadd.f32 %v1501, %v1918
        %v1920 = vpop.f32.mrb[0].mxu0
        %v1921 = vadd.f32 %v1506, %v1920
        %v1922 = vpop.f32.mrb[0].mxu0
        %v1923 = vadd.f32 %v1506, %v1922
        %1924 = vmatprep.mubr.bf16.mxu0 0
        %1925 = vmatmul.mubr.bf16.gmra.mrb[0].mxu0 %v1835
        %v1926 = vpop.f32.mrb[0].mxu0
        %v1927 = vadd.f32 %v1511, %v1926
        %v1928 = vpop.f32.mrb[0].mxu0
        %v1929 = vadd.f32 %v1511, %v1928
        %v1930 = vpop.f32.mrb[0].mxu0
        %v1931 = vadd.f32 %v1516, %v1930
        %v1932 = vpop.f32.mrb[0].mxu0
        %v1933 = vadd.f32 %v1516, %v1932
        %1934 = vmatprep.mubr.bf16.mxu0 0
        %1935 = vmatmul.mubr.bf16.gmra.mrb[0].mxu0 %v1836
        %v1936 = vpop.f32.mrb[0].mxu0
        %v1937 = vadd.f32 %v1521, %v1936
        %v1938 = vpop.f32.mrb[0].mxu0
        %v1939 = vadd.f32 %v1521, %v1938
        %v1940 = vpop.f32.mrb[0].mxu0
        %v1941 = vadd.f32 %v1526, %v1940
        %v1942 = vpop.f32.mrb[0].mxu0
        %v1943 = vadd.f32 %v1526, %v1942
        %1944 = vmatprep.mubr.bf16.mxu0 0
        %1945 = vmatmul.mubr.bf16.gmra.mrb[0].mxu0 %v1837
        %v1946 = vpop.f32.mrb[0].mxu0
        %v1947 = vadd.f32 %v1531, %v1946
        %v1948 = vpop.f32.mrb[0].mxu0
        %v1949 = vadd.f32 %v1531, %v1948
        %v1950 = vpop.f32.mrb[0].mxu0
        %v1951 = vadd.f32 %v1536, %v1950
        %v1952 = vpop.f32.mrb[0].mxu0
        %v1953 = vadd.f32 %v1536, %v1952
        %1954 = vmatprep.mubr.bf16.mxu0 0
        %1955 = vmatmul.mubr.bf16.gmra.mrb[0].mxu0 %v1838
        %v1956 = vpop.f32.mrb[0].mxu0
        %v1957 = vadd.f32 %v1541, %v1956
        %v1958 = vpop.f32.mrb[0].mxu0
        %v1959 = vadd.f32 %v1541, %v1958
        %v1960 = vpop.f32.mrb[0].mxu0
        %v1961 = vadd.f32 %v1546, %v1960
        %v1962 = vpop.f32.mrb[0].mxu0
        %v1963 = vadd.f32 %v1546, %v1962
        %1964 = vmatprep.mubr.bf16.mxu0 0
        %1965 = vmatmul.mubr.bf16.gmra.mrb[0].mxu0 %v1839
        %v1966 = vpop.f32.mrb[0].mxu0
        %v1967 = vadd.f32 %v1551, %v1966
        %v1968 = vpop.f32.mrb[0].mxu0
        %v1969 = vadd.f32 %v1551, %v1968
        %v1970 = vpop.f32.mrb[0].mxu0
        %v1971 = vadd.f32 %v1556, %v1970
        %v1972 = vpop.f32.mrb[0].mxu0
        %v1973 = vadd.f32 %v1556, %v1972
        %1974 = vmatprep.mubr.bf16.mxu0 0
        %1975 = vmatmul.mubr.bf16.gmra.mrb[0].mxu0 %v1840
        %v1976 = vpop.f32.mrb[0].mxu0
        %v1977 = vadd.f32 %v1561, %v1976
        %v1978 = vpop.f32.mrb[0].mxu0
        %v1979 = vadd.f32 %v1561, %v1978
        %v1980 = vpop.f32.mrb[0].mxu0
        %v1981 = vadd.f32 %v1566, %v1980
        %v1982 = vpop.f32.mrb[0].mxu0
        %v1983 = vadd.f32 %v1566, %v1982
        %1984 = vmatprep.mubr.bf16.mxu0 0
        %1985 = vmatmul.mubr.bf16.gmra.mrb[0].mxu0 %v1841
        %v1986 = vpop.f32.mrb[0].mxu0
        %v1987 = vadd.f32 %v1571, %v1986
        %v1988 = vpop.f32.mrb[0].mxu0
        %v1989 = vadd.f32 %v1571, %v1988
        %v1990 = vpop.f32.mrb[0].mxu0
        %v1991 = vadd.f32 %v1576, %v1990
        %v1992 = vpop.f32.mrb[0].mxu0
        %v1993 = vadd.f32 %v1576, %v1992
        %1994 = vmatprep.mubr.bf16.mxu0 0
        %1995 = vmatmul.mubr.bf16.gmra.mrb[0].mxu0 %v1842
        %v1996 = vpop.f32.mrb[0].mxu0
        %v1997 = vadd.f32 %v1581, %v1996
        %v1998 = vpop.f32.mrb[0].mxu0
        %v1999 = vadd.f32 %v1581, %v1998
        %v2000 = vpop.f32.mrb[0].mxu0
        %v2001 = vadd.f32 %v1586, %v2000
        %v2002 = vpop.f32.mrb[0].mxu0
        %v2003 = vadd.f32 %v1586, %v2002
        %2004 = vmatprep.mubr.bf16.mxu0 0
        %2005 = vmatmul.mubr.bf16.gmra.mrb[0].mxu0 %v1843
        %v2006 = vpop.f32.mrb[0].mxu0
        %v2007 = vadd.f32 %v1591, %v2006
        %v2008 = vpop.f32.mrb[0].mxu0
        %v2009 = vadd.f32 %v1591, %v2008
        %v2010 = vpop.f32.mrb[0].mxu0
        %v2011 = vadd.f32 %v1596, %v2010
        %v2012 = vpop.f32.mrb[0].mxu0
        %v2013 = vadd.f32 %v1596, %v2012
        %2014 = vmatprep.mubr.bf16.mxu0 0
        %2015 = vmatmul.mubr.bf16.gmra.mrb[0].mxu0 %v1844
        %v2016 = vpop.f32.mrb[0].mxu0
        %v2017 = vadd.f32 %v1601, %v2016
        %v2018 = vpop.f32.mrb[0].mxu0
        %v2019 = vadd.f32 %v1601, %v2018
        %v2020 = vpop.f32.mrb[0].mxu0
        %v2021 = vadd.f32 %v1606, %v2020
        %v2022 = vpop.f32.mrb[0].mxu0
        %v2023 = vadd.f32 %v1606, %v2022
        %2024 = vmatprep.mubr.bf16.mxu0 0
        %2025 = vmatmul.mubr.bf16.gmra.mrb[0].mxu0 %v1845
        %v2026 = vpop.f32.mrb[0].mxu0
        %v2027 = vadd.f32 %v1611, %v2026
        %v2028 = vpop.f32.mrb[0].mxu0
        %v2029 = vadd.f32 %v1611, %v2028
        %v2030 = vpop.f32.mrb[0].mxu0
        %v2031 = vadd.f32 %v1616, %v2030
        %v2032 = vpop.f32.mrb[0].mxu0
        %v2033 = vadd.f32 %v1616, %v2032
        %2034 = vmatprep.mubr.bf16.mxu0 0
        %2035 = vmatmul.mubr.bf16.gmra.mrb[0].mxu0 %v1846
        %v2036 = vpop.f32.mrb[0].mxu0
        %v2037 = vadd.f32 %v1621, %v2036
        %v2038 = vpop.f32.mrb[0].mxu0
        %v2039 = vadd.f32 %v1621, %v2038
        %v2040 = vpop.f32.mrb[0].mxu0
        %v2041 = vadd.f32 %v1626, %v2040
        %v2042 = vpop.f32.mrb[0].mxu0
        %v2043 = vadd.f32 %v1626, %v2042
        %2044 = vmatprep.mubr.bf16.mxu0 0
        %2045 = vmatmul.mubr.bf16.gmra.mrb[0].mxu0 %v1847
        %v2046 = vpop.f32.mrb[0].mxu0
        %v2047 = vadd.f32 %v1631, %v2046
        %v2048 = vpop.f32.mrb[0].mxu0
        %v2049 = vadd.f32 %v1631, %v2048
        %v2050 = vpop.f32.mrb[0].mxu0
        %v2051 = vadd.f32 %v1636, %v2050
        %v2052 = vpop.f32.mrb[0].mxu0
        %v2053 = vadd.f32 %v1636, %v2052
        %2054 = vmatprep.mubr.bf16.mxu0 0
        %2055 = vmatmul.mubr.bf16.gmra.mrb[0].mxu0 %v1848
        %v2056 = vpop.f32.mrb[0].mxu0
        %v2057 = vadd.f32 %v1641, %v2056
        %v2058 = vpop.f32.mrb[0].mxu0
        %v2059 = vadd.f32 %v1641, %v2058
        %v2060 = vpop.f32.mrb[0].mxu0
        %v2061 = vadd.f32 %v1646, %v2060
        %v2062 = vpop.f32.mrb[0].mxu0
        %v2063 = vadd.f32 %v1646, %v2062
        %2064 = vmatprep.mubr.bf16.mxu0 0
        %2065 = vmatmul.mubr.bf16.gmra.mrb[0].mxu0 %v1849
        %v2066 = vpop.f32.mrb[0].mxu0
        %v2067 = vadd.f32 %v1651, %v2066
        %v2068 = vpop.f32.mrb[0].mxu0
        %v2069 = vadd.f32 %v1651, %v2068
        %v2070 = vpop.f32.mrb[0].mxu0
        %v2071 = vadd.f32 %v1656, %v2070
        %v2072 = vpop.f32.mrb[0].mxu0
        %v2073 = vadd.f32 %v1656, %v2072
        %2074 = vmatprep.mubr.bf16.mxu0 0
        %2075 = vmatmul.mubr.bf16.gmra.mrb[0].mxu0 %v1850
        %v2076 = vpop.f32.mrb[0].mxu0
        %v2077 = vadd.f32 %v1661, %v2076
        %v2078 = vpop.f32.mrb[0].mxu0
        %v2079 = vadd.f32 %v1661, %v2078
        %v2080 = vpop.f32.mrb[0].mxu0
        %v2081 = vadd.f32 %v1666, %v2080
        %v2082 = vpop.f32.mrb[0].mxu0
        %v2083 = vadd.f32 %v1666, %v2082
        %2084 = vmatprep.mubr.bf16.mxu0 0
        %2085 = vmatmul.mubr.bf16.gmra.mrb[0].mxu0 %v1851
        %v2086 = vpop.f32.mrb[0].mxu0
        %v2087 = vadd.f32 %v1671, %v2086
        %v2088 = vpop.f32.mrb[0].mxu0
        %v2089 = vadd.f32 %v1671, %v2088
        %v2090 = vpop.f32.mrb[0].mxu0
        %v2091 = vadd.f32 %v1676, %v2090
        %v2092 = vpop.f32.mrb[0].mxu0
        %v2093 = vadd.f32 %v1676, %v2092
        %2094 = vmatprep.mubr.bf16.mxu0 0
        %2095 = vmatmul.mubr.bf16.gmra.mrb[0].mxu0 %v1852
        %v2096 = vpop.f32.mrb[0].mxu0
        %v2097 = vadd.f32 %v1681, %v2096
        %v2098 = vpop.f32.mrb[0].mxu0
        %v2099 = vadd.f32 %v1681, %v2098
        %v2100 = vpop.f32.mrb[0].mxu0
        %v2101 = vadd.f32 %v1686, %v2100
        %v2102 = vpop.f32.mrb[0].mxu0
        %v2103 = vadd.f32 %v1686, %v2102
        %2104 = vmatprep.mubr.bf16.mxu0 0
        %2105 = vmatmul.mubr.bf16.gmra.mrb[0].mxu0 %v1853
        %v2106 = vpop.f32.mrb[0].mxu0
        %v2107 = vadd.f32 %v1691, %v2106
        %v2108 = vpop.f32.mrb[0].mxu0
        %v2109 = vadd.f32 %v1691, %v2108
        %v2110 = vpop.f32.mrb[0].mxu0
        %v2111 = vadd.f32 %v1696, %v2110
        %v2112 = vpop.f32.mrb[0].mxu0
        %v2113 = vadd.f32 %v1696, %v2112
        %2114 = vmatprep.mubr.bf16.mxu0 0
        %2115 = vmatmul.mubr.bf16.gmra.mrb[0].mxu0 %v1854
        %v2116 = vpop.f32.mrb[0].mxu0
        %v2117 = vadd.f32 %v1701, %v2116
        %v2118 = vpop.f32.mrb[0].mxu0
        %v2119 = vadd.f32 %v1701, %v2118
        %v2120 = vpop.f32.mrb[0].mxu0
        %v2121 = vadd.f32 %v1706, %v2120
        %v2122 = vpop.f32.mrb[0].mxu0
        %v2123 = vadd.f32 %v1706, %v2122
        %2124 = vmatprep.mubr.bf16.mxu0 0
        %2125 = vmatmul.mubr.bf16.gmra.mrb[0].mxu0 %v1855
        %v2126 = vpop.f32.mrb[0].mxu0
        %v2127 = vadd.f32 %v1711, %v2126
        %v2128 = vpop.f32.mrb[0].mxu0
        %v2129 = vadd.f32 %v1711, %v2128
        %v2130 = vpop.f32.mrb[0].mxu0
        %v2131 = vadd.f32 %v1716, %v2130
        %v2132 = vpop.f32.mrb[0].mxu0
        %v2133 = vadd.f32 %v1716, %v2132
        %2134 = vmatprep.mubr.bf16.mxu0 0
        %2135 = vmatmul.mubr.bf16.gmra.mrb[0].mxu0 %v1856
        %v2136 = vpop.f32.mrb[0].mxu0
        %v2137 = vadd.f32 %v1721, %v2136
        %v2138 = vpop.f32.mrb[0].mxu0
        %v2139 = vadd.f32 %v1721, %v2138
        %v2140 = vpop.f32.mrb[0].mxu0
        %v2141 = vadd.f32 %v1726, %v2140
        %v2142 = vpop.f32.mrb[0].mxu0
        %v2143 = vadd.f32 %v1726, %v2142
        %2144 = vmatprep.mubr.bf16.mxu0 0
        %2145 = vmatmul.mubr.bf16.gmra.mrb[0].mxu0 %v1857
        %v2146 = vpop.f32.mrb[0].mxu0
        %v2147 = vadd.f32 %v1731, %v2146
        %v2148 = vpop.f32.mrb[0].mxu0
        %v2149 = vadd.f32 %v1731, %v2148
        %v2150 = vpop.f32.mrb[0].mxu0
        %v2151 = vadd.f32 %v1736, %v2150
        %v2152 = vpop.f32.mrb[0].mxu0
        %v2153 = vadd.f32 %v1736, %v2152
        %2154 = vdwg.mxu0
        %2155 = vmatprep.subr.bf16.mxu0 %v1389
        %2156 = vmatpush1.bf16.msra.mxu0 %v1388
        %2157 = vmatprep.subr.bf16.mxu0 %v1397
        %2158 = vmatpush1.bf16.msra.mxu0 %v1396
        %2159 = vmatprep.subr.bf16.mxu0 %v1405
        %2160 = vmatpush1.bf16.msra.mxu0 %v1404
        %2161 = vmatprep.subr.bf16.mxu0 %v1413
        %2162 = vmatpush1.bf16.msra.mxu0 %v1412
        %2163 = vmatprep.subr.bf16.mxu0 %v1421
        %2164 = vmatpush1.bf16.msra.mxu0 %v1420
        %2165 = vmatprep.subr.bf16.mxu0 %v1429
        %2166 = vmatpush1.bf16.msra.mxu0 %v1428
        %2167 = vmatprep.subr.bf16.mxu0 %v1437
        %2168 = vmatpush1.bf16.msra.mxu0 %v1436
        %2169 = vmatprep.subr.bf16.mxu0 %v1445
        %2170 = vmatpush1.bf16.msra.mxu0 %v1444
        %2171 = vmatprep.subr.bf16.mxu0 0
        %2172 = vmatpush1.bf16.msra.mxu0 0
        %2173 = vmatprep.subr.bf16.mxu0 0
        %2174 = vmatpush1.bf16.msra.mxu0 0
        %2175 = vmatprep.subr.bf16.mxu0 0
        %2176 = vmatpush1.bf16.msra.mxu0 0
        %2177 = vmatprep.subr.bf16.mxu0 0
        %2178 = vmatpush1.bf16.msra.mxu0 0
        %2179 = vmatprep.subr.bf16.mxu0 0
        %2180 = vmatpush1.bf16.msra.mxu0 0
        %2181 = vmatprep.subr.bf16.mxu0 0
        %2182 = vmatpush1.bf16.msra.mxu0 0
        %2183 = vmatprep.subr.bf16.mxu0 0
        %2184 = vmatpush1.bf16.msra.mxu0 0
        %2185 = vmatprep.subr.bf16.mxu0 0
        %2186 = vmatpush1.bf16.msra.mxu0 0
        %2187 = vmatprep.mubr.bf16.mxu0 0
        %2188 = vmatmul.mubr.bf16.gmra.mrb[0].mxu0 %v1834
        %v2189 = vpop.f32.mrb[0].mxu0
        %v2190 = vpop.f32.mrb[0].mxu0
        %v2191 = vpop.f32.mrb[0].mxu0
        %v2192 = vpop.f32.mrb[0].mxu0
        %2193 = vmatprep.mubr.bf16.mxu0 0
        %2194 = vmatmul.mubr.bf16.gmra.mrb[0].mxu0 %v1835
        %v2195 = vpop.f32.mrb[0].mxu0
        %v2196 = vpop.f32.mrb[0].mxu0
        %v2197 = vpop.f32.mrb[0].mxu0
        %v2198 = vpop.f32.mrb[0].mxu0
        %2199 = vmatprep.mubr.bf16.mxu0 0
        %2200 = vmatmul.mubr.bf16.gmra.mrb[0].mxu0 %v1836
        %v2201 = vpop.f32.mrb[0].mxu0
        %v2202 = vpop.f32.mrb[0].mxu0
        %v2203 = vpop.f32.mrb[0].mxu0
        %v2204 = vpop.f32.mrb[0].mxu0
        %2205 = vmatprep.mubr.bf16.mxu0 0
        %2206 = vmatmul.mubr.bf16.gmra.mrb[0].mxu0 %v1837
        %v2207 = vpop.f32.mrb[0].mxu0
        %v2208 = vpop.f32.mrb[0].mxu0
        %v2209 = vpop.f32.mrb[0].mxu0
        %v2210 = vpop.f32.mrb[0].mxu0
        %2211 = vmatprep.mubr.bf16.mxu0 0
        %2212 = vmatmul.mubr.bf16.gmra.mrb[0].mxu0 %v1838
        %v2213 = vpop.f32.mrb[0].mxu0
        %v2214 = vpop.f32.mrb[0].mxu0
        %v2215 = vpop.f32.mrb[0].mxu0
        %v2216 = vpop.f32.mrb[0].mxu0
        %2217 = vmatprep.mubr.bf16.mxu0 0
        %2218 = vmatmul.mubr.bf16.gmra.mrb[0].mxu0 %v1839
        %v2219 = vpop.f32.mrb[0].mxu0
        %v2220 = vpop.f32.mrb[0].mxu0
        %v2221 = vpop.f32.mrb[0].mxu0
        %v2222 = vpop.f32.mrb[0].mxu0
        %2223 = vmatprep.mubr.bf16.mxu0 0
        %2224 = vmatmul.mubr.bf16.gmra.mrb[0].mxu0 %v1840
        %v2225 = vpop.f32.mrb[0].mxu0
        %v2226 = vpop.f32.mrb[0].mxu0
        %v2227 = vpop.f32.mrb[0].mxu0
        %v2228 = vpop.f32.mrb[0].mxu0
        %2229 = vmatprep.mubr.bf16.mxu0 0
        %2230 = vmatmul.mubr.bf16.gmra.mrb[0].mxu0 %v1841
        %v2231 = vpop.f32.mrb[0].mxu0
        %v2232 = vpop.f32.mrb[0].mxu0
        %v2233 = vpop.f32.mrb[0].mxu0
        %v2234 = vpop.f32.mrb[0].mxu0
        %2235 = vmatprep.mubr.bf16.mxu0 0
        %2236 = vmatmul.mubr.bf16.gmra.mrb[0].mxu0 %v1842
        %v2237 = vpop.f32.mrb[0].mxu0
        %v2238 = vadd.f32 %v1581, %v2237
        %v2239 = vpop.f32.mrb[0].mxu0
        %v2240 = vadd.f32 %v1581, %v2239
        %v2241 = vpop.f32.mrb[0].mxu0
        %v2242 = vadd.f32 %v1586, %v2241
        %v2243 = vpop.f32.mrb[0].mxu0
        %v2244 = vadd.f32 %v1586, %v2243
        %2245 = vmatprep.mubr.bf16.mxu0 0
        %2246 = vmatmul.mubr.bf16.gmra.mrb[0].mxu0 %v1843
        %v2247 = vpop.f32.mrb[0].mxu0
        %v2248 = vadd.f32 %v1591, %v2247
        %v2249 = vpop.f32.mrb[0].mxu0
        %v2250 = vadd.f32 %v1591, %v2249
        %v2251 = vpop.f32.mrb[0].mxu0
        %v2252 = vadd.f32 %v1596, %v2251
        %v2253 = vpop.f32.mrb[0].mxu0
        %v2254 = vadd.f32 %v1596, %v2253
        %2255 = vmatprep.mubr.bf16.mxu0 0
        %2256 = vmatmul.mubr.bf16.gmra.mrb[0].mxu0 %v1844
        %v2257 = vpop.f32.mrb[0].mxu0
        %v2258 = vadd.f32 %v1601, %v2257
        %v2259 = vpop.f32.mrb[0].mxu0
        %v2260 = vadd.f32 %v1601, %v2259
        %v2261 = vpop.f32.mrb[0].mxu0
        %v2262 = vadd.f32 %v1606, %v2261
        %v2263 = vpop.f32.mrb[0].mxu0
        %v2264 = vadd.f32 %v1606, %v2263
        %2265 = vmatprep.mubr.bf16.mxu0 0
        %2266 = vmatmul.mubr.bf16.gmra.mrb[0].mxu0 %v1845
        %v2267 = vpop.f32.mrb[0].mxu0
        %v2268 = vadd.f32 %v1611, %v2267
        %v2269 = vpop.f32.mrb[0].mxu0
        %v2270 = vadd.f32 %v1611, %v2269
        %v2271 = vpop.f32.mrb[0].mxu0
        %v2272 = vadd.f32 %v1616, %v2271
        %v2273 = vpop.f32.mrb[0].mxu0
        %v2274 = vadd.f32 %v1616, %v2273
        %2275 = vmatprep.mubr.bf16.mxu0 0
        %2276 = vmatmul.mubr.bf16.gmra.mrb[0].mxu0 %v1846
        %v2277 = vpop.f32.mrb[0].mxu0
        %v2278 = vadd.f32 %v1621, %v2277
        %v2279 = vpop.f32.mrb[0].mxu0
        %v2280 = vadd.f32 %v1621, %v2279
        %v2281 = vpop.f32.mrb[0].mxu0
        %v2282 = vadd.f32 %v1626, %v2281
        %v2283 = vpop.f32.mrb[0].mxu0
        %v2284 = vadd.f32 %v1626, %v2283
        %2285 = vmatprep.mubr.bf16.mxu0 0
        %2286 = vmatmul.mubr.bf16.gmra.mrb[0].mxu0 %v1847
        %v2287 = vpop.f32.mrb[0].mxu0
        %v2288 = vadd.f32 %v1631, %v2287
        %v2289 = vpop.f32.mrb[0].mxu0
        %v2290 = vadd.f32 %v1631, %v2289
        %v2291 = vpop.f32.mrb[0].mxu0
        %v2292 = vadd.f32 %v1636, %v2291
        %v2293 = vpop.f32.mrb[0].mxu0
        %v2294 = vadd.f32 %v1636, %v2293
        %2295 = vmatprep.mubr.bf16.mxu0 0
        %2296 = vmatmul.mubr.bf16.gmra.mrb[0].mxu0 %v1848
        %v2297 = vpop.f32.mrb[0].mxu0
        %v2298 = vadd.f32 %v1641, %v2297
        %v2299 = vpop.f32.mrb[0].mxu0
        %v2300 = vadd.f32 %v1641, %v2299
        %v2301 = vpop.f32.mrb[0].mxu0
        %v2302 = vadd.f32 %v1646, %v2301
        %v2303 = vpop.f32.mrb[0].mxu0
        %v2304 = vadd.f32 %v1646, %v2303
        %2305 = vmatprep.mubr.bf16.mxu0 0
        %2306 = vmatmul.mubr.bf16.gmra.mrb[0].mxu0 %v1849
        %v2307 = vpop.f32.mrb[0].mxu0
        %v2308 = vadd.f32 %v1651, %v2307
        %v2309 = vpop.f32.mrb[0].mxu0
        %v2310 = vadd.f32 %v1651, %v2309
        %v2311 = vpop.f32.mrb[0].mxu0
        %v2312 = vadd.f32 %v1656, %v2311
        %v2313 = vpop.f32.mrb[0].mxu0
        %v2314 = vadd.f32 %v1656, %v2313
        %2315 = vmatprep.mubr.bf16.mxu0 0
        %2316 = vmatmul.mubr.bf16.gmra.mrb[0].mxu0 %v1850
        %v2317 = vpop.f32.mrb[0].mxu0
        %v2318 = vadd.f32 %v1661, %v2317
        %v2319 = vpop.f32.mrb[0].mxu0
        %v2320 = vadd.f32 %v1661, %v2319
        %v2321 = vpop.f32.mrb[0].mxu0
        %v2322 = vadd.f32 %v1666, %v2321
        %v2323 = vpop.f32.mrb[0].mxu0
        %v2324 = vadd.f32 %v1666, %v2323
        %2325 = vmatprep.mubr.bf16.mxu0 0
        %2326 = vmatmul.mubr.bf16.gmra.mrb[0].mxu0 %v1851
        %v2327 = vpop.f32.mrb[0].mxu0
        %v2328 = vadd.f32 %v1671, %v2327
        %v2329 = vpop.f32.mrb[0].mxu0
        %v2330 = vadd.f32 %v1671, %v2329
        %v2331 = vpop.f32.mrb[0].mxu0
        %v2332 = vadd.f32 %v1676, %v2331
        %v2333 = vpop.f32.mrb[0].mxu0
        %v2334 = vadd.f32 %v1676, %v2333
        %2335 = vmatprep.mubr.bf16.mxu0 0
        %2336 = vmatmul.mubr.bf16.gmra.mrb[0].mxu0 %v1852
        %v2337 = vpop.f32.mrb[0].mxu0
        %v2338 = vadd.f32 %v1681, %v2337
        %v2339 = vpop.f32.mrb[0].mxu0
        %v2340 = vadd.f32 %v1681, %v2339
        %v2341 = vpop.f32.mrb[0].mxu0
        %v2342 = vadd.f32 %v1686, %v2341
        %v2343 = vpop.f32.mrb[0].mxu0
        %v2344 = vadd.f32 %v1686, %v2343
        %2345 = vmatprep.mubr.bf16.mxu0 0
        %2346 = vmatmul.mubr.bf16.gmra.mrb[0].mxu0 %v1853
        %v2347 = vpop.f32.mrb[0].mxu0
        %v2348 = vadd.f32 %v1691, %v2347
        %v2349 = vpop.f32.mrb[0].mxu0
        %v2350 = vadd.f32 %v1691, %v2349
        %v2351 = vpop.f32.mrb[0].mxu0
        %v2352 = vadd.f32 %v1696, %v2351
        %v2353 = vpop.f32.mrb[0].mxu0
        %v2354 = vadd.f32 %v1696, %v2353
        %2355 = vmatprep.mubr.bf16.mxu0 0
        %2356 = vmatmul.mubr.bf16.gmra.mrb[0].mxu0 %v1854
        %v2357 = vpop.f32.mrb[0].mxu0
        %v2358 = vadd.f32 %v1701, %v2357
        %v2359 = vpop.f32.mrb[0].mxu0
        %v2360 = vadd.f32 %v1701, %v2359
        %v2361 = vpop.f32.mrb[0].mxu0
        %v2362 = vadd.f32 %v1706, %v2361
        %v2363 = vpop.f32.mrb[0].mxu0
        %v2364 = vadd.f32 %v1706, %v2363
        %2365 = vmatprep.mubr.bf16.mxu0 0
        %2366 = vmatmul.mubr.bf16.gmra.mrb[0].mxu0 %v1855
        %v2367 = vpop.f32.mrb[0].mxu0
        %v2368 = vadd.f32 %v1711, %v2367
        %v2369 = vpop.f32.mrb[0].mxu0
        %v2370 = vadd.f32 %v1711, %v2369
        %v2371 = vpop.f32.mrb[0].mxu0
        %v2372 = vadd.f32 %v1716, %v2371
        %v2373 = vpop.f32.mrb[0].mxu0
        %v2374 = vadd.f32 %v1716, %v2373
        %2375 = vmatprep.mubr.bf16.mxu0 0
        %2376 = vmatmul.mubr.bf16.gmra.mrb[0].mxu0 %v1856
        %v2377 = vpop.f32.mrb[0].mxu0
        %v2378 = vadd.f32 %v1721, %v2377
        %v2379 = vpop.f32.mrb[0].mxu0
        %v2380 = vadd.f32 %v1721, %v2379
        %v2381 = vpop.f32.mrb[0].mxu0
        %v2382 = vadd.f32 %v1726, %v2381
        %v2383 = vpop.f32.mrb[0].mxu0
        %v2384 = vadd.f32 %v1726, %v2383
        %2385 = vmatprep.mubr.bf16.mxu0 0
        %2386 = vmatmul.mubr.bf16.gmra.mrb[0].mxu0 %v1857
        %v2387 = vpop.f32.mrb[0].mxu0
        %v2388 = vadd.f32 %v1731, %v2387
        %v2389 = vpop.f32.mrb[0].mxu0
        %v2390 = vadd.f32 %v1731, %v2389
        %v2391 = vpop.f32.mrb[0].mxu0
        %v2392 = vadd.f32 %v1736, %v2391
        %v2393 = vpop.f32.mrb[0].mxu0
        %v2394 = vadd.f32 %v1736, %v2393
        %2395 = vdwg.mxu0
        %2396 = vmatprep.subr.bf16.mxu0 %v1391
        %2397 = vmatpush1.bf16.msra.mxu0 %v1390
        %2398 = vmatprep.subr.bf16.mxu0 %v1399
        %2399 = vmatpush1.bf16.msra.mxu0 %v1398
        %2400 = vmatprep.subr.bf16.mxu0 %v1407
        %2401 = vmatpush1.bf16.msra.mxu0 %v1406
        %2402 = vmatprep.subr.bf16.mxu0 %v1415
        %2403 = vmatpush1.bf16.msra.mxu0 %v1414
        %2404 = vmatprep.subr.bf16.mxu0 %v1423
        %2405 = vmatpush1.bf16.msra.mxu0 %v1422
        %2406 = vmatprep.subr.bf16.mxu0 %v1431
        %2407 = vmatpush1.bf16.msra.mxu0 %v1430
        %2408 = vmatprep.subr.bf16.mxu0 %v1439
        %2409 = vmatpush1.bf16.msra.mxu0 %v1438
        %2410 = vmatprep.subr.bf16.mxu0 %v1447
        %2411 = vmatpush1.bf16.msra.mxu0 %v1446
        %2412 = vmatprep.subr.bf16.mxu0 0
        %2413 = vmatpush1.bf16.msra.mxu0 0
        %2414 = vmatprep.subr.bf16.mxu0 0
        %2415 = vmatpush1.bf16.msra.mxu0 0
        %2416 = vmatprep.subr.bf16.mxu0 0
        %2417 = vmatpush1.bf16.msra.mxu0 0
        %2418 = vmatprep.subr.bf16.mxu0 0
        %2419 = vmatpush1.bf16.msra.mxu0 0
        %2420 = vmatprep.subr.bf16.mxu0 0
        %2421 = vmatpush1.bf16.msra.mxu0 0
        %2422 = vmatprep.subr.bf16.mxu0 0
        %2423 = vmatpush1.bf16.msra.mxu0 0
        %2424 = vmatprep.subr.bf16.mxu0 0
        %2425 = vmatpush1.bf16.msra.mxu0 0
        %2426 = vmatprep.subr.bf16.mxu0 0
        %2427 = vmatpush1.bf16.msra.mxu0 0
        %2428 = vmatprep.mubr.bf16.mxu0 0
        %2429 = vmatmul.mubr.bf16.gmra.mrb[0].mxu0 %v1834
        %v2430 = vpop.f32.mrb[0].mxu0
        %v2431 = vpop.f32.mrb[0].mxu0
        %v2432 = vpop.f32.mrb[0].mxu0
        %v2433 = vpop.f32.mrb[0].mxu0
        %2434 = vmatprep.mubr.bf16.mxu0 0
        %2435 = vmatmul.mubr.bf16.gmra.mrb[0].mxu0 %v1835
        %v2436 = vpop.f32.mrb[0].mxu0
        %v2437 = vpop.f32.mrb[0].mxu0
        %v2438 = vpop.f32.mrb[0].mxu0
        %v2439 = vpop.f32.mrb[0].mxu0
        %2440 = vmatprep.mubr.bf16.mxu0 0
        %2441 = vmatmul.mubr.bf16.gmra.mrb[0].mxu0 %v1836
        %v2442 = vpop.f32.mrb[0].mxu0
        %v2443 = vpop.f32.mrb[0].mxu0
        %v2444 = vpop.f32.mrb[0].mxu0
        %v2445 = vpop.f32.mrb[0].mxu0
        %2446 = vmatprep.mubr.bf16.mxu0 0
        %2447 = vmatmul.mubr.bf16.gmra.mrb[0].mxu0 %v1837
        %v2448 = vpop.f32.mrb[0].mxu0
        %v2449 = vpop.f32.mrb[0].mxu0
        %v2450 = vpop.f32.mrb[0].mxu0
        %v2451 = vpop.f32.mrb[0].mxu0
        %2452 = vmatprep.mubr.bf16.mxu0 0
        %2453 = vmatmul.mubr.bf16.gmra.mrb[0].mxu0 %v1838
        %v2454 = vpop.f32.mrb[0].mxu0
        %v2455 = vpop.f32.mrb[0].mxu0
        %v2456 = vpop.f32.mrb[0].mxu0
        %v2457 = vpop.f32.mrb[0].mxu0
        %2458 = vmatprep.mubr.bf16.mxu0 0
        %2459 = vmatmul.mubr.bf16.gmra.mrb[0].mxu0 %v1839
        %v2460 = vpop.f32.mrb[0].mxu0
        %v2461 = vpop.f32.mrb[0].mxu0
        %v2462 = vpop.f32.mrb[0].mxu0
        %v2463 = vpop.f32.mrb[0].mxu0
        %2464 = vmatprep.mubr.bf16.mxu0 0
        %2465 = vmatmul.mubr.bf16.gmra.mrb[0].mxu0 %v1840
        %v2466 = vpop.f32.mrb[0].mxu0
        %v2467 = vpop.f32.mrb[0].mxu0
        %v2468 = vpop.f32.mrb[0].mxu0
        %v2469 = vpop.f32.mrb[0].mxu0
        %2470 = vmatprep.mubr.bf16.mxu0 0
        %2471 = vmatmul.mubr.bf16.gmra.mrb[0].mxu0 %v1841
        %v2472 = vpop.f32.mrb[0].mxu0
        %v2473 = vpop.f32.mrb[0].mxu0
        %v2474 = vpop.f32.mrb[0].mxu0
        %v2475 = vpop.f32.mrb[0].mxu0
        %2476 = vmatprep.mubr.bf16.mxu0 0
        %2477 = vmatmul.mubr.bf16.gmra.mrb[0].mxu0 %v1842
        %v2478 = vpop.f32.mrb[0].mxu0
        %v2479 = vadd.f32 %v1581, %v2478
        %v2480 = vpop.f32.mrb[0].mxu0
        %v2481 = vadd.f32 %v1581, %v2480
        %v2482 = vpop.f32.mrb[0].mxu0
        %v2483 = vadd.f32 %v1586, %v2482
        %v2484 = vpop.f32.mrb[0].mxu0
        %v2485 = vadd.f32 %v1586, %v2484
        %2486 = vmatprep.mubr.bf16.mxu0 0
        %2487 = vmatmul.mubr.bf16.gmra.mrb[0].mxu0 %v1843
        %v2488 = vpop.f32.mrb[0].mxu0
        %v2489 = vadd.f32 %v1591, %v2488
        %v2490 = vpop.f32.mrb[0].mxu0
        %v2491 = vadd.f32 %v1591, %v2490
        %v2492 = vpop.f32.mrb[0].mxu0
        %v2493 = vadd.f32 %v1596, %v2492
        %v2494 = vpop.f32.mrb[0].mxu0
        %v2495 = vadd.f32 %v1596, %v2494
        %2496 = vmatprep.mubr.bf16.mxu0 0
        %2497 = vmatmul.mubr.bf16.gmra.mrb[0].mxu0 %v1844
        %v2498 = vpop.f32.mrb[0].mxu0
        %v2499 = vadd.f32 %v1601, %v2498
        %v2500 = vpop.f32.mrb[0].mxu0
        %v2501 = vadd.f32 %v1601, %v2500
        %v2502 = vpop.f32.mrb[0].mxu0
        %v2503 = vadd.f32 %v1606, %v2502
        %v2504 = vpop.f32.mrb[0].mxu0
        %v2505 = vadd.f32 %v1606, %v2504
        %2506 = vmatprep.mubr.bf16.mxu0 0
        %2507 = vmatmul.mubr.bf16.gmra.mrb[0].mxu0 %v1845
        %v2508 = vpop.f32.mrb[0].mxu0
        %v2509 = vadd.f32 %v1611, %v2508
        %v2510 = vpop.f32.mrb[0].mxu0
        %v2511 = vadd.f32 %v1611, %v2510
        %v2512 = vpop.f32.mrb[0].mxu0
        %v2513 = vadd.f32 %v1616, %v2512
        %v2514 = vpop.f32.mrb[0].mxu0
        %v2515 = vadd.f32 %v1616, %v2514
        %2516 = vmatprep.mubr.bf16.mxu0 0
        %2517 = vmatmul.mubr.bf16.gmra.mrb[0].mxu0 %v1846
        %v2518 = vpop.f32.mrb[0].mxu0
        %v2519 = vadd.f32 %v1621, %v2518
        %v2520 = vpop.f32.mrb[0].mxu0
        %v2521 = vadd.f32 %v1621, %v2520
        %v2522 = vpop.f32.mrb[0].mxu0
        %v2523 = vadd.f32 %v1626, %v2522
        %v2524 = vpop.f32.mrb[0].mxu0
        %v2525 = vadd.f32 %v1626, %v2524
        %2526 = vmatprep.mubr.bf16.mxu0 0
        %2527 = vmatmul.mubr.bf16.gmra.mrb[0].mxu0 %v1847
        %v2528 = vpop.f32.mrb[0].mxu0
        %v2529 = vadd.f32 %v1631, %v2528
        %v2530 = vpop.f32.mrb[0].mxu0
        %v2531 = vadd.f32 %v1631, %v2530
        %v2532 = vpop.f32.mrb[0].mxu0
        %v2533 = vadd.f32 %v1636, %v2532
        %v2534 = vpop.f32.mrb[0].mxu0
        %v2535 = vadd.f32 %v1636, %v2534
        %2536 = vmatprep.mubr.bf16.mxu0 0
        %2537 = vmatmul.mubr.bf16.gmra.mrb[0].mxu0 %v1848
        %v2538 = vpop.f32.mrb[0].mxu0
        %v2539 = vadd.f32 %v1641, %v2538
        %v2540 = vpop.f32.mrb[0].mxu0
        %v2541 = vadd.f32 %v1641, %v2540
        %v2542 = vpop.f32.mrb[0].mxu0
        %v2543 = vadd.f32 %v1646, %v2542
        %v2544 = vpop.f32.mrb[0].mxu0
        %v2545 = vadd.f32 %v1646, %v2544
        %2546 = vmatprep.mubr.bf16.mxu0 0
        %2547 = vmatmul.mubr.bf16.gmra.mrb[0].mxu0 %v1849
        %v2548 = vpop.f32.mrb[0].mxu0
        %v2549 = vadd.f32 %v1651, %v2548
        %v2550 = vpop.f32.mrb[0].mxu0
        %v2551 = vadd.f32 %v1651, %v2550
        %v2552 = vpop.f32.mrb[0].mxu0
        %v2553 = vadd.f32 %v1656, %v2552
        %v2554 = vpop.f32.mrb[0].mxu0
        %v2555 = vadd.f32 %v1656, %v2554
        %2556 = vmatprep.mubr.bf16.mxu0 0
        %2557 = vmatmul.mubr.bf16.gmra.mrb[0].mxu0 %v1850
        %v2558 = vpop.f32.mrb[0].mxu0
        %v2559 = vadd.f32 %v1661, %v2558
        %v2560 = vpop.f32.mrb[0].mxu0
        %v2561 = vadd.f32 %v1661, %v2560
        %v2562 = vpop.f32.mrb[0].mxu0
        %v2563 = vadd.f32 %v1666, %v2562
        %v2564 = vpop.f32.mrb[0].mxu0
        %v2565 = vadd.f32 %v1666, %v2564
        %2566 = vmatprep.mubr.bf16.mxu0 0
        %2567 = vmatmul.mubr.bf16.gmra.mrb[0].mxu0 %v1851
        %v2568 = vpop.f32.mrb[0].mxu0
        %v2569 = vadd.f32 %v1671, %v2568
        %v2570 = vpop.f32.mrb[0].mxu0
        %v2571 = vadd.f32 %v1671, %v2570
        %v2572 = vpop.f32.mrb[0].mxu0
        %v2573 = vadd.f32 %v1676, %v2572
        %v2574 = vpop.f32.mrb[0].mxu0
        %v2575 = vadd.f32 %v1676, %v2574
        %2576 = vmatprep.mubr.bf16.mxu0 0
        %2577 = vmatmul.mubr.bf16.gmra.mrb[0].mxu0 %v1852
        %v2578 = vpop.f32.mrb[0].mxu0
        %v2579 = vadd.f32 %v1681, %v2578
        %v2580 = vpop.f32.mrb[0].mxu0
        %v2581 = vadd.f32 %v1681, %v2580
        %v2582 = vpop.f32.mrb[0].mxu0
        %v2583 = vadd.f32 %v1686, %v2582
        %v2584 = vpop.f32.mrb[0].mxu0
        %v2585 = vadd.f32 %v1686, %v2584
        %2586 = vmatprep.mubr.bf16.mxu0 0
        %2587 = vmatmul.mubr.bf16.gmra.mrb[0].mxu0 %v1853
        %v2588 = vpop.f32.mrb[0].mxu0
        %v2589 = vadd.f32 %v1691, %v2588
        %v2590 = vpop.f32.mrb[0].mxu0
        %v2591 = vadd.f32 %v1691, %v2590
        %v2592 = vpop.f32.mrb[0].mxu0
        %v2593 = vadd.f32 %v1696, %v2592
        %v2594 = vpop.f32.mrb[0].mxu0
        %v2595 = vadd.f32 %v1696, %v2594
        %2596 = vmatprep.mubr.bf16.mxu0 0
        %2597 = vmatmul.mubr.bf16.gmra.mrb[0].mxu0 %v1854
        %v2598 = vpop.f32.mrb[0].mxu0
        %v2599 = vadd.f32 %v1701, %v2598
        %v2600 = vpop.f32.mrb[0].mxu0
        %v2601 = vadd.f32 %v1701, %v2600
        %v2602 = vpop.f32.mrb[0].mxu0
        %v2603 = vadd.f32 %v1706, %v2602
        %v2604 = vpop.f32.mrb[0].mxu0
        %v2605 = vadd.f32 %v1706, %v2604
        %2606 = vmatprep.mubr.bf16.mxu0 0
        %2607 = vmatmul.mubr.bf16.gmra.mrb[0].mxu0 %v1855
        %v2608 = vpop.f32.mrb[0].mxu0
        %v2609 = vadd.f32 %v1711, %v2608
        %v2610 = vpop.f32.mrb[0].mxu0
        %v2611 = vadd.f32 %v1711, %v2610
        %v2612 = vpop.f32.mrb[0].mxu0
        %v2613 = vadd.f32 %v1716, %v2612
        %v2614 = vpop.f32.mrb[0].mxu0
        %v2615 = vadd.f32 %v1716, %v2614
        %2616 = vmatprep.mubr.bf16.mxu0 0
        %2617 = vmatmul.mubr.bf16.gmra.mrb[0].mxu0 %v1856
        %v2618 = vpop.f32.mrb[0].mxu0
        %v2619 = vadd.f32 %v1721, %v2618
        %v2620 = vpop.f32.mrb[0].mxu0
        %v2621 = vadd.f32 %v1721, %v2620
        %v2622 = vpop.f32.mrb[0].mxu0
        %v2623 = vadd.f32 %v1726, %v2622
        %v2624 = vpop.f32.mrb[0].mxu0
        %v2625 = vadd.f32 %v1726, %v2624
        %2626 = vmatprep.mubr.bf16.mxu0 0
        %2627 = vmatmul.mubr.bf16.gmra.mrb[0].mxu0 %v1857
        %v2628 = vpop.f32.mrb[0].mxu0
        %v2629 = vadd.f32 %v1731, %v2628
        %v2630 = vpop.f32.mrb[0].mxu0
        %v2631 = vadd.f32 %v1731, %v2630
        %v2632 = vpop.f32.mrb[0].mxu0
        %v2633 = vadd.f32 %v1736, %v2632
        %v2634 = vpop.f32.mrb[0].mxu0
        %v2635 = vadd.f32 %v1736, %v2634
        %2636 = vdwg.mxu0
        %2637 = vmatprep.subr.bf16.mxu0 %v1393
        %2638 = vmatpush1.bf16.msra.mxu0 %v1392
        %2639 = vmatprep.subr.bf16.mxu0 %v1401
        %2640 = vmatpush1.bf16.msra.mxu0 %v1400
        %2641 = vmatprep.subr.bf16.mxu0 %v1409
        %2642 = vmatpush1.bf16.msra.mxu0 %v1408
        %2643 = vmatprep.subr.bf16.mxu0 %v1417
        %2644 = vmatpush1.bf16.msra.mxu0 %v1416
        %2645 = vmatprep.subr.bf16.mxu0 %v1425
        %2646 = vmatpush1.bf16.msra.mxu0 %v1424
        %2647 = vmatprep.subr.bf16.mxu0 %v1433
        %2648 = vmatpush1.bf16.msra.mxu0 %v1432
        %2649 = vmatprep.subr.bf16.mxu0 %v1441
        %2650 = vmatpush1.bf16.msra.mxu0 %v1440
        %2651 = vmatprep.subr.bf16.mxu0 %v1449
        %2652 = vmatpush1.bf16.msra.mxu0 %v1448
        %2653 = vmatprep.subr.bf16.mxu0 0
        %2654 = vmatpush1.bf16.msra.mxu0 0
        %2655 = vmatprep.subr.bf16.mxu0 0
        %2656 = vmatpush1.bf16.msra.mxu0 0
        %2657 = vmatprep.subr.bf16.mxu0 0
        %2658 = vmatpush1.bf16.msra.mxu0 0
        %2659 = vmatprep.subr.bf16.mxu0 0
        %2660 = vmatpush1.bf16.msra.mxu0 0
        %2661 = vmatprep.subr.bf16.mxu0 0
        %2662 = vmatpush1.bf16.msra.mxu0 0
        %2663 = vmatprep.subr.bf16.mxu0 0
        %2664 = vmatpush1.bf16.msra.mxu0 0
        %2665 = vmatprep.subr.bf16.mxu0 0
        %2666 = vmatpush1.bf16.msra.mxu0 0
        %2667 = vmatprep.subr.bf16.mxu0 0
        %2668 = vmatpush1.bf16.msra.mxu0 0
        %2669 = vmatprep.mubr.bf16.mxu0 0
        %2670 = vmatmul.mubr.bf16.gmra.mrb[0].mxu0 %v1834
        %v2671 = vpop.f32.mrb[0].mxu0
        %v2672 = vpop.f32.mrb[0].mxu0
        %v2673 = vpop.f32.mrb[0].mxu0
        %v2674 = vpop.f32.mrb[0].mxu0
        %2675 = vmatprep.mubr.bf16.mxu0 0
        %2676 = vmatmul.mubr.bf16.gmra.mrb[0].mxu0 %v1835
        %v2677 = vpop.f32.mrb[0].mxu0
        %v2678 = vpop.f32.mrb[0].mxu0
        %v2679 = vpop.f32.mrb[0].mxu0
        %v2680 = vpop.f32.mrb[0].mxu0
        %2681 = vmatprep.mubr.bf16.mxu0 0
        %2682 = vmatmul.mubr.bf16.gmra.mrb[0].mxu0 %v1836
        %v2683 = vpop.f32.mrb[0].mxu0
        %v2684 = vpop.f32.mrb[0].mxu0
        %v2685 = vpop.f32.mrb[0].mxu0
        %v2686 = vpop.f32.mrb[0].mxu0
        %2687 = vmatprep.mubr.bf16.mxu0 0
        %2688 = vmatmul.mubr.bf16.gmra.mrb[0].mxu0 %v1837
        %v2689 = vpop.f32.mrb[0].mxu0
        %v2690 = vpop.f32.mrb[0].mxu0
        %v2691 = vpop.f32.mrb[0].mxu0
        %v2692 = vpop.f32.mrb[0].mxu0
        %2693 = vmatprep.mubr.bf16.mxu0 0
        %2694 = vmatmul.mubr.bf16.gmra.mrb[0].mxu0 %v1838
        %v2695 = vpop.f32.mrb[0].mxu0
        %v2696 = vpop.f32.mrb[0].mxu0
        %v2697 = vpop.f32.mrb[0].mxu0
        %v2698 = vpop.f32.mrb[0].mxu0
        %2699 = vmatprep.mubr.bf16.mxu0 0
        %2700 = vmatmul.mubr.bf16.gmra.mrb[0].mxu0 %v1839
        %v2701 = vpop.f32.mrb[0].mxu0
        %v2702 = vpop.f32.mrb[0].mxu0
        %v2703 = vpop.f32.mrb[0].mxu0
        %v2704 = vpop.f32.mrb[0].mxu0
        %2705 = vmatprep.mubr.bf16.mxu0 0
        %2706 = vmatmul.mubr.bf16.gmra.mrb[0].mxu0 %v1840
        %v2707 = vpop.f32.mrb[0].mxu0
        %v2708 = vpop.f32.mrb[0].mxu0
        %v2709 = vpop.f32.mrb[0].mxu0
        %v2710 = vpop.f32.mrb[0].mxu0
        %2711 = vmatprep.mubr.bf16.mxu0 0
        %2712 = vmatmul.mubr.bf16.gmra.mrb[0].mxu0 %v1841
        %v2713 = vpop.f32.mrb[0].mxu0
        %v2714 = vpop.f32.mrb[0].mxu0
        %v2715 = vpop.f32.mrb[0].mxu0
        %v2716 = vpop.f32.mrb[0].mxu0
        %2717 = vmatprep.mubr.bf16.mxu0 0
        %2718 = vmatmul.mubr.bf16.gmra.mrb[0].mxu0 %v1842
        %v2719 = vpop.f32.mrb[0].mxu0
        %v2720 = vadd.f32 %v1581, %v2719
        %v2721 = vpop.f32.mrb[0].mxu0
        %v2722 = vadd.f32 %v1581, %v2721
        %v2723 = vpop.f32.mrb[0].mxu0
        %v2724 = vadd.f32 %v1586, %v2723
        %v2725 = vpop.f32.mrb[0].mxu0
        %v2726 = vadd.f32 %v1586, %v2725
        %2727 = vmatprep.mubr.bf16.mxu0 0
        %2728 = vmatmul.mubr.bf16.gmra.mrb[0].mxu0 %v1843
        %v2729 = vpop.f32.mrb[0].mxu0
        %v2730 = vadd.f32 %v1591, %v2729
        %v2731 = vpop.f32.mrb[0].mxu0
        %v2732 = vadd.f32 %v1591, %v2731
        %v2733 = vpop.f32.mrb[0].mxu0
        %v2734 = vadd.f32 %v1596, %v2733
        %v2735 = vpop.f32.mrb[0].mxu0
        %v2736 = vadd.f32 %v1596, %v2735
        %2737 = vmatprep.mubr.bf16.mxu0 0
        %2738 = vmatmul.mubr.bf16.gmra.mrb[0].mxu0 %v1844
        %v2739 = vpop.f32.mrb[0].mxu0
        %v2740 = vadd.f32 %v1601, %v2739
        %v2741 = vpop.f32.mrb[0].mxu0
        %v2742 = vadd.f32 %v1601, %v2741
        %v2743 = vpop.f32.mrb[0].mxu0
        %v2744 = vadd.f32 %v1606, %v2743
        %v2745 = vpop.f32.mrb[0].mxu0
        %v2746 = vadd.f32 %v1606, %v2745
        %2747 = vmatprep.mubr.bf16.mxu0 0
        %2748 = vmatmul.mubr.bf16.gmra.mrb[0].mxu0 %v1845
        %v2749 = vpop.f32.mrb[0].mxu0
        %v2750 = vadd.f32 %v1611, %v2749
        %v2751 = vpop.f32.mrb[0].mxu0
        %v2752 = vadd.f32 %v1611, %v2751
        %v2753 = vpop.f32.mrb[0].mxu0
        %v2754 = vadd.f32 %v1616, %v2753
        %v2755 = vpop.f32.mrb[0].mxu0
        %v2756 = vadd.f32 %v1616, %v2755
        %2757 = vmatprep.mubr.bf16.mxu0 0
        %2758 = vmatmul.mubr.bf16.gmra.mrb[0].mxu0 %v1846
        %v2759 = vpop.f32.mrb[0].mxu0
        %v2760 = vadd.f32 %v1621, %v2759
        %v2761 = vpop.f32.mrb[0].mxu0
        %v2762 = vadd.f32 %v1621, %v2761
        %v2763 = vpop.f32.mrb[0].mxu0
        %v2764 = vadd.f32 %v1626, %v2763
        %v2765 = vpop.f32.mrb[0].mxu0
        %v2766 = vadd.f32 %v1626, %v2765
        %2767 = vmatprep.mubr.bf16.mxu0 0
        %2768 = vmatmul.mubr.bf16.gmra.mrb[0].mxu0 %v1847
        %v2769 = vpop.f32.mrb[0].mxu0
        %v2770 = vadd.f32 %v1631, %v2769
        %v2771 = vpop.f32.mrb[0].mxu0
        %v2772 = vadd.f32 %v1631, %v2771
        %v2773 = vpop.f32.mrb[0].mxu0
        %v2774 = vadd.f32 %v1636, %v2773
        %v2775 = vpop.f32.mrb[0].mxu0
        %v2776 = vadd.f32 %v1636, %v2775
        %2777 = vmatprep.mubr.bf16.mxu0 0
        %2778 = vmatmul.mubr.bf16.gmra.mrb[0].mxu0 %v1848
        %v2779 = vpop.f32.mrb[0].mxu0
        %v2780 = vadd.f32 %v1641, %v2779
        %v2781 = vpop.f32.mrb[0].mxu0
        %v2782 = vadd.f32 %v1641, %v2781
        %v2783 = vpop.f32.mrb[0].mxu0
        %v2784 = vadd.f32 %v1646, %v2783
        %v2785 = vpop.f32.mrb[0].mxu0
        %v2786 = vadd.f32 %v1646, %v2785
        %2787 = vmatprep.mubr.bf16.mxu0 0
        %2788 = vmatmul.mubr.bf16.gmra.mrb[0].mxu0 %v1849
        %v2789 = vpop.f32.mrb[0].mxu0
        %v2790 = vadd.f32 %v1651, %v2789
        %v2791 = vpop.f32.mrb[0].mxu0
        %v2792 = vadd.f32 %v1651, %v2791
        %v2793 = vpop.f32.mrb[0].mxu0
        %v2794 = vadd.f32 %v1656, %v2793
        %v2795 = vpop.f32.mrb[0].mxu0
        %v2796 = vadd.f32 %v1656, %v2795
        %2797 = vmatprep.mubr.bf16.mxu0 0
        %2798 = vmatmul.mubr.bf16.gmra.mrb[0].mxu0 %v1850
        %v2799 = vpop.f32.mrb[0].mxu0
        %v2800 = vadd.f32 %v1661, %v2799
        %v2801 = vpop.f32.mrb[0].mxu0
        %v2802 = vadd.f32 %v1661, %v2801
        %v2803 = vpop.f32.mrb[0].mxu0
        %v2804 = vadd.f32 %v1666, %v2803
        %v2805 = vpop.f32.mrb[0].mxu0
        %v2806 = vadd.f32 %v1666, %v2805
        %2807 = vmatprep.mubr.bf16.mxu0 0
        %2808 = vmatmul.mubr.bf16.gmra.mrb[0].mxu0 %v1851
        %v2809 = vpop.f32.mrb[0].mxu0
        %v2810 = vadd.f32 %v1671, %v2809
        %v2811 = vpop.f32.mrb[0].mxu0
        %v2812 = vadd.f32 %v1671, %v2811
        %v2813 = vpop.f32.mrb[0].mxu0
        %v2814 = vadd.f32 %v1676, %v2813
        %v2815 = vpop.f32.mrb[0].mxu0
        %v2816 = vadd.f32 %v1676, %v2815
        %2817 = vmatprep.mubr.bf16.mxu0 0
        %2818 = vmatmul.mubr.bf16.gmra.mrb[0].mxu0 %v1852
        %v2819 = vpop.f32.mrb[0].mxu0
        %v2820 = vadd.f32 %v1681, %v2819
        %v2821 = vpop.f32.mrb[0].mxu0
        %v2822 = vadd.f32 %v1681, %v2821
        %v2823 = vpop.f32.mrb[0].mxu0
        %v2824 = vadd.f32 %v1686, %v2823
        %v2825 = vpop.f32.mrb[0].mxu0
        %v2826 = vadd.f32 %v1686, %v2825
        %2827 = vmatprep.mubr.bf16.mxu0 0
        %2828 = vmatmul.mubr.bf16.gmra.mrb[0].mxu0 %v1853
        %v2829 = vpop.f32.mrb[0].mxu0
        %v2830 = vadd.f32 %v1691, %v2829
        %v2831 = vpop.f32.mrb[0].mxu0
        %v2832 = vadd.f32 %v1691, %v2831
        %v2833 = vpop.f32.mrb[0].mxu0
        %v2834 = vadd.f32 %v1696, %v2833
        %v2835 = vpop.f32.mrb[0].mxu0
        %v2836 = vadd.f32 %v1696, %v2835
        %2837 = vmatprep.mubr.bf16.mxu0 0
        %2838 = vmatmul.mubr.bf16.gmra.mrb[0].mxu0 %v1854
        %v2839 = vpop.f32.mrb[0].mxu0
        %v2840 = vadd.f32 %v1701, %v2839
        %v2841 = vpop.f32.mrb[0].mxu0
        %v2842 = vadd.f32 %v1701, %v2841
        %v2843 = vpop.f32.mrb[0].mxu0
        %v2844 = vadd.f32 %v1706, %v2843
        %v2845 = vpop.f32.mrb[0].mxu0
        %v2846 = vadd.f32 %v1706, %v2845
        %2847 = vmatprep.mubr.bf16.mxu0 0
        %2848 = vmatmul.mubr.bf16.gmra.mrb[0].mxu0 %v1855
        %v2849 = vpop.f32.mrb[0].mxu0
        %v2850 = vadd.f32 %v1711, %v2849
        %v2851 = vpop.f32.mrb[0].mxu0
        %v2852 = vadd.f32 %v1711, %v2851
        %v2853 = vpop.f32.mrb[0].mxu0
        %v2854 = vadd.f32 %v1716, %v2853
        %v2855 = vpop.f32.mrb[0].mxu0
        %v2856 = vadd.f32 %v1716, %v2855
        %2857 = vmatprep.mubr.bf16.mxu0 0
        %2858 = vmatmul.mubr.bf16.gmra.mrb[0].mxu0 %v1856
        %v2859 = vpop.f32.mrb[0].mxu0
        %v2860 = vadd.f32 %v1721, %v2859
        %v2861 = vpop.f32.mrb[0].mxu0
        %v2862 = vadd.f32 %v1721, %v2861
        %v2863 = vpop.f32.mrb[0].mxu0
        %v2864 = vadd.f32 %v1726, %v2863
        %v2865 = vpop.f32.mrb[0].mxu0
        %v2866 = vadd.f32 %v1726, %v2865
        %2867 = vmatprep.mubr.bf16.mxu0 0
        %2868 = vmatmul.mubr.bf16.gmra.mrb[0].mxu0 %v1857
        %v2869 = vpop.f32.mrb[0].mxu0
        %v2870 = vadd.f32 %v1731, %v2869
        %v2871 = vpop.f32.mrb[0].mxu0
        %v2872 = vadd.f32 %v1731, %v2871
        %v2873 = vpop.f32.mrb[0].mxu0
        %v2874 = vadd.f32 %v1736, %v2873
        %v2875 = vpop.f32.mrb[0].mxu0
        %v2876 = vadd.f32 %v1736, %v2875
        %2877 = vdwg.mxu0
        %2878 = vxpose.xlu0.b32.start [1/16] %v1917, 128
        %2879 = vxpose.xlu0.b32.cont [2/16] %v1921, 128
        %2880 = vxpose.xlu0.b32.cont [3/16] %v1927, 128
        %2881 = vxpose.xlu0.b32.cont [4/16] %v1931, 128
        %2882 = vxpose.xlu0.b32.cont [5/16] %v1937, 128
        %2883 = vxpose.xlu0.b32.cont [6/16] %v1941, 128
        %2884 = vxpose.xlu0.b32.cont [7/16] %v1947, 128
        %2885 = vxpose.xlu0.b32.cont [8/16] %v1951, 128
        %2886 = vxpose.xlu0.b32.cont [9/16] %v1957, 128
        %2887 = vxpose.xlu0.b32.cont [10/16] %v1961, 128
        %2888 = vxpose.xlu0.b32.cont [11/16] %v1967, 128
        %2889 = vxpose.xlu0.b32.cont [12/16] %v1971, 128
        %2890 = vxpose.xlu0.b32.cont [13/16] %v1977, 128
        %2891 = vxpose.xlu0.b32.cont [14/16] %v1981, 128
        %2892 = vxpose.xlu0.b32.cont [15/16] %v1987, 128
        %2893 = vxpose.xlu0.b32.end [16/16] %v1991, 128
        %v2894 = vpop.trf.xlu0
        %v2895 = vpop.trf.xlu0
        %v2896 = vpop.trf.xlu0
        %v2897 = vpop.trf.xlu0
        %v2898 = vpop.trf.xlu0
        %v2899 = vpop.trf.xlu0
        %v2900 = vpop.trf.xlu0
        %v2901 = vpop.trf.xlu0
        %v2902 = vpop.trf.xlu0
        %v2903 = vpop.trf.xlu0
        %v2904 = vpop.trf.xlu0
        %v2905 = vpop.trf.xlu0
        %v2906 = vpop.trf.xlu0
        %v2907 = vpop.trf.xlu0
        %v2908 = vpop.trf.xlu0
        %v2909 = vpop.trf.xlu0
        %2910 = vxpose.xlu0.b32.start [1/16] %v1919, 128
        %2911 = vxpose.xlu0.b32.cont [2/16] %v1923, 128
        %2912 = vxpose.xlu0.b32.cont [3/16] %v1929, 128
        %2913 = vxpose.xlu0.b32.cont [4/16] %v1933, 128
        %2914 = vxpose.xlu0.b32.cont [5/16] %v1939, 128
        %2915 = vxpose.xlu0.b32.cont [6/16] %v1943, 128
        %2916 = vxpose.xlu0.b32.cont [7/16] %v1949, 128
        %2917 = vxpose.xlu0.b32.cont [8/16] %v1953, 128
        %2918 = vxpose.xlu0.b32.cont [9/16] %v1959, 128
        %2919 = vxpose.xlu0.b32.cont [10/16] %v1963, 128
        %2920 = vxpose.xlu0.b32.cont [11/16] %v1969, 128
        %2921 = vxpose.xlu0.b32.cont [12/16] %v1973, 128
        %2922 = vxpose.xlu0.b32.cont [13/16] %v1979, 128
        %2923 = vxpose.xlu0.b32.cont [14/16] %v1983, 128
        %2924 = vxpose.xlu0.b32.cont [15/16] %v1989, 128
        %2925 = vxpose.xlu0.b32.end [16/16] %v1993, 128
        %v2926 = vpop.trf.xlu0
        %v2927 = vpop.trf.xlu0
        %v2928 = vpop.trf.xlu0
        %v2929 = vpop.trf.xlu0
        %v2930 = vpop.trf.xlu0
        %v2931 = vpop.trf.xlu0
        %v2932 = vpop.trf.xlu0
        %v2933 = vpop.trf.xlu0
        %v2934 = vpop.trf.xlu0
        %v2935 = vpop.trf.xlu0
        %v2936 = vpop.trf.xlu0
        %v2937 = vpop.trf.xlu0
        %v2938 = vpop.trf.xlu0
        %v2939 = vpop.trf.xlu0
        %v2940 = vpop.trf.xlu0
        %v2941 = vpop.trf.xlu0
        %v2942 = vpack.c.bf16 %v2895, %v2894
        %v2943 = vpack.c.bf16 %v2897, %v2896
        %v2944 = vpack.c.bf16 %v2899, %v2898
        %v2945 = vpack.c.bf16 %v2901, %v2900
        %v2946 = vpack.c.bf16 %v2903, %v2902
        %v2947 = vpack.c.bf16 %v2905, %v2904
        %v2948 = vpack.c.bf16 %v2907, %v2906
        %v2949 = vpack.c.bf16 %v2909, %v2908
        %v2950 = vpack.c.bf16 %v2927, %v2926
        %v2951 = vpack.c.bf16 %v2929, %v2928
        %v2952 = vpack.c.bf16 %v2931, %v2930
        %v2953 = vpack.c.bf16 %v2933, %v2932
        %v2954 = vpack.c.bf16 %v2935, %v2934
        %v2955 = vpack.c.bf16 %v2937, %v2936
        %v2956 = vpack.c.bf16 %v2939, %v2938
        %v2957 = vpack.c.bf16 %v2941, %v2940
        %v2958 = vpack.c.bf16 %v2001, %v1997
        %v2959 = vpack.c.bf16 %v2003, %v1999
        %v2960 = vpack.c.bf16 %v2242, %v2238
        %v2961 = vpack.c.bf16 %v2244, %v2240
        %v2962 = vpack.c.bf16 %v2483, %v2479
        %v2963 = vpack.c.bf16 %v2485, %v2481
        %v2964 = vpack.c.bf16 %v2724, %v2720
        %v2965 = vpack.c.bf16 %v2726, %v2722
        %v2966 = vpack.c.bf16 %v2011, %v2007
        %v2967 = vpack.c.bf16 %v2013, %v2009
        %v2968 = vpack.c.bf16 %v2252, %v2248
        %v2969 = vpack.c.bf16 %v2254, %v2250
        %v2970 = vpack.c.bf16 %v2493, %v2489
        %v2971 = vpack.c.bf16 %v2495, %v2491
        %v2972 = vpack.c.bf16 %v2734, %v2730
        %v2973 = vpack.c.bf16 %v2736, %v2732
        %v2974 = vpack.c.bf16 %v2021, %v2017
        %v2975 = vpack.c.bf16 %v2023, %v2019
        %v2976 = vpack.c.bf16 %v2262, %v2258
        %v2977 = vpack.c.bf16 %v2264, %v2260
        %v2978 = vpack.c.bf16 %v2503, %v2499
        %v2979 = vpack.c.bf16 %v2505, %v2501
        %v2980 = vpack.c.bf16 %v2744, %v2740
        %v2981 = vpack.c.bf16 %v2746, %v2742
        %v2982 = vpack.c.bf16 %v2031, %v2027
        %v2983 = vpack.c.bf16 %v2033, %v2029
        %v2984 = vpack.c.bf16 %v2272, %v2268
        %v2985 = vpack.c.bf16 %v2274, %v2270
        %v2986 = vpack.c.bf16 %v2513, %v2509
        %v2987 = vpack.c.bf16 %v2515, %v2511
        %v2988 = vpack.c.bf16 %v2754, %v2750
        %v2989 = vpack.c.bf16 %v2756, %v2752
        %v2990 = vpack.c.bf16 %v2041, %v2037
        %v2991 = vpack.c.bf16 %v2043, %v2039
        %v2992 = vpack.c.bf16 %v2282, %v2278
        %v2993 = vpack.c.bf16 %v2284, %v2280
        %v2994 = vpack.c.bf16 %v2523, %v2519
        %v2995 = vpack.c.bf16 %v2525, %v2521
        %v2996 = vpack.c.bf16 %v2764, %v2760
        %v2997 = vpack.c.bf16 %v2766, %v2762
        %v2998 = vpack.c.bf16 %v2051, %v2047
        %v2999 = vpack.c.bf16 %v2053, %v2049
        %v3000 = vpack.c.bf16 %v2292, %v2288
        %v3001 = vpack.c.bf16 %v2294, %v2290
        %v3002 = vpack.c.bf16 %v2533, %v2529
        %v3003 = vpack.c.bf16 %v2535, %v2531
        %v3004 = vpack.c.bf16 %v2774, %v2770
        %v3005 = vpack.c.bf16 %v2776, %v2772
        %v3006 = vpack.c.bf16 %v2061, %v2057
        %v3007 = vpack.c.bf16 %v2063, %v2059
        %v3008 = vpack.c.bf16 %v2302, %v2298
        %v3009 = vpack.c.bf16 %v2304, %v2300
        %v3010 = vpack.c.bf16 %v2543, %v2539
        %v3011 = vpack.c.bf16 %v2545, %v2541
        %v3012 = vpack.c.bf16 %v2784, %v2780
        %v3013 = vpack.c.bf16 %v2786, %v2782
        %v3014 = vpack.c.bf16 %v2071, %v2067
        %v3015 = vpack.c.bf16 %v2073, %v2069
        %v3016 = vpack.c.bf16 %v2312, %v2308
        %v3017 = vpack.c.bf16 %v2314, %v2310
        %v3018 = vpack.c.bf16 %v2553, %v2549
        %v3019 = vpack.c.bf16 %v2555, %v2551
        %v3020 = vpack.c.bf16 %v2794, %v2790
        %v3021 = vpack.c.bf16 %v2796, %v2792
        %3022 = vmatprep.subr.bf16.mxu0 %v2959
        %3023 = vmatpush1.bf16.msra.mxu0 %v2958
        %3024 = vmatprep.subr.bf16.mxu0 %v2967
        %3025 = vmatpush1.bf16.msra.mxu0 %v2966
        %3026 = vmatprep.subr.bf16.mxu0 %v2975
        %3027 = vmatpush1.bf16.msra.mxu0 %v2974
        %3028 = vmatprep.subr.bf16.mxu0 %v2983
        %3029 = vmatpush1.bf16.msra.mxu0 %v2982
        %3030 = vmatprep.subr.bf16.mxu0 %v2991
        %3031 = vmatpush1.bf16.msra.mxu0 %v2990
        %3032 = vmatprep.subr.bf16.mxu0 %v2999
        %3033 = vmatpush1.bf16.msra.mxu0 %v2998
        %3034 = vmatprep.subr.bf16.mxu0 %v3007
        %3035 = vmatpush1.bf16.msra.mxu0 %v3006
        %3036 = vmatprep.subr.bf16.mxu0 %v3015
        %3037 = vmatpush1.bf16.msra.mxu0 %v3014
        %3038 = vmatprep.subr.bf16.mxu0 0
        %3039 = vmatpush1.bf16.msra.mxu0 0
        %3040 = vmatprep.subr.bf16.mxu0 0
        %3041 = vmatpush1.bf16.msra.mxu0 0
        %3042 = vmatprep.subr.bf16.mxu0 0
        %3043 = vmatpush1.bf16.msra.mxu0 0
        %3044 = vmatprep.subr.bf16.mxu0 0
        %3045 = vmatpush1.bf16.msra.mxu0 0
        %3046 = vmatprep.subr.bf16.mxu0 0
        %3047 = vmatpush1.bf16.msra.mxu0 0
        %3048 = vmatprep.subr.bf16.mxu0 0
        %3049 = vmatpush1.bf16.msra.mxu0 0
        %3050 = vmatprep.subr.bf16.mxu0 0
        %3051 = vmatpush1.bf16.msra.mxu0 0
        %3052 = vmatprep.subr.bf16.mxu0 0
        %3053 = vmatpush1.bf16.msra.mxu0 0
        %3054 = vmatprep.mubr.bf16.mxu0 0
        %3055 = vmatmul.mubr.bf16.gmra.mrb[0].mxu0 %v2942
        %v3056 = vpop.f32.mrb[0].mxu0
        %v3057 = vadd.f32 0.0, %v3056
        %v3058 = vpop.f32.mrb[0].mxu0
        %v3059 = vadd.f32 0.0, %v3058
        %v3060 = vpop.f32.mrb[0].mxu0
        %v3061 = vadd.f32 0.0, %v3060
        %v3062 = vpop.f32.mrb[0].mxu0
        %v3063 = vadd.f32 0.0, %v3062
        %3064 = vmatprep.mubr.bf16.mxu0 0
        %3065 = vmatmul.mubr.bf16.gmra.mrb[0].mxu0 %v2943
        %v3066 = vpop.f32.mrb[0].mxu0
        %v3067 = vadd.f32 0.0, %v3066
        %v3068 = vpop.f32.mrb[0].mxu0
        %v3069 = vadd.f32 0.0, %v3068
        %v3070 = vpop.f32.mrb[0].mxu0
        %v3071 = vadd.f32 0.0, %v3070
        %v3072 = vpop.f32.mrb[0].mxu0
        %v3073 = vadd.f32 0.0, %v3072
        %3074 = vmatprep.mubr.bf16.mxu0 0
        %3075 = vmatmul.mubr.bf16.gmra.mrb[0].mxu0 %v2944
        %v3076 = vpop.f32.mrb[0].mxu0
        %v3077 = vadd.f32 0.0, %v3076
        %v3078 = vpop.f32.mrb[0].mxu0
        %v3079 = vadd.f32 0.0, %v3078
        %v3080 = vpop.f32.mrb[0].mxu0
        %v3081 = vadd.f32 0.0, %v3080
        %v3082 = vpop.f32.mrb[0].mxu0
        %v3083 = vadd.f32 0.0, %v3082
        %3084 = vmatprep.mubr.bf16.mxu0 0
        %3085 = vmatmul.mubr.bf16.gmra.mrb[0].mxu0 %v2945
        %v3086 = vpop.f32.mrb[0].mxu0
        %v3087 = vadd.f32 0.0, %v3086
        %v3088 = vpop.f32.mrb[0].mxu0
        %v3089 = vadd.f32 0.0, %v3088
        %v3090 = vpop.f32.mrb[0].mxu0
        %v3091 = vadd.f32 0.0, %v3090
        %v3092 = vpop.f32.mrb[0].mxu0
        %v3093 = vadd.f32 0.0, %v3092
        %3094 = vmatprep.mubr.bf16.mxu0 0
        %3095 = vmatmul.mubr.bf16.gmra.mrb[0].mxu0 %v2946
        %v3096 = vpop.f32.mrb[0].mxu0
        %v3097 = vadd.f32 0.0, %v3096
        %v3098 = vpop.f32.mrb[0].mxu0
        %v3099 = vadd.f32 0.0, %v3098
        %v3100 = vpop.f32.mrb[0].mxu0
        %v3101 = vadd.f32 0.0, %v3100
        %v3102 = vpop.f32.mrb[0].mxu0
        %v3103 = vadd.f32 0.0, %v3102
        %3104 = vmatprep.mubr.bf16.mxu0 0
        %3105 = vmatmul.mubr.bf16.gmra.mrb[0].mxu0 %v2947
        %v3106 = vpop.f32.mrb[0].mxu0
        %v3107 = vadd.f32 0.0, %v3106
        %v3108 = vpop.f32.mrb[0].mxu0
        %v3109 = vadd.f32 0.0, %v3108
        %v3110 = vpop.f32.mrb[0].mxu0
        %v3111 = vadd.f32 0.0, %v3110
        %v3112 = vpop.f32.mrb[0].mxu0
        %v3113 = vadd.f32 0.0, %v3112
        %3114 = vmatprep.mubr.bf16.mxu0 0
        %3115 = vmatmul.mubr.bf16.gmra.mrb[0].mxu0 %v2948
        %v3116 = vpop.f32.mrb[0].mxu0
        %v3117 = vadd.f32 0.0, %v3116
        %v3118 = vpop.f32.mrb[0].mxu0
        %v3119 = vadd.f32 0.0, %v3118
        %v3120 = vpop.f32.mrb[0].mxu0
        %v3121 = vadd.f32 0.0, %v3120
        %v3122 = vpop.f32.mrb[0].mxu0
        %v3123 = vadd.f32 0.0, %v3122
        %3124 = vmatprep.mubr.bf16.mxu0 0
        %3125 = vmatmul.mubr.bf16.gmra.mrb[0].mxu0 %v2949
        %v3126 = vpop.f32.mrb[0].mxu0
        %v3127 = vadd.f32 0.0, %v3126
        %v3128 = vpop.f32.mrb[0].mxu0
        %v3129 = vadd.f32 0.0, %v3128
        %v3130 = vpop.f32.mrb[0].mxu0
        %v3131 = vadd.f32 0.0, %v3130
        %v3132 = vpop.f32.mrb[0].mxu0
        %v3133 = vadd.f32 0.0, %v3132
        %3134 = vmatprep.mubr.bf16.mxu0 0
        %3135 = vmatmul.mubr.bf16.gmra.mrb[0].mxu0 %v2950
        %v3136 = vpop.f32.mrb[0].mxu0
        %v3137 = vadd.f32 0.0, %v3136
        %v3138 = vpop.f32.mrb[0].mxu0
        %v3139 = vadd.f32 0.0, %v3138
        %v3140 = vpop.f32.mrb[0].mxu0
        %v3141 = vadd.f32 0.0, %v3140
        %v3142 = vpop.f32.mrb[0].mxu0
        %v3143 = vadd.f32 0.0, %v3142
        %3144 = vmatprep.mubr.bf16.mxu0 0
        %3145 = vmatmul.mubr.bf16.gmra.mrb[0].mxu0 %v2951
        %v3146 = vpop.f32.mrb[0].mxu0
        %v3147 = vadd.f32 0.0, %v3146
        %v3148 = vpop.f32.mrb[0].mxu0
        %v3149 = vadd.f32 0.0, %v3148
        %v3150 = vpop.f32.mrb[0].mxu0
        %v3151 = vadd.f32 0.0, %v3150
        %v3152 = vpop.f32.mrb[0].mxu0
        %v3153 = vadd.f32 0.0, %v3152
        %3154 = vmatprep.mubr.bf16.mxu0 0
        %3155 = vmatmul.mubr.bf16.gmra.mrb[0].mxu0 %v2952
        %v3156 = vpop.f32.mrb[0].mxu0
        %v3157 = vadd.f32 0.0, %v3156
        %v3158 = vpop.f32.mrb[0].mxu0
        %v3159 = vadd.f32 0.0, %v3158
        %v3160 = vpop.f32.mrb[0].mxu0
        %v3161 = vadd.f32 0.0, %v3160
        %v3162 = vpop.f32.mrb[0].mxu0
        %v3163 = vadd.f32 0.0, %v3162
        %3164 = vmatprep.mubr.bf16.mxu0 0
        %3165 = vmatmul.mubr.bf16.gmra.mrb[0].mxu0 %v2953
        %v3166 = vpop.f32.mrb[0].mxu0
        %v3167 = vadd.f32 0.0, %v3166
        %v3168 = vpop.f32.mrb[0].mxu0
        %v3169 = vadd.f32 0.0, %v3168
        %v3170 = vpop.f32.mrb[0].mxu0
        %v3171 = vadd.f32 0.0, %v3170
        %v3172 = vpop.f32.mrb[0].mxu0
        %v3173 = vadd.f32 0.0, %v3172
        %3174 = vmatprep.mubr.bf16.mxu0 0
        %3175 = vmatmul.mubr.bf16.gmra.mrb[0].mxu0 %v2954
        %v3176 = vpop.f32.mrb[0].mxu0
        %v3177 = vadd.f32 0.0, %v3176
        %v3178 = vpop.f32.mrb[0].mxu0
        %v3179 = vadd.f32 0.0, %v3178
        %v3180 = vpop.f32.mrb[0].mxu0
        %v3181 = vadd.f32 0.0, %v3180
        %v3182 = vpop.f32.mrb[0].mxu0
        %v3183 = vadd.f32 0.0, %v3182
        %3184 = vmatprep.mubr.bf16.mxu0 0
        %3185 = vmatmul.mubr.bf16.gmra.mrb[0].mxu0 %v2955
        %v3186 = vpop.f32.mrb[0].mxu0
        %v3187 = vadd.f32 0.0, %v3186
        %v3188 = vpop.f32.mrb[0].mxu0
        %v3189 = vadd.f32 0.0, %v3188
        %v3190 = vpop.f32.mrb[0].mxu0
        %v3191 = vadd.f32 0.0, %v3190
        %v3192 = vpop.f32.mrb[0].mxu0
        %v3193 = vadd.f32 0.0, %v3192
        %3194 = vmatprep.mubr.bf16.mxu0 0
        %3195 = vmatmul.mubr.bf16.gmra.mrb[0].mxu0 %v2956
        %v3196 = vpop.f32.mrb[0].mxu0
        %v3197 = vadd.f32 0.0, %v3196
        %v3198 = vpop.f32.mrb[0].mxu0
        %v3199 = vadd.f32 0.0, %v3198
        %v3200 = vpop.f32.mrb[0].mxu0
        %v3201 = vadd.f32 0.0, %v3200
        %v3202 = vpop.f32.mrb[0].mxu0
        %v3203 = vadd.f32 0.0, %v3202
        %3204 = vmatprep.mubr.bf16.mxu0 0
        %3205 = vmatmul.mubr.bf16.gmra.mrb[0].mxu0 %v2957
        %v3206 = vpop.f32.mrb[0].mxu0
        %v3207 = vadd.f32 0.0, %v3206
        %v3208 = vpop.f32.mrb[0].mxu0
        %v3209 = vadd.f32 0.0, %v3208
        %v3210 = vpop.f32.mrb[0].mxu0
        %v3211 = vadd.f32 0.0, %v3210
        %v3212 = vpop.f32.mrb[0].mxu0
        %v3213 = vadd.f32 0.0, %v3212
        %3214 = vdwg.mxu0
        %3215 = vmatprep.subr.bf16.mxu0 %v2961
        %3216 = vmatpush1.bf16.msra.mxu0 %v2960
        %3217 = vmatprep.subr.bf16.mxu0 %v2969
        %3218 = vmatpush1.bf16.msra.mxu0 %v2968
        %3219 = vmatprep.subr.bf16.mxu0 %v2977
        %3220 = vmatpush1.bf16.msra.mxu0 %v2976
        %3221 = vmatprep.subr.bf16.mxu0 %v2985
        %3222 = vmatpush1.bf16.msra.mxu0 %v2984
        %3223 = vmatprep.subr.bf16.mxu0 %v2993
        %3224 = vmatpush1.bf16.msra.mxu0 %v2992
        %3225 = vmatprep.subr.bf16.mxu0 %v3001
        %3226 = vmatpush1.bf16.msra.mxu0 %v3000
        %3227 = vmatprep.subr.bf16.mxu0 %v3009
        %3228 = vmatpush1.bf16.msra.mxu0 %v3008
        %3229 = vmatprep.subr.bf16.mxu0 %v3017
        %3230 = vmatpush1.bf16.msra.mxu0 %v3016
        %3231 = vmatprep.subr.bf16.mxu0 0
        %3232 = vmatpush1.bf16.msra.mxu0 0
        %3233 = vmatprep.subr.bf16.mxu0 0
        %3234 = vmatpush1.bf16.msra.mxu0 0
        %3235 = vmatprep.subr.bf16.mxu0 0
        %3236 = vmatpush1.bf16.msra.mxu0 0
        %3237 = vmatprep.subr.bf16.mxu0 0
        %3238 = vmatpush1.bf16.msra.mxu0 0
        %3239 = vmatprep.subr.bf16.mxu0 0
        %3240 = vmatpush1.bf16.msra.mxu0 0
        %3241 = vmatprep.subr.bf16.mxu0 0
        %3242 = vmatpush1.bf16.msra.mxu0 0
        %3243 = vmatprep.subr.bf16.mxu0 0
        %3244 = vmatpush1.bf16.msra.mxu0 0
        %3245 = vmatprep.subr.bf16.mxu0 0
        %3246 = vmatpush1.bf16.msra.mxu0 0
        %3247 = vmatprep.mubr.bf16.mxu0 0
        %3248 = vmatmul.mubr.bf16.gmra.mrb[0].mxu0 %v2942
        %v3249 = vpop.f32.mrb[0].mxu0
        %v3250 = vadd.f32 0.0, %v3249
        %v3251 = vpop.f32.mrb[0].mxu0
        %v3252 = vadd.f32 0.0, %v3251
        %v3253 = vpop.f32.mrb[0].mxu0
        %v3254 = vadd.f32 0.0, %v3253
        %v3255 = vpop.f32.mrb[0].mxu0
        %v3256 = vadd.f32 0.0, %v3255
        %3257 = vmatprep.mubr.bf16.mxu0 0
        %3258 = vmatmul.mubr.bf16.gmra.mrb[0].mxu0 %v2943
        %v3259 = vpop.f32.mrb[0].mxu0
        %v3260 = vadd.f32 0.0, %v3259
        %v3261 = vpop.f32.mrb[0].mxu0
        %v3262 = vadd.f32 0.0, %v3261
        %v3263 = vpop.f32.mrb[0].mxu0
        %v3264 = vadd.f32 0.0, %v3263
        %v3265 = vpop.f32.mrb[0].mxu0
        %v3266 = vadd.f32 0.0, %v3265
        %3267 = vmatprep.mubr.bf16.mxu0 0
        %3268 = vmatmul.mubr.bf16.gmra.mrb[0].mxu0 %v2944
        %v3269 = vpop.f32.mrb[0].mxu0
        %v3270 = vadd.f32 0.0, %v3269
        %v3271 = vpop.f32.mrb[0].mxu0
        %v3272 = vadd.f32 0.0, %v3271
        %v3273 = vpop.f32.mrb[0].mxu0
        %v3274 = vadd.f32 0.0, %v3273
        %v3275 = vpop.f32.mrb[0].mxu0
        %v3276 = vadd.f32 0.0, %v3275
        %3277 = vmatprep.mubr.bf16.mxu0 0
        %3278 = vmatmul.mubr.bf16.gmra.mrb[0].mxu0 %v2945
        %v3279 = vpop.f32.mrb[0].mxu0
        %v3280 = vadd.f32 0.0, %v3279
        %v3281 = vpop.f32.mrb[0].mxu0
        %v3282 = vadd.f32 0.0, %v3281
        %v3283 = vpop.f32.mrb[0].mxu0
        %v3284 = vadd.f32 0.0, %v3283
        %v3285 = vpop.f32.mrb[0].mxu0
        %v3286 = vadd.f32 0.0, %v3285
        %3287 = vmatprep.mubr.bf16.mxu0 0
        %3288 = vmatmul.mubr.bf16.gmra.mrb[0].mxu0 %v2946
        %v3289 = vpop.f32.mrb[0].mxu0
        %v3290 = vadd.f32 0.0, %v3289
        %v3291 = vpop.f32.mrb[0].mxu0
        %v3292 = vadd.f32 0.0, %v3291
        %v3293 = vpop.f32.mrb[0].mxu0
        %v3294 = vadd.f32 0.0, %v3293
        %v3295 = vpop.f32.mrb[0].mxu0
        %v3296 = vadd.f32 0.0, %v3295
        %3297 = vmatprep.mubr.bf16.mxu0 0
        %3298 = vmatmul.mubr.bf16.gmra.mrb[0].mxu0 %v2947
        %v3299 = vpop.f32.mrb[0].mxu0
        %v3300 = vadd.f32 0.0, %v3299
        %v3301 = vpop.f32.mrb[0].mxu0
        %v3302 = vadd.f32 0.0, %v3301
        %v3303 = vpop.f32.mrb[0].mxu0
        %v3304 = vadd.f32 0.0, %v3303
        %v3305 = vpop.f32.mrb[0].mxu0
        %v3306 = vadd.f32 0.0, %v3305
        %3307 = vmatprep.mubr.bf16.mxu0 0
        %3308 = vmatmul.mubr.bf16.gmra.mrb[0].mxu0 %v2948
        %v3309 = vpop.f32.mrb[0].mxu0
        %v3310 = vadd.f32 0.0, %v3309
        %v3311 = vpop.f32.mrb[0].mxu0
        %v3312 = vadd.f32 0.0, %v3311
        %v3313 = vpop.f32.mrb[0].mxu0
        %v3314 = vadd.f32 0.0, %v3313
        %v3315 = vpop.f32.mrb[0].mxu0
        %v3316 = vadd.f32 0.0, %v3315
        %3317 = vmatprep.mubr.bf16.mxu0 0
        %3318 = vmatmul.mubr.bf16.gmra.mrb[0].mxu0 %v2949
        %v3319 = vpop.f32.mrb[0].mxu0
        %v3320 = vadd.f32 0.0, %v3319
        %v3321 = vpop.f32.mrb[0].mxu0
        %v3322 = vadd.f32 0.0, %v3321
        %v3323 = vpop.f32.mrb[0].mxu0
        %v3324 = vadd.f32 0.0, %v3323
        %v3325 = vpop.f32.mrb[0].mxu0
        %v3326 = vadd.f32 0.0, %v3325
        %3327 = vmatprep.mubr.bf16.mxu0 0
        %3328 = vmatmul.mubr.bf16.gmra.mrb[0].mxu0 %v2950
        %v3329 = vpop.f32.mrb[0].mxu0
        %v3330 = vadd.f32 0.0, %v3329
        %v3331 = vpop.f32.mrb[0].mxu0
        %v3332 = vadd.f32 0.0, %v3331
        %v3333 = vpop.f32.mrb[0].mxu0
        %v3334 = vadd.f32 0.0, %v3333
        %v3335 = vpop.f32.mrb[0].mxu0
        %v3336 = vadd.f32 0.0, %v3335
        %3337 = vmatprep.mubr.bf16.mxu0 0
        %3338 = vmatmul.mubr.bf16.gmra.mrb[0].mxu0 %v2951
        %v3339 = vpop.f32.mrb[0].mxu0
        %v3340 = vadd.f32 0.0, %v3339
        %v3341 = vpop.f32.mrb[0].mxu0
        %v3342 = vadd.f32 0.0, %v3341
        %v3343 = vpop.f32.mrb[0].mxu0
        %v3344 = vadd.f32 0.0, %v3343
        %v3345 = vpop.f32.mrb[0].mxu0
        %v3346 = vadd.f32 0.0, %v3345
        %3347 = vmatprep.mubr.bf16.mxu0 0
        %3348 = vmatmul.mubr.bf16.gmra.mrb[0].mxu0 %v2952
        %v3349 = vpop.f32.mrb[0].mxu0
        %v3350 = vadd.f32 0.0, %v3349
        %v3351 = vpop.f32.mrb[0].mxu0
        %v3352 = vadd.f32 0.0, %v3351
        %v3353 = vpop.f32.mrb[0].mxu0
        %v3354 = vadd.f32 0.0, %v3353
        %v3355 = vpop.f32.mrb[0].mxu0
        %v3356 = vadd.f32 0.0, %v3355
        %3357 = vmatprep.mubr.bf16.mxu0 0
        %3358 = vmatmul.mubr.bf16.gmra.mrb[0].mxu0 %v2953
        %v3359 = vpop.f32.mrb[0].mxu0
        %v3360 = vadd.f32 0.0, %v3359
        %v3361 = vpop.f32.mrb[0].mxu0
        %v3362 = vadd.f32 0.0, %v3361
        %v3363 = vpop.f32.mrb[0].mxu0
        %v3364 = vadd.f32 0.0, %v3363
        %v3365 = vpop.f32.mrb[0].mxu0
        %v3366 = vadd.f32 0.0, %v3365
        %3367 = vmatprep.mubr.bf16.mxu0 0
        %3368 = vmatmul.mubr.bf16.gmra.mrb[0].mxu0 %v2954
        %v3369 = vpop.f32.mrb[0].mxu0
        %v3370 = vadd.f32 0.0, %v3369
        %v3371 = vpop.f32.mrb[0].mxu0
        %v3372 = vadd.f32 0.0, %v3371
        %v3373 = vpop.f32.mrb[0].mxu0
        %v3374 = vadd.f32 0.0, %v3373
        %v3375 = vpop.f32.mrb[0].mxu0
        %v3376 = vadd.f32 0.0, %v3375
        %3377 = vmatprep.mubr.bf16.mxu0 0
        %3378 = vmatmul.mubr.bf16.gmra.mrb[0].mxu0 %v2955
        %v3379 = vpop.f32.mrb[0].mxu0
        %v3380 = vadd.f32 0.0, %v3379
        %v3381 = vpop.f32.mrb[0].mxu0
        %v3382 = vadd.f32 0.0, %v3381
        %v3383 = vpop.f32.mrb[0].mxu0
        %v3384 = vadd.f32 0.0, %v3383
        %v3385 = vpop.f32.mrb[0].mxu0
        %v3386 = vadd.f32 0.0, %v3385
        %3387 = vmatprep.mubr.bf16.mxu0 0
        %3388 = vmatmul.mubr.bf16.gmra.mrb[0].mxu0 %v2956
        %v3389 = vpop.f32.mrb[0].mxu0
        %v3390 = vadd.f32 0.0, %v3389
        %v3391 = vpop.f32.mrb[0].mxu0
        %v3392 = vadd.f32 0.0, %v3391
        %v3393 = vpop.f32.mrb[0].mxu0
        %v3394 = vadd.f32 0.0, %v3393
        %v3395 = vpop.f32.mrb[0].mxu0
        %v3396 = vadd.f32 0.0, %v3395
        %3397 = vmatprep.mubr.bf16.mxu0 0
        %3398 = vmatmul.mubr.bf16.gmra.mrb[0].mxu0 %v2957
        %v3399 = vpop.f32.mrb[0].mxu0
        %v3400 = vadd.f32 0.0, %v3399
        %v3401 = vpop.f32.mrb[0].mxu0
        %v3402 = vadd.f32 0.0, %v3401
        %v3403 = vpop.f32.mrb[0].mxu0
        %v3404 = vadd.f32 0.0, %v3403
        %v3405 = vpop.f32.mrb[0].mxu0
        %v3406 = vadd.f32 0.0, %v3405
        %3407 = vdwg.mxu0
        %3408 = vmatprep.subr.bf16.mxu0 %v2963
        %3409 = vmatpush1.bf16.msra.mxu0 %v2962
        %3410 = vmatprep.subr.bf16.mxu0 %v2971
        %3411 = vmatpush1.bf16.msra.mxu0 %v2970
        %3412 = vmatprep.subr.bf16.mxu0 %v2979
        %3413 = vmatpush1.bf16.msra.mxu0 %v2978
        %3414 = vmatprep.subr.bf16.mxu0 %v2987
        %3415 = vmatpush1.bf16.msra.mxu0 %v2986
        %3416 = vmatprep.subr.bf16.mxu0 %v2995
        %3417 = vmatpush1.bf16.msra.mxu0 %v2994
        %3418 = vmatprep.subr.bf16.mxu0 %v3003
        %3419 = vmatpush1.bf16.msra.mxu0 %v3002
        %3420 = vmatprep.subr.bf16.mxu0 %v3011
        %3421 = vmatpush1.bf16.msra.mxu0 %v3010
        %3422 = vmatprep.subr.bf16.mxu0 %v3019
        %3423 = vmatpush1.bf16.msra.mxu0 %v3018
        %3424 = vmatprep.subr.bf16.mxu0 0
        %3425 = vmatpush1.bf16.msra.mxu0 0
        %3426 = vmatprep.subr.bf16.mxu0 0
        %3427 = vmatpush1.bf16.msra.mxu0 0
        %3428 = vmatprep.subr.bf16.mxu0 0
        %3429 = vmatpush1.bf16.msra.mxu0 0
        %3430 = vmatprep.subr.bf16.mxu0 0
        %3431 = vmatpush1.bf16.msra.mxu0 0
        %3432 = vmatprep.subr.bf16.mxu0 0
        %3433 = vmatpush1.bf16.msra.mxu0 0
        %3434 = vmatprep.subr.bf16.mxu0 0
        %3435 = vmatpush1.bf16.msra.mxu0 0
        %3436 = vmatprep.subr.bf16.mxu0 0
        %3437 = vmatpush1.bf16.msra.mxu0 0
        %3438 = vmatprep.subr.bf16.mxu0 0
        %3439 = vmatpush1.bf16.msra.mxu0 0
        %3440 = vmatprep.mubr.bf16.mxu0 0
        %3441 = vmatmul.mubr.bf16.gmra.mrb[0].mxu0 %v2942
        %v3442 = vpop.f32.mrb[0].mxu0
        %v3443 = vadd.f32 0.0, %v3442
        %v3444 = vpop.f32.mrb[0].mxu0
        %v3445 = vadd.f32 0.0, %v3444
        %v3446 = vpop.f32.mrb[0].mxu0
        %v3447 = vadd.f32 0.0, %v3446
        %v3448 = vpop.f32.mrb[0].mxu0
        %v3449 = vadd.f32 0.0, %v3448
        %3450 = vmatprep.mubr.bf16.mxu0 0
        %3451 = vmatmul.mubr.bf16.gmra.mrb[0].mxu0 %v2943
        %v3452 = vpop.f32.mrb[0].mxu0
        %v3453 = vadd.f32 0.0, %v3452
        %v3454 = vpop.f32.mrb[0].mxu0
        %v3455 = vadd.f32 0.0, %v3454
        %v3456 = vpop.f32.mrb[0].mxu0
        %v3457 = vadd.f32 0.0, %v3456
        %v3458 = vpop.f32.mrb[0].mxu0
        %v3459 = vadd.f32 0.0, %v3458
        %3460 = vmatprep.mubr.bf16.mxu0 0
        %3461 = vmatmul.mubr.bf16.gmra.mrb[0].mxu0 %v2944
        %v3462 = vpop.f32.mrb[0].mxu0
        %v3463 = vadd.f32 0.0, %v3462
        %v3464 = vpop.f32.mrb[0].mxu0
        %v3465 = vadd.f32 0.0, %v3464
        %v3466 = vpop.f32.mrb[0].mxu0
        %v3467 = vadd.f32 0.0, %v3466
        %v3468 = vpop.f32.mrb[0].mxu0
        %v3469 = vadd.f32 0.0, %v3468
        %3470 = vmatprep.mubr.bf16.mxu0 0
        %3471 = vmatmul.mubr.bf16.gmra.mrb[0].mxu0 %v2945
        %v3472 = vpop.f32.mrb[0].mxu0
        %v3473 = vadd.f32 0.0, %v3472
        %v3474 = vpop.f32.mrb[0].mxu0
        %v3475 = vadd.f32 0.0, %v3474
        %v3476 = vpop.f32.mrb[0].mxu0
        %v3477 = vadd.f32 0.0, %v3476
        %v3478 = vpop.f32.mrb[0].mxu0
        %v3479 = vadd.f32 0.0, %v3478
        %3480 = vmatprep.mubr.bf16.mxu0 0
        %3481 = vmatmul.mubr.bf16.gmra.mrb[0].mxu0 %v2946
        %v3482 = vpop.f32.mrb[0].mxu0
        %v3483 = vadd.f32 0.0, %v3482
        %v3484 = vpop.f32.mrb[0].mxu0
        %v3485 = vadd.f32 0.0, %v3484
        %v3486 = vpop.f32.mrb[0].mxu0
        %v3487 = vadd.f32 0.0, %v3486
        %v3488 = vpop.f32.mrb[0].mxu0
        %v3489 = vadd.f32 0.0, %v3488
        %3490 = vmatprep.mubr.bf16.mxu0 0
        %3491 = vmatmul.mubr.bf16.gmra.mrb[0].mxu0 %v2947
        %v3492 = vpop.f32.mrb[0].mxu0
        %v3493 = vadd.f32 0.0, %v3492
        %v3494 = vpop.f32.mrb[0].mxu0
        %v3495 = vadd.f32 0.0, %v3494
        %v3496 = vpop.f32.mrb[0].mxu0
        %v3497 = vadd.f32 0.0, %v3496
        %v3498 = vpop.f32.mrb[0].mxu0
        %v3499 = vadd.f32 0.0, %v3498
        %3500 = vmatprep.mubr.bf16.mxu0 0
        %3501 = vmatmul.mubr.bf16.gmra.mrb[0].mxu0 %v2948
        %v3502 = vpop.f32.mrb[0].mxu0
        %v3503 = vadd.f32 0.0, %v3502
        %v3504 = vpop.f32.mrb[0].mxu0
        %v3505 = vadd.f32 0.0, %v3504
        %v3506 = vpop.f32.mrb[0].mxu0
        %v3507 = vadd.f32 0.0, %v3506
        %v3508 = vpop.f32.mrb[0].mxu0
        %v3509 = vadd.f32 0.0, %v3508
        %3510 = vmatprep.mubr.bf16.mxu0 0
        %3511 = vmatmul.mubr.bf16.gmra.mrb[0].mxu0 %v2949
        %v3512 = vpop.f32.mrb[0].mxu0
        %v3513 = vadd.f32 0.0, %v3512
        %v3514 = vpop.f32.mrb[0].mxu0
        %v3515 = vadd.f32 0.0, %v3514
        %v3516 = vpop.f32.mrb[0].mxu0
        %v3517 = vadd.f32 0.0, %v3516
        %v3518 = vpop.f32.mrb[0].mxu0
        %v3519 = vadd.f32 0.0, %v3518
        %3520 = vmatprep.mubr.bf16.mxu0 0
        %3521 = vmatmul.mubr.bf16.gmra.mrb[0].mxu0 %v2950
        %v3522 = vpop.f32.mrb[0].mxu0
        %v3523 = vadd.f32 0.0, %v3522
        %v3524 = vpop.f32.mrb[0].mxu0
        %v3525 = vadd.f32 0.0, %v3524
        %v3526 = vpop.f32.mrb[0].mxu0
        %v3527 = vadd.f32 0.0, %v3526
        %v3528 = vpop.f32.mrb[0].mxu0
        %v3529 = vadd.f32 0.0, %v3528
        %3530 = vmatprep.mubr.bf16.mxu0 0
        %3531 = vmatmul.mubr.bf16.gmra.mrb[0].mxu0 %v2951
        %v3532 = vpop.f32.mrb[0].mxu0
        %v3533 = vadd.f32 0.0, %v3532
        %v3534 = vpop.f32.mrb[0].mxu0
        %v3535 = vadd.f32 0.0, %v3534
        %v3536 = vpop.f32.mrb[0].mxu0
        %v3537 = vadd.f32 0.0, %v3536
        %v3538 = vpop.f32.mrb[0].mxu0
        %v3539 = vadd.f32 0.0, %v3538
        %3540 = vmatprep.mubr.bf16.mxu0 0
        %3541 = vmatmul.mubr.bf16.gmra.mrb[0].mxu0 %v2952
        %v3542 = vpop.f32.mrb[0].mxu0
        %v3543 = vadd.f32 0.0, %v3542
        %v3544 = vpop.f32.mrb[0].mxu0
        %v3545 = vadd.f32 0.0, %v3544
        %v3546 = vpop.f32.mrb[0].mxu0
        %v3547 = vadd.f32 0.0, %v3546
        %v3548 = vpop.f32.mrb[0].mxu0
        %v3549 = vadd.f32 0.0, %v3548
        %3550 = vmatprep.mubr.bf16.mxu0 0
        %3551 = vmatmul.mubr.bf16.gmra.mrb[0].mxu0 %v2953
        %v3552 = vpop.f32.mrb[0].mxu0
        %v3553 = vadd.f32 0.0, %v3552
        %v3554 = vpop.f32.mrb[0].mxu0
        %v3555 = vadd.f32 0.0, %v3554
        %v3556 = vpop.f32.mrb[0].mxu0
        %v3557 = vadd.f32 0.0, %v3556
        %v3558 = vpop.f32.mrb[0].mxu0
        %v3559 = vadd.f32 0.0, %v3558
        %3560 = vmatprep.mubr.bf16.mxu0 0
        %3561 = vmatmul.mubr.bf16.gmra.mrb[0].mxu0 %v2954
        %v3562 = vpop.f32.mrb[0].mxu0
        %v3563 = vadd.f32 0.0, %v3562
        %v3564 = vpop.f32.mrb[0].mxu0
        %v3565 = vadd.f32 0.0, %v3564
        %v3566 = vpop.f32.mrb[0].mxu0
        %v3567 = vadd.f32 0.0, %v3566
        %v3568 = vpop.f32.mrb[0].mxu0
        %v3569 = vadd.f32 0.0, %v3568
        %3570 = vmatprep.mubr.bf16.mxu0 0
        %3571 = vmatmul.mubr.bf16.gmra.mrb[0].mxu0 %v2955
        %v3572 = vpop.f32.mrb[0].mxu0
        %v3573 = vadd.f32 0.0, %v3572
        %v3574 = vpop.f32.mrb[0].mxu0
        %v3575 = vadd.f32 0.0, %v3574
        %v3576 = vpop.f32.mrb[0].mxu0
        %v3577 = vadd.f32 0.0, %v3576
        %v3578 = vpop.f32.mrb[0].mxu0
        %v3579 = vadd.f32 0.0, %v3578
        %3580 = vmatprep.mubr.bf16.mxu0 0
        %3581 = vmatmul.mubr.bf16.gmra.mrb[0].mxu0 %v2956
        %v3582 = vpop.f32.mrb[0].mxu0
        %v3583 = vadd.f32 0.0, %v3582
        %v3584 = vpop.f32.mrb[0].mxu0
        %v3585 = vadd.f32 0.0, %v3584
        %v3586 = vpop.f32.mrb[0].mxu0
        %v3587 = vadd.f32 0.0, %v3586
        %v3588 = vpop.f32.mrb[0].mxu0
        %v3589 = vadd.f32 0.0, %v3588
        %3590 = vmatprep.mubr.bf16.mxu0 0
        %3591 = vmatmul.mubr.bf16.gmra.mrb[0].mxu0 %v2957
        %v3592 = vpop.f32.mrb[0].mxu0
        %v3593 = vadd.f32 0.0, %v3592
        %v3594 = vpop.f32.mrb[0].mxu0
        %v3595 = vadd.f32 0.0, %v3594
        %v3596 = vpop.f32.mrb[0].mxu0
        %v3597 = vadd.f32 0.0, %v3596
        %v3598 = vpop.f32.mrb[0].mxu0
        %v3599 = vadd.f32 0.0, %v3598
        %3600 = vdwg.mxu0
        %3601 = vmatprep.subr.bf16.mxu0 %v2965
        %3602 = vmatpush1.bf16.msra.mxu0 %v2964
        %3603 = vmatprep.subr.bf16.mxu0 %v2973
        %3604 = vmatpush1.bf16.msra.mxu0 %v2972
        %3605 = vmatprep.subr.bf16.mxu0 %v2981
        %3606 = vmatpush1.bf16.msra.mxu0 %v2980
        %3607 = vmatprep.subr.bf16.mxu0 %v2989
        %3608 = vmatpush1.bf16.msra.mxu0 %v2988
        %3609 = vmatprep.subr.bf16.mxu0 %v2997
        %3610 = vmatpush1.bf16.msra.mxu0 %v2996
        %3611 = vmatprep.subr.bf16.mxu0 %v3005
        %3612 = vmatpush1.bf16.msra.mxu0 %v3004
        %3613 = vmatprep.subr.bf16.mxu0 %v3013
        %3614 = vmatpush1.bf16.msra.mxu0 %v3012
        %3615 = vmatprep.subr.bf16.mxu0 %v3021
        %3616 = vmatpush1.bf16.msra.mxu0 %v3020
        %3617 = vmatprep.subr.bf16.mxu0 0
        %3618 = vmatpush1.bf16.msra.mxu0 0
        %3619 = vmatprep.subr.bf16.mxu0 0
        %3620 = vmatpush1.bf16.msra.mxu0 0
        %3621 = vmatprep.subr.bf16.mxu0 0
        %3622 = vmatpush1.bf16.msra.mxu0 0
        %3623 = vmatprep.subr.bf16.mxu0 0
        %3624 = vmatpush1.bf16.msra.mxu0 0
        %3625 = vmatprep.subr.bf16.mxu0 0
        %3626 = vmatpush1.bf16.msra.mxu0 0
        %3627 = vmatprep.subr.bf16.mxu0 0
        %3628 = vmatpush1.bf16.msra.mxu0 0
        %3629 = vmatprep.subr.bf16.mxu0 0
        %3630 = vmatpush1.bf16.msra.mxu0 0
        %3631 = vmatprep.subr.bf16.mxu0 0
        %3632 = vmatpush1.bf16.msra.mxu0 0
        %3633 = vmatprep.mubr.bf16.mxu0 0
        %3634 = vmatmul.mubr.bf16.gmra.mrb[0].mxu0 %v2942
        %v3635 = vpop.f32.mrb[0].mxu0
        %v3636 = vadd.f32 0.0, %v3635
        %v3637 = vpop.f32.mrb[0].mxu0
        %v3638 = vadd.f32 0.0, %v3637
        %v3639 = vpop.f32.mrb[0].mxu0
        %v3640 = vadd.f32 0.0, %v3639
        %v3641 = vpop.f32.mrb[0].mxu0
        %v3642 = vadd.f32 0.0, %v3641
        %3643 = vmatprep.mubr.bf16.mxu0 0
        %3644 = vmatmul.mubr.bf16.gmra.mrb[0].mxu0 %v2943
        %v3645 = vpop.f32.mrb[0].mxu0
        %v3646 = vadd.f32 0.0, %v3645
        %v3647 = vpop.f32.mrb[0].mxu0
        %v3648 = vadd.f32 0.0, %v3647
        %v3649 = vpop.f32.mrb[0].mxu0
        %v3650 = vadd.f32 0.0, %v3649
        %v3651 = vpop.f32.mrb[0].mxu0
        %v3652 = vadd.f32 0.0, %v3651
        %3653 = vmatprep.mubr.bf16.mxu0 0
        %3654 = vmatmul.mubr.bf16.gmra.mrb[0].mxu0 %v2944
        %v3655 = vpop.f32.mrb[0].mxu0
        %v3656 = vadd.f32 0.0, %v3655
        %v3657 = vpop.f32.mrb[0].mxu0
        %v3658 = vadd.f32 0.0, %v3657
        %v3659 = vpop.f32.mrb[0].mxu0
        %v3660 = vadd.f32 0.0, %v3659
        %v3661 = vpop.f32.mrb[0].mxu0
        %v3662 = vadd.f32 0.0, %v3661
        %3663 = vmatprep.mubr.bf16.mxu0 0
        %3664 = vmatmul.mubr.bf16.gmra.mrb[0].mxu0 %v2945
        %v3665 = vpop.f32.mrb[0].mxu0
        %v3666 = vadd.f32 0.0, %v3665
        %v3667 = vpop.f32.mrb[0].mxu0
        %v3668 = vadd.f32 0.0, %v3667
        %v3669 = vpop.f32.mrb[0].mxu0
        %v3670 = vadd.f32 0.0, %v3669
        %v3671 = vpop.f32.mrb[0].mxu0
        %v3672 = vadd.f32 0.0, %v3671
        %3673 = vmatprep.mubr.bf16.mxu0 0
        %3674 = vmatmul.mubr.bf16.gmra.mrb[0].mxu0 %v2946
        %v3675 = vpop.f32.mrb[0].mxu0
        %v3676 = vadd.f32 0.0, %v3675
        %v3677 = vpop.f32.mrb[0].mxu0
        %v3678 = vadd.f32 0.0, %v3677
        %v3679 = vpop.f32.mrb[0].mxu0
        %v3680 = vadd.f32 0.0, %v3679
        %v3681 = vpop.f32.mrb[0].mxu0
        %v3682 = vadd.f32 0.0, %v3681
        %3683 = vmatprep.mubr.bf16.mxu0 0
        %3684 = vmatmul.mubr.bf16.gmra.mrb[0].mxu0 %v2947
        %v3685 = vpop.f32.mrb[0].mxu0
        %v3686 = vadd.f32 0.0, %v3685
        %v3687 = vpop.f32.mrb[0].mxu0
        %v3688 = vadd.f32 0.0, %v3687
        %v3689 = vpop.f32.mrb[0].mxu0
        %v3690 = vadd.f32 0.0, %v3689
        %v3691 = vpop.f32.mrb[0].mxu0
        %v3692 = vadd.f32 0.0, %v3691
        %3693 = vmatprep.mubr.bf16.mxu0 0
        %3694 = vmatmul.mubr.bf16.gmra.mrb[0].mxu0 %v2948
        %v3695 = vpop.f32.mrb[0].mxu0
        %v3696 = vadd.f32 0.0, %v3695
        %v3697 = vpop.f32.mrb[0].mxu0
        %v3698 = vadd.f32 0.0, %v3697
        %v3699 = vpop.f32.mrb[0].mxu0
        %v3700 = vadd.f32 0.0, %v3699
        %v3701 = vpop.f32.mrb[0].mxu0
        %v3702 = vadd.f32 0.0, %v3701
        %3703 = vmatprep.mubr.bf16.mxu0 0
        %3704 = vmatmul.mubr.bf16.gmra.mrb[0].mxu0 %v2949
        %v3705 = vpop.f32.mrb[0].mxu0
        %v3706 = vadd.f32 0.0, %v3705
        %v3707 = vpop.f32.mrb[0].mxu0
        %v3708 = vadd.f32 0.0, %v3707
        %v3709 = vpop.f32.mrb[0].mxu0
        %v3710 = vadd.f32 0.0, %v3709
        %v3711 = vpop.f32.mrb[0].mxu0
        %v3712 = vadd.f32 0.0, %v3711
        %3713 = vmatprep.mubr.bf16.mxu0 0
        %3714 = vmatmul.mubr.bf16.gmra.mrb[0].mxu0 %v2950
        %v3715 = vpop.f32.mrb[0].mxu0
        %v3716 = vadd.f32 0.0, %v3715
        %v3717 = vpop.f32.mrb[0].mxu0
        %v3718 = vadd.f32 0.0, %v3717
        %v3719 = vpop.f32.mrb[0].mxu0
        %v3720 = vadd.f32 0.0, %v3719
        %v3721 = vpop.f32.mrb[0].mxu0
        %v3722 = vadd.f32 0.0, %v3721
        %3723 = vmatprep.mubr.bf16.mxu0 0
        %3724 = vmatmul.mubr.bf16.gmra.mrb[0].mxu0 %v2951
        %v3725 = vpop.f32.mrb[0].mxu0
        %v3726 = vadd.f32 0.0, %v3725
        %v3727 = vpop.f32.mrb[0].mxu0
        %v3728 = vadd.f32 0.0, %v3727
        %v3729 = vpop.f32.mrb[0].mxu0
        %v3730 = vadd.f32 0.0, %v3729
        %v3731 = vpop.f32.mrb[0].mxu0
        %v3732 = vadd.f32 0.0, %v3731
        %3733 = vmatprep.mubr.bf16.mxu0 0
        %3734 = vmatmul.mubr.bf16.gmra.mrb[0].mxu0 %v2952
        %v3735 = vpop.f32.mrb[0].mxu0
        %v3736 = vadd.f32 0.0, %v3735
        %v3737 = vpop.f32.mrb[0].mxu0
        %v3738 = vadd.f32 0.0, %v3737
        %v3739 = vpop.f32.mrb[0].mxu0
        %v3740 = vadd.f32 0.0, %v3739
        %v3741 = vpop.f32.mrb[0].mxu0
        %v3742 = vadd.f32 0.0, %v3741
        %3743 = vmatprep.mubr.bf16.mxu0 0
        %3744 = vmatmul.mubr.bf16.gmra.mrb[0].mxu0 %v2953
        %v3745 = vpop.f32.mrb[0].mxu0
        %v3746 = vadd.f32 0.0, %v3745
        %v3747 = vpop.f32.mrb[0].mxu0
        %v3748 = vadd.f32 0.0, %v3747
        %v3749 = vpop.f32.mrb[0].mxu0
        %v3750 = vadd.f32 0.0, %v3749
        %v3751 = vpop.f32.mrb[0].mxu0
        %v3752 = vadd.f32 0.0, %v3751
        %3753 = vmatprep.mubr.bf16.mxu0 0
        %3754 = vmatmul.mubr.bf16.gmra.mrb[0].mxu0 %v2954
        %v3755 = vpop.f32.mrb[0].mxu0
        %v3756 = vadd.f32 0.0, %v3755
        %v3757 = vpop.f32.mrb[0].mxu0
        %v3758 = vadd.f32 0.0, %v3757
        %v3759 = vpop.f32.mrb[0].mxu0
        %v3760 = vadd.f32 0.0, %v3759
        %v3761 = vpop.f32.mrb[0].mxu0
        %v3762 = vadd.f32 0.0, %v3761
        %3763 = vmatprep.mubr.bf16.mxu0 0
        %3764 = vmatmul.mubr.bf16.gmra.mrb[0].mxu0 %v2955
        %v3765 = vpop.f32.mrb[0].mxu0
        %v3766 = vadd.f32 0.0, %v3765
        %v3767 = vpop.f32.mrb[0].mxu0
        %v3768 = vadd.f32 0.0, %v3767
        %v3769 = vpop.f32.mrb[0].mxu0
        %v3770 = vadd.f32 0.0, %v3769
        %v3771 = vpop.f32.mrb[0].mxu0
        %v3772 = vadd.f32 0.0, %v3771
        %3773 = vmatprep.mubr.bf16.mxu0 0
        %3774 = vmatmul.mubr.bf16.gmra.mrb[0].mxu0 %v2956
        %v3775 = vpop.f32.mrb[0].mxu0
        %v3776 = vadd.f32 0.0, %v3775
        %v3777 = vpop.f32.mrb[0].mxu0
        %v3778 = vadd.f32 0.0, %v3777
        %v3779 = vpop.f32.mrb[0].mxu0
        %v3780 = vadd.f32 0.0, %v3779
        %v3781 = vpop.f32.mrb[0].mxu0
        %v3782 = vadd.f32 0.0, %v3781
        %3783 = vmatprep.mubr.bf16.mxu0 0
        %3784 = vmatmul.mubr.bf16.gmra.mrb[0].mxu0 %v2957
        %v3785 = vpop.f32.mrb[0].mxu0
        %v3786 = vadd.f32 0.0, %v3785
        %v3787 = vpop.f32.mrb[0].mxu0
        %v3788 = vadd.f32 0.0, %v3787
        %v3789 = vpop.f32.mrb[0].mxu0
        %v3790 = vadd.f32 0.0, %v3789
        %v3791 = vpop.f32.mrb[0].mxu0
        %v3792 = vadd.f32 0.0, %v3791
        %3793 = vdwg.mxu0
        %v3794 = vmul.f32 %v3057, 0.088388346
        %v3795 = vmul.f32 %v3059, 0.088388346
        %v3796 = vmul.f32 %v3250, 0.088388346
        %v3797 = vmul.f32 %v3252, 0.088388346
        %v3798 = vmul.f32 %v3443, 0.088388346
        %v3799 = vmul.f32 %v3445, 0.088388346
        %v3800 = vmul.f32 %v3636, 0.088388346
        %v3801 = vmul.f32 %v3638, 0.088388346
        %v3802 = vmul.f32 %v3061, 0.088388346
        %v3803 = vmul.f32 %v3063, 0.088388346
        %v3804 = vmul.f32 %v3254, 0.088388346
        %v3805 = vmul.f32 %v3256, 0.088388346
        %v3806 = vmul.f32 %v3447, 0.088388346
        %v3807 = vmul.f32 %v3449, 0.088388346
        %v3808 = vmul.f32 %v3640, 0.088388346
        %v3809 = vmul.f32 %v3642, 0.088388346
        %v3810 = vmul.f32 %v3067, 0.088388346
        %v3811 = vmul.f32 %v3069, 0.088388346
        %v3812 = vmul.f32 %v3260, 0.088388346
        %v3813 = vmul.f32 %v3262, 0.088388346
        %v3814 = vmul.f32 %v3453, 0.088388346
        %v3815 = vmul.f32 %v3455, 0.088388346
        %v3816 = vmul.f32 %v3646, 0.088388346
        %v3817 = vmul.f32 %v3648, 0.088388346
        %v3818 = vmul.f32 %v3071, 0.088388346
        %v3819 = vmul.f32 %v3073, 0.088388346
        %v3820 = vmul.f32 %v3264, 0.088388346
        %v3821 = vmul.f32 %v3266, 0.088388346
        %v3822 = vmul.f32 %v3457, 0.088388346
        %v3823 = vmul.f32 %v3459, 0.088388346
        %v3824 = vmul.f32 %v3650, 0.088388346
        %v3825 = vmul.f32 %v3652, 0.088388346
        %v3826 = vmul.f32 %v3077, 0.088388346
        %v3827 = vmul.f32 %v3079, 0.088388346
        %v3828 = vmul.f32 %v3270, 0.088388346
        %v3829 = vmul.f32 %v3272, 0.088388346
        %v3830 = vmul.f32 %v3463, 0.088388346
        %v3831 = vmul.f32 %v3465, 0.088388346
        %v3832 = vmul.f32 %v3656, 0.088388346
        %v3833 = vmul.f32 %v3658, 0.088388346
        %v3834 = vmul.f32 %v3081, 0.088388346
        %v3835 = vmul.f32 %v3083, 0.088388346
        %v3836 = vmul.f32 %v3274, 0.088388346
        %v3837 = vmul.f32 %v3276, 0.088388346
        %v3838 = vmul.f32 %v3467, 0.088388346
        %v3839 = vmul.f32 %v3469, 0.088388346
        %v3840 = vmul.f32 %v3660, 0.088388346
        %v3841 = vmul.f32 %v3662, 0.088388346
        %v3842 = vmul.f32 %v3087, 0.088388346
        %v3843 = vmul.f32 %v3089, 0.088388346
        %v3844 = vmul.f32 %v3280, 0.088388346
        %v3845 = vmul.f32 %v3282, 0.088388346
        %v3846 = vmul.f32 %v3473, 0.088388346
        %v3847 = vmul.f32 %v3475, 0.088388346
        %v3848 = vmul.f32 %v3666, 0.088388346
        %v3849 = vmul.f32 %v3668, 0.088388346
        %v3850 = vmul.f32 %v3091, 0.088388346
        %v3851 = vmul.f32 %v3093, 0.088388346
        %v3852 = vmul.f32 %v3284, 0.088388346
        %v3853 = vmul.f32 %v3286, 0.088388346
        %v3854 = vmul.f32 %v3477, 0.088388346
        %v3855 = vmul.f32 %v3479, 0.088388346
        %v3856 = vmul.f32 %v3670, 0.088388346
        %v3857 = vmul.f32 %v3672, 0.088388346
        %v3858 = vmul.f32 %v3097, 0.088388346
        %v3859 = vmul.f32 %v3099, 0.088388346
        %v3860 = vmul.f32 %v3290, 0.088388346
        %v3861 = vmul.f32 %v3292, 0.088388346
        %v3862 = vmul.f32 %v3483, 0.088388346
        %v3863 = vmul.f32 %v3485, 0.088388346
        %v3864 = vmul.f32 %v3676, 0.088388346
        %v3865 = vmul.f32 %v3678, 0.088388346
        %v3866 = vmul.f32 %v3101, 0.088388346
        %v3867 = vmul.f32 %v3103, 0.088388346
        %v3868 = vmul.f32 %v3294, 0.088388346
        %v3869 = vmul.f32 %v3296, 0.088388346
        %v3870 = vmul.f32 %v3487, 0.088388346
        %v3871 = vmul.f32 %v3489, 0.088388346
        %v3872 = vmul.f32 %v3680, 0.088388346
        %v3873 = vmul.f32 %v3682, 0.088388346
        %v3874 = vmul.f32 %v3107, 0.088388346
        %v3875 = vmul.f32 %v3109, 0.088388346
        %v3876 = vmul.f32 %v3300, 0.088388346
        %v3877 = vmul.f32 %v3302, 0.088388346
        %v3878 = vmul.f32 %v3493, 0.088388346
        %v3879 = vmul.f32 %v3495, 0.088388346
        %v3880 = vmul.f32 %v3686, 0.088388346
        %v3881 = vmul.f32 %v3688, 0.088388346
        %v3882 = vmul.f32 %v3111, 0.088388346
        %v3883 = vmul.f32 %v3113, 0.088388346
        %v3884 = vmul.f32 %v3304, 0.088388346
        %v3885 = vmul.f32 %v3306, 0.088388346
        %v3886 = vmul.f32 %v3497, 0.088388346
        %v3887 = vmul.f32 %v3499, 0.088388346
        %v3888 = vmul.f32 %v3690, 0.088388346
        %v3889 = vmul.f32 %v3692, 0.088388346
        %v3890 = vmul.f32 %v3117, 0.088388346
        %v3891 = vmul.f32 %v3119, 0.088388346
        %v3892 = vmul.f32 %v3310, 0.088388346
        %v3893 = vmul.f32 %v3312, 0.088388346
        %v3894 = vmul.f32 %v3503, 0.088388346
        %v3895 = vmul.f32 %v3505, 0.088388346
        %v3896 = vmul.f32 %v3696, 0.088388346
        %v3897 = vmul.f32 %v3698, 0.088388346
        %v3898 = vmul.f32 %v3121, 0.088388346
        %v3899 = vmul.f32 %v3123, 0.088388346
        %v3900 = vmul.f32 %v3314, 0.088388346
        %v3901 = vmul.f32 %v3316, 0.088388346
        %v3902 = vmul.f32 %v3507, 0.088388346
        %v3903 = vmul.f32 %v3509, 0.088388346
        %v3904 = vmul.f32 %v3700, 0.088388346
        %v3905 = vmul.f32 %v3702, 0.088388346
        %v3906 = vmul.f32 %v3127, 0.088388346
        %v3907 = vmul.f32 %v3129, 0.088388346
        %v3908 = vmul.f32 %v3320, 0.088388346
        %v3909 = vmul.f32 %v3322, 0.088388346
        %v3910 = vmul.f32 %v3513, 0.088388346
        %v3911 = vmul.f32 %v3515, 0.088388346
        %v3912 = vmul.f32 %v3706, 0.088388346
        %v3913 = vmul.f32 %v3708, 0.088388346
        %v3914 = vmul.f32 %v3131, 0.088388346
        %v3915 = vmul.f32 %v3133, 0.088388346
        %v3916 = vmul.f32 %v3324, 0.088388346
        %v3917 = vmul.f32 %v3326, 0.088388346
        %v3918 = vmul.f32 %v3517, 0.088388346
        %v3919 = vmul.f32 %v3519, 0.088388346
        %v3920 = vmul.f32 %v3710, 0.088388346
        %v3921 = vmul.f32 %v3712, 0.088388346
        %v3922 = vmul.f32 %v3137, 0.088388346
        %v3923 = vmul.f32 %v3139, 0.088388346
        %v3924 = vmul.f32 %v3330, 0.088388346
        %v3925 = vmul.f32 %v3332, 0.088388346
        %v3926 = vmul.f32 %v3523, 0.088388346
        %v3927 = vmul.f32 %v3525, 0.088388346
        %v3928 = vmul.f32 %v3716, 0.088388346
        %v3929 = vmul.f32 %v3718, 0.088388346
        %v3930 = vmul.f32 %v3141, 0.088388346
        %v3931 = vmul.f32 %v3143, 0.088388346
        %v3932 = vmul.f32 %v3334, 0.088388346
        %v3933 = vmul.f32 %v3336, 0.088388346
        %v3934 = vmul.f32 %v3527, 0.088388346
        %v3935 = vmul.f32 %v3529, 0.088388346
        %v3936 = vmul.f32 %v3720, 0.088388346
        %v3937 = vmul.f32 %v3722, 0.088388346
        %v3938 = vmul.f32 %v3147, 0.088388346
        %v3939 = vmul.f32 %v3149, 0.088388346
        %v3940 = vmul.f32 %v3340, 0.088388346
        %v3941 = vmul.f32 %v3342, 0.088388346
        %v3942 = vmul.f32 %v3533, 0.088388346
        %v3943 = vmul.f32 %v3535, 0.088388346
        %v3944 = vmul.f32 %v3726, 0.088388346
        %v3945 = vmul.f32 %v3728, 0.088388346
        %v3946 = vmul.f32 %v3151, 0.088388346
        %v3947 = vmul.f32 %v3153, 0.088388346
        %v3948 = vmul.f32 %v3344, 0.088388346
        %v3949 = vmul.f32 %v3346, 0.088388346
        %v3950 = vmul.f32 %v3537, 0.088388346
        %v3951 = vmul.f32 %v3539, 0.088388346
        %v3952 = vmul.f32 %v3730, 0.088388346
        %v3953 = vmul.f32 %v3732, 0.088388346
        %v3954 = vmul.f32 %v3157, 0.088388346
        %v3955 = vmul.f32 %v3159, 0.088388346
        %v3956 = vmul.f32 %v3350, 0.088388346
        %v3957 = vmul.f32 %v3352, 0.088388346
        %v3958 = vmul.f32 %v3543, 0.088388346
        %v3959 = vmul.f32 %v3545, 0.088388346
        %v3960 = vmul.f32 %v3736, 0.088388346
        %v3961 = vmul.f32 %v3738, 0.088388346
        %v3962 = vmul.f32 %v3161, 0.088388346
        %v3963 = vmul.f32 %v3163, 0.088388346
        %v3964 = vmul.f32 %v3354, 0.088388346
        %v3965 = vmul.f32 %v3356, 0.088388346
        %v3966 = vmul.f32 %v3547, 0.088388346
        %v3967 = vmul.f32 %v3549, 0.088388346
        %v3968 = vmul.f32 %v3740, 0.088388346
        %v3969 = vmul.f32 %v3742, 0.088388346
        %v3970 = vmul.f32 %v3167, 0.088388346
        %v3971 = vmul.f32 %v3169, 0.088388346
        %v3972 = vmul.f32 %v3360, 0.088388346
        %v3973 = vmul.f32 %v3362, 0.088388346
        %v3974 = vmul.f32 %v3553, 0.088388346
        %v3975 = vmul.f32 %v3555, 0.088388346
        %v3976 = vmul.f32 %v3746, 0.088388346
        %v3977 = vmul.f32 %v3748, 0.088388346
        %v3978 = vmul.f32 %v3171, 0.088388346
        %v3979 = vmul.f32 %v3173, 0.088388346
        %v3980 = vmul.f32 %v3364, 0.088388346
        %v3981 = vmul.f32 %v3366, 0.088388346
        %v3982 = vmul.f32 %v3557, 0.088388346
        %v3983 = vmul.f32 %v3559, 0.088388346
        %v3984 = vmul.f32 %v3750, 0.088388346
        %v3985 = vmul.f32 %v3752, 0.088388346
        %v3986 = vmul.f32 %v3177, 0.088388346
        %v3987 = vmul.f32 %v3179, 0.088388346
        %v3988 = vmul.f32 %v3370, 0.088388346
        %v3989 = vmul.f32 %v3372, 0.088388346
        %v3990 = vmul.f32 %v3563, 0.088388346
        %v3991 = vmul.f32 %v3565, 0.088388346
        %v3992 = vmul.f32 %v3756, 0.088388346
        %v3993 = vmul.f32 %v3758, 0.088388346
        %v3994 = vmul.f32 %v3181, 0.088388346
        %v3995 = vmul.f32 %v3183, 0.088388346
        %v3996 = vmul.f32 %v3374, 0.088388346
        %v3997 = vmul.f32 %v3376, 0.088388346
        %v3998 = vmul.f32 %v3567, 0.088388346
        %v3999 = vmul.f32 %v3569, 0.088388346
        %v4000 = vmul.f32 %v3760, 0.088388346
        %v4001 = vmul.f32 %v3762, 0.088388346
        %v4002 = vmul.f32 %v3187, 0.088388346
        %v4003 = vmul.f32 %v3189, 0.088388346
        %v4004 = vmul.f32 %v3380, 0.088388346
        %v4005 = vmul.f32 %v3382, 0.088388346
        %v4006 = vmul.f32 %v3573, 0.088388346
        %v4007 = vmul.f32 %v3575, 0.088388346
        %v4008 = vmul.f32 %v3766, 0.088388346
        %v4009 = vmul.f32 %v3768, 0.088388346
        %v4010 = vmul.f32 %v3191, 0.088388346
        %v4011 = vmul.f32 %v3193, 0.088388346
        %v4012 = vmul.f32 %v3384, 0.088388346
        %v4013 = vmul.f32 %v3386, 0.088388346
        %v4014 = vmul.f32 %v3577, 0.088388346
        %v4015 = vmul.f32 %v3579, 0.088388346
        %v4016 = vmul.f32 %v3770, 0.088388346
        %v4017 = vmul.f32 %v3772, 0.088388346
        %v4018 = vmul.f32 %v3197, 0.088388346
        %v4019 = vmul.f32 %v3199, 0.088388346
        %v4020 = vmul.f32 %v3390, 0.088388346
        %v4021 = vmul.f32 %v3392, 0.088388346
        %v4022 = vmul.f32 %v3583, 0.088388346
        %v4023 = vmul.f32 %v3585, 0.088388346
        %v4024 = vmul.f32 %v3776, 0.088388346
        %v4025 = vmul.f32 %v3778, 0.088388346
        %v4026 = vmul.f32 %v3201, 0.088388346
        %v4027 = vmul.f32 %v3203, 0.088388346
        %v4028 = vmul.f32 %v3394, 0.088388346
        %v4029 = vmul.f32 %v3396, 0.088388346
        %v4030 = vmul.f32 %v3587, 0.088388346
        %v4031 = vmul.f32 %v3589, 0.088388346
        %v4032 = vmul.f32 %v3780, 0.088388346
        %v4033 = vmul.f32 %v3782, 0.088388346
        %v4034 = vmul.f32 %v3207, 0.088388346
        %v4035 = vmul.f32 %v3209, 0.088388346
        %v4036 = vmul.f32 %v3400, 0.088388346
        %v4037 = vmul.f32 %v3402, 0.088388346
        %v4038 = vmul.f32 %v3593, 0.088388346
        %v4039 = vmul.f32 %v3595, 0.088388346
        %v4040 = vmul.f32 %v3786, 0.088388346
        %v4041 = vmul.f32 %v3788, 0.088388346
        %v4042 = vmul.f32 %v3211, 0.088388346
        %v4043 = vmul.f32 %v3213, 0.088388346
        %v4044 = vmul.f32 %v3404, 0.088388346
        %v4045 = vmul.f32 %v3406, 0.088388346
        %v4046 = vmul.f32 %v3597, 0.088388346
        %v4047 = vmul.f32 %v3599, 0.088388346
        %v4048 = vmul.f32 %v3790, 0.088388346
        %v4049 = vmul.f32 %v3792, 0.088388346
        %v4050 = vmax.f32 %v3794, %v3795
        %v4051 = vmax.f32 %v4050, %v3796
        %v4052 = vmax.f32 %v4051, %v3797
        %v4053 = vmax.f32 %v4052, %v3798
        %v4054 = vmax.f32 %v4053, %v3799
        %v4055 = vmax.f32 %v4054, %v3800
        %v4056 = vmax.f32 %v4055, %v3801
        %4057 = vmax.xlane.f32.xlu0 %v4056
        %v4058 = vpop.xlane.xlu0 %4057
        %v4059 = vmax.f32 %v3802, %v3803
        %v4060 = vmax.f32 %v4059, %v3804
        %v4061 = vmax.f32 %v4060, %v3805
        %v4062 = vmax.f32 %v4061, %v3806
        %v4063 = vmax.f32 %v4062, %v3807
        %v4064 = vmax.f32 %v4063, %v3808
        %v4065 = vmax.f32 %v4064, %v3809
        %4066 = vmax.xlane.f32.xlu0 %v4065
        %v4067 = vpop.xlane.xlu0 %4066
        %v4068 = vmax.f32 %v3810, %v3811
        %v4069 = vmax.f32 %v4068, %v3812
        %v4070 = vmax.f32 %v4069, %v3813
        %v4071 = vmax.f32 %v4070, %v3814
        %v4072 = vmax.f32 %v4071, %v3815
        %v4073 = vmax.f32 %v4072, %v3816
        %v4074 = vmax.f32 %v4073, %v3817
        %4075 = vmax.xlane.f32.xlu0 %v4074
        %v4076 = vpop.xlane.xlu0 %4075
        %v4077 = vmax.f32 %v3818, %v3819
        %v4078 = vmax.f32 %v4077, %v3820
        %v4079 = vmax.f32 %v4078, %v3821
        %v4080 = vmax.f32 %v4079, %v3822
        %v4081 = vmax.f32 %v4080, %v3823
        %v4082 = vmax.f32 %v4081, %v3824
        %v4083 = vmax.f32 %v4082, %v3825
        %4084 = vmax.xlane.f32.xlu0 %v4083
        %v4085 = vpop.xlane.xlu0 %4084
        %v4086 = vmax.f32 %v3826, %v3827
        %v4087 = vmax.f32 %v4086, %v3828
        %v4088 = vmax.f32 %v4087, %v3829
        %v4089 = vmax.f32 %v4088, %v3830
        %v4090 = vmax.f32 %v4089, %v3831
        %v4091 = vmax.f32 %v4090, %v3832
        %v4092 = vmax.f32 %v4091, %v3833
        %4093 = vmax.xlane.f32.xlu0 %v4092
        %v4094 = vpop.xlane.xlu0 %4093
        %v4095 = vmax.f32 %v3834, %v3835
        %v4096 = vmax.f32 %v4095, %v3836
        %v4097 = vmax.f32 %v4096, %v3837
        %v4098 = vmax.f32 %v4097, %v3838
        %v4099 = vmax.f32 %v4098, %v3839
        %v4100 = vmax.f32 %v4099, %v3840
        %v4101 = vmax.f32 %v4100, %v3841
        %4102 = vmax.xlane.f32.xlu0 %v4101
        %v4103 = vpop.xlane.xlu0 %4102
        %v4104 = vmax.f32 %v3842, %v3843
        %v4105 = vmax.f32 %v4104, %v3844
        %v4106 = vmax.f32 %v4105, %v3845
        %v4107 = vmax.f32 %v4106, %v3846
        %v4108 = vmax.f32 %v4107, %v3847
        %v4109 = vmax.f32 %v4108, %v3848
        %v4110 = vmax.f32 %v4109, %v3849
        %4111 = vmax.xlane.f32.xlu0 %v4110
        %v4112 = vpop.xlane.xlu0 %4111
        %v4113 = vmax.f32 %v3850, %v3851
        %v4114 = vmax.f32 %v4113, %v3852
        %v4115 = vmax.f32 %v4114, %v3853
        %v4116 = vmax.f32 %v4115, %v3854
        %v4117 = vmax.f32 %v4116, %v3855
        %v4118 = vmax.f32 %v4117, %v3856
        %v4119 = vmax.f32 %v4118, %v3857
        %4120 = vmax.xlane.f32.xlu0 %v4119
        %v4121 = vpop.xlane.xlu0 %4120
        %v4122 = vmax.f32 %v3858, %v3859
        %v4123 = vmax.f32 %v4122, %v3860
        %v4124 = vmax.f32 %v4123, %v3861
        %v4125 = vmax.f32 %v4124, %v3862
        %v4126 = vmax.f32 %v4125, %v3863
        %v4127 = vmax.f32 %v4126, %v3864
        %v4128 = vmax.f32 %v4127, %v3865
        %4129 = vmax.xlane.f32.xlu0 %v4128
        %v4130 = vpop.xlane.xlu0 %4129
        %v4131 = vmax.f32 %v3866, %v3867
        %v4132 = vmax.f32 %v4131, %v3868
        %v4133 = vmax.f32 %v4132, %v3869
        %v4134 = vmax.f32 %v4133, %v3870
        %v4135 = vmax.f32 %v4134, %v3871
        %v4136 = vmax.f32 %v4135, %v3872
        %v4137 = vmax.f32 %v4136, %v3873
        %4138 = vmax.xlane.f32.xlu0 %v4137
        %v4139 = vpop.xlane.xlu0 %4138
        %v4140 = vmax.f32 %v3874, %v3875
        %v4141 = vmax.f32 %v4140, %v3876
        %v4142 = vmax.f32 %v4141, %v3877
        %v4143 = vmax.f32 %v4142, %v3878
        %v4144 = vmax.f32 %v4143, %v3879
        %v4145 = vmax.f32 %v4144, %v3880
        %v4146 = vmax.f32 %v4145, %v3881
        %4147 = vmax.xlane.f32.xlu0 %v4146
        %v4148 = vpop.xlane.xlu0 %4147
        %v4149 = vmax.f32 %v3882, %v3883
        %v4150 = vmax.f32 %v4149, %v3884
        %v4151 = vmax.f32 %v4150, %v3885
        %v4152 = vmax.f32 %v4151, %v3886
        %v4153 = vmax.f32 %v4152, %v3887
        %v4154 = vmax.f32 %v4153, %v3888
        %v4155 = vmax.f32 %v4154, %v3889
        %4156 = vmax.xlane.f32.xlu0 %v4155
        %v4157 = vpop.xlane.xlu0 %4156
        %v4158 = vmax.f32 %v3890, %v3891
        %v4159 = vmax.f32 %v4158, %v3892
        %v4160 = vmax.f32 %v4159, %v3893
        %v4161 = vmax.f32 %v4160, %v3894
        %v4162 = vmax.f32 %v4161, %v3895
        %v4163 = vmax.f32 %v4162, %v3896
        %v4164 = vmax.f32 %v4163, %v3897
        %4165 = vmax.xlane.f32.xlu0 %v4164
        %v4166 = vpop.xlane.xlu0 %4165
        %v4167 = vmax.f32 %v3898, %v3899
        %v4168 = vmax.f32 %v4167, %v3900
        %v4169 = vmax.f32 %v4168, %v3901
        %v4170 = vmax.f32 %v4169, %v3902
        %v4171 = vmax.f32 %v4170, %v3903
        %v4172 = vmax.f32 %v4171, %v3904
        %v4173 = vmax.f32 %v4172, %v3905
        %4174 = vmax.xlane.f32.xlu0 %v4173
        %v4175 = vpop.xlane.xlu0 %4174
        %v4176 = vmax.f32 %v3906, %v3907
        %v4177 = vmax.f32 %v4176, %v3908
        %v4178 = vmax.f32 %v4177, %v3909
        %v4179 = vmax.f32 %v4178, %v3910
        %v4180 = vmax.f32 %v4179, %v3911
        %v4181 = vmax.f32 %v4180, %v3912
        %v4182 = vmax.f32 %v4181, %v3913
        %4183 = vmax.xlane.f32.xlu0 %v4182
        %v4184 = vpop.xlane.xlu0 %4183
        %v4185 = vmax.f32 %v3914, %v3915
        %v4186 = vmax.f32 %v4185, %v3916
        %v4187 = vmax.f32 %v4186, %v3917
        %v4188 = vmax.f32 %v4187, %v3918
        %v4189 = vmax.f32 %v4188, %v3919
        %v4190 = vmax.f32 %v4189, %v3920
        %v4191 = vmax.f32 %v4190, %v3921
        %4192 = vmax.xlane.f32.xlu0 %v4191
        %v4193 = vpop.xlane.xlu0 %4192
        %v4194 = vmax.f32 %v3922, %v3923
        %v4195 = vmax.f32 %v4194, %v3924
        %v4196 = vmax.f32 %v4195, %v3925
        %v4197 = vmax.f32 %v4196, %v3926
        %v4198 = vmax.f32 %v4197, %v3927
        %v4199 = vmax.f32 %v4198, %v3928
        %v4200 = vmax.f32 %v4199, %v3929
        %4201 = vmax.xlane.f32.xlu0 %v4200
        %v4202 = vpop.xlane.xlu0 %4201
        %v4203 = vmax.f32 %v3930, %v3931
        %v4204 = vmax.f32 %v4203, %v3932
        %v4205 = vmax.f32 %v4204, %v3933
        %v4206 = vmax.f32 %v4205, %v3934
        %v4207 = vmax.f32 %v4206, %v3935
        %v4208 = vmax.f32 %v4207, %v3936
        %v4209 = vmax.f32 %v4208, %v3937
        %4210 = vmax.xlane.f32.xlu0 %v4209
        %v4211 = vpop.xlane.xlu0 %4210
        %v4212 = vmax.f32 %v3938, %v3939
        %v4213 = vmax.f32 %v4212, %v3940
        %v4214 = vmax.f32 %v4213, %v3941
        %v4215 = vmax.f32 %v4214, %v3942
        %v4216 = vmax.f32 %v4215, %v3943
        %v4217 = vmax.f32 %v4216, %v3944
        %v4218 = vmax.f32 %v4217, %v3945
        %4219 = vmax.xlane.f32.xlu0 %v4218
        %v4220 = vpop.xlane.xlu0 %4219
        %v4221 = vmax.f32 %v3946, %v3947
        %v4222 = vmax.f32 %v4221, %v3948
        %v4223 = vmax.f32 %v4222, %v3949
        %v4224 = vmax.f32 %v4223, %v3950
        %v4225 = vmax.f32 %v4224, %v3951
        %v4226 = vmax.f32 %v4225, %v3952
        %v4227 = vmax.f32 %v4226, %v3953
        %4228 = vmax.xlane.f32.xlu0 %v4227
        %v4229 = vpop.xlane.xlu0 %4228
        %v4230 = vmax.f32 %v3954, %v3955
        %v4231 = vmax.f32 %v4230, %v3956
        %v4232 = vmax.f32 %v4231, %v3957
        %v4233 = vmax.f32 %v4232, %v3958
        %v4234 = vmax.f32 %v4233, %v3959
        %v4235 = vmax.f32 %v4234, %v3960
        %v4236 = vmax.f32 %v4235, %v3961
        %4237 = vmax.xlane.f32.xlu0 %v4236
        %v4238 = vpop.xlane.xlu0 %4237
        %v4239 = vmax.f32 %v3962, %v3963
        %v4240 = vmax.f32 %v4239, %v3964
        %v4241 = vmax.f32 %v4240, %v3965
        %v4242 = vmax.f32 %v4241, %v3966
        %v4243 = vmax.f32 %v4242, %v3967
        %v4244 = vmax.f32 %v4243, %v3968
        %v4245 = vmax.f32 %v4244, %v3969
        %4246 = vmax.xlane.f32.xlu0 %v4245
        %v4247 = vpop.xlane.xlu0 %4246
        %v4248 = vmax.f32 %v3970, %v3971
        %v4249 = vmax.f32 %v4248, %v3972
        %v4250 = vmax.f32 %v4249, %v3973
        %v4251 = vmax.f32 %v4250, %v3974
        %v4252 = vmax.f32 %v4251, %v3975
        %v4253 = vmax.f32 %v4252, %v3976
        %v4254 = vmax.f32 %v4253, %v3977
        %4255 = vmax.xlane.f32.xlu0 %v4254
        %v4256 = vpop.xlane.xlu0 %4255
        %v4257 = vmax.f32 %v3978, %v3979
        %v4258 = vmax.f32 %v4257, %v3980
        %v4259 = vmax.f32 %v4258, %v3981
        %v4260 = vmax.f32 %v4259, %v3982
        %v4261 = vmax.f32 %v4260, %v3983
        %v4262 = vmax.f32 %v4261, %v3984
        %v4263 = vmax.f32 %v4262, %v3985
        %4264 = vmax.xlane.f32.xlu0 %v4263
        %v4265 = vpop.xlane.xlu0 %4264
        %v4266 = vmax.f32 %v3986, %v3987
        %v4267 = vmax.f32 %v4266, %v3988
        %v4268 = vmax.f32 %v4267, %v3989
        %v4269 = vmax.f32 %v4268, %v3990
        %v4270 = vmax.f32 %v4269, %v3991
        %v4271 = vmax.f32 %v4270, %v3992
        %v4272 = vmax.f32 %v4271, %v3993
        %4273 = vmax.xlane.f32.xlu0 %v4272
        %v4274 = vpop.xlane.xlu0 %4273
        %v4275 = vmax.f32 %v3994, %v3995
        %v4276 = vmax.f32 %v4275, %v3996
        %v4277 = vmax.f32 %v4276, %v3997
        %v4278 = vmax.f32 %v4277, %v3998
        %v4279 = vmax.f32 %v4278, %v3999
        %v4280 = vmax.f32 %v4279, %v4000
        %v4281 = vmax.f32 %v4280, %v4001
        %4282 = vmax.xlane.f32.xlu0 %v4281
        %v4283 = vpop.xlane.xlu0 %4282
        %v4284 = vmax.f32 %v4002, %v4003
        %v4285 = vmax.f32 %v4284, %v4004
        %v4286 = vmax.f32 %v4285, %v4005
        %v4287 = vmax.f32 %v4286, %v4006
        %v4288 = vmax.f32 %v4287, %v4007
        %v4289 = vmax.f32 %v4288, %v4008
        %v4290 = vmax.f32 %v4289, %v4009
        %4291 = vmax.xlane.f32.xlu0 %v4290
        %v4292 = vpop.xlane.xlu0 %4291
        %v4293 = vmax.f32 %v4010, %v4011
        %v4294 = vmax.f32 %v4293, %v4012
        %v4295 = vmax.f32 %v4294, %v4013
        %v4296 = vmax.f32 %v4295, %v4014
        %v4297 = vmax.f32 %v4296, %v4015
        %v4298 = vmax.f32 %v4297, %v4016
        %v4299 = vmax.f32 %v4298, %v4017
        %4300 = vmax.xlane.f32.xlu0 %v4299
        %v4301 = vpop.xlane.xlu0 %4300
        %v4302 = vmax.f32 %v4018, %v4019
        %v4303 = vmax.f32 %v4302, %v4020
        %v4304 = vmax.f32 %v4303, %v4021
        %v4305 = vmax.f32 %v4304, %v4022
        %v4306 = vmax.f32 %v4305, %v4023
        %v4307 = vmax.f32 %v4306, %v4024
        %v4308 = vmax.f32 %v4307, %v4025
        %4309 = vmax.xlane.f32.xlu0 %v4308
        %v4310 = vpop.xlane.xlu0 %4309
        %v4311 = vmax.f32 %v4026, %v4027
        %v4312 = vmax.f32 %v4311, %v4028
        %v4313 = vmax.f32 %v4312, %v4029
        %v4314 = vmax.f32 %v4313, %v4030
        %v4315 = vmax.f32 %v4314, %v4031
        %v4316 = vmax.f32 %v4315, %v4032
        %v4317 = vmax.f32 %v4316, %v4033
        %4318 = vmax.xlane.f32.xlu0 %v4317
        %v4319 = vpop.xlane.xlu0 %4318
        %v4320 = vmax.f32 %v4034, %v4035
        %v4321 = vmax.f32 %v4320, %v4036
        %v4322 = vmax.f32 %v4321, %v4037
        %v4323 = vmax.f32 %v4322, %v4038
        %v4324 = vmax.f32 %v4323, %v4039
        %v4325 = vmax.f32 %v4324, %v4040
        %v4326 = vmax.f32 %v4325, %v4041
        %4327 = vmax.xlane.f32.xlu0 %v4326
        %v4328 = vpop.xlane.xlu0 %4327
        %v4329 = vmax.f32 %v4042, %v4043
        %v4330 = vmax.f32 %v4329, %v4044
        %v4331 = vmax.f32 %v4330, %v4045
        %v4332 = vmax.f32 %v4331, %v4046
        %v4333 = vmax.f32 %v4332, %v4047
        %v4334 = vmax.f32 %v4333, %v4048
        %v4335 = vmax.f32 %v4334, %v4049
        %4336 = vmax.xlane.f32.xlu0 %v4335
        %v4337 = vpop.xlane.xlu0 %4336
        %v4338 = vsub.f32 %v3794, %v4058
        %v4339 = vsub.f32 %v3795, %v4058
        %v4340 = vsub.f32 %v3796, %v4058
        %v4341 = vsub.f32 %v3797, %v4058
        %v4342 = vsub.f32 %v3798, %v4058
        %v4343 = vsub.f32 %v3799, %v4058
        %v4344 = vsub.f32 %v3800, %v4058
        %v4345 = vsub.f32 %v3801, %v4058
        %v4346 = vsub.f32 %v3802, %v4067
        %v4347 = vsub.f32 %v3803, %v4067
        %v4348 = vsub.f32 %v3804, %v4067
        %v4349 = vsub.f32 %v3805, %v4067
        %v4350 = vsub.f32 %v3806, %v4067
        %v4351 = vsub.f32 %v3807, %v4067
        %v4352 = vsub.f32 %v3808, %v4067
        %v4353 = vsub.f32 %v3809, %v4067
        %v4354 = vsub.f32 %v3810, %v4076
        %v4355 = vsub.f32 %v3811, %v4076
        %v4356 = vsub.f32 %v3812, %v4076
        %v4357 = vsub.f32 %v3813, %v4076
        %v4358 = vsub.f32 %v3814, %v4076
        %v4359 = vsub.f32 %v3815, %v4076
        %v4360 = vsub.f32 %v3816, %v4076
        %v4361 = vsub.f32 %v3817, %v4076
        %v4362 = vsub.f32 %v3818, %v4085
        %v4363 = vsub.f32 %v3819, %v4085
        %v4364 = vsub.f32 %v3820, %v4085
        %v4365 = vsub.f32 %v3821, %v4085
        %v4366 = vsub.f32 %v3822, %v4085
        %v4367 = vsub.f32 %v3823, %v4085
        %v4368 = vsub.f32 %v3824, %v4085
        %v4369 = vsub.f32 %v3825, %v4085
        %v4370 = vsub.f32 %v3826, %v4094
        %v4371 = vsub.f32 %v3827, %v4094
        %v4372 = vsub.f32 %v3828, %v4094
        %v4373 = vsub.f32 %v3829, %v4094
        %v4374 = vsub.f32 %v3830, %v4094
        %v4375 = vsub.f32 %v3831, %v4094
        %v4376 = vsub.f32 %v3832, %v4094
        %v4377 = vsub.f32 %v3833, %v4094
        %v4378 = vsub.f32 %v3834, %v4103
        %v4379 = vsub.f32 %v3835, %v4103
        %v4380 = vsub.f32 %v3836, %v4103
        %v4381 = vsub.f32 %v3837, %v4103
        %v4382 = vsub.f32 %v3838, %v4103
        %v4383 = vsub.f32 %v3839, %v4103
        %v4384 = vsub.f32 %v3840, %v4103
        %v4385 = vsub.f32 %v3841, %v4103
        %v4386 = vsub.f32 %v3842, %v4112
        %v4387 = vsub.f32 %v3843, %v4112
        %v4388 = vsub.f32 %v3844, %v4112
        %v4389 = vsub.f32 %v3845, %v4112
        %v4390 = vsub.f32 %v3846, %v4112
        %v4391 = vsub.f32 %v3847, %v4112
        %v4392 = vsub.f32 %v3848, %v4112
        %v4393 = vsub.f32 %v3849, %v4112
        %v4394 = vsub.f32 %v3850, %v4121
        %v4395 = vsub.f32 %v3851, %v4121
        %v4396 = vsub.f32 %v3852, %v4121
        %v4397 = vsub.f32 %v3853, %v4121
        %v4398 = vsub.f32 %v3854, %v4121
        %v4399 = vsub.f32 %v3855, %v4121
        %v4400 = vsub.f32 %v3856, %v4121
        %v4401 = vsub.f32 %v3857, %v4121
        %v4402 = vsub.f32 %v3858, %v4130
        %v4403 = vsub.f32 %v3859, %v4130
        %v4404 = vsub.f32 %v3860, %v4130
        %v4405 = vsub.f32 %v3861, %v4130
        %v4406 = vsub.f32 %v3862, %v4130
        %v4407 = vsub.f32 %v3863, %v4130
        %v4408 = vsub.f32 %v3864, %v4130
        %v4409 = vsub.f32 %v3865, %v4130
        %v4410 = vsub.f32 %v3866, %v4139
        %v4411 = vsub.f32 %v3867, %v4139
        %v4412 = vsub.f32 %v3868, %v4139
        %v4413 = vsub.f32 %v3869, %v4139
        %v4414 = vsub.f32 %v3870, %v4139
        %v4415 = vsub.f32 %v3871, %v4139
        %v4416 = vsub.f32 %v3872, %v4139
        %v4417 = vsub.f32 %v3873, %v4139
        %v4418 = vsub.f32 %v3874, %v4148
        %v4419 = vsub.f32 %v3875, %v4148
        %v4420 = vsub.f32 %v3876, %v4148
        %v4421 = vsub.f32 %v3877, %v4148
        %v4422 = vsub.f32 %v3878, %v4148
        %v4423 = vsub.f32 %v3879, %v4148
        %v4424 = vsub.f32 %v3880, %v4148
        %v4425 = vsub.f32 %v3881, %v4148
        %v4426 = vsub.f32 %v3882, %v4157
        %v4427 = vsub.f32 %v3883, %v4157
        %v4428 = vsub.f32 %v3884, %v4157
        %v4429 = vsub.f32 %v3885, %v4157
        %v4430 = vsub.f32 %v3886, %v4157
        %v4431 = vsub.f32 %v3887, %v4157
        %v4432 = vsub.f32 %v3888, %v4157
        %v4433 = vsub.f32 %v3889, %v4157
        %v4434 = vsub.f32 %v3890, %v4166
        %v4435 = vsub.f32 %v3891, %v4166
        %v4436 = vsub.f32 %v3892, %v4166
        %v4437 = vsub.f32 %v3893, %v4166
        %v4438 = vsub.f32 %v3894, %v4166
        %v4439 = vsub.f32 %v3895, %v4166
        %v4440 = vsub.f32 %v3896, %v4166
        %v4441 = vsub.f32 %v3897, %v4166
        %v4442 = vsub.f32 %v3898, %v4175
        %v4443 = vsub.f32 %v3899, %v4175
        %v4444 = vsub.f32 %v3900, %v4175
        %v4445 = vsub.f32 %v3901, %v4175
        %v4446 = vsub.f32 %v3902, %v4175
        %v4447 = vsub.f32 %v3903, %v4175
        %v4448 = vsub.f32 %v3904, %v4175
        %v4449 = vsub.f32 %v3905, %v4175
        %v4450 = vsub.f32 %v3906, %v4184
        %v4451 = vsub.f32 %v3907, %v4184
        %v4452 = vsub.f32 %v3908, %v4184
        %v4453 = vsub.f32 %v3909, %v4184
        %v4454 = vsub.f32 %v3910, %v4184
        %v4455 = vsub.f32 %v3911, %v4184
        %v4456 = vsub.f32 %v3912, %v4184
        %v4457 = vsub.f32 %v3913, %v4184
        %v4458 = vsub.f32 %v3914, %v4193
        %v4459 = vsub.f32 %v3915, %v4193
        %v4460 = vsub.f32 %v3916, %v4193
        %v4461 = vsub.f32 %v3917, %v4193
        %v4462 = vsub.f32 %v3918, %v4193
        %v4463 = vsub.f32 %v3919, %v4193
        %v4464 = vsub.f32 %v3920, %v4193
        %v4465 = vsub.f32 %v3921, %v4193
        %v4466 = vsub.f32 %v3922, %v4202
        %v4467 = vsub.f32 %v3923, %v4202
        %v4468 = vsub.f32 %v3924, %v4202
        %v4469 = vsub.f32 %v3925, %v4202
        %v4470 = vsub.f32 %v3926, %v4202
        %v4471 = vsub.f32 %v3927, %v4202
        %v4472 = vsub.f32 %v3928, %v4202
        %v4473 = vsub.f32 %v3929, %v4202
        %v4474 = vsub.f32 %v3930, %v4211
        %v4475 = vsub.f32 %v3931, %v4211
        %v4476 = vsub.f32 %v3932, %v4211
        %v4477 = vsub.f32 %v3933, %v4211
        %v4478 = vsub.f32 %v3934, %v4211
        %v4479 = vsub.f32 %v3935, %v4211
        %v4480 = vsub.f32 %v3936, %v4211
        %v4481 = vsub.f32 %v3937, %v4211
        %v4482 = vsub.f32 %v3938, %v4220
        %v4483 = vsub.f32 %v3939, %v4220
        %v4484 = vsub.f32 %v3940, %v4220
        %v4485 = vsub.f32 %v3941, %v4220
        %v4486 = vsub.f32 %v3942, %v4220
        %v4487 = vsub.f32 %v3943, %v4220
        %v4488 = vsub.f32 %v3944, %v4220
        %v4489 = vsub.f32 %v3945, %v4220
        %v4490 = vsub.f32 %v3946, %v4229
        %v4491 = vsub.f32 %v3947, %v4229
        %v4492 = vsub.f32 %v3948, %v4229
        %v4493 = vsub.f32 %v3949, %v4229
        %v4494 = vsub.f32 %v3950, %v4229
        %v4495 = vsub.f32 %v3951, %v4229
        %v4496 = vsub.f32 %v3952, %v4229
        %v4497 = vsub.f32 %v3953, %v4229
        %v4498 = vsub.f32 %v3954, %v4238
        %v4499 = vsub.f32 %v3955, %v4238
        %v4500 = vsub.f32 %v3956, %v4238
        %v4501 = vsub.f32 %v3957, %v4238
        %v4502 = vsub.f32 %v3958, %v4238
        %v4503 = vsub.f32 %v3959, %v4238
        %v4504 = vsub.f32 %v3960, %v4238
        %v4505 = vsub.f32 %v3961, %v4238
        %v4506 = vsub.f32 %v3962, %v4247
        %v4507 = vsub.f32 %v3963, %v4247
        %v4508 = vsub.f32 %v3964, %v4247
        %v4509 = vsub.f32 %v3965, %v4247
        %v4510 = vsub.f32 %v3966, %v4247
        %v4511 = vsub.f32 %v3967, %v4247
        %v4512 = vsub.f32 %v3968, %v4247
        %v4513 = vsub.f32 %v3969, %v4247
        %v4514 = vsub.f32 %v3970, %v4256
        %v4515 = vsub.f32 %v3971, %v4256
        %v4516 = vsub.f32 %v3972, %v4256
        %v4517 = vsub.f32 %v3973, %v4256
        %v4518 = vsub.f32 %v3974, %v4256
        %v4519 = vsub.f32 %v3975, %v4256
        %v4520 = vsub.f32 %v3976, %v4256
        %v4521 = vsub.f32 %v3977, %v4256
        %v4522 = vsub.f32 %v3978, %v4265
        %v4523 = vsub.f32 %v3979, %v4265
        %v4524 = vsub.f32 %v3980, %v4265
        %v4525 = vsub.f32 %v3981, %v4265
        %v4526 = vsub.f32 %v3982, %v4265
        %v4527 = vsub.f32 %v3983, %v4265
        %v4528 = vsub.f32 %v3984, %v4265
        %v4529 = vsub.f32 %v3985, %v4265
        %v4530 = vsub.f32 %v3986, %v4274
        %v4531 = vsub.f32 %v3987, %v4274
        %v4532 = vsub.f32 %v3988, %v4274
        %v4533 = vsub.f32 %v3989, %v4274
        %v4534 = vsub.f32 %v3990, %v4274
        %v4535 = vsub.f32 %v3991, %v4274
        %v4536 = vsub.f32 %v3992, %v4274
        %v4537 = vsub.f32 %v3993, %v4274
        %v4538 = vsub.f32 %v3994, %v4283
        %v4539 = vsub.f32 %v3995, %v4283
        %v4540 = vsub.f32 %v3996, %v4283
        %v4541 = vsub.f32 %v3997, %v4283
        %v4542 = vsub.f32 %v3998, %v4283
        %v4543 = vsub.f32 %v3999, %v4283
        %v4544 = vsub.f32 %v4000, %v4283
        %v4545 = vsub.f32 %v4001, %v4283
        %v4546 = vsub.f32 %v4002, %v4292
        %v4547 = vsub.f32 %v4003, %v4292
        %v4548 = vsub.f32 %v4004, %v4292
        %v4549 = vsub.f32 %v4005, %v4292
        %v4550 = vsub.f32 %v4006, %v4292
        %v4551 = vsub.f32 %v4007, %v4292
        %v4552 = vsub.f32 %v4008, %v4292
        %v4553 = vsub.f32 %v4009, %v4292
        %v4554 = vsub.f32 %v4010, %v4301
        %v4555 = vsub.f32 %v4011, %v4301
        %v4556 = vsub.f32 %v4012, %v4301
        %v4557 = vsub.f32 %v4013, %v4301
        %v4558 = vsub.f32 %v4014, %v4301
        %v4559 = vsub.f32 %v4015, %v4301
        %v4560 = vsub.f32 %v4016, %v4301
        %v4561 = vsub.f32 %v4017, %v4301
        %v4562 = vsub.f32 %v4018, %v4310
        %v4563 = vsub.f32 %v4019, %v4310
        %v4564 = vsub.f32 %v4020, %v4310
        %v4565 = vsub.f32 %v4021, %v4310
        %v4566 = vsub.f32 %v4022, %v4310
        %v4567 = vsub.f32 %v4023, %v4310
        %v4568 = vsub.f32 %v4024, %v4310
        %v4569 = vsub.f32 %v4025, %v4310
        %v4570 = vsub.f32 %v4026, %v4319
        %v4571 = vsub.f32 %v4027, %v4319
        %v4572 = vsub.f32 %v4028, %v4319
        %v4573 = vsub.f32 %v4029, %v4319
        %v4574 = vsub.f32 %v4030, %v4319
        %v4575 = vsub.f32 %v4031, %v4319
        %v4576 = vsub.f32 %v4032, %v4319
        %v4577 = vsub.f32 %v4033, %v4319
        %v4578 = vsub.f32 %v4034, %v4328
        %v4579 = vsub.f32 %v4035, %v4328
        %v4580 = vsub.f32 %v4036, %v4328
        %v4581 = vsub.f32 %v4037, %v4328
        %v4582 = vsub.f32 %v4038, %v4328
        %v4583 = vsub.f32 %v4039, %v4328
        %v4584 = vsub.f32 %v4040, %v4328
        %v4585 = vsub.f32 %v4041, %v4328
        %v4586 = vsub.f32 %v4042, %v4337
        %v4587 = vsub.f32 %v4043, %v4337
        %v4588 = vsub.f32 %v4044, %v4337
        %v4589 = vsub.f32 %v4045, %v4337
        %v4590 = vsub.f32 %v4046, %v4337
        %v4591 = vsub.f32 %v4047, %v4337
        %v4592 = vsub.f32 %v4048, %v4337
        %v4593 = vsub.f32 %v4049, %v4337
        %v4594 = vmul.f32 %v4338, 1.442695
        %v4595 = vpow.pop %v4594
        %v4596 = vmul.f32 %v4339, 1.442695
        %v4597 = vpow.pop %v4596
        %v4598 = vmul.f32 %v4340, 1.442695
        %v4599 = vpow.pop %v4598
        %v4600 = vmul.f32 %v4341, 1.442695
        %v4601 = vpow.pop %v4600
        %v4602 = vmul.f32 %v4342, 1.442695
        %v4603 = vpow.pop %v4602
        %v4604 = vmul.f32 %v4343, 1.442695
        %v4605 = vpow.pop %v4604
        %v4606 = vmul.f32 %v4344, 1.442695
        %v4607 = vpow.pop %v4606
        %v4608 = vmul.f32 %v4345, 1.442695
        %v4609 = vpow.pop %v4608
        %v4610 = vmul.f32 %v4346, 1.442695
        %v4611 = vpow.pop %v4610
        %v4612 = vmul.f32 %v4347, 1.442695
        %v4613 = vpow.pop %v4612
        %v4614 = vmul.f32 %v4348, 1.442695
        %v4615 = vpow.pop %v4614
        %v4616 = vmul.f32 %v4349, 1.442695
        %v4617 = vpow.pop %v4616
        %v4618 = vmul.f32 %v4350, 1.442695
        %v4619 = vpow.pop %v4618
        %v4620 = vmul.f32 %v4351, 1.442695
        %v4621 = vpow.pop %v4620
        %v4622 = vmul.f32 %v4352, 1.442695
        %v4623 = vpow.pop %v4622
        %v4624 = vmul.f32 %v4353, 1.442695
        %v4625 = vpow.pop %v4624
        %v4626 = vmul.f32 %v4354, 1.442695
        %v4627 = vpow.pop %v4626
        %v4628 = vmul.f32 %v4355, 1.442695
        %v4629 = vpow.pop %v4628
        %v4630 = vmul.f32 %v4356, 1.442695
        %v4631 = vpow.pop %v4630
        %v4632 = vmul.f32 %v4357, 1.442695
        %v4633 = vpow.pop %v4632
        %v4634 = vmul.f32 %v4358, 1.442695
        %v4635 = vpow.pop %v4634
        %v4636 = vmul.f32 %v4359, 1.442695
        %v4637 = vpow.pop %v4636
        %v4638 = vmul.f32 %v4360, 1.442695
        %v4639 = vpow.pop %v4638
        %v4640 = vmul.f32 %v4361, 1.442695
        %v4641 = vpow.pop %v4640
        %v4642 = vmul.f32 %v4362, 1.442695
        %v4643 = vpow.pop %v4642
        %v4644 = vmul.f32 %v4363, 1.442695
        %v4645 = vpow.pop %v4644
        %v4646 = vmul.f32 %v4364, 1.442695
        %v4647 = vpow.pop %v4646
        %v4648 = vmul.f32 %v4365, 1.442695
        %v4649 = vpow.pop %v4648
        %v4650 = vmul.f32 %v4366, 1.442695
        %v4651 = vpow.pop %v4650
        %v4652 = vmul.f32 %v4367, 1.442695
        %v4653 = vpow.pop %v4652
        %v4654 = vmul.f32 %v4368, 1.442695
        %v4655 = vpow.pop %v4654
        %v4656 = vmul.f32 %v4369, 1.442695
        %v4657 = vpow.pop %v4656
        %v4658 = vmul.f32 %v4370, 1.442695
        %v4659 = vpow.pop %v4658
        %v4660 = vmul.f32 %v4371, 1.442695
        %v4661 = vpow.pop %v4660
        %v4662 = vmul.f32 %v4372, 1.442695
        %v4663 = vpow.pop %v4662
        %v4664 = vmul.f32 %v4373, 1.442695
        %v4665 = vpow.pop %v4664
        %v4666 = vmul.f32 %v4374, 1.442695
        %v4667 = vpow.pop %v4666
        %v4668 = vmul.f32 %v4375, 1.442695
        %v4669 = vpow.pop %v4668
        %v4670 = vmul.f32 %v4376, 1.442695
        %v4671 = vpow.pop %v4670
        %v4672 = vmul.f32 %v4377, 1.442695
        %v4673 = vpow.pop %v4672
        %v4674 = vmul.f32 %v4378, 1.442695
        %v4675 = vpow.pop %v4674
        %v4676 = vmul.f32 %v4379, 1.442695
        %v4677 = vpow.pop %v4676
        %v4678 = vmul.f32 %v4380, 1.442695
        %v4679 = vpow.pop %v4678
        %v4680 = vmul.f32 %v4381, 1.442695
        %v4681 = vpow.pop %v4680
        %v4682 = vmul.f32 %v4382, 1.442695
        %v4683 = vpow.pop %v4682
        %v4684 = vmul.f32 %v4383, 1.442695
        %v4685 = vpow.pop %v4684
        %v4686 = vmul.f32 %v4384, 1.442695
        %v4687 = vpow.pop %v4686
        %v4688 = vmul.f32 %v4385, 1.442695
        %v4689 = vpow.pop %v4688
        %v4690 = vmul.f32 %v4386, 1.442695
        %v4691 = vpow.pop %v4690
        %v4692 = vmul.f32 %v4387, 1.442695
        %v4693 = vpow.pop %v4692
        %v4694 = vmul.f32 %v4388, 1.442695
        %v4695 = vpow.pop %v4694
        %v4696 = vmul.f32 %v4389, 1.442695
        %v4697 = vpow.pop %v4696
        %v4698 = vmul.f32 %v4390, 1.442695
        %v4699 = vpow.pop %v4698
        %v4700 = vmul.f32 %v4391, 1.442695
        %v4701 = vpow.pop %v4700
        %v4702 = vmul.f32 %v4392, 1.442695
        %v4703 = vpow.pop %v4702
        %v4704 = vmul.f32 %v4393, 1.442695
        %v4705 = vpow.pop %v4704
        %v4706 = vmul.f32 %v4394, 1.442695
        %v4707 = vpow.pop %v4706
        %v4708 = vmul.f32 %v4395, 1.442695
        %v4709 = vpow.pop %v4708
        %v4710 = vmul.f32 %v4396, 1.442695
        %v4711 = vpow.pop %v4710
        %v4712 = vmul.f32 %v4397, 1.442695
        %v4713 = vpow.pop %v4712
        %v4714 = vmul.f32 %v4398, 1.442695
        %v4715 = vpow.pop %v4714
        %v4716 = vmul.f32 %v4399, 1.442695
        %v4717 = vpow.pop %v4716
        %v4718 = vmul.f32 %v4400, 1.442695
        %v4719 = vpow.pop %v4718
        %v4720 = vmul.f32 %v4401, 1.442695
        %v4721 = vpow.pop %v4720
        %v4722 = vmul.f32 %v4402, 1.442695
        %v4723 = vpow.pop %v4722
        %v4724 = vmul.f32 %v4403, 1.442695
        %v4725 = vpow.pop %v4724
        %v4726 = vmul.f32 %v4404, 1.442695
        %v4727 = vpow.pop %v4726
        %v4728 = vmul.f32 %v4405, 1.442695
        %v4729 = vpow.pop %v4728
        %v4730 = vmul.f32 %v4406, 1.442695
        %v4731 = vpow.pop %v4730
        %v4732 = vmul.f32 %v4407, 1.442695
        %v4733 = vpow.pop %v4732
        %v4734 = vmul.f32 %v4408, 1.442695
        %v4735 = vpow.pop %v4734
        %v4736 = vmul.f32 %v4409, 1.442695
        %v4737 = vpow.pop %v4736
        %v4738 = vmul.f32 %v4410, 1.442695
        %v4739 = vpow.pop %v4738
        %v4740 = vmul.f32 %v4411, 1.442695
        %v4741 = vpow.pop %v4740
        %v4742 = vmul.f32 %v4412, 1.442695
        %v4743 = vpow.pop %v4742
        %v4744 = vmul.f32 %v4413, 1.442695
        %v4745 = vpow.pop %v4744
        %v4746 = vmul.f32 %v4414, 1.442695
        %v4747 = vpow.pop %v4746
        %v4748 = vmul.f32 %v4415, 1.442695
        %v4749 = vpow.pop %v4748
        %v4750 = vmul.f32 %v4416, 1.442695
        %v4751 = vpow.pop %v4750
        %v4752 = vmul.f32 %v4417, 1.442695
        %v4753 = vpow.pop %v4752
        %v4754 = vmul.f32 %v4418, 1.442695
        %v4755 = vpow.pop %v4754
        %v4756 = vmul.f32 %v4419, 1.442695
        %v4757 = vpow.pop %v4756
        %v4758 = vmul.f32 %v4420, 1.442695
        %v4759 = vpow.pop %v4758
        %v4760 = vmul.f32 %v4421, 1.442695
        %v4761 = vpow.pop %v4760
        %v4762 = vmul.f32 %v4422, 1.442695
        %v4763 = vpow.pop %v4762
        %v4764 = vmul.f32 %v4423, 1.442695
        %v4765 = vpow.pop %v4764
        %v4766 = vmul.f32 %v4424, 1.442695
        %v4767 = vpow.pop %v4766
        %v4768 = vmul.f32 %v4425, 1.442695
        %v4769 = vpow.pop %v4768
        %v4770 = vmul.f32 %v4426, 1.442695
        %v4771 = vpow.pop %v4770
        %v4772 = vmul.f32 %v4427, 1.442695
        %v4773 = vpow.pop %v4772
        %v4774 = vmul.f32 %v4428, 1.442695
        %v4775 = vpow.pop %v4774
        %v4776 = vmul.f32 %v4429, 1.442695
        %v4777 = vpow.pop %v4776
        %v4778 = vmul.f32 %v4430, 1.442695
        %v4779 = vpow.pop %v4778
        %v4780 = vmul.f32 %v4431, 1.442695
        %v4781 = vpow.pop %v4780
        %v4782 = vmul.f32 %v4432, 1.442695
        %v4783 = vpow.pop %v4782
        %v4784 = vmul.f32 %v4433, 1.442695
        %v4785 = vpow.pop %v4784
        %v4786 = vmul.f32 %v4434, 1.442695
        %v4787 = vpow.pop %v4786
        %v4788 = vmul.f32 %v4435, 1.442695
        %v4789 = vpow.pop %v4788
        %v4790 = vmul.f32 %v4436, 1.442695
        %v4791 = vpow.pop %v4790
        %v4792 = vmul.f32 %v4437, 1.442695
        %v4793 = vpow.pop %v4792
        %v4794 = vmul.f32 %v4438, 1.442695
        %v4795 = vpow.pop %v4794
        %v4796 = vmul.f32 %v4439, 1.442695
        %v4797 = vpow.pop %v4796
        %v4798 = vmul.f32 %v4440, 1.442695
        %v4799 = vpow.pop %v4798
        %v4800 = vmul.f32 %v4441, 1.442695
        %v4801 = vpow.pop %v4800
        %v4802 = vmul.f32 %v4442, 1.442695
        %v4803 = vpow.pop %v4802
        %v4804 = vmul.f32 %v4443, 1.442695
        %v4805 = vpow.pop %v4804
        %v4806 = vmul.f32 %v4444, 1.442695
        %v4807 = vpow.pop %v4806
        %v4808 = vmul.f32 %v4445, 1.442695
        %v4809 = vpow.pop %v4808
        %v4810 = vmul.f32 %v4446, 1.442695
        %v4811 = vpow.pop %v4810
        %v4812 = vmul.f32 %v4447, 1.442695
        %v4813 = vpow.pop %v4812
        %v4814 = vmul.f32 %v4448, 1.442695
        %v4815 = vpow.pop %v4814
        %v4816 = vmul.f32 %v4449, 1.442695
        %v4817 = vpow.pop %v4816
        %v4818 = vmul.f32 %v4450, 1.442695
        %v4819 = vpow.pop %v4818
        %v4820 = vmul.f32 %v4451, 1.442695
        %v4821 = vpow.pop %v4820
        %v4822 = vmul.f32 %v4452, 1.442695
        %v4823 = vpow.pop %v4822
        %v4824 = vmul.f32 %v4453, 1.442695
        %v4825 = vpow.pop %v4824
        %v4826 = vmul.f32 %v4454, 1.442695
        %v4827 = vpow.pop %v4826
        %v4828 = vmul.f32 %v4455, 1.442695
        %v4829 = vpow.pop %v4828
        %v4830 = vmul.f32 %v4456, 1.442695
        %v4831 = vpow.pop %v4830
        %v4832 = vmul.f32 %v4457, 1.442695
        %v4833 = vpow.pop %v4832
        %v4834 = vmul.f32 %v4458, 1.442695
        %v4835 = vpow.pop %v4834
        %v4836 = vmul.f32 %v4459, 1.442695
        %v4837 = vpow.pop %v4836
        %v4838 = vmul.f32 %v4460, 1.442695
        %v4839 = vpow.pop %v4838
        %v4840 = vmul.f32 %v4461, 1.442695
        %v4841 = vpow.pop %v4840
        %v4842 = vmul.f32 %v4462, 1.442695
        %v4843 = vpow.pop %v4842
        %v4844 = vmul.f32 %v4463, 1.442695
        %v4845 = vpow.pop %v4844
        %v4846 = vmul.f32 %v4464, 1.442695
        %v4847 = vpow.pop %v4846
        %v4848 = vmul.f32 %v4465, 1.442695
        %v4849 = vpow.pop %v4848
        %v4850 = vmul.f32 %v4466, 1.442695
        %v4851 = vpow.pop %v4850
        %v4852 = vmul.f32 %v4467, 1.442695
        %v4853 = vpow.pop %v4852
        %v4854 = vmul.f32 %v4468, 1.442695
        %v4855 = vpow.pop %v4854
        %v4856 = vmul.f32 %v4469, 1.442695
        %v4857 = vpow.pop %v4856
        %v4858 = vmul.f32 %v4470, 1.442695
        %v4859 = vpow.pop %v4858
        %v4860 = vmul.f32 %v4471, 1.442695
        %v4861 = vpow.pop %v4860
        %v4862 = vmul.f32 %v4472, 1.442695
        %v4863 = vpow.pop %v4862
        %v4864 = vmul.f32 %v4473, 1.442695
        %v4865 = vpow.pop %v4864
        %v4866 = vmul.f32 %v4474, 1.442695
        %v4867 = vpow.pop %v4866
        %v4868 = vmul.f32 %v4475, 1.442695
        %v4869 = vpow.pop %v4868
        %v4870 = vmul.f32 %v4476, 1.442695
        %v4871 = vpow.pop %v4870
        %v4872 = vmul.f32 %v4477, 1.442695
        %v4873 = vpow.pop %v4872
        %v4874 = vmul.f32 %v4478, 1.442695
        %v4875 = vpow.pop %v4874
        %v4876 = vmul.f32 %v4479, 1.442695
        %v4877 = vpow.pop %v4876
        %v4878 = vmul.f32 %v4480, 1.442695
        %v4879 = vpow.pop %v4878
        %v4880 = vmul.f32 %v4481, 1.442695
        %v4881 = vpow.pop %v4880
        %v4882 = vmul.f32 %v4482, 1.442695
        %v4883 = vpow.pop %v4882
        %v4884 = vmul.f32 %v4483, 1.442695
        %v4885 = vpow.pop %v4884
        %v4886 = vmul.f32 %v4484, 1.442695
        %v4887 = vpow.pop %v4886
        %v4888 = vmul.f32 %v4485, 1.442695
        %v4889 = vpow.pop %v4888
        %v4890 = vmul.f32 %v4486, 1.442695
        %v4891 = vpow.pop %v4890
        %v4892 = vmul.f32 %v4487, 1.442695
        %v4893 = vpow.pop %v4892
        %v4894 = vmul.f32 %v4488, 1.442695
        %v4895 = vpow.pop %v4894
        %v4896 = vmul.f32 %v4489, 1.442695
        %v4897 = vpow.pop %v4896
        %v4898 = vmul.f32 %v4490, 1.442695
        %v4899 = vpow.pop %v4898
        %v4900 = vmul.f32 %v4491, 1.442695
        %v4901 = vpow.pop %v4900
        %v4902 = vmul.f32 %v4492, 1.442695
        %v4903 = vpow.pop %v4902
        %v4904 = vmul.f32 %v4493, 1.442695
        %v4905 = vpow.pop %v4904
        %v4906 = vmul.f32 %v4494, 1.442695
        %v4907 = vpow.pop %v4906
        %v4908 = vmul.f32 %v4495, 1.442695
        %v4909 = vpow.pop %v4908
        %v4910 = vmul.f32 %v4496, 1.442695
        %v4911 = vpow.pop %v4910
        %v4912 = vmul.f32 %v4497, 1.442695
        %v4913 = vpow.pop %v4912
        %v4914 = vmul.f32 %v4498, 1.442695
        %v4915 = vpow.pop %v4914
        %v4916 = vmul.f32 %v4499, 1.442695
        %v4917 = vpow.pop %v4916
        %v4918 = vmul.f32 %v4500, 1.442695
        %v4919 = vpow.pop %v4918
        %v4920 = vmul.f32 %v4501, 1.442695
        %v4921 = vpow.pop %v4920
        %v4922 = vmul.f32 %v4502, 1.442695
        %v4923 = vpow.pop %v4922
        %v4924 = vmul.f32 %v4503, 1.442695
        %v4925 = vpow.pop %v4924
        %v4926 = vmul.f32 %v4504, 1.442695
        %v4927 = vpow.pop %v4926
        %v4928 = vmul.f32 %v4505, 1.442695
        %v4929 = vpow.pop %v4928
        %v4930 = vmul.f32 %v4506, 1.442695
        %v4931 = vpow.pop %v4930
        %v4932 = vmul.f32 %v4507, 1.442695
        %v4933 = vpow.pop %v4932
        %v4934 = vmul.f32 %v4508, 1.442695
        %v4935 = vpow.pop %v4934
        %v4936 = vmul.f32 %v4509, 1.442695
        %v4937 = vpow.pop %v4936
        %v4938 = vmul.f32 %v4510, 1.442695
        %v4939 = vpow.pop %v4938
        %v4940 = vmul.f32 %v4511, 1.442695
        %v4941 = vpow.pop %v4940
        %v4942 = vmul.f32 %v4512, 1.442695
        %v4943 = vpow.pop %v4942
        %v4944 = vmul.f32 %v4513, 1.442695
        %v4945 = vpow.pop %v4944
        %v4946 = vmul.f32 %v4514, 1.442695
        %v4947 = vpow.pop %v4946
        %v4948 = vmul.f32 %v4515, 1.442695
        %v4949 = vpow.pop %v4948
        %v4950 = vmul.f32 %v4516, 1.442695
        %v4951 = vpow.pop %v4950
        %v4952 = vmul.f32 %v4517, 1.442695
        %v4953 = vpow.pop %v4952
        %v4954 = vmul.f32 %v4518, 1.442695
        %v4955 = vpow.pop %v4954
        %v4956 = vmul.f32 %v4519, 1.442695
        %v4957 = vpow.pop %v4956
        %v4958 = vmul.f32 %v4520, 1.442695
        %v4959 = vpow.pop %v4958
        %v4960 = vmul.f32 %v4521, 1.442695
        %v4961 = vpow.pop %v4960
        %v4962 = vmul.f32 %v4522, 1.442695
        %v4963 = vpow.pop %v4962
        %v4964 = vmul.f32 %v4523, 1.442695
        %v4965 = vpow.pop %v4964
        %v4966 = vmul.f32 %v4524, 1.442695
        %v4967 = vpow.pop %v4966
        %v4968 = vmul.f32 %v4525, 1.442695
        %v4969 = vpow.pop %v4968
        %v4970 = vmul.f32 %v4526, 1.442695
        %v4971 = vpow.pop %v4970
        %v4972 = vmul.f32 %v4527, 1.442695
        %v4973 = vpow.pop %v4972
        %v4974 = vmul.f32 %v4528, 1.442695
        %v4975 = vpow.pop %v4974
        %v4976 = vmul.f32 %v4529, 1.442695
        %v4977 = vpow.pop %v4976
        %v4978 = vmul.f32 %v4530, 1.442695
        %v4979 = vpow.pop %v4978
        %v4980 = vmul.f32 %v4531, 1.442695
        %v4981 = vpow.pop %v4980
        %v4982 = vmul.f32 %v4532, 1.442695
        %v4983 = vpow.pop %v4982
        %v4984 = vmul.f32 %v4533, 1.442695
        %v4985 = vpow.pop %v4984
        %v4986 = vmul.f32 %v4534, 1.442695
        %v4987 = vpow.pop %v4986
        %v4988 = vmul.f32 %v4535, 1.442695
        %v4989 = vpow.pop %v4988
        %v4990 = vmul.f32 %v4536, 1.442695
        %v4991 = vpow.pop %v4990
        %v4992 = vmul.f32 %v4537, 1.442695
        %v4993 = vpow.pop %v4992
        %v4994 = vmul.f32 %v4538, 1.442695
        %v4995 = vpow.pop %v4994
        %v4996 = vmul.f32 %v4539, 1.442695
        %v4997 = vpow.pop %v4996
        %v4998 = vmul.f32 %v4540, 1.442695
        %v4999 = vpow.pop %v4998
        %v5000 = vmul.f32 %v4541, 1.442695
        %v5001 = vpow.pop %v5000
        %v5002 = vmul.f32 %v4542, 1.442695
        %v5003 = vpow.pop %v5002
        %v5004 = vmul.f32 %v4543, 1.442695
        %v5005 = vpow.pop %v5004
        %v5006 = vmul.f32 %v4544, 1.442695
        %v5007 = vpow.pop %v5006
        %v5008 = vmul.f32 %v4545, 1.442695
        %v5009 = vpow.pop %v5008
        %v5010 = vmul.f32 %v4546, 1.442695
        %v5011 = vpow.pop %v5010
        %v5012 = vmul.f32 %v4547, 1.442695
        %v5013 = vpow.pop %v5012
        %v5014 = vmul.f32 %v4548, 1.442695
        %v5015 = vpow.pop %v5014
        %v5016 = vmul.f32 %v4549, 1.442695
        %v5017 = vpow.pop %v5016
        %v5018 = vmul.f32 %v4550, 1.442695
        %v5019 = vpow.pop %v5018
        %v5020 = vmul.f32 %v4551, 1.442695
        %v5021 = vpow.pop %v5020
        %v5022 = vmul.f32 %v4552, 1.442695
        %v5023 = vpow.pop %v5022
        %v5024 = vmul.f32 %v4553, 1.442695
        %v5025 = vpow.pop %v5024
        %v5026 = vmul.f32 %v4554, 1.442695
        %v5027 = vpow.pop %v5026
        %v5028 = vmul.f32 %v4555, 1.442695
        %v5029 = vpow.pop %v5028
        %v5030 = vmul.f32 %v4556, 1.442695
        %v5031 = vpow.pop %v5030
        %v5032 = vmul.f32 %v4557, 1.442695
        %v5033 = vpow.pop %v5032
        %v5034 = vmul.f32 %v4558, 1.442695
        %v5035 = vpow.pop %v5034
        %v5036 = vmul.f32 %v4559, 1.442695
        %v5037 = vpow.pop %v5036
        %v5038 = vmul.f32 %v4560, 1.442695
        %v5039 = vpow.pop %v5038
        %v5040 = vmul.f32 %v4561, 1.442695
        %v5041 = vpow.pop %v5040
        %v5042 = vmul.f32 %v4562, 1.442695
        %v5043 = vpow.pop %v5042
        %v5044 = vmul.f32 %v4563, 1.442695
        %v5045 = vpow.pop %v5044
        %v5046 = vmul.f32 %v4564, 1.442695
        %v5047 = vpow.pop %v5046
        %v5048 = vmul.f32 %v4565, 1.442695
        %v5049 = vpow.pop %v5048
        %v5050 = vmul.f32 %v4566, 1.442695
        %v5051 = vpow.pop %v5050
        %v5052 = vmul.f32 %v4567, 1.442695
        %v5053 = vpow.pop %v5052
        %v5054 = vmul.f32 %v4568, 1.442695
        %v5055 = vpow.pop %v5054
        %v5056 = vmul.f32 %v4569, 1.442695
        %v5057 = vpow.pop %v5056
        %v5058 = vmul.f32 %v4570, 1.442695
        %v5059 = vpow.pop %v5058
        %v5060 = vmul.f32 %v4571, 1.442695
        %v5061 = vpow.pop %v5060
        %v5062 = vmul.f32 %v4572, 1.442695
        %v5063 = vpow.pop %v5062
        %v5064 = vmul.f32 %v4573, 1.442695
        %v5065 = vpow.pop %v5064
        %v5066 = vmul.f32 %v4574, 1.442695
        %v5067 = vpow.pop %v5066
        %v5068 = vmul.f32 %v4575, 1.442695
        %v5069 = vpow.pop %v5068
        %v5070 = vmul.f32 %v4576, 1.442695
        %v5071 = vpow.pop %v5070
        %v5072 = vmul.f32 %v4577, 1.442695
        %v5073 = vpow.pop %v5072
        %v5074 = vmul.f32 %v4578, 1.442695
        %v5075 = vpow.pop %v5074
        %v5076 = vmul.f32 %v4579, 1.442695
        %v5077 = vpow.pop %v5076
        %v5078 = vmul.f32 %v4580, 1.442695
        %v5079 = vpow.pop %v5078
        %v5080 = vmul.f32 %v4581, 1.442695
        %v5081 = vpow.pop %v5080
        %v5082 = vmul.f32 %v4582, 1.442695
        %v5083 = vpow.pop %v5082
        %v5084 = vmul.f32 %v4583, 1.442695
        %v5085 = vpow.pop %v5084
        %v5086 = vmul.f32 %v4584, 1.442695
        %v5087 = vpow.pop %v5086
        %v5088 = vmul.f32 %v4585, 1.442695
        %v5089 = vpow.pop %v5088
        %v5090 = vmul.f32 %v4586, 1.442695
        %v5091 = vpow.pop %v5090
        %v5092 = vmul.f32 %v4587, 1.442695
        %v5093 = vpow.pop %v5092
        %v5094 = vmul.f32 %v4588, 1.442695
        %v5095 = vpow.pop %v5094
        %v5096 = vmul.f32 %v4589, 1.442695
        %v5097 = vpow.pop %v5096
        %v5098 = vmul.f32 %v4590, 1.442695
        %v5099 = vpow.pop %v5098
        %v5100 = vmul.f32 %v4591, 1.442695
        %v5101 = vpow.pop %v5100
        %v5102 = vmul.f32 %v4592, 1.442695
        %v5103 = vpow.pop %v5102
        %v5104 = vmul.f32 %v4593, 1.442695
        %v5105 = vpow.pop %v5104
        %v5106 = vadd.f32 %v4595, %v4597
        %v5107 = vadd.f32 %v5106, %v4599
        %v5108 = vadd.f32 %v5107, %v4601
        %v5109 = vadd.f32 %v5108, %v4603
        %v5110 = vadd.f32 %v5109, %v4605
        %v5111 = vadd.f32 %v5110, %v4607
        %v5112 = vadd.f32 %v5111, %v4609
        %5113 = vadd.xlane.f32.xlu0 %v5112
        %v5114 = vpop.xlane.xlu0 %5113
        %v5115 = vadd.f32 %v4611, %v4613
        %v5116 = vadd.f32 %v5115, %v4615
        %v5117 = vadd.f32 %v5116, %v4617
        %v5118 = vadd.f32 %v5117, %v4619
        %v5119 = vadd.f32 %v5118, %v4621
        %v5120 = vadd.f32 %v5119, %v4623
        %v5121 = vadd.f32 %v5120, %v4625
        %5122 = vadd.xlane.f32.xlu0 %v5121
        %v5123 = vpop.xlane.xlu0 %5122
        %v5124 = vadd.f32 %v4627, %v4629
        %v5125 = vadd.f32 %v5124, %v4631
        %v5126 = vadd.f32 %v5125, %v4633
        %v5127 = vadd.f32 %v5126, %v4635
        %v5128 = vadd.f32 %v5127, %v4637
        %v5129 = vadd.f32 %v5128, %v4639
        %v5130 = vadd.f32 %v5129, %v4641
        %5131 = vadd.xlane.f32.xlu0 %v5130
        %v5132 = vpop.xlane.xlu0 %5131
        %v5133 = vadd.f32 %v4643, %v4645
        %v5134 = vadd.f32 %v5133, %v4647
        %v5135 = vadd.f32 %v5134, %v4649
        %v5136 = vadd.f32 %v5135, %v4651
        %v5137 = vadd.f32 %v5136, %v4653
        %v5138 = vadd.f32 %v5137, %v4655
        %v5139 = vadd.f32 %v5138, %v4657
        %5140 = vadd.xlane.f32.xlu0 %v5139
        %v5141 = vpop.xlane.xlu0 %5140
        %v5142 = vadd.f32 %v4659, %v4661
        %v5143 = vadd.f32 %v5142, %v4663
        %v5144 = vadd.f32 %v5143, %v4665
        %v5145 = vadd.f32 %v5144, %v4667
        %v5146 = vadd.f32 %v5145, %v4669
        %v5147 = vadd.f32 %v5146, %v4671
        %v5148 = vadd.f32 %v5147, %v4673
        %5149 = vadd.xlane.f32.xlu0 %v5148
        %v5150 = vpop.xlane.xlu0 %5149
        %v5151 = vadd.f32 %v4675, %v4677
        %v5152 = vadd.f32 %v5151, %v4679
        %v5153 = vadd.f32 %v5152, %v4681
        %v5154 = vadd.f32 %v5153, %v4683
        %v5155 = vadd.f32 %v5154, %v4685
        %v5156 = vadd.f32 %v5155, %v4687
        %v5157 = vadd.f32 %v5156, %v4689
        %5158 = vadd.xlane.f32.xlu0 %v5157
        %v5159 = vpop.xlane.xlu0 %5158
        %v5160 = vadd.f32 %v4691, %v4693
        %v5161 = vadd.f32 %v5160, %v4695
        %v5162 = vadd.f32 %v5161, %v4697
        %v5163 = vadd.f32 %v5162, %v4699
        %v5164 = vadd.f32 %v5163, %v4701
        %v5165 = vadd.f32 %v5164, %v4703
        %v5166 = vadd.f32 %v5165, %v4705
        %5167 = vadd.xlane.f32.xlu0 %v5166
        %v5168 = vpop.xlane.xlu0 %5167
        %v5169 = vadd.f32 %v4707, %v4709
        %v5170 = vadd.f32 %v5169, %v4711
        %v5171 = vadd.f32 %v5170, %v4713
        %v5172 = vadd.f32 %v5171, %v4715
        %v5173 = vadd.f32 %v5172, %v4717
        %v5174 = vadd.f32 %v5173, %v4719
        %v5175 = vadd.f32 %v5174, %v4721
        %5176 = vadd.xlane.f32.xlu0 %v5175
        %v5177 = vpop.xlane.xlu0 %5176
        %v5178 = vadd.f32 %v4723, %v4725
        %v5179 = vadd.f32 %v5178, %v4727
        %v5180 = vadd.f32 %v5179, %v4729
        %v5181 = vadd.f32 %v5180, %v4731
        %v5182 = vadd.f32 %v5181, %v4733
        %v5183 = vadd.f32 %v5182, %v4735
        %v5184 = vadd.f32 %v5183, %v4737
        %5185 = vadd.xlane.f32.xlu0 %v5184
        %v5186 = vpop.xlane.xlu0 %5185
        %v5187 = vadd.f32 %v4739, %v4741
        %v5188 = vadd.f32 %v5187, %v4743
        %v5189 = vadd.f32 %v5188, %v4745
        %v5190 = vadd.f32 %v5189, %v4747
        %v5191 = vadd.f32 %v5190, %v4749
        %v5192 = vadd.f32 %v5191, %v4751
        %v5193 = vadd.f32 %v5192, %v4753
        %5194 = vadd.xlane.f32.xlu0 %v5193
        %v5195 = vpop.xlane.xlu0 %5194
        %v5196 = vadd.f32 %v4755, %v4757
        %v5197 = vadd.f32 %v5196, %v4759
        %v5198 = vadd.f32 %v5197, %v4761
        %v5199 = vadd.f32 %v5198, %v4763
        %v5200 = vadd.f32 %v5199, %v4765
        %v5201 = vadd.f32 %v5200, %v4767
        %v5202 = vadd.f32 %v5201, %v4769
        %5203 = vadd.xlane.f32.xlu0 %v5202
        %v5204 = vpop.xlane.xlu0 %5203
        %v5205 = vadd.f32 %v4771, %v4773
        %v5206 = vadd.f32 %v5205, %v4775
        %v5207 = vadd.f32 %v5206, %v4777
        %v5208 = vadd.f32 %v5207, %v4779
        %v5209 = vadd.f32 %v5208, %v4781
        %v5210 = vadd.f32 %v5209, %v4783
        %v5211 = vadd.f32 %v5210, %v4785
        %5212 = vadd.xlane.f32.xlu0 %v5211
        %v5213 = vpop.xlane.xlu0 %5212
        %v5214 = vadd.f32 %v4787, %v4789
        %v5215 = vadd.f32 %v5214, %v4791
        %v5216 = vadd.f32 %v5215, %v4793
        %v5217 = vadd.f32 %v5216, %v4795
        %v5218 = vadd.f32 %v5217, %v4797
        %v5219 = vadd.f32 %v5218, %v4799
        %v5220 = vadd.f32 %v5219, %v4801
        %5221 = vadd.xlane.f32.xlu0 %v5220
        %v5222 = vpop.xlane.xlu0 %5221
        %v5223 = vadd.f32 %v4803, %v4805
        %v5224 = vadd.f32 %v5223, %v4807
        %v5225 = vadd.f32 %v5224, %v4809
        %v5226 = vadd.f32 %v5225, %v4811
        %v5227 = vadd.f32 %v5226, %v4813
        %v5228 = vadd.f32 %v5227, %v4815
        %v5229 = vadd.f32 %v5228, %v4817
        %5230 = vadd.xlane.f32.xlu0 %v5229
        %v5231 = vpop.xlane.xlu0 %5230
        %v5232 = vadd.f32 %v4819, %v4821
        %v5233 = vadd.f32 %v5232, %v4823
        %v5234 = vadd.f32 %v5233, %v4825
        %v5235 = vadd.f32 %v5234, %v4827
        %v5236 = vadd.f32 %v5235, %v4829
        %v5237 = vadd.f32 %v5236, %v4831
        %v5238 = vadd.f32 %v5237, %v4833
        %5239 = vadd.xlane.f32.xlu0 %v5238
        %v5240 = vpop.xlane.xlu0 %5239
        %v5241 = vadd.f32 %v4835, %v4837
        %v5242 = vadd.f32 %v5241, %v4839
        %v5243 = vadd.f32 %v5242, %v4841
        %v5244 = vadd.f32 %v5243, %v4843
        %v5245 = vadd.f32 %v5244, %v4845
        %v5246 = vadd.f32 %v5245, %v4847
        %v5247 = vadd.f32 %v5246, %v4849
        %5248 = vadd.xlane.f32.xlu0 %v5247
        %v5249 = vpop.xlane.xlu0 %5248
        %v5250 = vadd.f32 %v4851, %v4853
        %v5251 = vadd.f32 %v5250, %v4855
        %v5252 = vadd.f32 %v5251, %v4857
        %v5253 = vadd.f32 %v5252, %v4859
        %v5254 = vadd.f32 %v5253, %v4861
        %v5255 = vadd.f32 %v5254, %v4863
        %v5256 = vadd.f32 %v5255, %v4865
        %5257 = vadd.xlane.f32.xlu0 %v5256
        %v5258 = vpop.xlane.xlu0 %5257
        %v5259 = vadd.f32 %v4867, %v4869
        %v5260 = vadd.f32 %v5259, %v4871
        %v5261 = vadd.f32 %v5260, %v4873
        %v5262 = vadd.f32 %v5261, %v4875
        %v5263 = vadd.f32 %v5262, %v4877
        %v5264 = vadd.f32 %v5263, %v4879
        %v5265 = vadd.f32 %v5264, %v4881
        %5266 = vadd.xlane.f32.xlu0 %v5265
        %v5267 = vpop.xlane.xlu0 %5266
        %v5268 = vadd.f32 %v4883, %v4885
        %v5269 = vadd.f32 %v5268, %v4887
        %v5270 = vadd.f32 %v5269, %v4889
        %v5271 = vadd.f32 %v5270, %v4891
        %v5272 = vadd.f32 %v5271, %v4893
        %v5273 = vadd.f32 %v5272, %v4895
        %v5274 = vadd.f32 %v5273, %v4897
        %5275 = vadd.xlane.f32.xlu0 %v5274
        %v5276 = vpop.xlane.xlu0 %5275
        %v5277 = vadd.f32 %v4899, %v4901
        %v5278 = vadd.f32 %v5277, %v4903
        %v5279 = vadd.f32 %v5278, %v4905
        %v5280 = vadd.f32 %v5279, %v4907
        %v5281 = vadd.f32 %v5280, %v4909
        %v5282 = vadd.f32 %v5281, %v4911
        %v5283 = vadd.f32 %v5282, %v4913
        %5284 = vadd.xlane.f32.xlu0 %v5283
        %v5285 = vpop.xlane.xlu0 %5284
        %v5286 = vadd.f32 %v4915, %v4917
        %v5287 = vadd.f32 %v5286, %v4919
        %v5288 = vadd.f32 %v5287, %v4921
        %v5289 = vadd.f32 %v5288, %v4923
        %v5290 = vadd.f32 %v5289, %v4925
        %v5291 = vadd.f32 %v5290, %v4927
        %v5292 = vadd.f32 %v5291, %v4929
        %5293 = vadd.xlane.f32.xlu0 %v5292
        %v5294 = vpop.xlane.xlu0 %5293
        %v5295 = vadd.f32 %v4931, %v4933
        %v5296 = vadd.f32 %v5295, %v4935
        %v5297 = vadd.f32 %v5296, %v4937
        %v5298 = vadd.f32 %v5297, %v4939
        %v5299 = vadd.f32 %v5298, %v4941
        %v5300 = vadd.f32 %v5299, %v4943
        %v5301 = vadd.f32 %v5300, %v4945
        %5302 = vadd.xlane.f32.xlu0 %v5301
        %v5303 = vpop.xlane.xlu0 %5302
        %v5304 = vadd.f32 %v4947, %v4949
        %v5305 = vadd.f32 %v5304, %v4951
        %v5306 = vadd.f32 %v5305, %v4953
        %v5307 = vadd.f32 %v5306, %v4955
        %v5308 = vadd.f32 %v5307, %v4957
        %v5309 = vadd.f32 %v5308, %v4959
        %v5310 = vadd.f32 %v5309, %v4961
        %5311 = vadd.xlane.f32.xlu0 %v5310
        %v5312 = vpop.xlane.xlu0 %5311
        %v5313 = vadd.f32 %v4963, %v4965
        %v5314 = vadd.f32 %v5313, %v4967
        %v5315 = vadd.f32 %v5314, %v4969
        %v5316 = vadd.f32 %v5315, %v4971
        %v5317 = vadd.f32 %v5316, %v4973
        %v5318 = vadd.f32 %v5317, %v4975
        %v5319 = vadd.f32 %v5318, %v4977
        %5320 = vadd.xlane.f32.xlu0 %v5319
        %v5321 = vpop.xlane.xlu0 %5320
        %v5322 = vadd.f32 %v4979, %v4981
        %v5323 = vadd.f32 %v5322, %v4983
        %v5324 = vadd.f32 %v5323, %v4985
        %v5325 = vadd.f32 %v5324, %v4987
        %v5326 = vadd.f32 %v5325, %v4989
        %v5327 = vadd.f32 %v5326, %v4991
        %v5328 = vadd.f32 %v5327, %v4993
        %5329 = vadd.xlane.f32.xlu0 %v5328
        %v5330 = vpop.xlane.xlu0 %5329
        %v5331 = vadd.f32 %v4995, %v4997
        %v5332 = vadd.f32 %v5331, %v4999
        %v5333 = vadd.f32 %v5332, %v5001
        %v5334 = vadd.f32 %v5333, %v5003
        %v5335 = vadd.f32 %v5334, %v5005
        %v5336 = vadd.f32 %v5335, %v5007
        %v5337 = vadd.f32 %v5336, %v5009
        %5338 = vadd.xlane.f32.xlu0 %v5337
        %v5339 = vpop.xlane.xlu0 %5338
        %v5340 = vadd.f32 %v5011, %v5013
        %v5341 = vadd.f32 %v5340, %v5015
        %v5342 = vadd.f32 %v5341, %v5017
        %v5343 = vadd.f32 %v5342, %v5019
        %v5344 = vadd.f32 %v5343, %v5021
        %v5345 = vadd.f32 %v5344, %v5023
        %v5346 = vadd.f32 %v5345, %v5025
        %5347 = vadd.xlane.f32.xlu0 %v5346
        %v5348 = vpop.xlane.xlu0 %5347
        %v5349 = vadd.f32 %v5027, %v5029
        %v5350 = vadd.f32 %v5349, %v5031
        %v5351 = vadd.f32 %v5350, %v5033
        %v5352 = vadd.f32 %v5351, %v5035
        %v5353 = vadd.f32 %v5352, %v5037
        %v5354 = vadd.f32 %v5353, %v5039
        %v5355 = vadd.f32 %v5354, %v5041
        %5356 = vadd.xlane.f32.xlu0 %v5355
        %v5357 = vpop.xlane.xlu0 %5356
        %v5358 = vadd.f32 %v5043, %v5045
        %v5359 = vadd.f32 %v5358, %v5047
        %v5360 = vadd.f32 %v5359, %v5049
        %v5361 = vadd.f32 %v5360, %v5051
        %v5362 = vadd.f32 %v5361, %v5053
        %v5363 = vadd.f32 %v5362, %v5055
        %v5364 = vadd.f32 %v5363, %v5057
        %5365 = vadd.xlane.f32.xlu0 %v5364
        %v5366 = vpop.xlane.xlu0 %5365
        %v5367 = vadd.f32 %v5059, %v5061
        %v5368 = vadd.f32 %v5367, %v5063
        %v5369 = vadd.f32 %v5368, %v5065
        %v5370 = vadd.f32 %v5369, %v5067
        %v5371 = vadd.f32 %v5370, %v5069
        %v5372 = vadd.f32 %v5371, %v5071
        %v5373 = vadd.f32 %v5372, %v5073
        %5374 = vadd.xlane.f32.xlu0 %v5373
        %v5375 = vpop.xlane.xlu0 %5374
        %v5376 = vadd.f32 %v5075, %v5077
        %v5377 = vadd.f32 %v5376, %v5079
        %v5378 = vadd.f32 %v5377, %v5081
        %v5379 = vadd.f32 %v5378, %v5083
        %v5380 = vadd.f32 %v5379, %v5085
        %v5381 = vadd.f32 %v5380, %v5087
        %v5382 = vadd.f32 %v5381, %v5089
        %5383 = vadd.xlane.f32.xlu0 %v5382
        %v5384 = vpop.xlane.xlu0 %5383
        %v5385 = vadd.f32 %v5091, %v5093
        %v5386 = vadd.f32 %v5385, %v5095
        %v5387 = vadd.f32 %v5386, %v5097
        %v5388 = vadd.f32 %v5387, %v5099
        %v5389 = vadd.f32 %v5388, %v5101
        %v5390 = vadd.f32 %v5389, %v5103
        %v5391 = vadd.f32 %v5390, %v5105
        %5392 = vadd.xlane.f32.xlu0 %v5391
        %v5393 = vpop.xlane.xlu0 %5392
        %v5394 = vrcp.pop %v5114
        %v5395 = vrcp.pop %v5123
        %v5396 = vrcp.pop %v5132
        %v5397 = vrcp.pop %v5141
        %v5398 = vrcp.pop %v5150
        %v5399 = vrcp.pop %v5159
        %v5400 = vrcp.pop %v5168
        %v5401 = vrcp.pop %v5177
        %v5402 = vrcp.pop %v5186
        %v5403 = vrcp.pop %v5195
        %v5404 = vrcp.pop %v5204
        %v5405 = vrcp.pop %v5213
        %v5406 = vrcp.pop %v5222
        %v5407 = vrcp.pop %v5231
        %v5408 = vrcp.pop %v5240
        %v5409 = vrcp.pop %v5249
        %v5410 = vrcp.pop %v5258
        %v5411 = vrcp.pop %v5267
        %v5412 = vrcp.pop %v5276
        %v5413 = vrcp.pop %v5285
        %v5414 = vrcp.pop %v5294
        %v5415 = vrcp.pop %v5303
        %v5416 = vrcp.pop %v5312
        %v5417 = vrcp.pop %v5321
        %v5418 = vrcp.pop %v5330
        %v5419 = vrcp.pop %v5339
        %v5420 = vrcp.pop %v5348
        %v5421 = vrcp.pop %v5357
        %v5422 = vrcp.pop %v5366
        %v5423 = vrcp.pop %v5375
        %v5424 = vrcp.pop %v5384
        %v5425 = vrcp.pop %v5393
        %v5426 = vmul.f32 %v4595, %v5394
        %v5427 = vmul.f32 %v4597, %v5394
        %v5428 = vmul.f32 %v4599, %v5394
        %v5429 = vmul.f32 %v4601, %v5394
        %v5430 = vmul.f32 %v4603, %v5394
        %v5431 = vmul.f32 %v4605, %v5394
        %v5432 = vmul.f32 %v4607, %v5394
        %v5433 = vmul.f32 %v4609, %v5394
        %v5434 = vmul.f32 %v4611, %v5395
        %v5435 = vmul.f32 %v4613, %v5395
        %v5436 = vmul.f32 %v4615, %v5395
        %v5437 = vmul.f32 %v4617, %v5395
        %v5438 = vmul.f32 %v4619, %v5395
        %v5439 = vmul.f32 %v4621, %v5395
        %v5440 = vmul.f32 %v4623, %v5395
        %v5441 = vmul.f32 %v4625, %v5395
        %v5442 = vmul.f32 %v4627, %v5396
        %v5443 = vmul.f32 %v4629, %v5396
        %v5444 = vmul.f32 %v4631, %v5396
        %v5445 = vmul.f32 %v4633, %v5396
        %v5446 = vmul.f32 %v4635, %v5396
        %v5447 = vmul.f32 %v4637, %v5396
        %v5448 = vmul.f32 %v4639, %v5396
        %v5449 = vmul.f32 %v4641, %v5396
        %v5450 = vmul.f32 %v4643, %v5397
        %v5451 = vmul.f32 %v4645, %v5397
        %v5452 = vmul.f32 %v4647, %v5397
        %v5453 = vmul.f32 %v4649, %v5397
        %v5454 = vmul.f32 %v4651, %v5397
        %v5455 = vmul.f32 %v4653, %v5397
        %v5456 = vmul.f32 %v4655, %v5397
        %v5457 = vmul.f32 %v4657, %v5397
        %v5458 = vmul.f32 %v4659, %v5398
        %v5459 = vmul.f32 %v4661, %v5398
        %v5460 = vmul.f32 %v4663, %v5398
        %v5461 = vmul.f32 %v4665, %v5398
        %v5462 = vmul.f32 %v4667, %v5398
        %v5463 = vmul.f32 %v4669, %v5398
        %v5464 = vmul.f32 %v4671, %v5398
        %v5465 = vmul.f32 %v4673, %v5398
        %v5466 = vmul.f32 %v4675, %v5399
        %v5467 = vmul.f32 %v4677, %v5399
        %v5468 = vmul.f32 %v4679, %v5399
        %v5469 = vmul.f32 %v4681, %v5399
        %v5470 = vmul.f32 %v4683, %v5399
        %v5471 = vmul.f32 %v4685, %v5399
        %v5472 = vmul.f32 %v4687, %v5399
        %v5473 = vmul.f32 %v4689, %v5399
        %v5474 = vmul.f32 %v4691, %v5400
        %v5475 = vmul.f32 %v4693, %v5400
        %v5476 = vmul.f32 %v4695, %v5400
        %v5477 = vmul.f32 %v4697, %v5400
        %v5478 = vmul.f32 %v4699, %v5400
        %v5479 = vmul.f32 %v4701, %v5400
        %v5480 = vmul.f32 %v4703, %v5400
        %v5481 = vmul.f32 %v4705, %v5400
        %v5482 = vmul.f32 %v4707, %v5401
        %v5483 = vmul.f32 %v4709, %v5401
        %v5484 = vmul.f32 %v4711, %v5401
        %v5485 = vmul.f32 %v4713, %v5401
        %v5486 = vmul.f32 %v4715, %v5401
        %v5487 = vmul.f32 %v4717, %v5401
        %v5488 = vmul.f32 %v4719, %v5401
        %v5489 = vmul.f32 %v4721, %v5401
        %v5490 = vmul.f32 %v4723, %v5402
        %v5491 = vmul.f32 %v4725, %v5402
        %v5492 = vmul.f32 %v4727, %v5402
        %v5493 = vmul.f32 %v4729, %v5402
        %v5494 = vmul.f32 %v4731, %v5402
        %v5495 = vmul.f32 %v4733, %v5402
        %v5496 = vmul.f32 %v4735, %v5402
        %v5497 = vmul.f32 %v4737, %v5402
        %v5498 = vmul.f32 %v4739, %v5403
        %v5499 = vmul.f32 %v4741, %v5403
        %v5500 = vmul.f32 %v4743, %v5403
        %v5501 = vmul.f32 %v4745, %v5403
        %v5502 = vmul.f32 %v4747, %v5403
        %v5503 = vmul.f32 %v4749, %v5403
        %v5504 = vmul.f32 %v4751, %v5403
        %v5505 = vmul.f32 %v4753, %v5403
        %v5506 = vmul.f32 %v4755, %v5404
        %v5507 = vmul.f32 %v4757, %v5404
        %v5508 = vmul.f32 %v4759, %v5404
        %v5509 = vmul.f32 %v4761, %v5404
        %v5510 = vmul.f32 %v4763, %v5404
        %v5511 = vmul.f32 %v4765, %v5404
        %v5512 = vmul.f32 %v4767, %v5404
        %v5513 = vmul.f32 %v4769, %v5404
        %v5514 = vmul.f32 %v4771, %v5405
        %v5515 = vmul.f32 %v4773, %v5405
        %v5516 = vmul.f32 %v4775, %v5405
        %v5517 = vmul.f32 %v4777, %v5405
        %v5518 = vmul.f32 %v4779, %v5405
        %v5519 = vmul.f32 %v4781, %v5405
        %v5520 = vmul.f32 %v4783, %v5405
        %v5521 = vmul.f32 %v4785, %v5405
        %v5522 = vmul.f32 %v4787, %v5406
        %v5523 = vmul.f32 %v4789, %v5406
        %v5524 = vmul.f32 %v4791, %v5406
        %v5525 = vmul.f32 %v4793, %v5406
        %v5526 = vmul.f32 %v4795, %v5406
        %v5527 = vmul.f32 %v4797, %v5406
        %v5528 = vmul.f32 %v4799, %v5406
        %v5529 = vmul.f32 %v4801, %v5406
        %v5530 = vmul.f32 %v4803, %v5407
        %v5531 = vmul.f32 %v4805, %v5407
        %v5532 = vmul.f32 %v4807, %v5407
        %v5533 = vmul.f32 %v4809, %v5407
        %v5534 = vmul.f32 %v4811, %v5407
        %v5535 = vmul.f32 %v4813, %v5407
        %v5536 = vmul.f32 %v4815, %v5407
        %v5537 = vmul.f32 %v4817, %v5407
        %v5538 = vmul.f32 %v4819, %v5408
        %v5539 = vmul.f32 %v4821, %v5408
        %v5540 = vmul.f32 %v4823, %v5408
        %v5541 = vmul.f32 %v4825, %v5408
        %v5542 = vmul.f32 %v4827, %v5408
        %v5543 = vmul.f32 %v4829, %v5408
        %v5544 = vmul.f32 %v4831, %v5408
        %v5545 = vmul.f32 %v4833, %v5408
        %v5546 = vmul.f32 %v4835, %v5409
        %v5547 = vmul.f32 %v4837, %v5409
        %v5548 = vmul.f32 %v4839, %v5409
        %v5549 = vmul.f32 %v4841, %v5409
        %v5550 = vmul.f32 %v4843, %v5409
        %v5551 = vmul.f32 %v4845, %v5409
        %v5552 = vmul.f32 %v4847, %v5409
        %v5553 = vmul.f32 %v4849, %v5409
        %v5554 = vmul.f32 %v4851, %v5410
        %v5555 = vmul.f32 %v4853, %v5410
        %v5556 = vmul.f32 %v4855, %v5410
        %v5557 = vmul.f32 %v4857, %v5410
        %v5558 = vmul.f32 %v4859, %v5410
        %v5559 = vmul.f32 %v4861, %v5410
        %v5560 = vmul.f32 %v4863, %v5410
        %v5561 = vmul.f32 %v4865, %v5410
        %v5562 = vmul.f32 %v4867, %v5411
        %v5563 = vmul.f32 %v4869, %v5411
        %v5564 = vmul.f32 %v4871, %v5411
        %v5565 = vmul.f32 %v4873, %v5411
        %v5566 = vmul.f32 %v4875, %v5411
        %v5567 = vmul.f32 %v4877, %v5411
        %v5568 = vmul.f32 %v4879, %v5411
        %v5569 = vmul.f32 %v4881, %v5411
        %v5570 = vmul.f32 %v4883, %v5412
        %v5571 = vmul.f32 %v4885, %v5412
        %v5572 = vmul.f32 %v4887, %v5412
        %v5573 = vmul.f32 %v4889, %v5412
        %v5574 = vmul.f32 %v4891, %v5412
        %v5575 = vmul.f32 %v4893, %v5412
        %v5576 = vmul.f32 %v4895, %v5412
        %v5577 = vmul.f32 %v4897, %v5412
        %v5578 = vmul.f32 %v4899, %v5413
        %v5579 = vmul.f32 %v4901, %v5413
        %v5580 = vmul.f32 %v4903, %v5413
        %v5581 = vmul.f32 %v4905, %v5413
        %v5582 = vmul.f32 %v4907, %v5413
        %v5583 = vmul.f32 %v4909, %v5413
        %v5584 = vmul.f32 %v4911, %v5413
        %v5585 = vmul.f32 %v4913, %v5413
        %v5586 = vmul.f32 %v4915, %v5414
        %v5587 = vmul.f32 %v4917, %v5414
        %v5588 = vmul.f32 %v4919, %v5414
        %v5589 = vmul.f32 %v4921, %v5414
        %v5590 = vmul.f32 %v4923, %v5414
        %v5591 = vmul.f32 %v4925, %v5414
        %v5592 = vmul.f32 %v4927, %v5414
        %v5593 = vmul.f32 %v4929, %v5414
        %v5594 = vmul.f32 %v4931, %v5415
        %v5595 = vmul.f32 %v4933, %v5415
        %v5596 = vmul.f32 %v4935, %v5415
        %v5597 = vmul.f32 %v4937, %v5415
        %v5598 = vmul.f32 %v4939, %v5415
        %v5599 = vmul.f32 %v4941, %v5415
        %v5600 = vmul.f32 %v4943, %v5415
        %v5601 = vmul.f32 %v4945, %v5415
        %v5602 = vmul.f32 %v4947, %v5416
        %v5603 = vmul.f32 %v4949, %v5416
        %v5604 = vmul.f32 %v4951, %v5416
        %v5605 = vmul.f32 %v4953, %v5416
        %v5606 = vmul.f32 %v4955, %v5416
        %v5607 = vmul.f32 %v4957, %v5416
        %v5608 = vmul.f32 %v4959, %v5416
        %v5609 = vmul.f32 %v4961, %v5416
        %v5610 = vmul.f32 %v4963, %v5417
        %v5611 = vmul.f32 %v4965, %v5417
        %v5612 = vmul.f32 %v4967, %v5417
        %v5613 = vmul.f32 %v4969, %v5417
        %v5614 = vmul.f32 %v4971, %v5417
        %v5615 = vmul.f32 %v4973, %v5417
        %v5616 = vmul.f32 %v4975, %v5417
        %v5617 = vmul.f32 %v4977, %v5417
        %v5618 = vmul.f32 %v4979, %v5418
        %v5619 = vmul.f32 %v4981, %v5418
        %v5620 = vmul.f32 %v4983, %v5418
        %v5621 = vmul.f32 %v4985, %v5418
        %v5622 = vmul.f32 %v4987, %v5418
        %v5623 = vmul.f32 %v4989, %v5418
        %v5624 = vmul.f32 %v4991, %v5418
        %v5625 = vmul.f32 %v4993, %v5418
        %v5626 = vmul.f32 %v4995, %v5419
        %v5627 = vmul.f32 %v4997, %v5419
        %v5628 = vmul.f32 %v4999, %v5419
        %v5629 = vmul.f32 %v5001, %v5419
        %v5630 = vmul.f32 %v5003, %v5419
        %v5631 = vmul.f32 %v5005, %v5419
        %v5632 = vmul.f32 %v5007, %v5419
        %v5633 = vmul.f32 %v5009, %v5419
        %v5634 = vmul.f32 %v5011, %v5420
        %v5635 = vmul.f32 %v5013, %v5420
        %v5636 = vmul.f32 %v5015, %v5420
        %v5637 = vmul.f32 %v5017, %v5420
        %v5638 = vmul.f32 %v5019, %v5420
        %v5639 = vmul.f32 %v5021, %v5420
        %v5640 = vmul.f32 %v5023, %v5420
        %v5641 = vmul.f32 %v5025, %v5420
        %v5642 = vmul.f32 %v5027, %v5421
        %v5643 = vmul.f32 %v5029, %v5421
        %v5644 = vmul.f32 %v5031, %v5421
        %v5645 = vmul.f32 %v5033, %v5421
        %v5646 = vmul.f32 %v5035, %v5421
        %v5647 = vmul.f32 %v5037, %v5421
        %v5648 = vmul.f32 %v5039, %v5421
        %v5649 = vmul.f32 %v5041, %v5421
        %v5650 = vmul.f32 %v5043, %v5422
        %v5651 = vmul.f32 %v5045, %v5422
        %v5652 = vmul.f32 %v5047, %v5422
        %v5653 = vmul.f32 %v5049, %v5422
        %v5654 = vmul.f32 %v5051, %v5422
        %v5655 = vmul.f32 %v5053, %v5422
        %v5656 = vmul.f32 %v5055, %v5422
        %v5657 = vmul.f32 %v5057, %v5422
        %v5658 = vmul.f32 %v5059, %v5423
        %v5659 = vmul.f32 %v5061, %v5423
        %v5660 = vmul.f32 %v5063, %v5423
        %v5661 = vmul.f32 %v5065, %v5423
        %v5662 = vmul.f32 %v5067, %v5423
        %v5663 = vmul.f32 %v5069, %v5423
        %v5664 = vmul.f32 %v5071, %v5423
        %v5665 = vmul.f32 %v5073, %v5423
        %v5666 = vmul.f32 %v5075, %v5424
        %v5667 = vmul.f32 %v5077, %v5424
        %v5668 = vmul.f32 %v5079, %v5424
        %v5669 = vmul.f32 %v5081, %v5424
        %v5670 = vmul.f32 %v5083, %v5424
        %v5671 = vmul.f32 %v5085, %v5424
        %v5672 = vmul.f32 %v5087, %v5424
        %v5673 = vmul.f32 %v5089, %v5424
        %v5674 = vmul.f32 %v5091, %v5425
        %v5675 = vmul.f32 %v5093, %v5425
        %v5676 = vmul.f32 %v5095, %v5425
        %v5677 = vmul.f32 %v5097, %v5425
        %v5678 = vmul.f32 %v5099, %v5425
        %v5679 = vmul.f32 %v5101, %v5425
        %v5680 = vmul.f32 %v5103, %v5425
        %v5681 = vmul.f32 %v5105, %v5425
        %v5682 = vpack.c.bf16 %v2081, %v2077
        %v5683 = vpack.c.bf16 %v2083, %v2079
        %v5684 = vpack.c.bf16 %v2322, %v2318
        %v5685 = vpack.c.bf16 %v2324, %v2320
        %v5686 = vpack.c.bf16 %v2563, %v2559
        %v5687 = vpack.c.bf16 %v2565, %v2561
        %v5688 = vpack.c.bf16 %v2804, %v2800
        %v5689 = vpack.c.bf16 %v2806, %v2802
        %v5690 = vpack.c.bf16 %v2091, %v2087
        %v5691 = vpack.c.bf16 %v2093, %v2089
        %v5692 = vpack.c.bf16 %v2332, %v2328
        %v5693 = vpack.c.bf16 %v2334, %v2330
        %v5694 = vpack.c.bf16 %v2573, %v2569
        %v5695 = vpack.c.bf16 %v2575, %v2571
        %v5696 = vpack.c.bf16 %v2814, %v2810
        %v5697 = vpack.c.bf16 %v2816, %v2812
        %v5698 = vpack.c.bf16 %v2101, %v2097
        %v5699 = vpack.c.bf16 %v2103, %v2099
        %v5700 = vpack.c.bf16 %v2342, %v2338
        %v5701 = vpack.c.bf16 %v2344, %v2340
        %v5702 = vpack.c.bf16 %v2583, %v2579
        %v5703 = vpack.c.bf16 %v2585, %v2581
        %v5704 = vpack.c.bf16 %v2824, %v2820
        %v5705 = vpack.c.bf16 %v2826, %v2822
        %v5706 = vpack.c.bf16 %v2111, %v2107
        %v5707 = vpack.c.bf16 %v2113, %v2109
        %v5708 = vpack.c.bf16 %v2352, %v2348
        %v5709 = vpack.c.bf16 %v2354, %v2350
        %v5710 = vpack.c.bf16 %v2593, %v2589
        %v5711 = vpack.c.bf16 %v2595, %v2591
        %v5712 = vpack.c.bf16 %v2834, %v2830
        %v5713 = vpack.c.bf16 %v2836, %v2832
        %v5714 = vpack.c.bf16 %v2121, %v2117
        %v5715 = vpack.c.bf16 %v2123, %v2119
        %v5716 = vpack.c.bf16 %v2362, %v2358
        %v5717 = vpack.c.bf16 %v2364, %v2360
        %v5718 = vpack.c.bf16 %v2603, %v2599
        %v5719 = vpack.c.bf16 %v2605, %v2601
        %v5720 = vpack.c.bf16 %v2844, %v2840
        %v5721 = vpack.c.bf16 %v2846, %v2842
        %v5722 = vpack.c.bf16 %v2131, %v2127
        %v5723 = vpack.c.bf16 %v2133, %v2129
        %v5724 = vpack.c.bf16 %v2372, %v2368
        %v5725 = vpack.c.bf16 %v2374, %v2370
        %v5726 = vpack.c.bf16 %v2613, %v2609
        %v5727 = vpack.c.bf16 %v2615, %v2611
        %v5728 = vpack.c.bf16 %v2854, %v2850
        %v5729 = vpack.c.bf16 %v2856, %v2852
        %v5730 = vpack.c.bf16 %v2141, %v2137
        %v5731 = vpack.c.bf16 %v2143, %v2139
        %v5732 = vpack.c.bf16 %v2382, %v2378
        %v5733 = vpack.c.bf16 %v2384, %v2380
        %v5734 = vpack.c.bf16 %v2623, %v2619
        %v5735 = vpack.c.bf16 %v2625, %v2621
        %v5736 = vpack.c.bf16 %v2864, %v2860
        %v5737 = vpack.c.bf16 %v2866, %v2862
        %v5738 = vpack.c.bf16 %v2151, %v2147
        %v5739 = vpack.c.bf16 %v2153, %v2149
        %v5740 = vpack.c.bf16 %v2392, %v2388
        %v5741 = vpack.c.bf16 %v2394, %v2390
        %v5742 = vpack.c.bf16 %v2633, %v2629
        %v5743 = vpack.c.bf16 %v2635, %v2631
        %v5744 = vpack.c.bf16 %v2874, %v2870
        %v5745 = vpack.c.bf16 %v2876, %v2872
        %v5746 = vpack.c.bf16 %v5434, %v5426
        %v5747 = vpack.c.bf16 %v5435, %v5427
        %v5748 = vpack.c.bf16 %v5436, %v5428
        %v5749 = vpack.c.bf16 %v5437, %v5429
        %v5750 = vpack.c.bf16 %v5438, %v5430
        %v5751 = vpack.c.bf16 %v5439, %v5431
        %v5752 = vpack.c.bf16 %v5440, %v5432
        %v5753 = vpack.c.bf16 %v5441, %v5433
        %v5754 = vpack.c.bf16 %v5450, %v5442
        %v5755 = vpack.c.bf16 %v5451, %v5443
        %v5756 = vpack.c.bf16 %v5452, %v5444
        %v5757 = vpack.c.bf16 %v5453, %v5445
        %v5758 = vpack.c.bf16 %v5454, %v5446
        %v5759 = vpack.c.bf16 %v5455, %v5447
        %v5760 = vpack.c.bf16 %v5456, %v5448
        %v5761 = vpack.c.bf16 %v5457, %v5449
        %v5762 = vpack.c.bf16 %v5466, %v5458
        %v5763 = vpack.c.bf16 %v5467, %v5459
        %v5764 = vpack.c.bf16 %v5468, %v5460
        %v5765 = vpack.c.bf16 %v5469, %v5461
        %v5766 = vpack.c.bf16 %v5470, %v5462
        %v5767 = vpack.c.bf16 %v5471, %v5463
        %v5768 = vpack.c.bf16 %v5472, %v5464
        %v5769 = vpack.c.bf16 %v5473, %v5465
        %v5770 = vpack.c.bf16 %v5482, %v5474
        %v5771 = vpack.c.bf16 %v5483, %v5475
        %v5772 = vpack.c.bf16 %v5484, %v5476
        %v5773 = vpack.c.bf16 %v5485, %v5477
        %v5774 = vpack.c.bf16 %v5486, %v5478
        %v5775 = vpack.c.bf16 %v5487, %v5479
        %v5776 = vpack.c.bf16 %v5488, %v5480
        %v5777 = vpack.c.bf16 %v5489, %v5481
        %v5778 = vpack.c.bf16 %v5498, %v5490
        %v5779 = vpack.c.bf16 %v5499, %v5491
        %v5780 = vpack.c.bf16 %v5500, %v5492
        %v5781 = vpack.c.bf16 %v5501, %v5493
        %v5782 = vpack.c.bf16 %v5502, %v5494
        %v5783 = vpack.c.bf16 %v5503, %v5495
        %v5784 = vpack.c.bf16 %v5504, %v5496
        %v5785 = vpack.c.bf16 %v5505, %v5497
        %v5786 = vpack.c.bf16 %v5514, %v5506
        %v5787 = vpack.c.bf16 %v5515, %v5507
        %v5788 = vpack.c.bf16 %v5516, %v5508
        %v5789 = vpack.c.bf16 %v5517, %v5509
        %v5790 = vpack.c.bf16 %v5518, %v5510
        %v5791 = vpack.c.bf16 %v5519, %v5511
        %v5792 = vpack.c.bf16 %v5520, %v5512
        %v5793 = vpack.c.bf16 %v5521, %v5513
        %v5794 = vpack.c.bf16 %v5530, %v5522
        %v5795 = vpack.c.bf16 %v5531, %v5523
        %v5796 = vpack.c.bf16 %v5532, %v5524
        %v5797 = vpack.c.bf16 %v5533, %v5525
        %v5798 = vpack.c.bf16 %v5534, %v5526
        %v5799 = vpack.c.bf16 %v5535, %v5527
        %v5800 = vpack.c.bf16 %v5536, %v5528
        %v5801 = vpack.c.bf16 %v5537, %v5529
        %v5802 = vpack.c.bf16 %v5546, %v5538
        %v5803 = vpack.c.bf16 %v5547, %v5539
        %v5804 = vpack.c.bf16 %v5548, %v5540
        %v5805 = vpack.c.bf16 %v5549, %v5541
        %v5806 = vpack.c.bf16 %v5550, %v5542
        %v5807 = vpack.c.bf16 %v5551, %v5543
        %v5808 = vpack.c.bf16 %v5552, %v5544
        %v5809 = vpack.c.bf16 %v5553, %v5545
        %v5810 = vpack.c.bf16 %v5562, %v5554
        %v5811 = vpack.c.bf16 %v5563, %v5555
        %v5812 = vpack.c.bf16 %v5564, %v5556
        %v5813 = vpack.c.bf16 %v5565, %v5557
        %v5814 = vpack.c.bf16 %v5566, %v5558
        %v5815 = vpack.c.bf16 %v5567, %v5559
        %v5816 = vpack.c.bf16 %v5568, %v5560
        %v5817 = vpack.c.bf16 %v5569, %v5561
        %v5818 = vpack.c.bf16 %v5578, %v5570
        %v5819 = vpack.c.bf16 %v5579, %v5571
        %v5820 = vpack.c.bf16 %v5580, %v5572
        %v5821 = vpack.c.bf16 %v5581, %v5573
        %v5822 = vpack.c.bf16 %v5582, %v5574
        %v5823 = vpack.c.bf16 %v5583, %v5575
        %v5824 = vpack.c.bf16 %v5584, %v5576
        %v5825 = vpack.c.bf16 %v5585, %v5577
        %v5826 = vpack.c.bf16 %v5594, %v5586
        %v5827 = vpack.c.bf16 %v5595, %v5587
        %v5828 = vpack.c.bf16 %v5596, %v5588
        %v5829 = vpack.c.bf16 %v5597, %v5589
        %v5830 = vpack.c.bf16 %v5598, %v5590
        %v5831 = vpack.c.bf16 %v5599, %v5591
        %v5832 = vpack.c.bf16 %v5600, %v5592
        %v5833 = vpack.c.bf16 %v5601, %v5593
        %v5834 = vpack.c.bf16 %v5610, %v5602
        %v5835 = vpack.c.bf16 %v5611, %v5603
        %v5836 = vpack.c.bf16 %v5612, %v5604
        %v5837 = vpack.c.bf16 %v5613, %v5605
        %v5838 = vpack.c.bf16 %v5614, %v5606
        %v5839 = vpack.c.bf16 %v5615, %v5607
        %v5840 = vpack.c.bf16 %v5616, %v5608
        %v5841 = vpack.c.bf16 %v5617, %v5609
        %v5842 = vpack.c.bf16 %v5626, %v5618
        %v5843 = vpack.c.bf16 %v5627, %v5619
        %v5844 = vpack.c.bf16 %v5628, %v5620
        %v5845 = vpack.c.bf16 %v5629, %v5621
        %v5846 = vpack.c.bf16 %v5630, %v5622
        %v5847 = vpack.c.bf16 %v5631, %v5623
        %v5848 = vpack.c.bf16 %v5632, %v5624
        %v5849 = vpack.c.bf16 %v5633, %v5625
        %v5850 = vpack.c.bf16 %v5642, %v5634
        %v5851 = vpack.c.bf16 %v5643, %v5635
        %v5852 = vpack.c.bf16 %v5644, %v5636
        %v5853 = vpack.c.bf16 %v5645, %v5637
        %v5854 = vpack.c.bf16 %v5646, %v5638
        %v5855 = vpack.c.bf16 %v5647, %v5639
        %v5856 = vpack.c.bf16 %v5648, %v5640
        %v5857 = vpack.c.bf16 %v5649, %v5641
        %v5858 = vpack.c.bf16 %v5658, %v5650
        %v5859 = vpack.c.bf16 %v5659, %v5651
        %v5860 = vpack.c.bf16 %v5660, %v5652
        %v5861 = vpack.c.bf16 %v5661, %v5653
        %v5862 = vpack.c.bf16 %v5662, %v5654
        %v5863 = vpack.c.bf16 %v5663, %v5655
        %v5864 = vpack.c.bf16 %v5664, %v5656
        %v5865 = vpack.c.bf16 %v5665, %v5657
        %v5866 = vpack.c.bf16 %v5674, %v5666
        %v5867 = vpack.c.bf16 %v5675, %v5667
        %v5868 = vpack.c.bf16 %v5676, %v5668
        %v5869 = vpack.c.bf16 %v5677, %v5669
        %v5870 = vpack.c.bf16 %v5678, %v5670
        %v5871 = vpack.c.bf16 %v5679, %v5671
        %v5872 = vpack.c.bf16 %v5680, %v5672
        %v5873 = vpack.c.bf16 %v5681, %v5673
        %5874 = vmatprep.subr.bf16.mxu0 %v5747
        %5875 = vmatpush1.bf16.xpose.msra.mxu0 %v5746
        %5876 = vmatprep.subr.bf16.mxu0 %v5755
        %5877 = vmatpush1.bf16.xpose.msra.mxu0 %v5754
        %5878 = vmatprep.subr.bf16.mxu0 %v5763
        %5879 = vmatpush1.bf16.xpose.msra.mxu0 %v5762
        %5880 = vmatprep.subr.bf16.mxu0 %v5771
        %5881 = vmatpush1.bf16.xpose.msra.mxu0 %v5770
        %5882 = vmatprep.subr.bf16.mxu0 %v5779
        %5883 = vmatpush1.bf16.xpose.msra.mxu0 %v5778
        %5884 = vmatprep.subr.bf16.mxu0 %v5787
        %5885 = vmatpush1.bf16.xpose.msra.mxu0 %v5786
        %5886 = vmatprep.subr.bf16.mxu0 %v5795
        %5887 = vmatpush1.bf16.xpose.msra.mxu0 %v5794
        %5888 = vmatprep.subr.bf16.mxu0 %v5803
        %5889 = vmatpush1.bf16.xpose.msra.mxu0 %v5802
        %5890 = vmatprep.subr.bf16.mxu0 %v5811
        %5891 = vmatpush1.bf16.xpose.msra.mxu0 %v5810
        %5892 = vmatprep.subr.bf16.mxu0 %v5819
        %5893 = vmatpush1.bf16.xpose.msra.mxu0 %v5818
        %5894 = vmatprep.subr.bf16.mxu0 %v5827
        %5895 = vmatpush1.bf16.xpose.msra.mxu0 %v5826
        %5896 = vmatprep.subr.bf16.mxu0 %v5835
        %5897 = vmatpush1.bf16.xpose.msra.mxu0 %v5834
        %5898 = vmatprep.subr.bf16.mxu0 %v5843
        %5899 = vmatpush1.bf16.xpose.msra.mxu0 %v5842
        %5900 = vmatprep.subr.bf16.mxu0 %v5851
        %5901 = vmatpush1.bf16.xpose.msra.mxu0 %v5850
        %5902 = vmatprep.subr.bf16.mxu0 %v5859
        %5903 = vmatpush1.bf16.xpose.msra.mxu0 %v5858
        %5904 = vmatprep.subr.bf16.mxu0 %v5867
        %5905 = vmatpush1.bf16.xpose.msra.mxu0 %v5866
        %5906 = vmatprep.mubr.bf16.mxu0 %v5683
        %5907 = vmatmul.mubr.bf16.gmra.mrb[0].mxu0 %v5682
        %v5908 = vpop.f32.mrb[0].mxu0
        %v5909 = vadd.f32 0.0, %v5908
        %v5910 = vpop.f32.mrb[0].mxu0
        %v5911 = vadd.f32 0.0, %v5910
        %v5912 = vpop.f32.mrb[0].mxu0
        %v5913 = vadd.f32 0.0, %v5912
        %v5914 = vpop.f32.mrb[0].mxu0
        %v5915 = vadd.f32 0.0, %v5914
        %5916 = vmatprep.mubr.bf16.mxu0 %v5691
        %5917 = vmatmul.mubr.bf16.gmra.mrb[0].mxu0 %v5690
        %v5918 = vpop.f32.mrb[0].mxu0
        %v5919 = vadd.f32 0.0, %v5918
        %v5920 = vpop.f32.mrb[0].mxu0
        %v5921 = vadd.f32 0.0, %v5920
        %v5922 = vpop.f32.mrb[0].mxu0
        %v5923 = vadd.f32 0.0, %v5922
        %v5924 = vpop.f32.mrb[0].mxu0
        %v5925 = vadd.f32 0.0, %v5924
        %5926 = vmatprep.mubr.bf16.mxu0 %v5699
        %5927 = vmatmul.mubr.bf16.gmra.mrb[0].mxu0 %v5698
        %v5928 = vpop.f32.mrb[0].mxu0
        %v5929 = vadd.f32 0.0, %v5928
        %v5930 = vpop.f32.mrb[0].mxu0
        %v5931 = vadd.f32 0.0, %v5930
        %v5932 = vpop.f32.mrb[0].mxu0
        %v5933 = vadd.f32 0.0, %v5932
        %v5934 = vpop.f32.mrb[0].mxu0
        %v5935 = vadd.f32 0.0, %v5934
        %5936 = vmatprep.mubr.bf16.mxu0 %v5707
        %5937 = vmatmul.mubr.bf16.gmra.mrb[0].mxu0 %v5706
        %v5938 = vpop.f32.mrb[0].mxu0
        %v5939 = vadd.f32 0.0, %v5938
        %v5940 = vpop.f32.mrb[0].mxu0
        %v5941 = vadd.f32 0.0, %v5940
        %v5942 = vpop.f32.mrb[0].mxu0
        %v5943 = vadd.f32 0.0, %v5942
        %v5944 = vpop.f32.mrb[0].mxu0
        %v5945 = vadd.f32 0.0, %v5944
        %5946 = vmatprep.mubr.bf16.mxu0 %v5715
        %5947 = vmatmul.mubr.bf16.gmra.mrb[0].mxu0 %v5714
        %v5948 = vpop.f32.mrb[0].mxu0
        %v5949 = vadd.f32 0.0, %v5948
        %v5950 = vpop.f32.mrb[0].mxu0
        %v5951 = vadd.f32 0.0, %v5950
        %v5952 = vpop.f32.mrb[0].mxu0
        %v5953 = vadd.f32 0.0, %v5952
        %v5954 = vpop.f32.mrb[0].mxu0
        %v5955 = vadd.f32 0.0, %v5954
        %5956 = vmatprep.mubr.bf16.mxu0 %v5723
        %5957 = vmatmul.mubr.bf16.gmra.mrb[0].mxu0 %v5722
        %v5958 = vpop.f32.mrb[0].mxu0
        %v5959 = vadd.f32 0.0, %v5958
        %v5960 = vpop.f32.mrb[0].mxu0
        %v5961 = vadd.f32 0.0, %v5960
        %v5962 = vpop.f32.mrb[0].mxu0
        %v5963 = vadd.f32 0.0, %v5962
        %v5964 = vpop.f32.mrb[0].mxu0
        %v5965 = vadd.f32 0.0, %v5964
        %5966 = vmatprep.mubr.bf16.mxu0 %v5731
        %5967 = vmatmul.mubr.bf16.gmra.mrb[0].mxu0 %v5730
        %v5968 = vpop.f32.mrb[0].mxu0
        %v5969 = vadd.f32 0.0, %v5968
        %v5970 = vpop.f32.mrb[0].mxu0
        %v5971 = vadd.f32 0.0, %v5970
        %v5972 = vpop.f32.mrb[0].mxu0
        %v5973 = vadd.f32 0.0, %v5972
        %v5974 = vpop.f32.mrb[0].mxu0
        %v5975 = vadd.f32 0.0, %v5974
        %5976 = vmatprep.mubr.bf16.mxu0 %v5739
        %5977 = vmatmul.mubr.bf16.gmra.mrb[0].mxu0 %v5738
        %v5978 = vpop.f32.mrb[0].mxu0
        %v5979 = vadd.f32 0.0, %v5978
        %v5980 = vpop.f32.mrb[0].mxu0
        %v5981 = vadd.f32 0.0, %v5980
        %v5982 = vpop.f32.mrb[0].mxu0
        %v5983 = vadd.f32 0.0, %v5982
        %v5984 = vpop.f32.mrb[0].mxu0
        %v5985 = vadd.f32 0.0, %v5984
        %5986 = vdwg.mxu0
        %5987 = vmatprep.subr.bf16.mxu0 %v5749
        %5988 = vmatpush1.bf16.xpose.msra.mxu0 %v5748
        %5989 = vmatprep.subr.bf16.mxu0 %v5757
        %5990 = vmatpush1.bf16.xpose.msra.mxu0 %v5756
        %5991 = vmatprep.subr.bf16.mxu0 %v5765
        %5992 = vmatpush1.bf16.xpose.msra.mxu0 %v5764
        %5993 = vmatprep.subr.bf16.mxu0 %v5773
        %5994 = vmatpush1.bf16.xpose.msra.mxu0 %v5772
        %5995 = vmatprep.subr.bf16.mxu0 %v5781
        %5996 = vmatpush1.bf16.xpose.msra.mxu0 %v5780
        %5997 = vmatprep.subr.bf16.mxu0 %v5789
        %5998 = vmatpush1.bf16.xpose.msra.mxu0 %v5788
        %5999 = vmatprep.subr.bf16.mxu0 %v5797
        %6000 = vmatpush1.bf16.xpose.msra.mxu0 %v5796
        %6001 = vmatprep.subr.bf16.mxu0 %v5805
        %6002 = vmatpush1.bf16.xpose.msra.mxu0 %v5804
        %6003 = vmatprep.subr.bf16.mxu0 %v5813
        %6004 = vmatpush1.bf16.xpose.msra.mxu0 %v5812
        %6005 = vmatprep.subr.bf16.mxu0 %v5821
        %6006 = vmatpush1.bf16.xpose.msra.mxu0 %v5820
        %6007 = vmatprep.subr.bf16.mxu0 %v5829
        %6008 = vmatpush1.bf16.xpose.msra.mxu0 %v5828
        %6009 = vmatprep.subr.bf16.mxu0 %v5837
        %6010 = vmatpush1.bf16.xpose.msra.mxu0 %v5836
        %6011 = vmatprep.subr.bf16.mxu0 %v5845
        %6012 = vmatpush1.bf16.xpose.msra.mxu0 %v5844
        %6013 = vmatprep.subr.bf16.mxu0 %v5853
        %6014 = vmatpush1.bf16.xpose.msra.mxu0 %v5852
        %6015 = vmatprep.subr.bf16.mxu0 %v5861
        %6016 = vmatpush1.bf16.xpose.msra.mxu0 %v5860
        %6017 = vmatprep.subr.bf16.mxu0 %v5869
        %6018 = vmatpush1.bf16.xpose.msra.mxu0 %v5868
        %6019 = vmatprep.mubr.bf16.mxu0 %v5685
        %6020 = vmatmul.mubr.bf16.gmra.mrb[0].mxu0 %v5684
        %v6021 = vpop.f32.mrb[0].mxu0
        %v6022 = vadd.f32 %v5909, %v6021
        %v6023 = vpop.f32.mrb[0].mxu0
        %v6024 = vadd.f32 %v5911, %v6023
        %v6025 = vpop.f32.mrb[0].mxu0
        %v6026 = vadd.f32 %v5913, %v6025
        %v6027 = vpop.f32.mrb[0].mxu0
        %v6028 = vadd.f32 %v5915, %v6027
        %6029 = vmatprep.mubr.bf16.mxu0 %v5693
        %6030 = vmatmul.mubr.bf16.gmra.mrb[0].mxu0 %v5692
        %v6031 = vpop.f32.mrb[0].mxu0
        %v6032 = vadd.f32 %v5919, %v6031
        %v6033 = vpop.f32.mrb[0].mxu0
        %v6034 = vadd.f32 %v5921, %v6033
        %v6035 = vpop.f32.mrb[0].mxu0
        %v6036 = vadd.f32 %v5923, %v6035
        %v6037 = vpop.f32.mrb[0].mxu0
        %v6038 = vadd.f32 %v5925, %v6037
        %6039 = vmatprep.mubr.bf16.mxu0 %v5701
        %6040 = vmatmul.mubr.bf16.gmra.mrb[0].mxu0 %v5700
        %v6041 = vpop.f32.mrb[0].mxu0
        %v6042 = vadd.f32 %v5929, %v6041
        %v6043 = vpop.f32.mrb[0].mxu0
        %v6044 = vadd.f32 %v5931, %v6043
        %v6045 = vpop.f32.mrb[0].mxu0
        %v6046 = vadd.f32 %v5933, %v6045
        %v6047 = vpop.f32.mrb[0].mxu0
        %v6048 = vadd.f32 %v5935, %v6047
        %6049 = vmatprep.mubr.bf16.mxu0 %v5709
        %6050 = vmatmul.mubr.bf16.gmra.mrb[0].mxu0 %v5708
        %v6051 = vpop.f32.mrb[0].mxu0
        %v6052 = vadd.f32 %v5939, %v6051
        %v6053 = vpop.f32.mrb[0].mxu0
        %v6054 = vadd.f32 %v5941, %v6053
        %v6055 = vpop.f32.mrb[0].mxu0
        %v6056 = vadd.f32 %v5943, %v6055
        %v6057 = vpop.f32.mrb[0].mxu0
        %v6058 = vadd.f32 %v5945, %v6057
        %6059 = vmatprep.mubr.bf16.mxu0 %v5717
        %6060 = vmatmul.mubr.bf16.gmra.mrb[0].mxu0 %v5716
        %v6061 = vpop.f32.mrb[0].mxu0
        %v6062 = vadd.f32 %v5949, %v6061
        %v6063 = vpop.f32.mrb[0].mxu0
        %v6064 = vadd.f32 %v5951, %v6063
        %v6065 = vpop.f32.mrb[0].mxu0
        %v6066 = vadd.f32 %v5953, %v6065
        %v6067 = vpop.f32.mrb[0].mxu0
        %v6068 = vadd.f32 %v5955, %v6067
        %6069 = vmatprep.mubr.bf16.mxu0 %v5725
        %6070 = vmatmul.mubr.bf16.gmra.mrb[0].mxu0 %v5724
        %v6071 = vpop.f32.mrb[0].mxu0
        %v6072 = vadd.f32 %v5959, %v6071
        %v6073 = vpop.f32.mrb[0].mxu0
        %v6074 = vadd.f32 %v5961, %v6073
        %v6075 = vpop.f32.mrb[0].mxu0
        %v6076 = vadd.f32 %v5963, %v6075
        %v6077 = vpop.f32.mrb[0].mxu0
        %v6078 = vadd.f32 %v5965, %v6077
        %6079 = vmatprep.mubr.bf16.mxu0 %v5733
        %6080 = vmatmul.mubr.bf16.gmra.mrb[0].mxu0 %v5732
        %v6081 = vpop.f32.mrb[0].mxu0
        %v6082 = vadd.f32 %v5969, %v6081
        %v6083 = vpop.f32.mrb[0].mxu0
        %v6084 = vadd.f32 %v5971, %v6083
        %v6085 = vpop.f32.mrb[0].mxu0
        %v6086 = vadd.f32 %v5973, %v6085
        %v6087 = vpop.f32.mrb[0].mxu0
        %v6088 = vadd.f32 %v5975, %v6087
        %6089 = vmatprep.mubr.bf16.mxu0 %v5741
        %6090 = vmatmul.mubr.bf16.gmra.mrb[0].mxu0 %v5740
        %v6091 = vpop.f32.mrb[0].mxu0
        %v6092 = vadd.f32 %v5979, %v6091
        %v6093 = vpop.f32.mrb[0].mxu0
        %v6094 = vadd.f32 %v5981, %v6093
        %v6095 = vpop.f32.mrb[0].mxu0
        %v6096 = vadd.f32 %v5983, %v6095
        %v6097 = vpop.f32.mrb[0].mxu0
        %v6098 = vadd.f32 %v5985, %v6097
        %6099 = vdwg.mxu0
        %6100 = vmatprep.subr.bf16.mxu0 %v5751
        %6101 = vmatpush1.bf16.xpose.msra.mxu0 %v5750
        %6102 = vmatprep.subr.bf16.mxu0 %v5759
        %6103 = vmatpush1.bf16.xpose.msra.mxu0 %v5758
        %6104 = vmatprep.subr.bf16.mxu0 %v5767
        %6105 = vmatpush1.bf16.xpose.msra.mxu0 %v5766
        %6106 = vmatprep.subr.bf16.mxu0 %v5775
        %6107 = vmatpush1.bf16.xpose.msra.mxu0 %v5774
        %6108 = vmatprep.subr.bf16.mxu0 %v5783
        %6109 = vmatpush1.bf16.xpose.msra.mxu0 %v5782
        %6110 = vmatprep.subr.bf16.mxu0 %v5791
        %6111 = vmatpush1.bf16.xpose.msra.mxu0 %v5790
        %6112 = vmatprep.subr.bf16.mxu0 %v5799
        %6113 = vmatpush1.bf16.xpose.msra.mxu0 %v5798
        %6114 = vmatprep.subr.bf16.mxu0 %v5807
        %6115 = vmatpush1.bf16.xpose.msra.mxu0 %v5806
        %6116 = vmatprep.subr.bf16.mxu0 %v5815
        %6117 = vmatpush1.bf16.xpose.msra.mxu0 %v5814
        %6118 = vmatprep.subr.bf16.mxu0 %v5823
        %6119 = vmatpush1.bf16.xpose.msra.mxu0 %v5822
        %6120 = vmatprep.subr.bf16.mxu0 %v5831
        %6121 = vmatpush1.bf16.xpose.msra.mxu0 %v5830
        %6122 = vmatprep.subr.bf16.mxu0 %v5839
        %6123 = vmatpush1.bf16.xpose.msra.mxu0 %v5838
        %6124 = vmatprep.subr.bf16.mxu0 %v5847
        %6125 = vmatpush1.bf16.xpose.msra.mxu0 %v5846
        %6126 = vmatprep.subr.bf16.mxu0 %v5855
        %6127 = vmatpush1.bf16.xpose.msra.mxu0 %v5854
        %6128 = vmatprep.subr.bf16.mxu0 %v5863
        %6129 = vmatpush1.bf16.xpose.msra.mxu0 %v5862
        %6130 = vmatprep.subr.bf16.mxu0 %v5871
        %6131 = vmatpush1.bf16.xpose.msra.mxu0 %v5870
        %6132 = vmatprep.mubr.bf16.mxu0 %v5687
        %6133 = vmatmul.mubr.bf16.gmra.mrb[0].mxu0 %v5686
        %v6134 = vpop.f32.mrb[0].mxu0
        %v6135 = vadd.f32 %v6022, %v6134
        %v6136 = vpop.f32.mrb[0].mxu0
        %v6137 = vadd.f32 %v6024, %v6136
        %v6138 = vpop.f32.mrb[0].mxu0
        %v6139 = vadd.f32 %v6026, %v6138
        %v6140 = vpop.f32.mrb[0].mxu0
        %v6141 = vadd.f32 %v6028, %v6140
        %6142 = vmatprep.mubr.bf16.mxu0 %v5695
        %6143 = vmatmul.mubr.bf16.gmra.mrb[0].mxu0 %v5694
        %v6144 = vpop.f32.mrb[0].mxu0
        %v6145 = vadd.f32 %v6032, %v6144
        %v6146 = vpop.f32.mrb[0].mxu0
        %v6147 = vadd.f32 %v6034, %v6146
        %v6148 = vpop.f32.mrb[0].mxu0
        %v6149 = vadd.f32 %v6036, %v6148
        %v6150 = vpop.f32.mrb[0].mxu0
        %v6151 = vadd.f32 %v6038, %v6150
        %6152 = vmatprep.mubr.bf16.mxu0 %v5703
        %6153 = vmatmul.mubr.bf16.gmra.mrb[0].mxu0 %v5702
        %v6154 = vpop.f32.mrb[0].mxu0
        %v6155 = vadd.f32 %v6042, %v6154
        %v6156 = vpop.f32.mrb[0].mxu0
        %v6157 = vadd.f32 %v6044, %v6156
        %v6158 = vpop.f32.mrb[0].mxu0
        %v6159 = vadd.f32 %v6046, %v6158
        %v6160 = vpop.f32.mrb[0].mxu0
        %v6161 = vadd.f32 %v6048, %v6160
        %6162 = vmatprep.mubr.bf16.mxu0 %v5711
        %6163 = vmatmul.mubr.bf16.gmra.mrb[0].mxu0 %v5710
        %v6164 = vpop.f32.mrb[0].mxu0
        %v6165 = vadd.f32 %v6052, %v6164
        %v6166 = vpop.f32.mrb[0].mxu0
        %v6167 = vadd.f32 %v6054, %v6166
        %v6168 = vpop.f32.mrb[0].mxu0
        %v6169 = vadd.f32 %v6056, %v6168
        %v6170 = vpop.f32.mrb[0].mxu0
        %v6171 = vadd.f32 %v6058, %v6170
        %6172 = vmatprep.mubr.bf16.mxu0 %v5719
        %6173 = vmatmul.mubr.bf16.gmra.mrb[0].mxu0 %v5718
        %v6174 = vpop.f32.mrb[0].mxu0
        %v6175 = vadd.f32 %v6062, %v6174
        %v6176 = vpop.f32.mrb[0].mxu0
        %v6177 = vadd.f32 %v6064, %v6176
        %v6178 = vpop.f32.mrb[0].mxu0
        %v6179 = vadd.f32 %v6066, %v6178
        %v6180 = vpop.f32.mrb[0].mxu0
        %v6181 = vadd.f32 %v6068, %v6180
        %6182 = vmatprep.mubr.bf16.mxu0 %v5727
        %6183 = vmatmul.mubr.bf16.gmra.mrb[0].mxu0 %v5726
        %v6184 = vpop.f32.mrb[0].mxu0
        %v6185 = vadd.f32 %v6072, %v6184
        %v6186 = vpop.f32.mrb[0].mxu0
        %v6187 = vadd.f32 %v6074, %v6186
        %v6188 = vpop.f32.mrb[0].mxu0
        %v6189 = vadd.f32 %v6076, %v6188
        %v6190 = vpop.f32.mrb[0].mxu0
        %v6191 = vadd.f32 %v6078, %v6190
        %6192 = vmatprep.mubr.bf16.mxu0 %v5735
        %6193 = vmatmul.mubr.bf16.gmra.mrb[0].mxu0 %v5734
        %v6194 = vpop.f32.mrb[0].mxu0
        %v6195 = vadd.f32 %v6082, %v6194
        %v6196 = vpop.f32.mrb[0].mxu0
        %v6197 = vadd.f32 %v6084, %v6196
        %v6198 = vpop.f32.mrb[0].mxu0
        %v6199 = vadd.f32 %v6086, %v6198
        %v6200 = vpop.f32.mrb[0].mxu0
        %v6201 = vadd.f32 %v6088, %v6200
        %6202 = vmatprep.mubr.bf16.mxu0 %v5743
        %6203 = vmatmul.mubr.bf16.gmra.mrb[0].mxu0 %v5742
        %v6204 = vpop.f32.mrb[0].mxu0
        %v6205 = vadd.f32 %v6092, %v6204
        %v6206 = vpop.f32.mrb[0].mxu0
        %v6207 = vadd.f32 %v6094, %v6206
        %v6208 = vpop.f32.mrb[0].mxu0
        %v6209 = vadd.f32 %v6096, %v6208
        %v6210 = vpop.f32.mrb[0].mxu0
        %v6211 = vadd.f32 %v6098, %v6210
        %6212 = vdwg.mxu0
        %6213 = vmatprep.subr.bf16.mxu0 %v5753
        %6214 = vmatpush1.bf16.xpose.msra.mxu0 %v5752
        %6215 = vmatprep.subr.bf16.mxu0 %v5761
        %6216 = vmatpush1.bf16.xpose.msra.mxu0 %v5760
        %6217 = vmatprep.subr.bf16.mxu0 %v5769
        %6218 = vmatpush1.bf16.xpose.msra.mxu0 %v5768
        %6219 = vmatprep.subr.bf16.mxu0 %v5777
        %6220 = vmatpush1.bf16.xpose.msra.mxu0 %v5776
        %6221 = vmatprep.subr.bf16.mxu0 %v5785
        %6222 = vmatpush1.bf16.xpose.msra.mxu0 %v5784
        %6223 = vmatprep.subr.bf16.mxu0 %v5793
        %6224 = vmatpush1.bf16.xpose.msra.mxu0 %v5792
        %6225 = vmatprep.subr.bf16.mxu0 %v5801
        %6226 = vmatpush1.bf16.xpose.msra.mxu0 %v5800
        %6227 = vmatprep.subr.bf16.mxu0 %v5809
        %6228 = vmatpush1.bf16.xpose.msra.mxu0 %v5808
        %6229 = vmatprep.subr.bf16.mxu0 %v5817
        %6230 = vmatpush1.bf16.xpose.msra.mxu0 %v5816
        %6231 = vmatprep.subr.bf16.mxu0 %v5825
        %6232 = vmatpush1.bf16.xpose.msra.mxu0 %v5824
        %6233 = vmatprep.subr.bf16.mxu0 %v5833
        %6234 = vmatpush1.bf16.xpose.msra.mxu0 %v5832
        %6235 = vmatprep.subr.bf16.mxu0 %v5841
        %6236 = vmatpush1.bf16.xpose.msra.mxu0 %v5840
        %6237 = vmatprep.subr.bf16.mxu0 %v5849
        %6238 = vmatpush1.bf16.xpose.msra.mxu0 %v5848
        %6239 = vmatprep.subr.bf16.mxu0 %v5857
        %6240 = vmatpush1.bf16.xpose.msra.mxu0 %v5856
        %6241 = vmatprep.subr.bf16.mxu0 %v5865
        %6242 = vmatpush1.bf16.xpose.msra.mxu0 %v5864
        %6243 = vmatprep.subr.bf16.mxu0 %v5873
        %6244 = vmatpush1.bf16.xpose.msra.mxu0 %v5872
        %6245 = vmatprep.mubr.bf16.mxu0 %v5689
        %6246 = vmatmul.mubr.bf16.gmra.mrb[0].mxu0 %v5688
        %v6247 = vpop.f32.mrb[0].mxu0
        %v6248 = vadd.f32 %v6135, %v6247
        %v6249 = vpop.f32.mrb[0].mxu0
        %v6250 = vadd.f32 %v6137, %v6249
        %v6251 = vpop.f32.mrb[0].mxu0
        %v6252 = vadd.f32 %v6139, %v6251
        %v6253 = vpop.f32.mrb[0].mxu0
        %v6254 = vadd.f32 %v6141, %v6253
        %6255 = vmatprep.mubr.bf16.mxu0 %v5697
        %6256 = vmatmul.mubr.bf16.gmra.mrb[0].mxu0 %v5696
        %v6257 = vpop.f32.mrb[0].mxu0
        %v6258 = vadd.f32 %v6145, %v6257
        %v6259 = vpop.f32.mrb[0].mxu0
        %v6260 = vadd.f32 %v6147, %v6259
        %v6261 = vpop.f32.mrb[0].mxu0
        %v6262 = vadd.f32 %v6149, %v6261
        %v6263 = vpop.f32.mrb[0].mxu0
        %v6264 = vadd.f32 %v6151, %v6263
        %6265 = vmatprep.mubr.bf16.mxu0 %v5705
        %6266 = vmatmul.mubr.bf16.gmra.mrb[0].mxu0 %v5704
        %v6267 = vpop.f32.mrb[0].mxu0
        %v6268 = vadd.f32 %v6155, %v6267
        %v6269 = vpop.f32.mrb[0].mxu0
        %v6270 = vadd.f32 %v6157, %v6269
        %v6271 = vpop.f32.mrb[0].mxu0
        %v6272 = vadd.f32 %v6159, %v6271
        %v6273 = vpop.f32.mrb[0].mxu0
        %v6274 = vadd.f32 %v6161, %v6273
        %6275 = vmatprep.mubr.bf16.mxu0 %v5713
        %6276 = vmatmul.mubr.bf16.gmra.mrb[0].mxu0 %v5712
        %v6277 = vpop.f32.mrb[0].mxu0
        %v6278 = vadd.f32 %v6165, %v6277
        %v6279 = vpop.f32.mrb[0].mxu0
        %v6280 = vadd.f32 %v6167, %v6279
        %v6281 = vpop.f32.mrb[0].mxu0
        %v6282 = vadd.f32 %v6169, %v6281
        %v6283 = vpop.f32.mrb[0].mxu0
        %v6284 = vadd.f32 %v6171, %v6283
        %6285 = vmatprep.mubr.bf16.mxu0 %v5721
        %6286 = vmatmul.mubr.bf16.gmra.mrb[0].mxu0 %v5720
        %v6287 = vpop.f32.mrb[0].mxu0
        %v6288 = vadd.f32 %v6175, %v6287
        %v6289 = vpop.f32.mrb[0].mxu0
        %v6290 = vadd.f32 %v6177, %v6289
        %v6291 = vpop.f32.mrb[0].mxu0
        %v6292 = vadd.f32 %v6179, %v6291
        %v6293 = vpop.f32.mrb[0].mxu0
        %v6294 = vadd.f32 %v6181, %v6293
        %6295 = vmatprep.mubr.bf16.mxu0 %v5729
        %6296 = vmatmul.mubr.bf16.gmra.mrb[0].mxu0 %v5728
        %v6297 = vpop.f32.mrb[0].mxu0
        %v6298 = vadd.f32 %v6185, %v6297
        %v6299 = vpop.f32.mrb[0].mxu0
        %v6300 = vadd.f32 %v6187, %v6299
        %v6301 = vpop.f32.mrb[0].mxu0
        %v6302 = vadd.f32 %v6189, %v6301
        %v6303 = vpop.f32.mrb[0].mxu0
        %v6304 = vadd.f32 %v6191, %v6303
        %6305 = vmatprep.mubr.bf16.mxu0 %v5737
        %6306 = vmatmul.mubr.bf16.gmra.mrb[0].mxu0 %v5736
        %v6307 = vpop.f32.mrb[0].mxu0
        %v6308 = vadd.f32 %v6195, %v6307
        %v6309 = vpop.f32.mrb[0].mxu0
        %v6310 = vadd.f32 %v6197, %v6309
        %v6311 = vpop.f32.mrb[0].mxu0
        %v6312 = vadd.f32 %v6199, %v6311
        %v6313 = vpop.f32.mrb[0].mxu0
        %v6314 = vadd.f32 %v6201, %v6313
        %6315 = vmatprep.mubr.bf16.mxu0 %v5745
        %6316 = vmatmul.mubr.bf16.gmra.mrb[0].mxu0 %v5744
        %v6317 = vpop.f32.mrb[0].mxu0
        %v6318 = vadd.f32 %v6205, %v6317
        %v6319 = vpop.f32.mrb[0].mxu0
        %v6320 = vadd.f32 %v6207, %v6319
        %v6321 = vpop.f32.mrb[0].mxu0
        %v6322 = vadd.f32 %v6209, %v6321
        %v6323 = vpop.f32.mrb[0].mxu0
        %v6324 = vadd.f32 %v6211, %v6323
        %6325 = vdwg.mxu0
        %v6326 = vld [vmem:[%s10] sm:$0xf]
        %v6327 = vld [vmem:[%s10 + $0x4] sm:$0xf]
        %v6328 = vld [vmem:[%s10 + $0x8] sm:$0xf]
        %v6329 = vld [vmem:[%s10 + $0xc] sm:$0xf]
        %v6330 = vld [vmem:[%s10 + $0x10] sm:$0xf]
        %v6331 = vld [vmem:[%s10 + $0x14] sm:$0xf]
        %v6332 = vld [vmem:[%s10 + $0x18] sm:$0xf]
        %v6333 = vld [vmem:[%s10 + $0x1c] sm:$0xf]
        %v6334 = vld [vmem:[%s10 + $0x20] sm:$0xf]
        %v6335 = vld [vmem:[%s10 + $0x24] sm:$0xf]
        %v6336 = vld [vmem:[%s10 + $0x28] sm:$0xf]
        %v6337 = vld [vmem:[%s10 + $0x2c] sm:$0xf]
        %v6338 = vld [vmem:[%s10 + $0x30] sm:$0xf]
        %v6339 = vld [vmem:[%s10 + $0x34] sm:$0xf]
        %v6340 = vld [vmem:[%s10 + $0x38] sm:$0xf]
        %v6341 = vld [vmem:[%s10 + $0x3c] sm:$0xf]
        %v6342 = vpack.c.bf16 %v6252, %v6248
        %v6343 = vpack.c.bf16 %v6254, %v6250
        %v6344 = vpack.c.bf16 %v6262, %v6258
        %v6345 = vpack.c.bf16 %v6264, %v6260
        %v6346 = vpack.c.bf16 %v6272, %v6268
        %v6347 = vpack.c.bf16 %v6274, %v6270
        %v6348 = vpack.c.bf16 %v6282, %v6278
        %v6349 = vpack.c.bf16 %v6284, %v6280
        %v6350 = vpack.c.bf16 %v6292, %v6288
        %v6351 = vpack.c.bf16 %v6294, %v6290
        %v6352 = vpack.c.bf16 %v6302, %v6298
        %v6353 = vpack.c.bf16 %v6304, %v6300
        %v6354 = vpack.c.bf16 %v6312, %v6308
        %v6355 = vpack.c.bf16 %v6314, %v6310
        %v6356 = vpack.c.bf16 %v6322, %v6318
        %v6357 = vpack.c.bf16 %v6324, %v6320
        %v6374 = vunpack.c.l.b16 %v6326
        %v6375 = vunpack.c.l.b16 %v6327
        %v6376 = vunpack.c.l.b16 %v6328
        %v6377 = vunpack.c.l.b16 %v6329
        %v6378 = vunpack.c.l.b16 %v6330
        %v6379 = vunpack.c.l.b16 %v6331
        %v6380 = vunpack.c.l.b16 %v6332
        %v6381 = vunpack.c.l.b16 %v6333
        %v6382 = vunpack.c.l.b16 %v6334
        %v6383 = vunpack.c.l.b16 %v6335
        %v6384 = vunpack.c.l.b16 %v6336
        %v6385 = vunpack.c.l.b16 %v6337
        %v6386 = vunpack.c.l.b16 %v6338
        %v6387 = vunpack.c.l.b16 %v6339
        %v6388 = vunpack.c.l.b16 %v6340
        %v6389 = vunpack.c.l.b16 %v6341
        %v6390 = vpack.c.b16 %v6375, %v6374
        %v6391 = vpack.c.b16 %v6377, %v6376
        %v6392 = vpack.c.b16 %v6379, %v6378
        %v6393 = vpack.c.b16 %v6381, %v6380
        %v6394 = vpack.c.b16 %v6383, %v6382
        %v6395 = vpack.c.b16 %v6385, %v6384
        %v6396 = vpack.c.b16 %v6387, %v6386
        %v6397 = vpack.c.b16 %v6389, %v6388
        %6406 = vmatprep.subr.bf16.mxu0 %v6343
        %6407 = vmatpush1.bf16.msra.mxu0 %v6342
        %6408 = vmatprep.subr.bf16.mxu0 %v6345
        %6409 = vmatpush1.bf16.msra.mxu0 %v6344
        %6410 = vmatprep.subr.bf16.mxu0 %v6347
        %6411 = vmatpush1.bf16.msra.mxu0 %v6346
        %6412 = vmatprep.subr.bf16.mxu0 %v6349
        %6413 = vmatpush1.bf16.msra.mxu0 %v6348
        %6414 = vmatprep.subr.bf16.mxu0 %v6351
        %6415 = vmatpush1.bf16.msra.mxu0 %v6350
        %6416 = vmatprep.subr.bf16.mxu0 %v6353
        %6417 = vmatpush1.bf16.msra.mxu0 %v6352
        %6418 = vmatprep.subr.bf16.mxu0 %v6355
        %6419 = vmatpush1.bf16.msra.mxu0 %v6354
        %6420 = vmatprep.subr.bf16.mxu0 %v6357
        %6421 = vmatpush1.bf16.msra.mxu0 %v6356
        %6422 = vmatprep.subr.bf16.mxu0 0
        %6423 = vmatpush1.bf16.msra.mxu0 0
        %6424 = vmatprep.subr.bf16.mxu0 0
        %6425 = vmatpush1.bf16.msra.mxu0 0
        %6426 = vmatprep.subr.bf16.mxu0 0
        %6427 = vmatpush1.bf16.msra.mxu0 0
        %6428 = vmatprep.subr.bf16.mxu0 0
        %6429 = vmatpush1.bf16.msra.mxu0 0
        %6430 = vmatprep.subr.bf16.mxu0 0
        %6431 = vmatpush1.bf16.msra.mxu0 0
        %6432 = vmatprep.subr.bf16.mxu0 0
        %6433 = vmatpush1.bf16.msra.mxu0 0
        %6434 = vmatprep.subr.bf16.mxu0 0
        %6435 = vmatpush1.bf16.msra.mxu0 0
        %6436 = vmatprep.subr.bf16.mxu0 0
        %6437 = vmatpush1.bf16.msra.mxu0 0
        %6438 = vmatprep.mubr.bf16.mxu0 0
        %6439 = vmatmul.mubr.bf16.gmra.mrb[0].mxu0 %v6390
        %v6440 = vpop.f32.mrb[0].mxu0
        %v6441 = vadd.f32 0.0, %v6440
        %v6442 = vpop.f32.mrb[0].mxu0
        %v6443 = vadd.f32 0.0, %v6442
        %v6444 = vpop.f32.mrb[0].mxu0
        %v6445 = vadd.f32 0.0, %v6444
        %v6446 = vpop.f32.mrb[0].mxu0
        %v6447 = vadd.f32 0.0, %v6446
        %6448 = vmatprep.mubr.bf16.mxu0 0
        %6449 = vmatmul.mubr.bf16.gmra.mrb[0].mxu0 %v6391
        %v6450 = vpop.f32.mrb[0].mxu0
        %v6451 = vadd.f32 0.0, %v6450
        %v6452 = vpop.f32.mrb[0].mxu0
        %v6453 = vadd.f32 0.0, %v6452
        %v6454 = vpop.f32.mrb[0].mxu0
        %v6455 = vadd.f32 0.0, %v6454
        %v6456 = vpop.f32.mrb[0].mxu0
        %v6457 = vadd.f32 0.0, %v6456
        %6458 = vmatprep.mubr.bf16.mxu0 0
        %6459 = vmatmul.mubr.bf16.gmra.mrb[0].mxu0 %v6392
        %v6460 = vpop.f32.mrb[0].mxu0
        %v6461 = vadd.f32 0.0, %v6460
        %v6462 = vpop.f32.mrb[0].mxu0
        %v6463 = vadd.f32 0.0, %v6462
        %v6464 = vpop.f32.mrb[0].mxu0
        %v6465 = vadd.f32 0.0, %v6464
        %v6466 = vpop.f32.mrb[0].mxu0
        %v6467 = vadd.f32 0.0, %v6466
        %6468 = vmatprep.mubr.bf16.mxu0 0
        %6469 = vmatmul.mubr.bf16.gmra.mrb[0].mxu0 %v6393
        %v6470 = vpop.f32.mrb[0].mxu0
        %v6471 = vadd.f32 0.0, %v6470
        %v6472 = vpop.f32.mrb[0].mxu0
        %v6473 = vadd.f32 0.0, %v6472
        %v6474 = vpop.f32.mrb[0].mxu0
        %v6475 = vadd.f32 0.0, %v6474
        %v6476 = vpop.f32.mrb[0].mxu0
        %v6477 = vadd.f32 0.0, %v6476
        %6478 = vmatprep.mubr.bf16.mxu0 0
        %6479 = vmatmul.mubr.bf16.gmra.mrb[0].mxu0 %v6394
        %v6480 = vpop.f32.mrb[0].mxu0
        %v6481 = vadd.f32 0.0, %v6480
        %v6482 = vpop.f32.mrb[0].mxu0
        %v6483 = vadd.f32 0.0, %v6482
        %v6484 = vpop.f32.mrb[0].mxu0
        %v6485 = vadd.f32 0.0, %v6484
        %v6486 = vpop.f32.mrb[0].mxu0
        %v6487 = vadd.f32 0.0, %v6486
        %6488 = vmatprep.mubr.bf16.mxu0 0
        %6489 = vmatmul.mubr.bf16.gmra.mrb[0].mxu0 %v6395
        %v6490 = vpop.f32.mrb[0].mxu0
        %v6491 = vadd.f32 0.0, %v6490
        %v6492 = vpop.f32.mrb[0].mxu0
        %v6493 = vadd.f32 0.0, %v6492
        %v6494 = vpop.f32.mrb[0].mxu0
        %v6495 = vadd.f32 0.0, %v6494
        %v6496 = vpop.f32.mrb[0].mxu0
        %v6497 = vadd.f32 0.0, %v6496
        %6498 = vmatprep.mubr.bf16.mxu0 0
        %6499 = vmatmul.mubr.bf16.gmra.mrb[0].mxu0 %v6396
        %v6500 = vpop.f32.mrb[0].mxu0
        %v6501 = vadd.f32 0.0, %v6500
        %v6502 = vpop.f32.mrb[0].mxu0
        %v6503 = vadd.f32 0.0, %v6502
        %v6504 = vpop.f32.mrb[0].mxu0
        %v6505 = vadd.f32 0.0, %v6504
        %v6506 = vpop.f32.mrb[0].mxu0
        %v6507 = vadd.f32 0.0, %v6506
        %6508 = vmatprep.mubr.bf16.mxu0 0
        %6509 = vmatmul.mubr.bf16.gmra.mrb[0].mxu0 %v6397
        %v6510 = vpop.f32.mrb[0].mxu0
        %v6511 = vadd.f32 0.0, %v6510
        %v6512 = vpop.f32.mrb[0].mxu0
        %v6513 = vadd.f32 0.0, %v6512
        %v6514 = vpop.f32.mrb[0].mxu0
        %v6515 = vadd.f32 0.0, %v6514
        %v6516 = vpop.f32.mrb[0].mxu0
        %v6517 = vadd.f32 0.0, %v6516
        %6518 = vdwg.mxu0
        %v6519 = vadd.f32 %v921, %v6441
        %v6520 = vadd.f32 %v923, %v6443
        %v6521 = vadd.f32 %v925, %v6445
        %v6522 = vadd.f32 %v927, %v6447
        %v6523 = vadd.f32 %v931, %v6451
        %v6524 = vadd.f32 %v933, %v6453
        %v6525 = vadd.f32 %v935, %v6455
        %v6526 = vadd.f32 %v937, %v6457
        %v6527 = vadd.f32 %v941, %v6461
        %v6528 = vadd.f32 %v943, %v6463
        %v6529 = vadd.f32 %v945, %v6465
        %v6530 = vadd.f32 %v947, %v6467
        %v6531 = vadd.f32 %v951, %v6471
        %v6532 = vadd.f32 %v953, %v6473
        %v6533 = vadd.f32 %v955, %v6475
        %v6534 = vadd.f32 %v957, %v6477
        %v6535 = vadd.f32 %v961, %v6481
        %v6536 = vadd.f32 %v963, %v6483
        %v6537 = vadd.f32 %v965, %v6485
        %v6538 = vadd.f32 %v967, %v6487
        %v6539 = vadd.f32 %v971, %v6491
        %v6540 = vadd.f32 %v973, %v6493
        %v6541 = vadd.f32 %v975, %v6495
        %v6542 = vadd.f32 %v977, %v6497
        %v6543 = vadd.f32 %v981, %v6501
        %v6544 = vadd.f32 %v983, %v6503
        %v6545 = vadd.f32 %v985, %v6505
        %v6546 = vadd.f32 %v987, %v6507
        %v6547 = vadd.f32 %v991, %v6511
        %v6548 = vadd.f32 %v993, %v6513
        %v6549 = vadd.f32 %v995, %v6515
        %v6550 = vadd.f32 %v997, %v6517
        %v6551 = vld [vmem:[%s11] sm:$0xff]
        %v6552 = vld [vmem:[%s11 + $0x8] sm:$0xff]
        %v6553 = vld [vmem:[%s11 + $0x10] sm:$0xff]
        %v6554 = vld [vmem:[%s11 + $0x18] sm:$0xff]
        %v6555 = vld [vmem:[%s11 + $0x20] sm:$0xff]
        %v6556 = vld [vmem:[%s11 + $0x28] sm:$0xff]
        %v6557 = vld [vmem:[%s11 + $0x30] sm:$0xff]
        %v6558 = vld [vmem:[%s11 + $0x38] sm:$0xff]
        %v6559 = vld [vmem:[%s11 + $0x40] sm:$0xff]
        %v6560 = vld [vmem:[%s11 + $0x48] sm:$0xff]
        %v6561 = vld [vmem:[%s11 + $0x50] sm:$0xff]
        %v6562 = vld [vmem:[%s11 + $0x58] sm:$0xff]
        %v6563 = vld [vmem:[%s11 + $0x60] sm:$0xff]
        %v6564 = vld [vmem:[%s11 + $0x68] sm:$0xff]
        %v6565 = vld [vmem:[%s11 + $0x70] sm:$0xff]
        %v6566 = vld [vmem:[%s11 + $0x78] sm:$0xff]
        %6568 = vset.pattern.permute.xlu0 0
        %6569 = vperm.xlu0 %6568, %v6551
        %v6570 = vpop.permute.xlu0 %6569
        %6573 = vset.pattern.permute.xlu0 0
        %6574 = vperm.xlu0 %6573, %v6552
        %v6575 = vpop.permute.xlu0 %6574
        %6578 = vset.pattern.permute.xlu0 0
        %6579 = vperm.xlu0 %6578, %v6553
        %v6580 = vpop.permute.xlu0 %6579
        %6583 = vset.pattern.permute.xlu0 0
        %6584 = vperm.xlu0 %6583, %v6554
        %v6585 = vpop.permute.xlu0 %6584
        %6588 = vset.pattern.permute.xlu0 0
        %6589 = vperm.xlu0 %6588, %v6555
        %v6590 = vpop.permute.xlu0 %6589
        %6593 = vset.pattern.permute.xlu0 0
        %6594 = vperm.xlu0 %6593, %v6556
        %v6595 = vpop.permute.xlu0 %6594
        %6598 = vset.pattern.permute.xlu0 0
        %6599 = vperm.xlu0 %6598, %v6557
        %v6600 = vpop.permute.xlu0 %6599
        %6603 = vset.pattern.permute.xlu0 0
        %6604 = vperm.xlu0 %6603, %v6558
        %v6605 = vpop.permute.xlu0 %6604
        %6608 = vset.pattern.permute.xlu0 0
        %6609 = vperm.xlu0 %6608, %v6559
        %v6610 = vpop.permute.xlu0 %6609
        %6613 = vset.pattern.permute.xlu0 0
        %6614 = vperm.xlu0 %6613, %v6560
        %v6615 = vpop.permute.xlu0 %6614
        %6618 = vset.pattern.permute.xlu0 0
        %6619 = vperm.xlu0 %6618, %v6561
        %v6620 = vpop.permute.xlu0 %6619
        %6623 = vset.pattern.permute.xlu0 0
        %6624 = vperm.xlu0 %6623, %v6562
        %v6625 = vpop.permute.xlu0 %6624
        %6628 = vset.pattern.permute.xlu0 0
        %6629 = vperm.xlu0 %6628, %v6563
        %v6630 = vpop.permute.xlu0 %6629
        %6633 = vset.pattern.permute.xlu0 0
        %6634 = vperm.xlu0 %6633, %v6564
        %v6635 = vpop.permute.xlu0 %6634
        %6638 = vset.pattern.permute.xlu0 0
        %6639 = vperm.xlu0 %6638, %v6565
        %v6640 = vpop.permute.xlu0 %6639
        %6643 = vset.pattern.permute.xlu0 0
        %6644 = vperm.xlu0 %6643, %v6566
        %v6645 = vpop.permute.xlu0 %6644
        %v6647 = vadd.f32 %v6519, %v6570
        %v6648 = vadd.f32 %v6520, %v6570
        %v6649 = vadd.f32 %v6521, %v6575
        %v6650 = vadd.f32 %v6522, %v6575
        %v6651 = vadd.f32 %v6523, %v6580
        %v6652 = vadd.f32 %v6524, %v6580
        %v6653 = vadd.f32 %v6525, %v6585
        %v6654 = vadd.f32 %v6526, %v6585
        %v6655 = vadd.f32 %v6527, %v6590
        %v6656 = vadd.f32 %v6528, %v6590
        %v6657 = vadd.f32 %v6529, %v6595
        %v6658 = vadd.f32 %v6530, %v6595
        %v6659 = vadd.f32 %v6531, %v6600
        %v6660 = vadd.f32 %v6532, %v6600
        %v6661 = vadd.f32 %v6533, %v6605
        %v6662 = vadd.f32 %v6534, %v6605
        %v6663 = vadd.f32 %v6535, %v6610
        %v6664 = vadd.f32 %v6536, %v6610
        %v6665 = vadd.f32 %v6537, %v6615
        %v6666 = vadd.f32 %v6538, %v6615
        %v6667 = vadd.f32 %v6539, %v6620
        %v6668 = vadd.f32 %v6540, %v6620
        %v6669 = vadd.f32 %v6541, %v6625
        %v6670 = vadd.f32 %v6542, %v6625
        %v6671 = vadd.f32 %v6543, %v6630
        %v6672 = vadd.f32 %v6544, %v6630
        %v6673 = vadd.f32 %v6545, %v6635
        %v6674 = vadd.f32 %v6546, %v6635
        %v6675 = vadd.f32 %v6547, %v6640
        %v6676 = vadd.f32 %v6548, %v6640
        %v6677 = vadd.f32 %v6549, %v6645
        %v6678 = vadd.f32 %v6550, %v6645
        %v6679 = vld [vmem:[%s12] sm:$0xf]
        %v6680 = vld [vmem:[%s12 + $0x4] sm:$0xf]
        %v6681 = vld [vmem:[%s12 + $0x8] sm:$0xf]
        %v6682 = vld [vmem:[%s12 + $0xc] sm:$0xf]
        %v6683 = vld [vmem:[%s12 + $0x10] sm:$0xf]
        %v6684 = vld [vmem:[%s12 + $0x14] sm:$0xf]
        %v6685 = vld [vmem:[%s12 + $0x18] sm:$0xf]
        %v6686 = vld [vmem:[%s12 + $0x1c] sm:$0xf]
        %v6687 = vld [vmem:[%s12 + $0x20] sm:$0xf]
        %v6688 = vld [vmem:[%s12 + $0x24] sm:$0xf]
        %v6689 = vld [vmem:[%s12 + $0x28] sm:$0xf]
        %v6690 = vld [vmem:[%s12 + $0x2c] sm:$0xf]
        %v6691 = vld [vmem:[%s12 + $0x30] sm:$0xf]
        %v6692 = vld [vmem:[%s12 + $0x34] sm:$0xf]
        %v6693 = vld [vmem:[%s12 + $0x38] sm:$0xf]
        %v6694 = vld [vmem:[%s12 + $0x3c] sm:$0xf]
        %v6695 = vpack.c.bf16 %v6649, %v6647
        %v6696 = vpack.c.bf16 %v6650, %v6648
        %v6697 = vpack.c.bf16 %v6653, %v6651
        %v6698 = vpack.c.bf16 %v6654, %v6652
        %v6699 = vpack.c.bf16 %v6657, %v6655
        %v6700 = vpack.c.bf16 %v6658, %v6656
        %v6701 = vpack.c.bf16 %v6661, %v6659
        %v6702 = vpack.c.bf16 %v6662, %v6660
        %v6703 = vpack.c.bf16 %v6665, %v6663
        %v6704 = vpack.c.bf16 %v6666, %v6664
        %v6705 = vpack.c.bf16 %v6669, %v6667
        %v6706 = vpack.c.bf16 %v6670, %v6668
        %v6707 = vpack.c.bf16 %v6673, %v6671
        %v6708 = vpack.c.bf16 %v6674, %v6672
        %v6709 = vpack.c.bf16 %v6677, %v6675
        %v6710 = vpack.c.bf16 %v6678, %v6676
        %v6711 = vld [vmem:[%s13] sm:$0xff]
        %v6712 = vld [vmem:[%s13 + $0x8] sm:$0xff]
        %v6713 = vld [vmem:[%s13 + $0x10] sm:$0xff]
        %v6714 = vld [vmem:[%s13 + $0x18] sm:$0xff]
        %v6715 = vld [vmem:[%s13 + $0x20] sm:$0xff]
        %v6716 = vld [vmem:[%s13 + $0x28] sm:$0xff]
        %v6717 = vld [vmem:[%s13 + $0x30] sm:$0xff]
        %v6718 = vld [vmem:[%s13 + $0x38] sm:$0xff]
        %v6719 = vld [vmem:[%s13 + $0x40] sm:$0xff]
        %v6720 = vld [vmem:[%s13 + $0x48] sm:$0xff]
        %v6721 = vld [vmem:[%s13 + $0x50] sm:$0xff]
        %v6722 = vld [vmem:[%s13 + $0x58] sm:$0xff]
        %v6723 = vld [vmem:[%s13 + $0x60] sm:$0xff]
        %v6724 = vld [vmem:[%s13 + $0x68] sm:$0xff]
        %v6725 = vld [vmem:[%s13 + $0x70] sm:$0xff]
        %v6726 = vld [vmem:[%s13 + $0x78] sm:$0xff]
        %6728 = vset.pattern.permute.xlu0 0
        %6729 = vperm.xlu0 %6728, %v6711
        %v6730 = vpop.permute.xlu0 %6729
        %6733 = vset.pattern.permute.xlu0 0
        %6734 = vperm.xlu0 %6733, %v6712
        %v6735 = vpop.permute.xlu0 %6734
        %6738 = vset.pattern.permute.xlu0 0
        %6739 = vperm.xlu0 %6738, %v6713
        %v6740 = vpop.permute.xlu0 %6739
        %6743 = vset.pattern.permute.xlu0 0
        %6744 = vperm.xlu0 %6743, %v6714
        %v6745 = vpop.permute.xlu0 %6744
        %6748 = vset.pattern.permute.xlu0 0
        %6749 = vperm.xlu0 %6748, %v6715
        %v6750 = vpop.permute.xlu0 %6749
        %6753 = vset.pattern.permute.xlu0 0
        %6754 = vperm.xlu0 %6753, %v6716
        %v6755 = vpop.permute.xlu0 %6754
        %6758 = vset.pattern.permute.xlu0 0
        %6759 = vperm.xlu0 %6758, %v6717
        %v6760 = vpop.permute.xlu0 %6759
        %6763 = vset.pattern.permute.xlu0 0
        %6764 = vperm.xlu0 %6763, %v6718
        %v6765 = vpop.permute.xlu0 %6764
        %6768 = vset.pattern.permute.xlu0 0
        %6769 = vperm.xlu0 %6768, %v6719
        %v6770 = vpop.permute.xlu0 %6769
        %6773 = vset.pattern.permute.xlu0 0
        %6774 = vperm.xlu0 %6773, %v6720
        %v6775 = vpop.permute.xlu0 %6774
        %6778 = vset.pattern.permute.xlu0 0
        %6779 = vperm.xlu0 %6778, %v6721
        %v6780 = vpop.permute.xlu0 %6779
        %6783 = vset.pattern.permute.xlu0 0
        %6784 = vperm.xlu0 %6783, %v6722
        %v6785 = vpop.permute.xlu0 %6784
        %6788 = vset.pattern.permute.xlu0 0
        %6789 = vperm.xlu0 %6788, %v6723
        %v6790 = vpop.permute.xlu0 %6789
        %6793 = vset.pattern.permute.xlu0 0
        %6794 = vperm.xlu0 %6793, %v6724
        %v6795 = vpop.permute.xlu0 %6794
        %6798 = vset.pattern.permute.xlu0 0
        %6799 = vperm.xlu0 %6798, %v6725
        %v6800 = vpop.permute.xlu0 %6799
        %6803 = vset.pattern.permute.xlu0 0
        %6804 = vperm.xlu0 %6803, %v6726
        %v6805 = vpop.permute.xlu0 %6804
        %v6823 = vunpack.c.l.b16 %v6679
        %v6824 = vunpack.c.l.b16 %v6680
        %v6825 = vunpack.c.l.b16 %v6681
        %v6826 = vunpack.c.l.b16 %v6682
        %v6827 = vunpack.c.l.b16 %v6683
        %v6828 = vunpack.c.l.b16 %v6684
        %v6829 = vunpack.c.l.b16 %v6685
        %v6830 = vunpack.c.l.b16 %v6686
        %v6831 = vunpack.c.l.b16 %v6687
        %v6832 = vunpack.c.l.b16 %v6688
        %v6833 = vunpack.c.l.b16 %v6689
        %v6834 = vunpack.c.l.b16 %v6690
        %v6835 = vunpack.c.l.b16 %v6691
        %v6836 = vunpack.c.l.b16 %v6692
        %v6837 = vunpack.c.l.b16 %v6693
        %v6838 = vunpack.c.l.b16 %v6694
        %v6839 = vpack.c.b16 %v6824, %v6823
        %v6840 = vpack.c.b16 %v6826, %v6825
        %v6841 = vpack.c.b16 %v6828, %v6827
        %v6842 = vpack.c.b16 %v6830, %v6829
        %v6843 = vpack.c.b16 %v6832, %v6831
        %v6844 = vpack.c.b16 %v6834, %v6833
        %v6845 = vpack.c.b16 %v6836, %v6835
        %v6846 = vpack.c.b16 %v6838, %v6837
        %6855 = vmatprep.subr.bf16.mxu0 %v6696
        %6856 = vmatpush1.bf16.msra.mxu0 %v6695
        %6857 = vmatprep.subr.bf16.mxu0 %v6698
        %6858 = vmatpush1.bf16.msra.mxu0 %v6697
        %6859 = vmatprep.subr.bf16.mxu0 %v6700
        %6860 = vmatpush1.bf16.msra.mxu0 %v6699
        %6861 = vmatprep.subr.bf16.mxu0 %v6702
        %6862 = vmatpush1.bf16.msra.mxu0 %v6701
        %6863 = vmatprep.subr.bf16.mxu0 %v6704
        %6864 = vmatpush1.bf16.msra.mxu0 %v6703
        %6865 = vmatprep.subr.bf16.mxu0 %v6706
        %6866 = vmatpush1.bf16.msra.mxu0 %v6705
        %6867 = vmatprep.subr.bf16.mxu0 %v6708
        %6868 = vmatpush1.bf16.msra.mxu0 %v6707
        %6869 = vmatprep.subr.bf16.mxu0 %v6710
        %6870 = vmatpush1.bf16.msra.mxu0 %v6709
        %6871 = vmatprep.subr.bf16.mxu0 0
        %6872 = vmatpush1.bf16.msra.mxu0 0
        %6873 = vmatprep.subr.bf16.mxu0 0
        %6874 = vmatpush1.bf16.msra.mxu0 0
        %6875 = vmatprep.subr.bf16.mxu0 0
        %6876 = vmatpush1.bf16.msra.mxu0 0
        %6877 = vmatprep.subr.bf16.mxu0 0
        %6878 = vmatpush1.bf16.msra.mxu0 0
        %6879 = vmatprep.subr.bf16.mxu0 0
        %6880 = vmatpush1.bf16.msra.mxu0 0
        %6881 = vmatprep.subr.bf16.mxu0 0
        %6882 = vmatpush1.bf16.msra.mxu0 0
        %6883 = vmatprep.subr.bf16.mxu0 0
        %6884 = vmatpush1.bf16.msra.mxu0 0
        %6885 = vmatprep.subr.bf16.mxu0 0
        %6886 = vmatpush1.bf16.msra.mxu0 0
        %6887 = vmatprep.mubr.bf16.mxu0 0
        %6888 = vmatmul.mubr.bf16.gmra.mrb[0].mxu0 %v6839
        %v6889 = vpop.f32.mrb[0].mxu0
        %v6890 = vadd.f32 %v6730, %v6889
        %v6891 = vpop.f32.mrb[0].mxu0
        %v6892 = vadd.f32 %v6730, %v6891
        %v6893 = vpop.f32.mrb[0].mxu0
        %v6894 = vadd.f32 %v6735, %v6893
        %v6895 = vpop.f32.mrb[0].mxu0
        %v6896 = vadd.f32 %v6735, %v6895
        %6897 = vmatprep.mubr.bf16.mxu0 0
        %6898 = vmatmul.mubr.bf16.gmra.mrb[0].mxu0 %v6840
        %v6899 = vpop.f32.mrb[0].mxu0
        %v6900 = vadd.f32 %v6740, %v6899
        %v6901 = vpop.f32.mrb[0].mxu0
        %v6902 = vadd.f32 %v6740, %v6901
        %v6903 = vpop.f32.mrb[0].mxu0
        %v6904 = vadd.f32 %v6745, %v6903
        %v6905 = vpop.f32.mrb[0].mxu0
        %v6906 = vadd.f32 %v6745, %v6905
        %6907 = vmatprep.mubr.bf16.mxu0 0
        %6908 = vmatmul.mubr.bf16.gmra.mrb[0].mxu0 %v6841
        %v6909 = vpop.f32.mrb[0].mxu0
        %v6910 = vadd.f32 %v6750, %v6909
        %v6911 = vpop.f32.mrb[0].mxu0
        %v6912 = vadd.f32 %v6750, %v6911
        %v6913 = vpop.f32.mrb[0].mxu0
        %v6914 = vadd.f32 %v6755, %v6913
        %v6915 = vpop.f32.mrb[0].mxu0
        %v6916 = vadd.f32 %v6755, %v6915
        %6917 = vmatprep.mubr.bf16.mxu0 0
        %6918 = vmatmul.mubr.bf16.gmra.mrb[0].mxu0 %v6842
        %v6919 = vpop.f32.mrb[0].mxu0
        %v6920 = vadd.f32 %v6760, %v6919
        %v6921 = vpop.f32.mrb[0].mxu0
        %v6922 = vadd.f32 %v6760, %v6921
        %v6923 = vpop.f32.mrb[0].mxu0
        %v6924 = vadd.f32 %v6765, %v6923
        %v6925 = vpop.f32.mrb[0].mxu0
        %v6926 = vadd.f32 %v6765, %v6925
        %6927 = vmatprep.mubr.bf16.mxu0 0
        %6928 = vmatmul.mubr.bf16.gmra.mrb[0].mxu0 %v6843
        %v6929 = vpop.f32.mrb[0].mxu0
        %v6930 = vadd.f32 %v6770, %v6929
        %v6931 = vpop.f32.mrb[0].mxu0
        %v6932 = vadd.f32 %v6770, %v6931
        %v6933 = vpop.f32.mrb[0].mxu0
        %v6934 = vadd.f32 %v6775, %v6933
        %v6935 = vpop.f32.mrb[0].mxu0
        %v6936 = vadd.f32 %v6775, %v6935
        %6937 = vmatprep.mubr.bf16.mxu0 0
        %6938 = vmatmul.mubr.bf16.gmra.mrb[0].mxu0 %v6844
        %v6939 = vpop.f32.mrb[0].mxu0
        %v6940 = vadd.f32 %v6780, %v6939
        %v6941 = vpop.f32.mrb[0].mxu0
        %v6942 = vadd.f32 %v6780, %v6941
        %v6943 = vpop.f32.mrb[0].mxu0
        %v6944 = vadd.f32 %v6785, %v6943
        %v6945 = vpop.f32.mrb[0].mxu0
        %v6946 = vadd.f32 %v6785, %v6945
        %6947 = vmatprep.mubr.bf16.mxu0 0
        %6948 = vmatmul.mubr.bf16.gmra.mrb[0].mxu0 %v6845
        %v6949 = vpop.f32.mrb[0].mxu0
        %v6950 = vadd.f32 %v6790, %v6949
        %v6951 = vpop.f32.mrb[0].mxu0
        %v6952 = vadd.f32 %v6790, %v6951
        %v6953 = vpop.f32.mrb[0].mxu0
        %v6954 = vadd.f32 %v6795, %v6953
        %v6955 = vpop.f32.mrb[0].mxu0
        %v6956 = vadd.f32 %v6795, %v6955
        %6957 = vmatprep.mubr.bf16.mxu0 0
        %6958 = vmatmul.mubr.bf16.gmra.mrb[0].mxu0 %v6846
        %v6959 = vpop.f32.mrb[0].mxu0
        %v6960 = vadd.f32 %v6800, %v6959
        %v6961 = vpop.f32.mrb[0].mxu0
        %v6962 = vadd.f32 %v6800, %v6961
        %v6963 = vpop.f32.mrb[0].mxu0
        %v6964 = vadd.f32 %v6805, %v6963
        %v6965 = vpop.f32.mrb[0].mxu0
        %v6966 = vadd.f32 %v6805, %v6965
        %6967 = vdwg.mxu0
        %6968 = vxpose.xlu0.b32.start [1/16] %v6890, 128
        %6969 = vxpose.xlu0.b32.cont [2/16] %v6894, 128
        %6970 = vxpose.xlu0.b32.cont [3/16] %v6900, 128
        %6971 = vxpose.xlu0.b32.cont [4/16] %v6904, 128
        %6972 = vxpose.xlu0.b32.cont [5/16] %v6910, 128
        %6973 = vxpose.xlu0.b32.cont [6/16] %v6914, 128
        %6974 = vxpose.xlu0.b32.cont [7/16] %v6920, 128
        %6975 = vxpose.xlu0.b32.cont [8/16] %v6924, 128
        %6976 = vxpose.xlu0.b32.cont [9/16] %v6930, 128
        %6977 = vxpose.xlu0.b32.cont [10/16] %v6934, 128
        %6978 = vxpose.xlu0.b32.cont [11/16] %v6940, 128
        %6979 = vxpose.xlu0.b32.cont [12/16] %v6944, 128
        %6980 = vxpose.xlu0.b32.cont [13/16] %v6950, 128
        %6981 = vxpose.xlu0.b32.cont [14/16] %v6954, 128
        %6982 = vxpose.xlu0.b32.cont [15/16] %v6960, 128
        %6983 = vxpose.xlu0.b32.end [16/16] %v6964, 128
        %v6984 = vpop.trf.xlu0
        %v6985 = vpop.trf.xlu0
        %v6986 = vpop.trf.xlu0
        %v6987 = vpop.trf.xlu0
        %v6988 = vpop.trf.xlu0
        %v6989 = vpop.trf.xlu0
        %v6990 = vpop.trf.xlu0
        %v6991 = vpop.trf.xlu0
        %v6992 = vpop.trf.xlu0
        %v6993 = vpop.trf.xlu0
        %v6994 = vpop.trf.xlu0
        %v6995 = vpop.trf.xlu0
        %v6996 = vpop.trf.xlu0
        %v6997 = vpop.trf.xlu0
        %v6998 = vpop.trf.xlu0
        %v6999 = vpop.trf.xlu0
        %7000 = vxpose.xlu0.b32.start [1/16] %v6892, 128
        %7001 = vxpose.xlu0.b32.cont [2/16] %v6896, 128
        %7002 = vxpose.xlu0.b32.cont [3/16] %v6902, 128
        %7003 = vxpose.xlu0.b32.cont [4/16] %v6906, 128
        %7004 = vxpose.xlu0.b32.cont [5/16] %v6912, 128
        %7005 = vxpose.xlu0.b32.cont [6/16] %v6916, 128
        %7006 = vxpose.xlu0.b32.cont [7/16] %v6922, 128
        %7007 = vxpose.xlu0.b32.cont [8/16] %v6926, 128
        %7008 = vxpose.xlu0.b32.cont [9/16] %v6932, 128
        %7009 = vxpose.xlu0.b32.cont [10/16] %v6936, 128
        %7010 = vxpose.xlu0.b32.cont [11/16] %v6942, 128
        %7011 = vxpose.xlu0.b32.cont [12/16] %v6946, 128
        %7012 = vxpose.xlu0.b32.cont [13/16] %v6952, 128
        %7013 = vxpose.xlu0.b32.cont [14/16] %v6956, 128
        %7014 = vxpose.xlu0.b32.cont [15/16] %v6962, 128
        %7015 = vxpose.xlu0.b32.end [16/16] %v6966, 128
        %v7016 = vpop.trf.xlu0
        %v7017 = vpop.trf.xlu0
        %v7018 = vpop.trf.xlu0
        %v7019 = vpop.trf.xlu0
        %v7020 = vpop.trf.xlu0
        %v7021 = vpop.trf.xlu0
        %v7022 = vpop.trf.xlu0
        %v7023 = vpop.trf.xlu0
        %v7024 = vpop.trf.xlu0
        %v7025 = vpop.trf.xlu0
        %v7026 = vpop.trf.xlu0
        %v7027 = vpop.trf.xlu0
        %v7028 = vpop.trf.xlu0
        %v7029 = vpop.trf.xlu0
        %v7030 = vpop.trf.xlu0
        %v7031 = vpop.trf.xlu0
        %v7032 = vld [vmem:[%s642] sm:$0xff]
        %v7033 = vld [vmem:[%s14] sm:$0xff]
        %v7034 = vld [vmem:[%s14 + $0x8] sm:$0xff]
        %v7035 = vld [vmem:[%s14 + $0x10] sm:$0xff]
        %v7036 = vld [vmem:[%s14 + $0x18] sm:$0xff]
        %v7037 = vld [vmem:[%s14 + $0x20] sm:$0xff]
        %v7038 = vld [vmem:[%s14 + $0x28] sm:$0xff]
        %v7039 = vld [vmem:[%s14 + $0x30] sm:$0xff]
        %v7040 = vld [vmem:[%s14 + $0x38] sm:$0xff]
        %v7041 = vld [vmem:[%s14 + $0x40] sm:$0xff]
        %v7042 = vld [vmem:[%s14 + $0x48] sm:$0xff]
        %v7043 = vld [vmem:[%s14 + $0x50] sm:$0xff]
        %v7044 = vld [vmem:[%s14 + $0x58] sm:$0xff]
        %v7045 = vld [vmem:[%s14 + $0x60] sm:$0xff]
        %v7046 = vld [vmem:[%s14 + $0x68] sm:$0xff]
        %v7047 = vld [vmem:[%s14 + $0x70] sm:$0xff]
        %v7048 = vld [vmem:[%s14 + $0x78] sm:$0xff]
        %v7049 = vpack.c.bf16 %v7032, %v7032
        %v7050 = vld [vmem:[%s15] sm:$0x3]
        %v7052 = vlaneseq
        %v7053 = vshrl.u32 %v7052, 7
        %v7054 = vsub.s32 0, %v7053
        %v7055 = vrot.slane %v7050, %v7054
        %v7056 = vlaneseq
        %v7057 = vshrl.u32 %v7056, 7
        %v7058 = vsub.s32 1, %v7057
        %v7059 = vrot.slane %v7050, %v7058
        %v7078 = vunpack.c.l.b16 %v7033
        %v7079 = vunpack.c.h.b16 %v7033
        %v7080 = vunpack.c.l.b16 %v7034
        %v7081 = vunpack.c.h.b16 %v7034
        %v7082 = vunpack.c.l.b16 %v7035
        %v7083 = vunpack.c.h.b16 %v7035
        %v7084 = vunpack.c.l.b16 %v7036
        %v7085 = vunpack.c.h.b16 %v7036
        %v7086 = vunpack.c.l.b16 %v7037
        %v7087 = vunpack.c.h.b16 %v7037
        %v7088 = vunpack.c.l.b16 %v7038
        %v7089 = vunpack.c.h.b16 %v7038
        %v7090 = vunpack.c.l.b16 %v7039
        %v7091 = vunpack.c.h.b16 %v7039
        %v7092 = vunpack.c.l.b16 %v7040
        %v7093 = vunpack.c.h.b16 %v7040
        %v7094 = vunpack.c.l.b16 %v7041
        %v7095 = vunpack.c.h.b16 %v7041
        %v7096 = vunpack.c.l.b16 %v7042
        %v7097 = vunpack.c.h.b16 %v7042
        %v7098 = vunpack.c.l.b16 %v7043
        %v7099 = vunpack.c.h.b16 %v7043
        %v7100 = vunpack.c.l.b16 %v7044
        %v7101 = vunpack.c.h.b16 %v7044
        %v7102 = vunpack.c.l.b16 %v7045
        %v7103 = vunpack.c.h.b16 %v7045
        %v7104 = vunpack.c.l.b16 %v7046
        %v7105 = vunpack.c.h.b16 %v7046
        %v7106 = vunpack.c.l.b16 %v7047
        %v7107 = vunpack.c.h.b16 %v7047
        %v7108 = vunpack.c.l.b16 %v7048
        %v7109 = vunpack.c.h.b16 %v7048
        %v7110 = vpack.c.b16 %v7080, %v7078
        %v7111 = vpack.c.b16 %v7081, %v7079
        %v7112 = vpack.c.b16 %v7084, %v7082
        %v7113 = vpack.c.b16 %v7085, %v7083
        %v7114 = vpack.c.b16 %v7088, %v7086
        %v7115 = vpack.c.b16 %v7089, %v7087
        %v7116 = vpack.c.b16 %v7092, %v7090
        %v7117 = vpack.c.b16 %v7093, %v7091
        %v7118 = vpack.c.b16 %v7096, %v7094
        %v7119 = vpack.c.b16 %v7097, %v7095
        %v7120 = vpack.c.b16 %v7100, %v7098
        %v7121 = vpack.c.b16 %v7101, %v7099
        %v7122 = vpack.c.b16 %v7104, %v7102
        %v7123 = vpack.c.b16 %v7105, %v7103
        %v7124 = vpack.c.b16 %v7108, %v7106
        %v7125 = vpack.c.b16 %v7109, %v7107
        %7142 = vmatprep.subr.bf16.mxu0 %v7111
        %7143 = vmatpush1.bf16.msra.mxu0 %v7110
        %7144 = vmatprep.subr.bf16.mxu0 %v7113
        %7145 = vmatpush1.bf16.msra.mxu0 %v7112
        %7146 = vmatprep.subr.bf16.mxu0 %v7115
        %7147 = vmatpush1.bf16.msra.mxu0 %v7114
        %7148 = vmatprep.subr.bf16.mxu0 %v7117
        %7149 = vmatpush1.bf16.msra.mxu0 %v7116
        %7150 = vmatprep.subr.bf16.mxu0 %v7119
        %7151 = vmatpush1.bf16.msra.mxu0 %v7118
        %7152 = vmatprep.subr.bf16.mxu0 %v7121
        %7153 = vmatpush1.bf16.msra.mxu0 %v7120
        %7154 = vmatprep.subr.bf16.mxu0 %v7123
        %7155 = vmatpush1.bf16.msra.mxu0 %v7122
        %7156 = vmatprep.subr.bf16.mxu0 %v7125
        %7157 = vmatpush1.bf16.msra.mxu0 %v7124
        %7158 = vmatprep.subr.bf16.mxu0 0
        %7159 = vmatpush1.bf16.msra.mxu0 0
        %7160 = vmatprep.subr.bf16.mxu0 0
        %7161 = vmatpush1.bf16.msra.mxu0 0
        %7162 = vmatprep.subr.bf16.mxu0 0
        %7163 = vmatpush1.bf16.msra.mxu0 0
        %7164 = vmatprep.subr.bf16.mxu0 0
        %7165 = vmatpush1.bf16.msra.mxu0 0
        %7166 = vmatprep.subr.bf16.mxu0 0
        %7167 = vmatpush1.bf16.msra.mxu0 0
        %7168 = vmatprep.subr.bf16.mxu0 0
        %7169 = vmatpush1.bf16.msra.mxu0 0
        %7170 = vmatprep.subr.bf16.mxu0 0
        %7171 = vmatpush1.bf16.msra.mxu0 0
        %7172 = vmatprep.subr.bf16.mxu0 0
        %7173 = vmatpush1.bf16.msra.mxu0 0
        %7174 = vmatprep.mubr.bf16.mxu0 0
        %7175 = vmatmul.mubr.bf16.gmra.mrb[0].mxu0 %v7049
        %v7176 = vpop.f32.mrb[0].mxu0
        %v7177 = vadd.f32 %v7055, %v7176
        %v7178 = vpop.f32.mrb[0].mxu0
        %v7179 = vadd.f32 %v7059, %v7178
        %v7180 = vpop.f32.mrb[0].mxu0
        %v7181 = vpop.f32.mrb[0].mxu0
        %7182 = vdwg.mxu0
        %v7183 = vpack.c.bf16 %v6985, %v6984
        %v7184 = vpack.c.bf16 %v6987, %v6986
        %v7185 = vpack.c.bf16 %v6989, %v6988
        %v7186 = vpack.c.bf16 %v6991, %v6990
        %v7187 = vpack.c.bf16 %v6993, %v6992
        %v7188 = vpack.c.bf16 %v6995, %v6994
        %v7189 = vpack.c.bf16 %v6997, %v6996
        %v7190 = vpack.c.bf16 %v6999, %v6998
        %v7191 = vpack.c.bf16 %v7017, %v7016
        %v7192 = vpack.c.bf16 %v7019, %v7018
        %v7193 = vpack.c.bf16 %v7021, %v7020
        %v7194 = vpack.c.bf16 %v7023, %v7022
        %v7195 = vpack.c.bf16 %v7025, %v7024
        %v7196 = vpack.c.bf16 %v7027, %v7026
        %v7197 = vpack.c.bf16 %v7029, %v7028
        %v7198 = vpack.c.bf16 %v7031, %v7030
        %v7199 = vpack.c.bf16 %v7177, %v7177
        %7200 = vmatprep.subr.bf16.mxu0 0
        %7201 = vmatpush1.bf16.xpose.msra.mxu0 %v7199
        %7202 = vmatprep.subr.bf16.mxu0 0
        %7203 = vmatpush1.bf16.xpose.msra.mxu0 0
        %7204 = vmatprep.subr.bf16.mxu0 0
        %7205 = vmatpush1.bf16.xpose.msra.mxu0 0
        %7206 = vmatprep.subr.bf16.mxu0 0
        %7207 = vmatpush1.bf16.xpose.msra.mxu0 0
        %7208 = vmatprep.subr.bf16.mxu0 0
        %7209 = vmatpush1.bf16.xpose.msra.mxu0 0
        %7210 = vmatprep.subr.bf16.mxu0 0
        %7211 = vmatpush1.bf16.xpose.msra.mxu0 0
        %7212 = vmatprep.subr.bf16.mxu0 0
        %7213 = vmatpush1.bf16.xpose.msra.mxu0 0
        %7214 = vmatprep.subr.bf16.mxu0 0
        %7215 = vmatpush1.bf16.xpose.msra.mxu0 0
        %7216 = vmatprep.subr.bf16.mxu0 0
        %7217 = vmatpush1.bf16.xpose.msra.mxu0 0
        %7218 = vmatprep.subr.bf16.mxu0 0
        %7219 = vmatpush1.bf16.xpose.msra.mxu0 0
        %7220 = vmatprep.subr.bf16.mxu0 0
        %7221 = vmatpush1.bf16.xpose.msra.mxu0 0
        %7222 = vmatprep.subr.bf16.mxu0 0
        %7223 = vmatpush1.bf16.xpose.msra.mxu0 0
        %7224 = vmatprep.subr.bf16.mxu0 0
        %7225 = vmatpush1.bf16.xpose.msra.mxu0 0
        %7226 = vmatprep.subr.bf16.mxu0 0
        %7227 = vmatpush1.bf16.xpose.msra.mxu0 0
        %7228 = vmatprep.subr.bf16.mxu0 0
        %7229 = vmatpush1.bf16.xpose.msra.mxu0 0
        %7230 = vmatprep.subr.bf16.mxu0 0
        %7231 = vmatpush1.bf16.xpose.msra.mxu0 0
        %7232 = vmatprep.mubr.bf16.mxu0 0
        %7233 = vmatmul.mubr.bf16.gmra.mrb[0].mxu0 %v7183
        %v7234 = vpop.f32.mrb[0].mxu0
        %v7235 = vadd.f32 0.0, %v7234
        %v7236 = vpop.f32.mrb[0].mxu0
        %v7237 = vpop.f32.mrb[0].mxu0
        %v7238 = vadd.f32 0.0, %v7237
        %v7239 = vpop.f32.mrb[0].mxu0
        %7240 = vmatprep.mubr.bf16.mxu0 0
        %7241 = vmatmul.mubr.bf16.gmra.mrb[0].mxu0 %v7184
        %v7242 = vpop.f32.mrb[0].mxu0
        %v7243 = vadd.f32 0.0, %v7242
        %v7244 = vpop.f32.mrb[0].mxu0
        %v7245 = vpop.f32.mrb[0].mxu0
        %v7246 = vadd.f32 0.0, %v7245
        %v7247 = vpop.f32.mrb[0].mxu0
        %7248 = vmatprep.mubr.bf16.mxu0 0
        %7249 = vmatmul.mubr.bf16.gmra.mrb[0].mxu0 %v7185
        %v7250 = vpop.f32.mrb[0].mxu0
        %v7251 = vadd.f32 0.0, %v7250
        %v7252 = vpop.f32.mrb[0].mxu0
        %v7253 = vpop.f32.mrb[0].mxu0
        %v7254 = vadd.f32 0.0, %v7253
        %v7255 = vpop.f32.mrb[0].mxu0
        %7256 = vmatprep.mubr.bf16.mxu0 0
        %7257 = vmatmul.mubr.bf16.gmra.mrb[0].mxu0 %v7186
        %v7258 = vpop.f32.mrb[0].mxu0
        %v7259 = vadd.f32 0.0, %v7258
        %v7260 = vpop.f32.mrb[0].mxu0
        %v7261 = vpop.f32.mrb[0].mxu0
        %v7262 = vadd.f32 0.0, %v7261
        %v7263 = vpop.f32.mrb[0].mxu0
        %7264 = vmatprep.mubr.bf16.mxu0 0
        %7265 = vmatmul.mubr.bf16.gmra.mrb[0].mxu0 %v7187
        %v7266 = vpop.f32.mrb[0].mxu0
        %v7267 = vadd.f32 0.0, %v7266
        %v7268 = vpop.f32.mrb[0].mxu0
        %v7269 = vpop.f32.mrb[0].mxu0
        %v7270 = vadd.f32 0.0, %v7269
        %v7271 = vpop.f32.mrb[0].mxu0
        %7272 = vmatprep.mubr.bf16.mxu0 0
        %7273 = vmatmul.mubr.bf16.gmra.mrb[0].mxu0 %v7188
        %v7274 = vpop.f32.mrb[0].mxu0
        %v7275 = vadd.f32 0.0, %v7274
        %v7276 = vpop.f32.mrb[0].mxu0
        %v7277 = vpop.f32.mrb[0].mxu0
        %v7278 = vadd.f32 0.0, %v7277
        %v7279 = vpop.f32.mrb[0].mxu0
        %7280 = vmatprep.mubr.bf16.mxu0 0
        %7281 = vmatmul.mubr.bf16.gmra.mrb[0].mxu0 %v7189
        %v7282 = vpop.f32.mrb[0].mxu0
        %v7283 = vadd.f32 0.0, %v7282
        %v7284 = vpop.f32.mrb[0].mxu0
        %v7285 = vpop.f32.mrb[0].mxu0
        %v7286 = vadd.f32 0.0, %v7285
        %v7287 = vpop.f32.mrb[0].mxu0
        %7288 = vmatprep.mubr.bf16.mxu0 0
        %7289 = vmatmul.mubr.bf16.gmra.mrb[0].mxu0 %v7190
        %v7290 = vpop.f32.mrb[0].mxu0
        %v7291 = vadd.f32 0.0, %v7290
        %v7292 = vpop.f32.mrb[0].mxu0
        %v7293 = vpop.f32.mrb[0].mxu0
        %v7294 = vadd.f32 0.0, %v7293
        %v7295 = vpop.f32.mrb[0].mxu0
        %7296 = vmatprep.mubr.bf16.mxu0 0
        %7297 = vmatmul.mubr.bf16.gmra.mrb[0].mxu0 %v7191
        %v7298 = vpop.f32.mrb[0].mxu0
        %v7299 = vadd.f32 0.0, %v7298
        %v7300 = vpop.f32.mrb[0].mxu0
        %v7301 = vpop.f32.mrb[0].mxu0
        %v7302 = vadd.f32 0.0, %v7301
        %v7303 = vpop.f32.mrb[0].mxu0
        %7304 = vmatprep.mubr.bf16.mxu0 0
        %7305 = vmatmul.mubr.bf16.gmra.mrb[0].mxu0 %v7192
        %v7306 = vpop.f32.mrb[0].mxu0
        %v7307 = vadd.f32 0.0, %v7306
        %v7308 = vpop.f32.mrb[0].mxu0
        %v7309 = vpop.f32.mrb[0].mxu0
        %v7310 = vadd.f32 0.0, %v7309
        %v7311 = vpop.f32.mrb[0].mxu0
        %7312 = vmatprep.mubr.bf16.mxu0 0
        %7313 = vmatmul.mubr.bf16.gmra.mrb[0].mxu0 %v7193
        %v7314 = vpop.f32.mrb[0].mxu0
        %v7315 = vadd.f32 0.0, %v7314
        %v7316 = vpop.f32.mrb[0].mxu0
        %v7317 = vpop.f32.mrb[0].mxu0
        %v7318 = vadd.f32 0.0, %v7317
        %v7319 = vpop.f32.mrb[0].mxu0
        %7320 = vmatprep.mubr.bf16.mxu0 0
        %7321 = vmatmul.mubr.bf16.gmra.mrb[0].mxu0 %v7194
        %v7322 = vpop.f32.mrb[0].mxu0
        %v7323 = vadd.f32 0.0, %v7322
        %v7324 = vpop.f32.mrb[0].mxu0
        %v7325 = vpop.f32.mrb[0].mxu0
        %v7326 = vadd.f32 0.0, %v7325
        %v7327 = vpop.f32.mrb[0].mxu0
        %7328 = vmatprep.mubr.bf16.mxu0 0
        %7329 = vmatmul.mubr.bf16.gmra.mrb[0].mxu0 %v7195
        %v7330 = vpop.f32.mrb[0].mxu0
        %v7331 = vadd.f32 0.0, %v7330
        %v7332 = vpop.f32.mrb[0].mxu0
        %v7333 = vpop.f32.mrb[0].mxu0
        %v7334 = vadd.f32 0.0, %v7333
        %v7335 = vpop.f32.mrb[0].mxu0
        %7336 = vmatprep.mubr.bf16.mxu0 0
        %7337 = vmatmul.mubr.bf16.gmra.mrb[0].mxu0 %v7196
        %v7338 = vpop.f32.mrb[0].mxu0
        %v7339 = vadd.f32 0.0, %v7338
        %v7340 = vpop.f32.mrb[0].mxu0
        %v7341 = vpop.f32.mrb[0].mxu0
        %v7342 = vadd.f32 0.0, %v7341
        %v7343 = vpop.f32.mrb[0].mxu0
        %7344 = vmatprep.mubr.bf16.mxu0 0
        %7345 = vmatmul.mubr.bf16.gmra.mrb[0].mxu0 %v7197
        %v7346 = vpop.f32.mrb[0].mxu0
        %v7347 = vadd.f32 0.0, %v7346
        %v7348 = vpop.f32.mrb[0].mxu0
        %v7349 = vpop.f32.mrb[0].mxu0
        %v7350 = vadd.f32 0.0, %v7349
        %v7351 = vpop.f32.mrb[0].mxu0
        %7352 = vmatprep.mubr.bf16.mxu0 0
        %7353 = vmatmul.mubr.bf16.gmra.mrb[0].mxu0 %v7198
        %v7354 = vpop.f32.mrb[0].mxu0
        %v7355 = vadd.f32 0.0, %v7354
        %v7356 = vpop.f32.mrb[0].mxu0
        %v7357 = vpop.f32.mrb[0].mxu0
        %v7358 = vadd.f32 0.0, %v7357
        %v7359 = vpop.f32.mrb[0].mxu0
        %7360 = vdwg.mxu0
        %v7361 = vmul.f32 %v7235, 0.088388346
        %v7362 = vmul.f32 %v7238, 0.088388346
        %v7363 = vmul.f32 %v7243, 0.088388346
        %v7364 = vmul.f32 %v7246, 0.088388346
        %v7365 = vmul.f32 %v7251, 0.088388346
        %v7366 = vmul.f32 %v7254, 0.088388346
        %v7367 = vmul.f32 %v7259, 0.088388346
        %v7368 = vmul.f32 %v7262, 0.088388346
        %v7369 = vmul.f32 %v7267, 0.088388346
        %v7370 = vmul.f32 %v7270, 0.088388346
        %v7371 = vmul.f32 %v7275, 0.088388346
        %v7372 = vmul.f32 %v7278, 0.088388346
        %v7373 = vmul.f32 %v7283, 0.088388346
        %v7374 = vmul.f32 %v7286, 0.088388346
        %v7375 = vmul.f32 %v7291, 0.088388346
        %v7376 = vmul.f32 %v7294, 0.088388346
        %v7377 = vmul.f32 %v7299, 0.088388346
        %v7378 = vmul.f32 %v7302, 0.088388346
        %v7379 = vmul.f32 %v7307, 0.088388346
        %v7380 = vmul.f32 %v7310, 0.088388346
        %v7381 = vmul.f32 %v7315, 0.088388346
        %v7382 = vmul.f32 %v7318, 0.088388346
        %v7383 = vmul.f32 %v7323, 0.088388346
        %v7384 = vmul.f32 %v7326, 0.088388346
        %v7385 = vmul.f32 %v7331, 0.088388346
        %v7386 = vmul.f32 %v7334, 0.088388346
        %v7387 = vmul.f32 %v7339, 0.088388346
        %v7388 = vmul.f32 %v7342, 0.088388346
        %v7389 = vmul.f32 %v7347, 0.088388346
        %v7390 = vmul.f32 %v7350, 0.088388346
        %v7391 = vmul.f32 %v7355, 0.088388346
        %v7392 = vmul.f32 %v7358, 0.088388346
        %vm7393 = vcmask 64512
        %v7394 = vsel %vm7393, %v7361, -inf
        %7395 = vmax.xlane.f32.xlu0 %v7394
        %v7396 = vpop.xlane.xlu0 %7395
        %v7397 = vsel %vm7393, %v7362, -inf
        %7398 = vmax.xlane.f32.xlu0 %v7397
        %v7399 = vpop.xlane.xlu0 %7398
        %v7400 = vsel %vm7393, %v7363, -inf
        %7401 = vmax.xlane.f32.xlu0 %v7400
        %v7402 = vpop.xlane.xlu0 %7401
        %v7403 = vsel %vm7393, %v7364, -inf
        %7404 = vmax.xlane.f32.xlu0 %v7403
        %v7405 = vpop.xlane.xlu0 %7404
        %v7406 = vsel %vm7393, %v7365, -inf
        %7407 = vmax.xlane.f32.xlu0 %v7406
        %v7408 = vpop.xlane.xlu0 %7407
        %v7409 = vsel %vm7393, %v7366, -inf
        %7410 = vmax.xlane.f32.xlu0 %v7409
        %v7411 = vpop.xlane.xlu0 %7410
        %v7412 = vsel %vm7393, %v7367, -inf
        %7413 = vmax.xlane.f32.xlu0 %v7412
        %v7414 = vpop.xlane.xlu0 %7413
        %v7415 = vsel %vm7393, %v7368, -inf
        %7416 = vmax.xlane.f32.xlu0 %v7415
        %v7417 = vpop.xlane.xlu0 %7416
        %v7418 = vsel %vm7393, %v7369, -inf
        %7419 = vmax.xlane.f32.xlu0 %v7418
        %v7420 = vpop.xlane.xlu0 %7419
        %v7421 = vsel %vm7393, %v7370, -inf
        %7422 = vmax.xlane.f32.xlu0 %v7421
        %v7423 = vpop.xlane.xlu0 %7422
        %v7424 = vsel %vm7393, %v7371, -inf
        %7425 = vmax.xlane.f32.xlu0 %v7424
        %v7426 = vpop.xlane.xlu0 %7425
        %v7427 = vsel %vm7393, %v7372, -inf
        %7428 = vmax.xlane.f32.xlu0 %v7427
        %v7429 = vpop.xlane.xlu0 %7428
        %v7430 = vsel %vm7393, %v7373, -inf
        %7431 = vmax.xlane.f32.xlu0 %v7430
        %v7432 = vpop.xlane.xlu0 %7431
        %v7433 = vsel %vm7393, %v7374, -inf
        %7434 = vmax.xlane.f32.xlu0 %v7433
        %v7435 = vpop.xlane.xlu0 %7434
        %v7436 = vsel %vm7393, %v7375, -inf
        %7437 = vmax.xlane.f32.xlu0 %v7436
        %v7438 = vpop.xlane.xlu0 %7437
        %v7439 = vsel %vm7393, %v7376, -inf
        %7440 = vmax.xlane.f32.xlu0 %v7439
        %v7441 = vpop.xlane.xlu0 %7440
        %v7442 = vsel %vm7393, %v7377, -inf
        %7443 = vmax.xlane.f32.xlu0 %v7442
        %v7444 = vpop.xlane.xlu0 %7443
        %v7445 = vsel %vm7393, %v7378, -inf
        %7446 = vmax.xlane.f32.xlu0 %v7445
        %v7447 = vpop.xlane.xlu0 %7446
        %v7448 = vsel %vm7393, %v7379, -inf
        %7449 = vmax.xlane.f32.xlu0 %v7448
        %v7450 = vpop.xlane.xlu0 %7449
        %v7451 = vsel %vm7393, %v7380, -inf
        %7452 = vmax.xlane.f32.xlu0 %v7451
        %v7453 = vpop.xlane.xlu0 %7452
        %v7454 = vsel %vm7393, %v7381, -inf
        %7455 = vmax.xlane.f32.xlu0 %v7454
        %v7456 = vpop.xlane.xlu0 %7455
        %v7457 = vsel %vm7393, %v7382, -inf
        %7458 = vmax.xlane.f32.xlu0 %v7457
        %v7459 = vpop.xlane.xlu0 %7458
        %v7460 = vsel %vm7393, %v7383, -inf
        %7461 = vmax.xlane.f32.xlu0 %v7460
        %v7462 = vpop.xlane.xlu0 %7461
        %v7463 = vsel %vm7393, %v7384, -inf
        %7464 = vmax.xlane.f32.xlu0 %v7463
        %v7465 = vpop.xlane.xlu0 %7464
        %v7466 = vsel %vm7393, %v7385, -inf
        %7467 = vmax.xlane.f32.xlu0 %v7466
        %v7468 = vpop.xlane.xlu0 %7467
        %v7469 = vsel %vm7393, %v7386, -inf
        %7470 = vmax.xlane.f32.xlu0 %v7469
        %v7471 = vpop.xlane.xlu0 %7470
        %v7472 = vsel %vm7393, %v7387, -inf
        %7473 = vmax.xlane.f32.xlu0 %v7472
        %v7474 = vpop.xlane.xlu0 %7473
        %v7475 = vsel %vm7393, %v7388, -inf
        %7476 = vmax.xlane.f32.xlu0 %v7475
        %v7477 = vpop.xlane.xlu0 %7476
        %v7478 = vsel %vm7393, %v7389, -inf
        %7479 = vmax.xlane.f32.xlu0 %v7478
        %v7480 = vpop.xlane.xlu0 %7479
        %v7481 = vsel %vm7393, %v7390, -inf
        %7482 = vmax.xlane.f32.xlu0 %v7481
        %v7483 = vpop.xlane.xlu0 %7482
        %v7484 = vsel %vm7393, %v7391, -inf
        %7485 = vmax.xlane.f32.xlu0 %v7484
        %v7486 = vpop.xlane.xlu0 %7485
        %v7487 = vsel %vm7393, %v7392, -inf
        %7488 = vmax.xlane.f32.xlu0 %v7487
        %v7489 = vpop.xlane.xlu0 %7488
        %v7490 = vsub.f32 %v7361, %v7396
        %v7491 = vsub.f32 %v7362, %v7399
        %v7492 = vsub.f32 %v7363, %v7402
        %v7493 = vsub.f32 %v7364, %v7405
        %v7494 = vsub.f32 %v7365, %v7408
        %v7495 = vsub.f32 %v7366, %v7411
        %v7496 = vsub.f32 %v7367, %v7414
        %v7497 = vsub.f32 %v7368, %v7417
        %v7498 = vsub.f32 %v7369, %v7420
        %v7499 = vsub.f32 %v7370, %v7423
        %v7500 = vsub.f32 %v7371, %v7426
        %v7501 = vsub.f32 %v7372, %v7429
        %v7502 = vsub.f32 %v7373, %v7432
        %v7503 = vsub.f32 %v7374, %v7435
        %v7504 = vsub.f32 %v7375, %v7438
        %v7505 = vsub.f32 %v7376, %v7441
        %v7506 = vsub.f32 %v7377, %v7444
        %v7507 = vsub.f32 %v7378, %v7447
        %v7508 = vsub.f32 %v7379, %v7450
        %v7509 = vsub.f32 %v7380, %v7453
        %v7510 = vsub.f32 %v7381, %v7456
        %v7511 = vsub.f32 %v7382, %v7459
        %v7512 = vsub.f32 %v7383, %v7462
        %v7513 = vsub.f32 %v7384, %v7465
        %v7514 = vsub.f32 %v7385, %v7468
        %v7515 = vsub.f32 %v7386, %v7471
        %v7516 = vsub.f32 %v7387, %v7474
        %v7517 = vsub.f32 %v7388, %v7477
        %v7518 = vsub.f32 %v7389, %v7480
        %v7519 = vsub.f32 %v7390, %v7483
        %v7520 = vsub.f32 %v7391, %v7486
        %v7521 = vsub.f32 %v7392, %v7489
        %v7522 = vmul.f32 %v7490, 1.442695
        %v7523 = vpow.pop %v7522
        %v7524 = vmul.f32 %v7491, 1.442695
        %v7525 = vpow.pop %v7524
        %v7526 = vmul.f32 %v7492, 1.442695
        %v7527 = vpow.pop %v7526
        %v7528 = vmul.f32 %v7493, 1.442695
        %v7529 = vpow.pop %v7528
        %v7530 = vmul.f32 %v7494, 1.442695
        %v7531 = vpow.pop %v7530
        %v7532 = vmul.f32 %v7495, 1.442695
        %v7533 = vpow.pop %v7532
        %v7534 = vmul.f32 %v7496, 1.442695
        %v7535 = vpow.pop %v7534
        %v7536 = vmul.f32 %v7497, 1.442695
        %v7537 = vpow.pop %v7536
        %v7538 = vmul.f32 %v7498, 1.442695
        %v7539 = vpow.pop %v7538
        %v7540 = vmul.f32 %v7499, 1.442695
        %v7541 = vpow.pop %v7540
        %v7542 = vmul.f32 %v7500, 1.442695
        %v7543 = vpow.pop %v7542
        %v7544 = vmul.f32 %v7501, 1.442695
        %v7545 = vpow.pop %v7544
        %v7546 = vmul.f32 %v7502, 1.442695
        %v7547 = vpow.pop %v7546
        %v7548 = vmul.f32 %v7503, 1.442695
        %v7549 = vpow.pop %v7548
        %v7550 = vmul.f32 %v7504, 1.442695
        %v7551 = vpow.pop %v7550
        %v7552 = vmul.f32 %v7505, 1.442695
        %v7553 = vpow.pop %v7552
        %v7554 = vmul.f32 %v7506, 1.442695
        %v7555 = vpow.pop %v7554
        %v7556 = vmul.f32 %v7507, 1.442695
        %v7557 = vpow.pop %v7556
        %v7558 = vmul.f32 %v7508, 1.442695
        %v7559 = vpow.pop %v7558
        %v7560 = vmul.f32 %v7509, 1.442695
        %v7561 = vpow.pop %v7560
        %v7562 = vmul.f32 %v7510, 1.442695
        %v7563 = vpow.pop %v7562
        %v7564 = vmul.f32 %v7511, 1.442695
        %v7565 = vpow.pop %v7564
        %v7566 = vmul.f32 %v7512, 1.442695
        %v7567 = vpow.pop %v7566
        %v7568 = vmul.f32 %v7513, 1.442695
        %v7569 = vpow.pop %v7568
        %v7570 = vmul.f32 %v7514, 1.442695
        %v7571 = vpow.pop %v7570
        %v7572 = vmul.f32 %v7515, 1.442695
        %v7573 = vpow.pop %v7572
        %v7574 = vmul.f32 %v7516, 1.442695
        %v7575 = vpow.pop %v7574
        %v7576 = vmul.f32 %v7517, 1.442695
        %v7577 = vpow.pop %v7576
        %v7578 = vmul.f32 %v7518, 1.442695
        %v7579 = vpow.pop %v7578
        %v7580 = vmul.f32 %v7519, 1.442695
        %v7581 = vpow.pop %v7580
        %v7582 = vmul.f32 %v7520, 1.442695
        %v7583 = vpow.pop %v7582
        %v7584 = vmul.f32 %v7521, 1.442695
        %v7585 = vpow.pop %v7584
        %v7586 = vsel %vm7393, %v7523, 0.0
        %7587 = vadd.xlane.f32.xlu0 %v7586
        %v7588 = vpop.xlane.xlu0 %7587
        %v7589 = vsel %vm7393, %v7525, 0.0
        %7590 = vadd.xlane.f32.xlu0 %v7589
        %v7591 = vpop.xlane.xlu0 %7590
        %v7592 = vsel %vm7393, %v7527, 0.0
        %7593 = vadd.xlane.f32.xlu0 %v7592
        %v7594 = vpop.xlane.xlu0 %7593
        %v7595 = vsel %vm7393, %v7529, 0.0
        %7596 = vadd.xlane.f32.xlu0 %v7595
        %v7597 = vpop.xlane.xlu0 %7596
        %v7598 = vsel %vm7393, %v7531, 0.0
        %7599 = vadd.xlane.f32.xlu0 %v7598
        %v7600 = vpop.xlane.xlu0 %7599
        %v7601 = vsel %vm7393, %v7533, 0.0
        %7602 = vadd.xlane.f32.xlu0 %v7601
        %v7603 = vpop.xlane.xlu0 %7602
        %v7604 = vsel %vm7393, %v7535, 0.0
        %7605 = vadd.xlane.f32.xlu0 %v7604
        %v7606 = vpop.xlane.xlu0 %7605
        %v7607 = vsel %vm7393, %v7537, 0.0
        %7608 = vadd.xlane.f32.xlu0 %v7607
        %v7609 = vpop.xlane.xlu0 %7608
        %v7610 = vsel %vm7393, %v7539, 0.0
        %7611 = vadd.xlane.f32.xlu0 %v7610
        %v7612 = vpop.xlane.xlu0 %7611
        %v7613 = vsel %vm7393, %v7541, 0.0
        %7614 = vadd.xlane.f32.xlu0 %v7613
        %v7615 = vpop.xlane.xlu0 %7614
        %v7616 = vsel %vm7393, %v7543, 0.0
        %7617 = vadd.xlane.f32.xlu0 %v7616
        %v7618 = vpop.xlane.xlu0 %7617
        %v7619 = vsel %vm7393, %v7545, 0.0
        %7620 = vadd.xlane.f32.xlu0 %v7619
        %v7621 = vpop.xlane.xlu0 %7620
        %v7622 = vsel %vm7393, %v7547, 0.0
        %7623 = vadd.xlane.f32.xlu0 %v7622
        %v7624 = vpop.xlane.xlu0 %7623
        %v7625 = vsel %vm7393, %v7549, 0.0
        %7626 = vadd.xlane.f32.xlu0 %v7625
        %v7627 = vpop.xlane.xlu0 %7626
        %v7628 = vsel %vm7393, %v7551, 0.0
        %7629 = vadd.xlane.f32.xlu0 %v7628
        %v7630 = vpop.xlane.xlu0 %7629
        %v7631 = vsel %vm7393, %v7553, 0.0
        %7632 = vadd.xlane.f32.xlu0 %v7631
        %v7633 = vpop.xlane.xlu0 %7632
        %v7634 = vsel %vm7393, %v7555, 0.0
        %7635 = vadd.xlane.f32.xlu0 %v7634
        %v7636 = vpop.xlane.xlu0 %7635
        %v7637 = vsel %vm7393, %v7557, 0.0
        %7638 = vadd.xlane.f32.xlu0 %v7637
        %v7639 = vpop.xlane.xlu0 %7638
        %v7640 = vsel %vm7393, %v7559, 0.0
        %7641 = vadd.xlane.f32.xlu0 %v7640
        %v7642 = vpop.xlane.xlu0 %7641
        %v7643 = vsel %vm7393, %v7561, 0.0
        %7644 = vadd.xlane.f32.xlu0 %v7643
        %v7645 = vpop.xlane.xlu0 %7644
        %v7646 = vsel %vm7393, %v7563, 0.0
        %7647 = vadd.xlane.f32.xlu0 %v7646
        %v7648 = vpop.xlane.xlu0 %7647
        %v7649 = vsel %vm7393, %v7565, 0.0
        %7650 = vadd.xlane.f32.xlu0 %v7649
        %v7651 = vpop.xlane.xlu0 %7650
        %v7652 = vsel %vm7393, %v7567, 0.0
        %7653 = vadd.xlane.f32.xlu0 %v7652
        %v7654 = vpop.xlane.xlu0 %7653
        %v7655 = vsel %vm7393, %v7569, 0.0
        %7656 = vadd.xlane.f32.xlu0 %v7655
        %v7657 = vpop.xlane.xlu0 %7656
        %v7658 = vsel %vm7393, %v7571, 0.0
        %7659 = vadd.xlane.f32.xlu0 %v7658
        %v7660 = vpop.xlane.xlu0 %7659
        %v7661 = vsel %vm7393, %v7573, 0.0
        %7662 = vadd.xlane.f32.xlu0 %v7661
        %v7663 = vpop.xlane.xlu0 %7662
        %v7664 = vsel %vm7393, %v7575, 0.0
        %7665 = vadd.xlane.f32.xlu0 %v7664
        %v7666 = vpop.xlane.xlu0 %7665
        %v7667 = vsel %vm7393, %v7577, 0.0
        %7668 = vadd.xlane.f32.xlu0 %v7667
        %v7669 = vpop.xlane.xlu0 %7668
        %v7670 = vsel %vm7393, %v7579, 0.0
        %7671 = vadd.xlane.f32.xlu0 %v7670
        %v7672 = vpop.xlane.xlu0 %7671
        %v7673 = vsel %vm7393, %v7581, 0.0
        %7674 = vadd.xlane.f32.xlu0 %v7673
        %v7675 = vpop.xlane.xlu0 %7674
        %v7676 = vsel %vm7393, %v7583, 0.0
        %7677 = vadd.xlane.f32.xlu0 %v7676
        %v7678 = vpop.xlane.xlu0 %7677
        %v7679 = vsel %vm7393, %v7585, 0.0
        %7680 = vadd.xlane.f32.xlu0 %v7679
        %v7681 = vpop.xlane.xlu0 %7680
        %v7682 = vrcp.pop %v7588
        %v7683 = vrcp.pop %v7591
        %v7684 = vrcp.pop %v7594
        %v7685 = vrcp.pop %v7597
        %v7686 = vrcp.pop %v7600
        %v7687 = vrcp.pop %v7603
        %v7688 = vrcp.pop %v7606
        %v7689 = vrcp.pop %v7609
        %v7690 = vrcp.pop %v7612
        %v7691 = vrcp.pop %v7615
        %v7692 = vrcp.pop %v7618
        %v7693 = vrcp.pop %v7621
        %v7694 = vrcp.pop %v7624
        %v7695 = vrcp.pop %v7627
        %v7696 = vrcp.pop %v7630
        %v7697 = vrcp.pop %v7633
        %v7698 = vrcp.pop %v7636
        %v7699 = vrcp.pop %v7639
        %v7700 = vrcp.pop %v7642
        %v7701 = vrcp.pop %v7645
        %v7702 = vrcp.pop %v7648
        %v7703 = vrcp.pop %v7651
        %v7704 = vrcp.pop %v7654
        %v7705 = vrcp.pop %v7657
        %v7706 = vrcp.pop %v7660
        %v7707 = vrcp.pop %v7663
        %v7708 = vrcp.pop %v7666
        %v7709 = vrcp.pop %v7669
        %v7710 = vrcp.pop %v7672
        %v7711 = vrcp.pop %v7675
        %v7712 = vrcp.pop %v7678
        %v7713 = vrcp.pop %v7681
        %v7714 = vmul.f32 %v7523, %v7682
        %v7715 = vmul.f32 %v7525, %v7683
        %v7716 = vmul.f32 %v7527, %v7684
        %v7717 = vmul.f32 %v7529, %v7685
        %v7718 = vmul.f32 %v7531, %v7686
        %v7719 = vmul.f32 %v7533, %v7687
        %v7720 = vmul.f32 %v7535, %v7688
        %v7721 = vmul.f32 %v7537, %v7689
        %v7722 = vmul.f32 %v7539, %v7690
        %v7723 = vmul.f32 %v7541, %v7691
        %v7724 = vmul.f32 %v7543, %v7692
        %v7725 = vmul.f32 %v7545, %v7693
        %v7726 = vmul.f32 %v7547, %v7694
        %v7727 = vmul.f32 %v7549, %v7695
        %v7728 = vmul.f32 %v7551, %v7696
        %v7729 = vmul.f32 %v7553, %v7697
        %v7730 = vmul.f32 %v7555, %v7698
        %v7731 = vmul.f32 %v7557, %v7699
        %v7732 = vmul.f32 %v7559, %v7700
        %v7733 = vmul.f32 %v7561, %v7701
        %v7734 = vmul.f32 %v7563, %v7702
        %v7735 = vmul.f32 %v7565, %v7703
        %v7736 = vmul.f32 %v7567, %v7704
        %v7737 = vmul.f32 %v7569, %v7705
        %v7738 = vmul.f32 %v7571, %v7706
        %v7739 = vmul.f32 %v7573, %v7707
        %v7740 = vmul.f32 %v7575, %v7708
        %v7741 = vmul.f32 %v7577, %v7709
        %v7742 = vmul.f32 %v7579, %v7710
        %v7743 = vmul.f32 %v7581, %v7711
        %v7744 = vmul.f32 %v7583, %v7712
        %v7745 = vmul.f32 %v7585, %v7713
        %v7746 = vpack.c.bf16 %v7715, %v7714
        %v7747 = vpack.c.bf16 %v7717, %v7716
        %v7748 = vpack.c.bf16 %v7719, %v7718
        %v7749 = vpack.c.bf16 %v7721, %v7720
        %v7750 = vpack.c.bf16 %v7723, %v7722
        %v7751 = vpack.c.bf16 %v7725, %v7724
        %v7752 = vpack.c.bf16 %v7727, %v7726
        %v7753 = vpack.c.bf16 %v7729, %v7728
        %v7754 = vpack.c.bf16 %v7731, %v7730
        %v7755 = vpack.c.bf16 %v7733, %v7732
        %v7756 = vpack.c.bf16 %v7735, %v7734
        %v7757 = vpack.c.bf16 %v7737, %v7736
        %v7758 = vpack.c.bf16 %v7739, %v7738
        %v7759 = vpack.c.bf16 %v7741, %v7740
        %v7760 = vpack.c.bf16 %v7743, %v7742
        %v7761 = vpack.c.bf16 %v7745, %v7744
        %v7762 = vpack.c.bf16 %v7179, %v7179
        %v7764 = vsel %vm7393, %v7746, 0
        %v7767 = vsel %vm7393, %v7747, 0
        %v7770 = vsel %vm7393, %v7748, 0
        %v7773 = vsel %vm7393, %v7749, 0
        %v7776 = vsel %vm7393, %v7750, 0
        %v7779 = vsel %vm7393, %v7751, 0
        %v7782 = vsel %vm7393, %v7752, 0
        %v7785 = vsel %vm7393, %v7753, 0
        %v7788 = vsel %vm7393, %v7754, 0
        %v7791 = vsel %vm7393, %v7755, 0
        %v7794 = vsel %vm7393, %v7756, 0
        %v7797 = vsel %vm7393, %v7757, 0
        %v7800 = vsel %vm7393, %v7758, 0
        %v7803 = vsel %vm7393, %v7759, 0
        %v7806 = vsel %vm7393, %v7760, 0
        %v7809 = vsel %vm7393, %v7761, 0
        %vm7811 = vcmask 1043456
        %v7813 = vsel %vm7811, %v7762, 0
        %7815 = vmatprep.subr.bf16.mxu0 0
        %7816 = vmatpush1.bf16.msra.mxu0 %v7813
        %7817 = vmatprep.subr.bf16.mxu0 0
        %7818 = vmatpush1.bf16.msra.mxu0 0
        %7819 = vmatprep.subr.bf16.mxu0 0
        %7820 = vmatpush1.bf16.msra.mxu0 0
        %7821 = vmatprep.subr.bf16.mxu0 0
        %7822 = vmatpush1.bf16.msra.mxu0 0
        %7823 = vmatprep.subr.bf16.mxu0 0
        %7824 = vmatpush1.bf16.msra.mxu0 0
        %7825 = vmatprep.subr.bf16.mxu0 0
        %7826 = vmatpush1.bf16.msra.mxu0 0
        %7827 = vmatprep.subr.bf16.mxu0 0
        %7828 = vmatpush1.bf16.msra.mxu0 0
        %7829 = vmatprep.subr.bf16.mxu0 0
        %7830 = vmatpush1.bf16.msra.mxu0 0
        %7831 = vmatprep.subr.bf16.mxu0 0
        %7832 = vmatpush1.bf16.msra.mxu0 0
        %7833 = vmatprep.subr.bf16.mxu0 0
        %7834 = vmatpush1.bf16.msra.mxu0 0
        %7835 = vmatprep.subr.bf16.mxu0 0
        %7836 = vmatpush1.bf16.msra.mxu0 0
        %7837 = vmatprep.subr.bf16.mxu0 0
        %7838 = vmatpush1.bf16.msra.mxu0 0
        %7839 = vmatprep.subr.bf16.mxu0 0
        %7840 = vmatpush1.bf16.msra.mxu0 0
        %7841 = vmatprep.subr.bf16.mxu0 0
        %7842 = vmatpush1.bf16.msra.mxu0 0
        %7843 = vmatprep.subr.bf16.mxu0 0
        %7844 = vmatpush1.bf16.msra.mxu0 0
        %7845 = vmatprep.subr.bf16.mxu0 0
        %7846 = vmatpush1.bf16.msra.mxu0 0
        %7847 = vmatprep.mubr.bf16.mxu0 0
        %7848 = vmatmul.mubr.bf16.gmra.mrb[0].mxu0 %v7764
        %v7849 = vpop.f32.mrb[0].mxu0
        %v7850 = vadd.f32 0.0, %v7849
        %v7851 = vpop.f32.mrb[0].mxu0
        %v7852 = vpop.f32.mrb[0].mxu0
        %v7853 = vadd.f32 0.0, %v7852
        %v7854 = vpop.f32.mrb[0].mxu0
        %7855 = vmatprep.mubr.bf16.mxu0 0
        %7856 = vmatmul.mubr.bf16.gmra.mrb[0].mxu0 %v7767
        %v7857 = vpop.f32.mrb[0].mxu0
        %v7858 = vadd.f32 0.0, %v7857
        %v7859 = vpop.f32.mrb[0].mxu0
        %v7860 = vpop.f32.mrb[0].mxu0
        %v7861 = vadd.f32 0.0, %v7860
        %v7862 = vpop.f32.mrb[0].mxu0
        %7863 = vmatprep.mubr.bf16.mxu0 0
        %7864 = vmatmul.mubr.bf16.gmra.mrb[0].mxu0 %v7770
        %v7865 = vpop.f32.mrb[0].mxu0
        %v7866 = vadd.f32 0.0, %v7865
        %v7867 = vpop.f32.mrb[0].mxu0
        %v7868 = vpop.f32.mrb[0].mxu0
        %v7869 = vadd.f32 0.0, %v7868
        %v7870 = vpop.f32.mrb[0].mxu0
        %7871 = vmatprep.mubr.bf16.mxu0 0
        %7872 = vmatmul.mubr.bf16.gmra.mrb[0].mxu0 %v7773
        %v7873 = vpop.f32.mrb[0].mxu0
        %v7874 = vadd.f32 0.0, %v7873
        %v7875 = vpop.f32.mrb[0].mxu0
        %v7876 = vpop.f32.mrb[0].mxu0
        %v7877 = vadd.f32 0.0, %v7876
        %v7878 = vpop.f32.mrb[0].mxu0
        %7879 = vmatprep.mubr.bf16.mxu0 0
        %7880 = vmatmul.mubr.bf16.gmra.mrb[0].mxu0 %v7776
        %v7881 = vpop.f32.mrb[0].mxu0
        %v7882 = vadd.f32 0.0, %v7881
        %v7883 = vpop.f32.mrb[0].mxu0
        %v7884 = vpop.f32.mrb[0].mxu0
        %v7885 = vadd.f32 0.0, %v7884
        %v7886 = vpop.f32.mrb[0].mxu0
        %7887 = vmatprep.mubr.bf16.mxu0 0
        %7888 = vmatmul.mubr.bf16.gmra.mrb[0].mxu0 %v7779
        %v7889 = vpop.f32.mrb[0].mxu0
        %v7890 = vadd.f32 0.0, %v7889
        %v7891 = vpop.f32.mrb[0].mxu0
        %v7892 = vpop.f32.mrb[0].mxu0
        %v7893 = vadd.f32 0.0, %v7892
        %v7894 = vpop.f32.mrb[0].mxu0
        %7895 = vmatprep.mubr.bf16.mxu0 0
        %7896 = vmatmul.mubr.bf16.gmra.mrb[0].mxu0 %v7782
        %v7897 = vpop.f32.mrb[0].mxu0
        %v7898 = vadd.f32 0.0, %v7897
        %v7899 = vpop.f32.mrb[0].mxu0
        %v7900 = vpop.f32.mrb[0].mxu0
        %v7901 = vadd.f32 0.0, %v7900
        %v7902 = vpop.f32.mrb[0].mxu0
        %7903 = vmatprep.mubr.bf16.mxu0 0
        %7904 = vmatmul.mubr.bf16.gmra.mrb[0].mxu0 %v7785
        %v7905 = vpop.f32.mrb[0].mxu0
        %v7906 = vadd.f32 0.0, %v7905
        %v7907 = vpop.f32.mrb[0].mxu0
        %v7908 = vpop.f32.mrb[0].mxu0
        %v7909 = vadd.f32 0.0, %v7908
        %v7910 = vpop.f32.mrb[0].mxu0
        %7911 = vmatprep.mubr.bf16.mxu0 0
        %7912 = vmatmul.mubr.bf16.gmra.mrb[0].mxu0 %v7788
        %v7913 = vpop.f32.mrb[0].mxu0
        %v7914 = vadd.f32 0.0, %v7913
        %v7915 = vpop.f32.mrb[0].mxu0
        %v7916 = vpop.f32.mrb[0].mxu0
        %v7917 = vadd.f32 0.0, %v7916
        %v7918 = vpop.f32.mrb[0].mxu0
        %7919 = vmatprep.mubr.bf16.mxu0 0
        %7920 = vmatmul.mubr.bf16.gmra.mrb[0].mxu0 %v7791
        %v7921 = vpop.f32.mrb[0].mxu0
        %v7922 = vadd.f32 0.0, %v7921
        %v7923 = vpop.f32.mrb[0].mxu0
        %v7924 = vpop.f32.mrb[0].mxu0
        %v7925 = vadd.f32 0.0, %v7924
        %v7926 = vpop.f32.mrb[0].mxu0
        %7927 = vmatprep.mubr.bf16.mxu0 0
        %7928 = vmatmul.mubr.bf16.gmra.mrb[0].mxu0 %v7794
        %v7929 = vpop.f32.mrb[0].mxu0
        %v7930 = vadd.f32 0.0, %v7929
        %v7931 = vpop.f32.mrb[0].mxu0
        %v7932 = vpop.f32.mrb[0].mxu0
        %v7933 = vadd.f32 0.0, %v7932
        %v7934 = vpop.f32.mrb[0].mxu0
        %7935 = vmatprep.mubr.bf16.mxu0 0
        %7936 = vmatmul.mubr.bf16.gmra.mrb[0].mxu0 %v7797
        %v7937 = vpop.f32.mrb[0].mxu0
        %v7938 = vadd.f32 0.0, %v7937
        %v7939 = vpop.f32.mrb[0].mxu0
        %v7940 = vpop.f32.mrb[0].mxu0
        %v7941 = vadd.f32 0.0, %v7940
        %v7942 = vpop.f32.mrb[0].mxu0
        %7943 = vmatprep.mubr.bf16.mxu0 0
        %7944 = vmatmul.mubr.bf16.gmra.mrb[0].mxu0 %v7800
        %v7945 = vpop.f32.mrb[0].mxu0
        %v7946 = vadd.f32 0.0, %v7945
        %v7947 = vpop.f32.mrb[0].mxu0
        %v7948 = vpop.f32.mrb[0].mxu0
        %v7949 = vadd.f32 0.0, %v7948
        %v7950 = vpop.f32.mrb[0].mxu0
        %7951 = vmatprep.mubr.bf16.mxu0 0
        %7952 = vmatmul.mubr.bf16.gmra.mrb[0].mxu0 %v7803
        %v7953 = vpop.f32.mrb[0].mxu0
        %v7954 = vadd.f32 0.0, %v7953
        %v7955 = vpop.f32.mrb[0].mxu0
        %v7956 = vpop.f32.mrb[0].mxu0
        %v7957 = vadd.f32 0.0, %v7956
        %v7958 = vpop.f32.mrb[0].mxu0
        %7959 = vmatprep.mubr.bf16.mxu0 0
        %7960 = vmatmul.mubr.bf16.gmra.mrb[0].mxu0 %v7806
        %v7961 = vpop.f32.mrb[0].mxu0
        %v7962 = vadd.f32 0.0, %v7961
        %v7963 = vpop.f32.mrb[0].mxu0
        %v7964 = vpop.f32.mrb[0].mxu0
        %v7965 = vadd.f32 0.0, %v7964
        %v7966 = vpop.f32.mrb[0].mxu0
        %7967 = vmatprep.mubr.bf16.mxu0 0
        %7968 = vmatmul.mubr.bf16.gmra.mrb[0].mxu0 %v7809
        %v7969 = vpop.f32.mrb[0].mxu0
        %v7970 = vadd.f32 0.0, %v7969
        %v7971 = vpop.f32.mrb[0].mxu0
        %v7972 = vpop.f32.mrb[0].mxu0
        %v7973 = vadd.f32 0.0, %v7972
        %v7974 = vpop.f32.mrb[0].mxu0
        %7975 = vdwg.mxu0
        %v7976 = vld [vmem:[%s16] sm:$0xf]
        %v7977 = vld [vmem:[%s16 + $0x4] sm:$0xf]
        %v7978 = vld [vmem:[%s16 + $0x8] sm:$0xf]
        %v7979 = vld [vmem:[%s16 + $0xc] sm:$0xf]
        %v7980 = vld [vmem:[%s16 + $0x10] sm:$0xf]
        %v7981 = vld [vmem:[%s16 + $0x14] sm:$0xf]
        %v7982 = vld [vmem:[%s16 + $0x18] sm:$0xf]
        %v7983 = vld [vmem:[%s16 + $0x1c] sm:$0xf]
        %v7984 = vld [vmem:[%s16 + $0x20] sm:$0xf]
        %v7985 = vld [vmem:[%s16 + $0x24] sm:$0xf]
        %v7986 = vld [vmem:[%s16 + $0x28] sm:$0xf]
        %v7987 = vld [vmem:[%s16 + $0x2c] sm:$0xf]
        %v7988 = vld [vmem:[%s16 + $0x30] sm:$0xf]
        %v7989 = vld [vmem:[%s16 + $0x34] sm:$0xf]
        %v7990 = vld [vmem:[%s16 + $0x38] sm:$0xf]
        %v7991 = vld [vmem:[%s16 + $0x3c] sm:$0xf]
        %v7992 = vpack.c.bf16 %v7853, %v7850
        %v7993 = vpack.c.bf16 %v7861, %v7858
        %v7994 = vpack.c.bf16 %v7869, %v7866
        %v7995 = vpack.c.bf16 %v7877, %v7874
        %v7996 = vpack.c.bf16 %v7885, %v7882
        %v7997 = vpack.c.bf16 %v7893, %v7890
        %v7998 = vpack.c.bf16 %v7901, %v7898
        %v7999 = vpack.c.bf16 %v7909, %v7906
        %v8000 = vpack.c.bf16 %v7917, %v7914
        %v8001 = vpack.c.bf16 %v7925, %v7922
        %v8002 = vpack.c.bf16 %v7933, %v7930
        %v8003 = vpack.c.bf16 %v7941, %v7938
        %v8004 = vpack.c.bf16 %v7949, %v7946
        %v8005 = vpack.c.bf16 %v7957, %v7954
        %v8006 = vpack.c.bf16 %v7965, %v7962
        %v8007 = vpack.c.bf16 %v7973, %v7970
        %v8024 = vunpack.c.l.b16 %v7976
        %v8025 = vunpack.c.l.b16 %v7977
        %v8026 = vunpack.c.l.b16 %v7978
        %v8027 = vunpack.c.l.b16 %v7979
        %v8028 = vunpack.c.l.b16 %v7980
        %v8029 = vunpack.c.l.b16 %v7981
        %v8030 = vunpack.c.l.b16 %v7982
        %v8031 = vunpack.c.l.b16 %v7983
        %v8032 = vunpack.c.l.b16 %v7984
        %v8033 = vunpack.c.l.b16 %v7985
        %v8034 = vunpack.c.l.b16 %v7986
        %v8035 = vunpack.c.l.b16 %v7987
        %v8036 = vunpack.c.l.b16 %v7988
        %v8037 = vunpack.c.l.b16 %v7989
        %v8038 = vunpack.c.l.b16 %v7990
        %v8039 = vunpack.c.l.b16 %v7991
        %v8040 = vpack.c.b16 %v8025, %v8024
        %v8041 = vpack.c.b16 %v8027, %v8026
        %v8042 = vpack.c.b16 %v8029, %v8028
        %v8043 = vpack.c.b16 %v8031, %v8030
        %v8044 = vpack.c.b16 %v8033, %v8032
        %v8045 = vpack.c.b16 %v8035, %v8034
        %v8046 = vpack.c.b16 %v8037, %v8036
        %v8047 = vpack.c.b16 %v8039, %v8038
        %8056 = vmatprep.subr.bf16.mxu0 0
        %8057 = vmatpush1.bf16.xpose.msra.mxu0 %v7992
        %8058 = vmatprep.subr.bf16.mxu0 0
        %8059 = vmatpush1.bf16.xpose.msra.mxu0 %v7993
        %8060 = vmatprep.subr.bf16.mxu0 0
        %8061 = vmatpush1.bf16.xpose.msra.mxu0 %v7994
        %8062 = vmatprep.subr.bf16.mxu0 0
        %8063 = vmatpush1.bf16.xpose.msra.mxu0 %v7995
        %8064 = vmatprep.subr.bf16.mxu0 0
        %8065 = vmatpush1.bf16.xpose.msra.mxu0 %v7996
        %8066 = vmatprep.subr.bf16.mxu0 0
        %8067 = vmatpush1.bf16.xpose.msra.mxu0 %v7997
        %8068 = vmatprep.subr.bf16.mxu0 0
        %8069 = vmatpush1.bf16.xpose.msra.mxu0 %v7998
        %8070 = vmatprep.subr.bf16.mxu0 0
        %8071 = vmatpush1.bf16.xpose.msra.mxu0 %v7999
        %8072 = vmatprep.subr.bf16.mxu0 0
        %8073 = vmatpush1.bf16.xpose.msra.mxu0 %v8000
        %8074 = vmatprep.subr.bf16.mxu0 0
        %8075 = vmatpush1.bf16.xpose.msra.mxu0 %v8001
        %8076 = vmatprep.subr.bf16.mxu0 0
        %8077 = vmatpush1.bf16.xpose.msra.mxu0 %v8002
        %8078 = vmatprep.subr.bf16.mxu0 0
        %8079 = vmatpush1.bf16.xpose.msra.mxu0 %v8003
        %8080 = vmatprep.subr.bf16.mxu0 0
        %8081 = vmatpush1.bf16.xpose.msra.mxu0 %v8004
        %8082 = vmatprep.subr.bf16.mxu0 0
        %8083 = vmatpush1.bf16.xpose.msra.mxu0 %v8005
        %8084 = vmatprep.subr.bf16.mxu0 0
        %8085 = vmatpush1.bf16.xpose.msra.mxu0 %v8006
        %8086 = vmatprep.subr.bf16.mxu0 0
        %8087 = vmatpush1.bf16.xpose.msra.mxu0 %v8007
        %8088 = vmatprep.mubr.bf16.mxu0 0
        %8089 = vmatmul.mubr.bf16.gmra.mrb[0].mxu0 %v8040
        %v8090 = vpop.f32.mrb[0].mxu0
        %v8091 = vadd.f32 0.0, %v8090
        %v8092 = vpop.f32.mrb[0].mxu0
        %v8093 = vadd.f32 0.0, %v8092
        %v8094 = vpop.f32.mrb[0].mxu0
        %v8095 = vadd.f32 0.0, %v8094
        %v8096 = vpop.f32.mrb[0].mxu0
        %v8097 = vadd.f32 0.0, %v8096
        %8098 = vmatprep.mubr.bf16.mxu0 0
        %8099 = vmatmul.mubr.bf16.gmra.mrb[0].mxu0 %v8041
        %v8100 = vpop.f32.mrb[0].mxu0
        %v8101 = vadd.f32 0.0, %v8100
        %v8102 = vpop.f32.mrb[0].mxu0
        %v8103 = vadd.f32 0.0, %v8102
        %v8104 = vpop.f32.mrb[0].mxu0
        %v8105 = vadd.f32 0.0, %v8104
        %v8106 = vpop.f32.mrb[0].mxu0
        %v8107 = vadd.f32 0.0, %v8106
        %8108 = vmatprep.mubr.bf16.mxu0 0
        %8109 = vmatmul.mubr.bf16.gmra.mrb[0].mxu0 %v8042
        %v8110 = vpop.f32.mrb[0].mxu0
        %v8111 = vadd.f32 0.0, %v8110
        %v8112 = vpop.f32.mrb[0].mxu0
        %v8113 = vadd.f32 0.0, %v8112
        %v8114 = vpop.f32.mrb[0].mxu0
        %v8115 = vadd.f32 0.0, %v8114
        %v8116 = vpop.f32.mrb[0].mxu0
        %v8117 = vadd.f32 0.0, %v8116
        %8118 = vmatprep.mubr.bf16.mxu0 0
        %8119 = vmatmul.mubr.bf16.gmra.mrb[0].mxu0 %v8043
        %v8120 = vpop.f32.mrb[0].mxu0
        %v8121 = vadd.f32 0.0, %v8120
        %v8122 = vpop.f32.mrb[0].mxu0
        %v8123 = vadd.f32 0.0, %v8122
        %v8124 = vpop.f32.mrb[0].mxu0
        %v8125 = vadd.f32 0.0, %v8124
        %v8126 = vpop.f32.mrb[0].mxu0
        %v8127 = vadd.f32 0.0, %v8126
        %8128 = vmatprep.mubr.bf16.mxu0 0
        %8129 = vmatmul.mubr.bf16.gmra.mrb[0].mxu0 %v8044
        %v8130 = vpop.f32.mrb[0].mxu0
        %v8131 = vadd.f32 0.0, %v8130
        %v8132 = vpop.f32.mrb[0].mxu0
        %v8133 = vadd.f32 0.0, %v8132
        %v8134 = vpop.f32.mrb[0].mxu0
        %v8135 = vadd.f32 0.0, %v8134
        %v8136 = vpop.f32.mrb[0].mxu0
        %v8137 = vadd.f32 0.0, %v8136
        %8138 = vmatprep.mubr.bf16.mxu0 0
        %8139 = vmatmul.mubr.bf16.gmra.mrb[0].mxu0 %v8045
        %v8140 = vpop.f32.mrb[0].mxu0
        %v8141 = vadd.f32 0.0, %v8140
        %v8142 = vpop.f32.mrb[0].mxu0
        %v8143 = vadd.f32 0.0, %v8142
        %v8144 = vpop.f32.mrb[0].mxu0
        %v8145 = vadd.f32 0.0, %v8144
        %v8146 = vpop.f32.mrb[0].mxu0
        %v8147 = vadd.f32 0.0, %v8146
        %8148 = vmatprep.mubr.bf16.mxu0 0
        %8149 = vmatmul.mubr.bf16.gmra.mrb[0].mxu0 %v8046
        %v8150 = vpop.f32.mrb[0].mxu0
        %v8151 = vadd.f32 0.0, %v8150
        %v8152 = vpop.f32.mrb[0].mxu0
        %v8153 = vadd.f32 0.0, %v8152
        %v8154 = vpop.f32.mrb[0].mxu0
        %v8155 = vadd.f32 0.0, %v8154
        %v8156 = vpop.f32.mrb[0].mxu0
        %v8157 = vadd.f32 0.0, %v8156
        %8158 = vmatprep.mubr.bf16.mxu0 0
        %8159 = vmatmul.mubr.bf16.gmra.mrb[0].mxu0 %v8047
        %v8160 = vpop.f32.mrb[0].mxu0
        %v8161 = vadd.f32 0.0, %v8160
        %v8162 = vpop.f32.mrb[0].mxu0
        %v8163 = vadd.f32 0.0, %v8162
        %v8164 = vpop.f32.mrb[0].mxu0
        %v8165 = vadd.f32 0.0, %v8164
        %v8166 = vpop.f32.mrb[0].mxu0
        %v8167 = vadd.f32 0.0, %v8166
        %8168 = vdwg.mxu0
        %v8169 = vadd.f32 %v6647, %v8091
        %v8170 = vadd.f32 %v6648, %v8093
        %v8171 = vadd.f32 %v6649, %v8095
        %v8172 = vadd.f32 %v6650, %v8097
        %v8173 = vadd.f32 %v6651, %v8101
        %v8174 = vadd.f32 %v6652, %v8103
        %v8175 = vadd.f32 %v6653, %v8105
        %v8176 = vadd.f32 %v6654, %v8107
        %v8177 = vadd.f32 %v6655, %v8111
        %v8178 = vadd.f32 %v6656, %v8113
        %v8179 = vadd.f32 %v6657, %v8115
        %v8180 = vadd.f32 %v6658, %v8117
        %v8181 = vadd.f32 %v6659, %v8121
        %v8182 = vadd.f32 %v6660, %v8123
        %v8183 = vadd.f32 %v6661, %v8125
        %v8184 = vadd.f32 %v6662, %v8127
        %v8185 = vadd.f32 %v6663, %v8131
        %v8186 = vadd.f32 %v6664, %v8133
        %v8187 = vadd.f32 %v6665, %v8135
        %v8188 = vadd.f32 %v6666, %v8137
        %v8189 = vadd.f32 %v6667, %v8141
        %v8190 = vadd.f32 %v6668, %v8143
        %v8191 = vadd.f32 %v6669, %v8145
        %v8192 = vadd.f32 %v6670, %v8147
        %v8193 = vadd.f32 %v6671, %v8151
        %v8194 = vadd.f32 %v6672, %v8153
        %v8195 = vadd.f32 %v6673, %v8155
        %v8196 = vadd.f32 %v6674, %v8157
        %v8197 = vadd.f32 %v6675, %v8161
        %v8198 = vadd.f32 %v6676, %v8163
        %v8199 = vadd.f32 %v6677, %v8165
        %v8200 = vadd.f32 %v6678, %v8167
        %v8201 = vld [vmem:[%s17] sm:$0xff]
        %v8202 = vld [vmem:[%s17 + $0x8] sm:$0xff]
        %v8203 = vld [vmem:[%s17 + $0x10] sm:$0xff]
        %v8204 = vld [vmem:[%s17 + $0x18] sm:$0xff]
        %v8205 = vld [vmem:[%s17 + $0x20] sm:$0xff]
        %v8206 = vld [vmem:[%s17 + $0x28] sm:$0xff]
        %v8207 = vld [vmem:[%s17 + $0x30] sm:$0xff]
        %v8208 = vld [vmem:[%s17 + $0x38] sm:$0xff]
        %v8209 = vld [vmem:[%s17 + $0x40] sm:$0xff]
        %v8210 = vld [vmem:[%s17 + $0x48] sm:$0xff]
        %v8211 = vld [vmem:[%s17 + $0x50] sm:$0xff]
        %v8212 = vld [vmem:[%s17 + $0x58] sm:$0xff]
        %v8213 = vld [vmem:[%s17 + $0x60] sm:$0xff]
        %v8214 = vld [vmem:[%s17 + $0x68] sm:$0xff]
        %v8215 = vld [vmem:[%s17 + $0x70] sm:$0xff]
        %v8216 = vld [vmem:[%s17 + $0x78] sm:$0xff]
        %8218 = vset.pattern.permute.xlu0 0
        %8219 = vperm.xlu0 %8218, %v8201
        %v8220 = vpop.permute.xlu0 %8219
        %8223 = vset.pattern.permute.xlu0 0
        %8224 = vperm.xlu0 %8223, %v8202
        %v8225 = vpop.permute.xlu0 %8224
        %8228 = vset.pattern.permute.xlu0 0
        %8229 = vperm.xlu0 %8228, %v8203
        %v8230 = vpop.permute.xlu0 %8229
        %8233 = vset.pattern.permute.xlu0 0
        %8234 = vperm.xlu0 %8233, %v8204
        %v8235 = vpop.permute.xlu0 %8234
        %8238 = vset.pattern.permute.xlu0 0
        %8239 = vperm.xlu0 %8238, %v8205
        %v8240 = vpop.permute.xlu0 %8239
        %8243 = vset.pattern.permute.xlu0 0
        %8244 = vperm.xlu0 %8243, %v8206
        %v8245 = vpop.permute.xlu0 %8244
        %8248 = vset.pattern.permute.xlu0 0
        %8249 = vperm.xlu0 %8248, %v8207
        %v8250 = vpop.permute.xlu0 %8249
        %8253 = vset.pattern.permute.xlu0 0
        %8254 = vperm.xlu0 %8253, %v8208
        %v8255 = vpop.permute.xlu0 %8254
        %8258 = vset.pattern.permute.xlu0 0
        %8259 = vperm.xlu0 %8258, %v8209
        %v8260 = vpop.permute.xlu0 %8259
        %8263 = vset.pattern.permute.xlu0 0
        %8264 = vperm.xlu0 %8263, %v8210
        %v8265 = vpop.permute.xlu0 %8264
        %8268 = vset.pattern.permute.xlu0 0
        %8269 = vperm.xlu0 %8268, %v8211
        %v8270 = vpop.permute.xlu0 %8269
        %8273 = vset.pattern.permute.xlu0 0
        %8274 = vperm.xlu0 %8273, %v8212
        %v8275 = vpop.permute.xlu0 %8274
        %8278 = vset.pattern.permute.xlu0 0
        %8279 = vperm.xlu0 %8278, %v8213
        %v8280 = vpop.permute.xlu0 %8279
        %8283 = vset.pattern.permute.xlu0 0
        %8284 = vperm.xlu0 %8283, %v8214
        %v8285 = vpop.permute.xlu0 %8284
        %8288 = vset.pattern.permute.xlu0 0
        %8289 = vperm.xlu0 %8288, %v8215
        %v8290 = vpop.permute.xlu0 %8289
        %8293 = vset.pattern.permute.xlu0 0
        %8294 = vperm.xlu0 %8293, %v8216
        %v8295 = vpop.permute.xlu0 %8294
        %v8297 = vadd.f32 %v8169, %v8220
        %v8298 = vadd.f32 %v8170, %v8220
        %v8299 = vadd.f32 %v8171, %v8225
        %v8300 = vadd.f32 %v8172, %v8225
        %v8301 = vadd.f32 %v8173, %v8230
        %v8302 = vadd.f32 %v8174, %v8230
        %v8303 = vadd.f32 %v8175, %v8235
        %v8304 = vadd.f32 %v8176, %v8235
        %v8305 = vadd.f32 %v8177, %v8240
        %v8306 = vadd.f32 %v8178, %v8240
        %v8307 = vadd.f32 %v8179, %v8245
        %v8308 = vadd.f32 %v8180, %v8245
        %v8309 = vadd.f32 %v8181, %v8250
        %v8310 = vadd.f32 %v8182, %v8250
        %v8311 = vadd.f32 %v8183, %v8255
        %v8312 = vadd.f32 %v8184, %v8255
        %v8313 = vadd.f32 %v8185, %v8260
        %v8314 = vadd.f32 %v8186, %v8260
        %v8315 = vadd.f32 %v8187, %v8265
        %v8316 = vadd.f32 %v8188, %v8265
        %v8317 = vadd.f32 %v8189, %v8270
        %v8318 = vadd.f32 %v8190, %v8270
        %v8319 = vadd.f32 %v8191, %v8275
        %v8320 = vadd.f32 %v8192, %v8275
        %v8321 = vadd.f32 %v8193, %v8280
        %v8322 = vadd.f32 %v8194, %v8280
        %v8323 = vadd.f32 %v8195, %v8285
        %v8324 = vadd.f32 %v8196, %v8285
        %v8325 = vadd.f32 %v8197, %v8290
        %v8326 = vadd.f32 %v8198, %v8290
        %v8327 = vadd.f32 %v8199, %v8295
        %v8328 = vadd.f32 %v8200, %v8295
        %v8329 = vld [vmem:[%s18] sm:$0x3]
        %v8330 = vpack.c.bf16 %v8299, %v8297
        %v8331 = vpack.c.bf16 %v8300, %v8298
        %v8332 = vpack.c.bf16 %v8303, %v8301
        %v8333 = vpack.c.bf16 %v8304, %v8302
        %v8334 = vpack.c.bf16 %v8307, %v8305
        %v8335 = vpack.c.bf16 %v8308, %v8306
        %v8336 = vpack.c.bf16 %v8311, %v8309
        %v8337 = vpack.c.bf16 %v8312, %v8310
        %v8338 = vpack.c.bf16 %v8315, %v8313
        %v8339 = vpack.c.bf16 %v8316, %v8314
        %v8340 = vpack.c.bf16 %v8319, %v8317
        %v8341 = vpack.c.bf16 %v8320, %v8318
        %v8342 = vpack.c.bf16 %v8323, %v8321
        %v8343 = vpack.c.bf16 %v8324, %v8322
        %v8344 = vpack.c.bf16 %v8327, %v8325
        %v8345 = vpack.c.bf16 %v8328, %v8326
        %v8346 = vld [vmem:[%s19] sm:$0xf]
        %8348 = vset.pattern.permute.xlu0 0
        %8349 = vperm.xlu0 %8348, %v8346
        %v8350 = vpop.permute.xlu0 %8349
        %8352 = vmatprep.subr.bf16.mxu0 %v8331
        %8353 = vmatpush1.bf16.msra.mxu0 %v8330
        %8354 = vmatprep.subr.bf16.mxu0 %v8333
        %8355 = vmatpush1.bf16.msra.mxu0 %v8332
        %8356 = vmatprep.subr.bf16.mxu0 %v8335
        %8357 = vmatpush1.bf16.msra.mxu0 %v8334
        %8358 = vmatprep.subr.bf16.mxu0 %v8337
        %8359 = vmatpush1.bf16.msra.mxu0 %v8336
        %8360 = vmatprep.subr.bf16.mxu0 %v8339
        %8361 = vmatpush1.bf16.msra.mxu0 %v8338
        %8362 = vmatprep.subr.bf16.mxu0 %v8341
        %8363 = vmatpush1.bf16.msra.mxu0 %v8340
        %8364 = vmatprep.subr.bf16.mxu0 %v8343
        %8365 = vmatpush1.bf16.msra.mxu0 %v8342
        %8366 = vmatprep.subr.bf16.mxu0 %v8345
        %8367 = vmatpush1.bf16.msra.mxu0 %v8344
        %8368 = vmatprep.subr.bf16.mxu0 0
        %8369 = vmatpush1.bf16.msra.mxu0 0
        %8370 = vmatprep.subr.bf16.mxu0 0
        %8371 = vmatpush1.bf16.msra.mxu0 0
        %8372 = vmatprep.subr.bf16.mxu0 0
        %8373 = vmatpush1.bf16.msra.mxu0 0
        %8374 = vmatprep.subr.bf16.mxu0 0
        %8375 = vmatpush1.bf16.msra.mxu0 0
        %8376 = vmatprep.subr.bf16.mxu0 0
        %8377 = vmatpush1.bf16.msra.mxu0 0
        %8378 = vmatprep.subr.bf16.mxu0 0
        %8379 = vmatpush1.bf16.msra.mxu0 0
        %8380 = vmatprep.subr.bf16.mxu0 0
        %8381 = vmatpush1.bf16.msra.mxu0 0
        %8382 = vmatprep.subr.bf16.mxu0 0
        %8383 = vmatpush1.bf16.msra.mxu0 0
        %8384 = vmatprep.mubr.bf16.mxu0 0
        %8385 = vmatmul.mubr.bf16.gmra.mrb[0].mxu0 %v8329
        %v8386 = vpop.f32.mrb[0].mxu0
        %v8387 = vadd.f32 %v8350, %v8386
        %v8388 = vpop.f32.mrb[0].mxu0
        %v8389 = vadd.f32 %v8350, %v8388
        %v8390 = vpop.f32.mrb[0].mxu0
        %v8391 = vpop.f32.mrb[0].mxu0
        %8392 = vdwg.mxu0
        %v8395 = vcombine.low %v8387, %v8389
        %8397 = vst [vmem:[%s623] sm:$0xff] %v8395
        %s8398 = sand.u32 %s450, 1
        %s8399 = scalar_lea.sflag [#allocation6], %s8398
        %s8400 = sand.u32 %s450, 1
        %s8401 = smul.addr %s8400, 8
        %s8402 = scalar_lea.vmem [#allocation5], %s8401
        // Predicated region
        $region93: #{tpu_custom_call.1} parent=91 // pred_check
          %p8403 = pneg %p460
        $region94: #{tpu_custom_call.1} parent=91 // pred_check_branch
          %8405 = sbr.rel (%p8403) target = $region96
        $region95: #{tpu_custom_call.1} parent=91 // pred_region
          %s8407 = ssub.s32 128, 128
          %8408 = vsyncadd %s8399, %s8407
          %s8409 = smul.addr %s44, 2
          %s8410 = smul.addr %s8409, 64
          %s8411 = scalar_lea.hbm %s20, %s8410
          %s8413 = sshll.u32 %s8402, 4
          %s8414 = int_to_ptr.vmem [resolvable:$true] %s8413
          %8416 = dma.vmem_to_hbm [thread:$0]  %s8414, 128, %s8411, %s8399
        $region96: #{tpu_custom_call.1} parent=91 // pred_fallthru
          _
      $region92: #{tpu_custom_call.1} parent=5 // pred_fallthru
        _
      %p8417 = scmp.le.s32.totalorder 2, %s39
      // Predicated region
      $region97: #{tpu_custom_call.1} parent=5 // pred_check
        %p8418 = pneg %p8417
      $region98: #{tpu_custom_call.1} parent=5 // pred_check_branch
        %8420 = sbr.rel (%p8418) target = $region100
      $region99: #{tpu_custom_call.1} parent=5 // pred_region
        %s8421 = ssub.s32 %s39, 2
        // Predicated region
        $region101: #{tpu_custom_call.1} parent=99 // pred_check
          %p8422 = pneg %p466
        $region102: #{tpu_custom_call.1} parent=99 // pred_check_branch
          %8424 = sbr.rel (%p8422) target = $region104
        $region103: #{tpu_custom_call.1} parent=99 // pred_region
          %s8425 = sand.u32 %s451, 1
          %s8426 = scalar_lea.sflag [#allocation6], %s8425
          %s8427 = sand.u32 %s451, 1
          %s8428 = smul.addr %s8427, 8
          %s8429 = scalar_lea.vmem [#allocation5], %s8428
          %8430 = dma.done %s8426, 128
        $region104: #{tpu_custom_call.1} parent=99 // pred_fallthru
          _
      $region100: #{tpu_custom_call.1} parent=5 // pred_fallthru
        _
    $region6: #{tpu_custom_call.1} parent=1 // loop_footer
      %s43 = sadd.s32 1, %s39
    $region7: #{tpu_custom_call.1} parent=1 // loop_footer_branch
      %38 = sbr.rel target = $region3
    $region8: #{tpu_custom_call.1} parent=1 // loop_exit
      _
    %8431 = vsyncpa [#allocation6], 1
    %s8432 = scalar_lea.sflag [#allocation6], 1
    %8433 = vsyncpa %s8432, 1

</llo_original>
